<compile_context>
chip_gen: v6e
topology: v6e:2x2x1
jax: 0.10.0
libtpu: 0.0.40
codegen_flags: <defaults>
</compile_context>

<pallas_src>
import functools

import jax
import jax.numpy as jnp
from jax.experimental import pallas as pl
from jax.experimental.pallas import tpu as pltpu

EMBED_DIM = 256     # nn.Linear(2048, embed_dim=256)
FEAT_DIM = 2048     # Inception v3 feature width feeding self.fc
C_MID = 32
K_ALIGN = 32        # im2col K (3*3*3 = 27) zero-padded to 32 for aligned DMA rows


def _round_up(x, m):
    return ((x + m - 1) // m) * m


# ------------------------------ Pallas kernel ------------------------------

def _fused_encoder_kernel(p_ref, w1_ref, b1_ref, w2_ref, b2_ref,
                          wf_ref, bf_ref, o_ref, acc_ref, *, hw_valid):
    """conv1 -> relu -> conv2 -> relu -> global-avg-pool -> fc, fully fused.

    Grid = (B, n_hw_tiles): each step handles one spatial tile of one image.
    Both convolutions run back-to-back on the MXU (bf16 operands, f32 acc).
    The spatial sum is ALSO an MXU op: a (1, t_hw) row-validity vector (1 for
    real rows, 0 for the padded tail of the last tile) contracted against the
    (t_hw, 2048) activation — this replaces the old full-tile where-mask plus
    axis-0 VPU/XLU reduction with near-free MXU work.  On the last spatial tile
    we divide by HW and apply the fc Linear(2048, 256) for that image.
    """
    j = pl.program_id(1)
    n_j = pl.num_programs(1)
    t_hw = p_ref.shape[1]

    @pl.when(j == 0)
    def _init():
        acc_ref[...] = jnp.zeros_like(acc_ref)

    x = p_ref[0]                                               # (t_hw, K) bf16
    h1 = jnp.maximum(
        jnp.dot(x, w1_ref[...], preferred_element_type=jnp.float32)
        + b1_ref[...], 0.0)                                    # (t_hw, 32) f32

    # Row-validity vector, (1, t_hw) only — a handful of vregs, not a full-tile
    # mask.  All-ones for interior tiles, zeroed tail on the remainder tile.
    col = jax.lax.broadcasted_iota(jnp.int32, (1, t_hw), 1) + j * t_hw
    pool_vec = (col < hw_valid).astype(jnp.float32)            # (1, t_hw) f32

    # conv2 bias + ReLU + masked spatial pooling as ONE chain: the single pass
    # over the (t_hw, 2048) f32 activation feeds the MXU pooling matvec.
    acc_ref[...] += jnp.dot(
        pool_vec,
        jnp.maximum(
            jnp.dot(h1.astype(jnp.bfloat16), w2_ref[...],
                    preferred_element_type=jnp.float32) + b2_ref[...], 0.0),
        preferred_element_type=jnp.float32)                    # (1, 2048) f32

    @pl.when(j == n_j - 1)
    def _finalize():
        pooled = acc_ref[...] * (1.0 / hw_valid)               # (1, 2048) f32
        out = jnp.dot(pooled.astype(jnp.bfloat16), wf_ref[...],
                      preferred_element_type=jnp.float32) + bf_ref[...]
        o_ref[...] = out.reshape(o_ref.shape).astype(o_ref.dtype)


# -------------------------------- glue (JAX) --------------------------------

def _im2col_3x3_valid(x_nhwc):
    """3x3 'valid' patches; layout (kh, kw, Cin) flattened, Cin fastest."""
    B, H, W, C = x_nhwc.shape
    Ho, Wo = H - 2, W - 2
    cols = []
    for i in range(3):
        for j in range(3):
            cols.append(x_nhwc[:, i:i + Ho, j:j + Wo, :])
    patches = jnp.concatenate(cols, axis=-1)                   # (B, Ho, Wo, 9*C)
    return patches.reshape(B, Ho * Wo, 9 * C), (Ho, Wo)


def init_params(key):
    k1, k2, k3, k4, k5, k6 = jax.random.split(key, 6)
    return {
        # stand-in trunk (see TODO(synk) above)
        "conv1_w": jax.random.normal(k1, (3 * 3 * 3, C_MID), jnp.float32) * 0.1,
        "conv1_b": jax.random.normal(k2, (C_MID,), jnp.float32) * 0.01,
        "conv2_w": jax.random.normal(k3, (C_MID, FEAT_DIM), jnp.float32) * 0.05,
        "conv2_b": jax.random.normal(k4, (FEAT_DIM,), jnp.float32) * 0.01,
        # self.fc = nn.Linear(2048, embed_dim) — exact shapes
        "fc_w": jax.random.normal(k5, (FEAT_DIM, EMBED_DIM), jnp.float32) * 0.02,
        "fc_b": jax.random.normal(k6, (EMBED_DIM,), jnp.float32) * 0.01,
    }


def _tile_and_vmem_defaults():
    """Per-generation spatial-tile cap and scoped-VMEM limit.

    128-MiB-VMEM chips (v5e/v6e): 1024-row tiles, 64 MiB (fewer grid steps,
    amortizes the ~0.35us/step overhead).  64-MiB-VMEM chips (v7x) or unknown:
    512-row tiles, 48 MiB (headroom for the double-buffered patch stream).
    """
    try:
        vmem_cap = int(getattr(pltpu.get_tpu_info(), "vmem_capacity_bytes"))
    except Exception:
        vmem_cap = None
    if vmem_cap is not None and vmem_cap >= 96 * 1024 * 1024:
        return 1024, 64 * 1024 * 1024
    return 512, 48 * 1024 * 1024


def encoder_cnn_forward(params, x_nchw, *, t_hw=None):
    x = jnp.transpose(x_nchw, (0, 2, 3, 1)).astype(jnp.float32)  # NCHW -> NHWC
    patches, (Ho, Wo) = _im2col_3x3_valid(x)                     # (B, HW, 27)
    B, HW, K = patches.shape

    t_cap, vmem_limit = _tile_and_vmem_defaults()
    if t_hw is None:
        # Multiple of 16 (bf16 sublane packing); capped per generation so the
        # (t_hw, 2048) f32 activation working set fits the scoped VMEM budget.
        t_hw = min(t_cap, _round_up(HW, 16))
    hw_pad = _round_up(HW, t_hw)
    if hw_pad != HW:
        patches = jnp.pad(patches, ((0, 0), (0, hw_pad - HW), (0, 0)))
    n_hw = hw_pad // t_hw

    # Zero-pad im2col K (27 -> 32) so the only per-step HBM stream (patches)
    # has 32-aligned rows; matching zero rows are appended to conv1_w.
    k_pad = _round_up(K, K_ALIGN)
    if k_pad != K:
        patches = jnp.pad(patches, ((0, 0), (0, 0), (0, k_pad - K)))
    w1 = jnp.pad(params["conv1_w"],
                 ((0, k_pad - K), (0, 0))).astype(jnp.bfloat16)

    # bf16 MXU operands, f32 bias / accumulation (halves HBM + VMEM traffic for
    # activations and weights; v6e/v7x MXUs are bf16-native).
    p_bf = patches.astype(jnp.bfloat16)
    w2 = params["conv2_w"].astype(jnp.bfloat16)
    wf = params["fc_w"].astype(jnp.bfloat16)
    b1 = params["conv1_b"].reshape(1, C_MID).astype(jnp.float32)
    b2 = params["conv2_b"].reshape(1, FEAT_DIM).astype(jnp.float32)
    bf_ = params["fc_b"].reshape(1, EMBED_DIM).astype(jnp.float32)

    flops = (2 * B * hw_pad * (k_pad * C_MID + C_MID * FEAT_DIM + FEAT_DIM)
             + 2 * B * FEAT_DIM * EMBED_DIM)
    bytes_accessed = (p_bf.size * 2 + w1.size * 2 + w2.size * 2 + wf.size * 2
                      + (C_MID + FEAT_DIM + EMBED_DIM) * 4
                      + B * EMBED_DIM * 4)

    def _specs(single_buffer_weights):
        # Weights/biases have constant block indices; single-buffering them
        # frees the never-used second copies of wf (1 MiB) / w2 (128 KiB) —
        # exactly the VMEM headroom wanted on v7x.
        kw = ({"pipeline_mode": pl.Buffered(1)} if single_buffer_weights else {})
        return [
            pl.BlockSpec((1, t_hw, k_pad), lambda b, j: (b, j, 0)),          # patches
            pl.BlockSpec((k_pad, C_MID), lambda b, j: (0, 0), **kw),         # conv1 w
            pl.BlockSpec((1, C_MID), lambda b, j: (0, 0), **kw),             # conv1 b
            pl.BlockSpec((C_MID, FEAT_DIM), lambda b, j: (0, 0), **kw),      # conv2 w
            pl.BlockSpec((1, FEAT_DIM), lambda b, j: (0, 0), **kw),          # conv2 b
            pl.BlockSpec((FEAT_DIM, EMBED_DIM), lambda b, j: (0, 0), **kw),  # fc w
            pl.BlockSpec((1, EMBED_DIM), lambda b, j: (0, 0), **kw),         # fc b
        ]

    def _run(single_buffer_weights):
        return pl.pallas_call(
            functools.partial(_fused_encoder_kernel, hw_valid=HW),
            out_shape=jax.ShapeDtypeStruct((B, 1, EMBED_DIM), jnp.float32),
            grid=(B, n_hw),
            in_specs=_specs(single_buffer_weights),
            out_specs=pl.BlockSpec((1, 1, EMBED_DIM), lambda b, j: (b, 0, 0)),
            scratch_shapes=[pltpu.VMEM((1, FEAT_DIM), jnp.float32)],
            compiler_params=pltpu.CompilerParams(
                # B is "parallel": B >= 2 (even) keeps both v7x TensorCores busy.
                # TODO(synk): for B == 1 on v7x, split HW over a leading parallel
                # axis with per-half partial (1, 2048) sums + a tiny combine/fc
                # epilogue so the second TensorCore is not idle.
                dimension_semantics=("parallel", "arbitrary"),
                vmem_limit_bytes=vmem_limit),
            cost_estimate=pl.CostEstimate(flops=int(flops), transcendentals=0,
                                          bytes_accessed=int(bytes_accessed)),
        )(p_bf, w1, b1, w2, b2, wf, bf_)

    try:
        out = _run(single_buffer_weights=True)
    except Exception:
        # pipeline_mode=pl.Buffered(1) unsupported on this jax/Mosaic build;
        # fall back to default double-buffered weight operands (correct, just
        # slightly more VMEM).
        out = _run(single_buffer_weights=False)
    return out.reshape(B, EMBED_DIM)


def encoder_cnn_reference(params, x_nchw):
    """Pure-JAX reference with the same bf16-operand / f32-accumulate math."""
    x = jnp.transpose(x_nchw, (0, 2, 3, 1)).astype(jnp.float32)
    patches, _ = _im2col_3x3_valid(x)
    B, HW, K = patches.shape
    bf16 = jnp.bfloat16
    h1 = jnp.maximum(
        jnp.dot(patches.astype(bf16).reshape(B * HW, K),
                params["conv1_w"].astype(bf16),
                preferred_element_type=jnp.float32) + params["conv1_b"], 0.0)
    h2 = jnp.maximum(
        jnp.dot(h1.astype(bf16), params["conv2_w"].astype(bf16),
                preferred_element_type=jnp.float32) + params["conv2_b"], 0.0)
    pooled = h2.reshape(B, HW, FEAT_DIM).mean(axis=1)
    return (jnp.dot(pooled.astype(bf16), params["fc_w"].astype(bf16),
                    preferred_element_type=jnp.float32) + params["fc_b"])


if __name__ == "__main__":
    key = jax.random.PRNGKey(0)
    k_x, k_p = jax.random.split(key)
    x = jax.random.normal(k_x, (2, 3, 16, 16), jnp.float32)   # NCHW like PyTorch
    params = init_params(k_p)

    out = jax.block_until_ready(encoder_cnn_forward(params, x))
    ref = jax.block_until_ready(encoder_cnn_reference(params, x))

    assert out.shape == (2, EMBED_DIM), out.shape
    assert out.dtype == jnp.float32
    assert bool(jnp.all(jnp.isfinite(out)))
    assert bool(jnp.allclose(out, ref, atol=2e-3, rtol=2e-3)), "mismatch vs reference"
    print("KERNEL_OK")
</pallas_src>

<mosaic_0001>
module attributes {stable_mosaic.version = 11 : i64} {
  func.func @_fused_encoder_kernel(%arg0: i32, %arg1: i32, %arg2: memref<1x208x32xbf16, #tpu.memory_space<vmem>>, %arg3: memref<32x32xbf16, #tpu.memory_space<vmem>>, %arg4: memref<1x32xf32, #tpu.memory_space<vmem>>, %arg5: memref<32x2048xbf16, #tpu.memory_space<vmem>>, %arg6: memref<1x2048xf32, #tpu.memory_space<vmem>>, %arg7: memref<2048x256xbf16, #tpu.memory_space<vmem>>, %arg8: memref<1x256xf32, #tpu.memory_space<vmem>>, %arg9: memref<1x1x256xf32, #tpu.memory_space<vmem>>, %arg10: memref<1x2048xf32, #tpu.memory_space<vmem>>) attributes {dimension_semantics = [#tpu.dimension_semantics<parallel>, #tpu.dimension_semantics<arbitrary>], iteration_bounds = array<i64: 2, 1>, scalar_prefetch = 0 : i64, scratch_operands = 1 : i64, tpu.core_type = #tpu.core_type<tc>, window_params = [{transform_indices = @transform_0, window_bounds = array<i64: 1, 208, 32>}, {pipeline_mode = #tpu.pipeline_mode<synchronous>, transform_indices = @transform_1, window_bounds = array<i64: 32, 32>}, {pipeline_mode = #tpu.pipeline_mode<synchronous>, transform_indices = @transform_2, window_bounds = array<i64: 1, 32>}, {pipeline_mode = #tpu.pipeline_mode<synchronous>, transform_indices = @transform_3, window_bounds = array<i64: 32, 2048>}, {pipeline_mode = #tpu.pipeline_mode<synchronous>, transform_indices = @transform_4, window_bounds = array<i64: 1, 2048>}, {pipeline_mode = #tpu.pipeline_mode<synchronous>, transform_indices = @transform_5, window_bounds = array<i64: 2048, 256>}, {pipeline_mode = #tpu.pipeline_mode<synchronous>, transform_indices = @transform_6, window_bounds = array<i64: 1, 256>}, {transform_indices = @transform_7, window_bounds = array<i64: 1, 1, 256>}]} {
    %c0_i32 = arith.constant 0 : i32
    %0 = arith.cmpi eq, %arg1, %c0_i32 : i32
    %1 = arith.extui %0 : i1 to i32
    %c0_i32_0 = arith.constant 0 : i32
    %2 = arith.cmpi ne, %1, %c0_i32_0 : i32
    scf.if %2 {
      %cst_21 = arith.constant 0.000000e+00 : f32
      %35 = vector.broadcast %cst_21 : f32 to vector<1x2048xf32>
      %c0_22 = arith.constant 0 : index
      %c0_23 = arith.constant 0 : index
      %36 = vector.load %arg10[%c0_22, %c0_23] : memref<1x2048xf32, #tpu.memory_space<vmem>>, vector<1x2048xf32>
      tpu.vector_store %arg10[%c0_22, %c0_23], %35 {strides = array<i32>} : memref<1x2048xf32, #tpu.memory_space<vmem>>, vector<1x2048xf32>,
    } else {
    }
    %c0 = arith.constant 0 : index
    %c0_1 = arith.constant 0 : index
    %c0_2 = arith.constant 0 : index
    %3 = vector.load %arg2[%c0, %c0_1, %c0_2] : memref<1x208x32xbf16, #tpu.memory_space<vmem>>, vector<1x208x32xbf16>
    %4 = vector.shape_cast %3 : vector<1x208x32xbf16> to vector<208x32xbf16>
    %c0_3 = arith.constant 0 : index
    %c0_4 = arith.constant 0 : index
    %5 = vector.load %arg3[%c0_3, %c0_4] : memref<32x32xbf16, #tpu.memory_space<vmem>>, vector<32x32xbf16>
    %cst = arith.constant dense<0.000000e+00> : vector<208x32xf32>
    %6 = tpu.matmul %4, %5, %cst {dimension_numbers = #tpu.dot_dimension_numbers<[1], [0], [0], [1], [0, 0, 1, 1], [], []>} : vector<208x32xbf16>, vector<32x32xbf16>, vector<208x32xf32> -> vector<208x32xf32>
    %c0_5 = arith.constant 0 : index
    %c0_6 = arith.constant 0 : index
    %7 = vector.load %arg4[%c0_5, %c0_6] : memref<1x32xf32, #tpu.memory_space<vmem>>, vector<1x32xf32>
    %8 = vector.broadcast %7 : vector<1x32xf32> to vector<208x32xf32>
    %9 = arith.addf %6, %8 : vector<208x32xf32>
    %cst_7 = arith.constant 0.000000e+00 : f32
    %10 = vector.broadcast %cst_7 : f32 to vector<208x32xf32>
    %11 = arith.maximumf %9, %10 : vector<208x32xf32>
    %12 = tpu.iota {dimensions = array<i32: 1>} : vector<1x208xi32>
    %c208_i32 = arith.constant 208 : i32
    %13 = arith.muli %arg1, %c208_i32 : i32
    %14 = vector.broadcast %13 : i32 to vector<1x208xi32>
    %15 = arith.addi %12, %14 : vector<1x208xi32>
    %c196_i32 = arith.constant 196 : i32
    %16 = vector.broadcast %c196_i32 : i32 to vector<1x208xi32>
    %17 = arith.cmpi slt, %15, %16 : vector<1x208xi32>
    %18 = arith.extui %17 : vector<1x208xi1> to vector<1x208xi32>
    %19 = arith.sitofp %18 : vector<1x208xi32> to vector<1x208xf32>
    %c0_8 = arith.constant 0 : index
    %c0_9 = arith.constant 0 : index
    %20 = vector.load %arg10[%c0_8, %c0_9] : memref<1x2048xf32, #tpu.memory_space<vmem>>, vector<1x2048xf32>
    %21 = arith.truncf %11 : vector<208x32xf32> to vector<208x32xbf16>
    %c0_10 = arith.constant 0 : index
    %c0_11 = arith.constant 0 : index
    %22 = vector.load %arg5[%c0_10, %c0_11] : memref<32x2048xbf16, #tpu.memory_space<vmem>>, vector<32x2048xbf16>
    %cst_12 = arith.constant dense<0.000000e+00> : vector<208x2048xf32>
    %23 = tpu.matmul %21, %22, %cst_12 {dimension_numbers = #tpu.dot_dimension_numbers<[1], [0], [0], [1], [0, 0, 1, 1], [], []>} : vector<208x32xbf16>, vector<32x2048xbf16>, vector<208x2048xf32> -> vector<208x2048xf32>
    %c0_13 = arith.constant 0 : index
    %c0_14 = arith.constant 0 : index
    %24 = vector.load %arg6[%c0_13, %c0_14] : memref<1x2048xf32, #tpu.memory_space<vmem>>, vector<1x2048xf32>
    %25 = vector.broadcast %24 : vector<1x2048xf32> to vector<208x2048xf32>
    %26 = arith.addf %23, %25 : vector<208x2048xf32>
    %cst_15 = arith.constant 0.000000e+00 : f32
    %27 = vector.broadcast %cst_15 : f32 to vector<208x2048xf32>
    %28 = arith.maximumf %26, %27 : vector<208x2048xf32>
    %cst_16 = arith.constant dense<0.000000e+00> : vector<1x2048xf32>
    %29 = tpu.matmul %19, %28, %cst_16 {dimension_numbers = #tpu.dot_dimension_numbers<[1], [0], [0], [1], [0, 0, 1, 1], [], []>} : vector<1x208xf32>, vector<208x2048xf32>, vector<1x2048xf32> -> vector<1x2048xf32>
    %30 = arith.addf %20, %29 : vector<1x2048xf32>
    %c0_17 = arith.constant 0 : index
    %c0_18 = arith.constant 0 : index
    %31 = vector.load %arg10[%c0_17, %c0_18] : memref<1x2048xf32, #tpu.memory_space<vmem>>, vector<1x2048xf32>
    tpu.vector_store %arg10[%c0_17, %c0_18], %30 {strides = array<i32>} : memref<1x2048xf32, #tpu.memory_space<vmem>>, vector<1x2048xf32>,
    %c0_i32_19 = arith.constant 0 : i32
    %32 = arith.cmpi eq, %arg1, %c0_i32_19 : i32
    %33 = arith.extui %32 : i1 to i32
    %c0_i32_20 = arith.constant 0 : i32
    %34 = arith.cmpi ne, %33, %c0_i32_20 : i32
    scf.if %34 {
      %c0_21 = arith.constant 0 : index
      %c0_22 = arith.constant 0 : index
      %35 = vector.load %arg10[%c0_21, %c0_22] : memref<1x2048xf32, #tpu.memory_space<vmem>>, vector<1x2048xf32>
      %cst_23 = arith.constant 0.00510204071 : f32
      %36 = vector.broadcast %cst_23 : f32 to vector<1x2048xf32>
      %37 = arith.mulf %35, %36 : vector<1x2048xf32>
      %38 = arith.truncf %37 : vector<1x2048xf32> to vector<1x2048xbf16>
      %c0_24 = arith.constant 0 : index
      %c0_25 = arith.constant 0 : index
      %39 = vector.load %arg7[%c0_24, %c0_25] : memref<2048x256xbf16, #tpu.memory_space<vmem>>, vector<2048x256xbf16>
      %cst_26 = arith.constant dense<0.000000e+00> : vector<1x256xf32>
      %40 = tpu.matmul %38, %39, %cst_26 {dimension_numbers = #tpu.dot_dimension_numbers<[1], [0], [0], [1], [0, 0, 1, 1], [], []>} : vector<1x2048xbf16>, vector<2048x256xbf16>, vector<1x256xf32> -> vector<1x256xf32>
      %c0_27 = arith.constant 0 : index
      %c0_28 = arith.constant 0 : index
      %41 = vector.load %arg8[%c0_27, %c0_28] : memref<1x256xf32, #tpu.memory_space<vmem>>, vector<1x256xf32>
      %42 = arith.addf %40, %41 : vector<1x256xf32>
      %43 = vector.shape_cast %42 : vector<1x256xf32> to vector<1x1x256xf32>
      %c0_29 = arith.constant 0 : index
      %c0_30 = arith.constant 0 : index
      %c0_31 = arith.constant 0 : index
      %44 = vector.load %arg9[%c0_29, %c0_30, %c0_31] : memref<1x1x256xf32, #tpu.memory_space<vmem>>, vector<1x1x256xf32>
      tpu.vector_store %arg9[%c0_29, %c0_30, %c0_31], %43 {strides = array<i32>} : memref<1x1x256xf32, #tpu.memory_space<vmem>>, vector<1x1x256xf32>,
    } else {
    }
    return
  }
  func.func @transform_0(%arg0: i32, %arg1: i32) -> (i32, i32, i32) {
    %c0_i32 = arith.constant 0 : i32
    %c0_i32_0 = arith.constant 0 : i32
    return %arg0, %arg1, %c0_i32 : i32, i32, i32
  }
  func.func @transform_1(%arg0: i32, %arg1: i32) -> (i32, i32) {
    %c0_i32 = arith.constant 0 : i32
    %c0_i32_0 = arith.constant 0 : i32
    %c0_i32_1 = arith.constant 0 : i32
    return %c0_i32, %c0_i32_0 : i32, i32
  }
  func.func @transform_2(%arg0: i32, %arg1: i32) -> (i32, i32) {
    %c0_i32 = arith.constant 0 : i32
    %c0_i32_0 = arith.constant 0 : i32
    %c0_i32_1 = arith.constant 0 : i32
    return %c0_i32, %c0_i32_0 : i32, i32
  }
  func.func @transform_3(%arg0: i32, %arg1: i32) -> (i32, i32) {
    %c0_i32 = arith.constant 0 : i32
    %c0_i32_0 = arith.constant 0 : i32
    %c0_i32_1 = arith.constant 0 : i32
    return %c0_i32, %c0_i32_0 : i32, i32
  }
  func.func @transform_4(%arg0: i32, %arg1: i32) -> (i32, i32) {
    %c0_i32 = arith.constant 0 : i32
    %c0_i32_0 = arith.constant 0 : i32
    %c0_i32_1 = arith.constant 0 : i32
    return %c0_i32, %c0_i32_0 : i32, i32
  }
  func.func @transform_5(%arg0: i32, %arg1: i32) -> (i32, i32) {
    %c0_i32 = arith.constant 0 : i32
    %c0_i32_0 = arith.constant 0 : i32
    %c0_i32_1 = arith.constant 0 : i32
    return %c0_i32, %c0_i32_0 : i32, i32
  }
  func.func @transform_6(%arg0: i32, %arg1: i32) -> (i32, i32) {
    %c0_i32 = arith.constant 0 : i32
    %c0_i32_0 = arith.constant 0 : i32
    %c0_i32_1 = arith.constant 0 : i32
    return %c0_i32, %c0_i32_0 : i32, i32
  }
  func.func @transform_7(%arg0: i32, %arg1: i32) -> (i32, i32, i32) {
    %c0_i32 = arith.constant 0 : i32
    %c0_i32_0 = arith.constant 0 : i32
    %c0_i32_1 = arith.constant 0 : i32
    return %arg0, %c0_i32, %c0_i32_0 : i32, i32, i32
  }
}

module attributes {stable_mosaic.version = 11 : i64} {
  func.func @_fused_encoder_kernel(%arg0: i32, %arg1: i32, %arg2: memref<1x208x32xbf16, #tpu.memory_space<vmem>>, %arg3: memref<32x32xbf16, #tpu.memory_space<vmem>>, %arg4: memref<1x32xf32, #tpu.memory_space<vmem>>, %arg5: memref<32x2048xbf16, #tpu.memory_space<vmem>>, %arg6: memref<1x2048xf32, #tpu.memory_space<vmem>>, %arg7: memref<2048x256xbf16, #tpu.memory_space<vmem>>, %arg8: memref<1x256xf32, #tpu.memory_space<vmem>>, %arg9: memref<1x1x256xf32, #tpu.memory_space<vmem>>, %arg10: memref<1x2048xf32, #tpu.memory_space<vmem>>) attributes {dimension_semantics = [#tpu.dimension_semantics<parallel>, #tpu.dimension_semantics<arbitrary>], iteration_bounds = array<i64: 2, 1>, scalar_prefetch = 0 : i64, scratch_operands = 1 : i64, tpu.core_type = #tpu.core_type<tc>, window_params = [{transform_indices = @transform_0, window_bounds = array<i64: 1, 208, 32>}, {pipeline_mode = #tpu.pipeline_mode<synchronous>, transform_indices = @transform_1, window_bounds = array<i64: 32, 32>}, {pipeline_mode = #tpu.pipeline_mode<synchronous>, transform_indices = @transform_2, window_bounds = array<i64: 1, 32>}, {pipeline_mode = #tpu.pipeline_mode<synchronous>, transform_indices = @transform_3, window_bounds = array<i64: 32, 2048>}, {pipeline_mode = #tpu.pipeline_mode<synchronous>, transform_indices = @transform_4, window_bounds = array<i64: 1, 2048>}, {pipeline_mode = #tpu.pipeline_mode<synchronous>, transform_indices = @transform_5, window_bounds = array<i64: 2048, 256>}, {pipeline_mode = #tpu.pipeline_mode<synchronous>, transform_indices = @transform_6, window_bounds = array<i64: 1, 256>}, {transform_indices = @transform_7, window_bounds = array<i64: 1, 1, 256>}]} {
    %c0_i32 = arith.constant 0 : i32
    %0 = arith.cmpi eq, %arg1, %c0_i32 : i32
    %1 = arith.extui %0 : i1 to i32
    %c0_i32_0 = arith.constant 0 : i32
    %2 = arith.cmpi ne, %1, %c0_i32_0 : i32
    scf.if %2 {
      %cst_21 = arith.constant 0.000000e+00 : f32
      %35 = vector.broadcast %cst_21 : f32 to vector<1x2048xf32>
      %c0_22 = arith.constant 0 : index
      %c0_23 = arith.constant 0 : index
      %36 = vector.load %arg10[%c0_22, %c0_23] : memref<1x2048xf32, #tpu.memory_space<vmem>>, vector<1x2048xf32>
      tpu.vector_store %arg10[%c0_22, %c0_23], %35 {strides = array<i32>} : memref<1x2048xf32, #tpu.memory_space<vmem>>, vector<1x2048xf32>,
    } else {
    }
    %c0 = arith.constant 0 : index
    %c0_1 = arith.constant 0 : index
    %c0_2 = arith.constant 0 : index
    %3 = vector.load %arg2[%c0, %c0_1, %c0_2] : memref<1x208x32xbf16, #tpu.memory_space<vmem>>, vector<1x208x32xbf16>
    %4 = vector.shape_cast %3 : vector<1x208x32xbf16> to vector<208x32xbf16>
    %c0_3 = arith.constant 0 : index
    %c0_4 = arith.constant 0 : index
    %5 = vector.load %arg3[%c0_3, %c0_4] : memref<32x32xbf16, #tpu.memory_space<vmem>>, vector<32x32xbf16>
    %cst = arith.constant dense<0.000000e+00> : vector<208x32xf32>
    %6 = tpu.matmul %4, %5, %cst {dimension_numbers = #tpu.dot_dimension_numbers<[1], [0], [0], [1], [0, 0, 1, 1], [], []>} : vector<208x32xbf16>, vector<32x32xbf16>, vector<208x32xf32> -> vector<208x32xf32>
    %c0_5 = arith.constant 0 : index
    %c0_6 = arith.constant 0 : index
    %7 = vector.load %arg4[%c0_5, %c0_6] : memref<1x32xf32, #tpu.memory_space<vmem>>, vector<1x32xf32>
    %8 = vector.broadcast %7 : vector<1x32xf32> to vector<208x32xf32>
    %9 = arith.addf %6, %8 : vector<208x32xf32>
    %cst_7 = arith.constant 0.000000e+00 : f32
    %10 = vector.broadcast %cst_7 : f32 to vector<208x32xf32>
    %11 = arith.maximumf %9, %10 : vector<208x32xf32>
    %12 = tpu.iota {dimensions = array<i32: 1>} : vector<1x208xi32>
    %c208_i32 = arith.constant 208 : i32
    %13 = arith.muli %arg1, %c208_i32 : i32
    %14 = vector.broadcast %13 : i32 to vector<1x208xi32>
    %15 = arith.addi %12, %14 : vector<1x208xi32>
    %c196_i32 = arith.constant 196 : i32
    %16 = vector.broadcast %c196_i32 : i32 to vector<1x208xi32>
    %17 = arith.cmpi slt, %15, %16 : vector<1x208xi32>
    %18 = arith.extui %17 : vector<1x208xi1> to vector<1x208xi32>
    %19 = arith.sitofp %18 : vector<1x208xi32> to vector<1x208xf32>
    %c0_8 = arith.constant 0 : index
    %c0_9 = arith.constant 0 : index
    %20 = vector.load %arg10[%c0_8, %c0_9] : memref<1x2048xf32, #tpu.memory_space<vmem>>, vector<1x2048xf32>
    %21 = arith.truncf %11 : vector<208x32xf32> to vector<208x32xbf16>
    %c0_10 = arith.constant 0 : index
    %c0_11 = arith.constant 0 : index
    %22 = vector.load %arg5[%c0_10, %c0_11] : memref<32x2048xbf16, #tpu.memory_space<vmem>>, vector<32x2048xbf16>
    %cst_12 = arith.constant dense<0.000000e+00> : vector<208x2048xf32>
    %23 = tpu.matmul %21, %22, %cst_12 {dimension_numbers = #tpu.dot_dimension_numbers<[1], [0], [0], [1], [0, 0, 1, 1], [], []>} : vector<208x32xbf16>, vector<32x2048xbf16>, vector<208x2048xf32> -> vector<208x2048xf32>
    %c0_13 = arith.constant 0 : index
    %c0_14 = arith.constant 0 : index
    %24 = vector.load %arg6[%c0_13, %c0_14] : memref<1x2048xf32, #tpu.memory_space<vmem>>, vector<1x2048xf32>
    %25 = vector.broadcast %24 : vector<1x2048xf32> to vector<208x2048xf32>
    %26 = arith.addf %23, %25 : vector<208x2048xf32>
    %cst_15 = arith.constant 0.000000e+00 : f32
    %27 = vector.broadcast %cst_15 : f32 to vector<208x2048xf32>
    %28 = arith.maximumf %26, %27 : vector<208x2048xf32>
    %cst_16 = arith.constant dense<0.000000e+00> : vector<1x2048xf32>
    %29 = tpu.matmul %19, %28, %cst_16 {dimension_numbers = #tpu.dot_dimension_numbers<[1], [0], [0], [1], [0, 0, 1, 1], [], []>} : vector<1x208xf32>, vector<208x2048xf32>, vector<1x2048xf32> -> vector<1x2048xf32>
    %30 = arith.addf %20, %29 : vector<1x2048xf32>
    %c0_17 = arith.constant 0 : index
    %c0_18 = arith.constant 0 : index
    %31 = vector.load %arg10[%c0_17, %c0_18] : memref<1x2048xf32, #tpu.memory_space<vmem>>, vector<1x2048xf32>
    tpu.vector_store %arg10[%c0_17, %c0_18], %30 {strides = array<i32>} : memref<1x2048xf32, #tpu.memory_space<vmem>>, vector<1x2048xf32>,
    %c0_i32_19 = arith.constant 0 : i32
    %32 = arith.cmpi eq, %arg1, %c0_i32_19 : i32
    %33 = arith.extui %32 : i1 to i32
    %c0_i32_20 = arith.constant 0 : i32
    %34 = arith.cmpi ne, %33, %c0_i32_20 : i32
    scf.if %34 {
      %c0_21 = arith.constant 0 : index
      %c0_22 = arith.constant 0 : index
      %35 = vector.load %arg10[%c0_21, %c0_22] : memref<1x2048xf32, #tpu.memory_space<vmem>>, vector<1x2048xf32>
      %cst_23 = arith.constant 0.00510204071 : f32
      %36 = vector.broadcast %cst_23 : f32 to vector<1x2048xf32>
      %37 = arith.mulf %35, %36 : vector<1x2048xf32>
      %38 = arith.truncf %37 : vector<1x2048xf32> to vector<1x2048xbf16>
      %c0_24 = arith.constant 0 : index
      %c0_25 = arith.constant 0 : index
      %39 = vector.load %arg7[%c0_24, %c0_25] : memref<2048x256xbf16, #tpu.memory_space<vmem>>, vector<2048x256xbf16>
      %cst_26 = arith.constant dense<0.000000e+00> : vector<1x256xf32>
      %40 = tpu.matmul %38, %39, %cst_26 {dimension_numbers = #tpu.dot_dimension_numbers<[1], [0], [0], [1], [0, 0, 1, 1], [], []>} : vector<1x2048xbf16>, vector<2048x256xbf16>, vector<1x256xf32> -> vector<1x256xf32>
      %c0_27 = arith.constant 0 : index
      %c0_28 = arith.constant 0 : index
      %41 = vector.load %arg8[%c0_27, %c0_28] : memref<1x256xf32, #tpu.memory_space<vmem>>, vector<1x256xf32>
      %42 = arith.addf %40, %41 : vector<1x256xf32>
      %43 = vector.shape_cast %42 : vector<1x256xf32> to vector<1x1x256xf32>
      %c0_29 = arith.constant 0 : index
      %c0_30 = arith.constant 0 : index
      %c0_31 = arith.constant 0 : index
      %44 = vector.load %arg9[%c0_29, %c0_30, %c0_31] : memref<1x1x256xf32, #tpu.memory_space<vmem>>, vector<1x1x256xf32>
      tpu.vector_store %arg9[%c0_29, %c0_30, %c0_31], %43 {strides = array<i32>} : memref<1x1x256xf32, #tpu.memory_space<vmem>>, vector<1x1x256xf32>,
    } else {
    }
    return
  }
  func.func @transform_0(%arg0: i32, %arg1: i32) -> (i32, i32, i32) {
    %c0_i32 = arith.constant 0 : i32
    %c0_i32_0 = arith.constant 0 : i32
    return %arg0, %arg1, %c0_i32 : i32, i32, i32
  }
  func.func @transform_1(%arg0: i32, %arg1: i32) -> (i32, i32) {
    %c0_i32 = arith.constant 0 : i32
    %c0_i32_0 = arith.constant 0 : i32
    %c0_i32_1 = arith.constant 0 : i32
    return %c0_i32, %c0_i32_0 : i32, i32
  }
  func.func @transform_2(%arg0: i32, %arg1: i32) -> (i32, i32) {
    %c0_i32 = arith.constant 0 : i32
    %c0_i32_0 = arith.constant 0 : i32
    %c0_i32_1 = arith.constant 0 : i32
    return %c0_i32, %c0_i32_0 : i32, i32
  }
  func.func @transform_3(%arg0: i32, %arg1: i32) -> (i32, i32) {
    %c0_i32 = arith.constant 0 : i32
    %c0_i32_0 = arith.constant 0 : i32
    %c0_i32_1 = arith.constant 0 : i32
    return %c0_i32, %c0_i32_0 : i32, i32
  }
  func.func @transform_4(%arg0: i32, %arg1: i32) -> (i32, i32) {
    %c0_i32 = arith.constant 0 : i32
    %c0_i32_0 = arith.constant 0 : i32
    %c0_i32_1 = arith.constant 0 : i32
    return %c0_i32, %c0_i32_0 : i32, i32
  }
  func.func @transform_5(%arg0: i32, %arg1: i32) -> (i32, i32) {
    %c0_i32 = arith.constant 0 : i32
    %c0_i32_0 = arith.constant 0 : i32
    %c0_i32_1 = arith.constant 0 : i32
    return %c0_i32, %c0_i32_0 : i32, i32
  }
  func.func @transform_6(%arg0: i32, %arg1: i32) -> (i32, i32) {
    %c0_i32 = arith.constant 0 : i32
    %c0_i32_0 = arith.constant 0 : i32
    %c0_i32_1 = arith.constant 0 : i32
    return %c0_i32, %c0_i32_0 : i32, i32
  }
  func.func @transform_7(%arg0: i32, %arg1: i32) -> (i32, i32, i32) {
    %c0_i32 = arith.constant 0 : i32
    %c0_i32_0 = arith.constant 0 : i32
    %c0_i32_1 = arith.constant 0 : i32
    return %arg0, %c0_i32, %c0_i32_0 : i32, i32, i32
  }
}

</mosaic_0001>

<llo_original>
// kernel: tpu_custom_call.1
$region0: #{tpu_custom_call.1}
  #allocation0 [shape = 'u32[]', space=smem, size = 0x4, offset = 0x4, fixed_abs, tag = 'smem constant byte address 0x4 - core index']
  #allocation1 [shape = 'u32[144,128]{1,0:T(1,128)}', space=vmem, size = 0x12000, scoped, tag = 'internal scratch']
  #allocation2 [shape = 'f32[1,2048]{1,0:T(1,128)}', space=vmem, size = 0x2000, scoped, tag = 'scratch operand']
  %s0 = inlined_call_operand.vmem [shape: bf16[2,208,32], index: 0, kind: input, shape index: {}]
  %s1 = inlined_call_operand.vmem [shape: bf16[32,32], index: 1, kind: input, shape index: {}]
  %s2 = inlined_call_operand.vmem [shape: f32[1,32], index: 2, kind: input, shape index: {}]
  %s3 = inlined_call_operand.vmem [shape: bf16[32,2048], index: 3, kind: input, shape index: {}]
  %s4 = inlined_call_operand.hbm [shape: f32[1,2048], index: 4, kind: input, shape index: {}]
  %s5 = inlined_call_operand.hbm [shape: bf16[2048,256], index: 5, kind: input, shape index: {}]
  %s6 = inlined_call_operand.vmem [shape: f32[1,256], index: 6, kind: input, shape index: {}]
  %s7 = inlined_call_operand.hbm [shape: f32[2,1,256], index: 7, kind: output, shape index: {}]
  %s8 = sld [smem:[#allocation0]]
  $region77: #{tpu_custom_call.1} parent=0
    _
  %s10 = ssub.s32 1, %s8
  %s11 = scalar_select 0, %s10, %s8
  $region1: #{tpu_custom_call.1} parent=0
    #allocation3 [shape = 'u8[8192]{0}', space=vmem, size = 0x2000, scoped, tag = 'input window, operand 4, single buffered']
    #allocation4 [shape = 's32[2]{0}', space=sflag, size = 0x8, scoped, tag = 'scoped memory for tpu_custom_call.1']
    #allocation5 [shape = 's32[2]{0}', space=sflag, size = 0x8, scoped, tag = 'scoped memory for tpu_custom_call.1']
    #allocation6 [shape = 'u8[1048576]{0}', space=vmem, size = 0x100000, scoped, tag = 'input window, operand 5, single buffered']
    #allocation7 [shape = 's32[1]{0}', space=sflag, size = 0x4, scoped, tag = 'scoped memory for tpu_custom_call.1']
    #allocation8 [shape = 'u8[2048]{0}', space=vmem, size = 0x800, scoped, tag = 'output window, operand 0']
    %12 = vsyncpa [#allocation4], 0
    %13 = vsyncpa [#allocation7], 0
    %14 = vsyncpa [#allocation5], 0
    %s15 = scalar_lea.sflag [#allocation5], 1
    %16 = vsyncpa %s15, 0
    loop: start=0, step=1, limit=4
    $region2: #{tpu_custom_call.1} parent=1 // loop_pre_header
      _
    $region3: #{tpu_custom_call.1} parent=1 // loop_header
      %s18 = sphi 0, %s22
      %p19 = scmp.ge.s32.totalorder %s18, 4
      %s25 = sphi 0, %s37
      %s26 = sphi 0, %s33
      %s27 = sphi 0, %s25
      %s28 = sphi 0, %s26
      %s29 = sphi 0, %s27
      %s30 = sphi 0, %s28
      %s42 = sphi 0, %s44
      %s45 = sphi 0, %s42
      %s46 = sphi 0, %s45
      %s62 = sphi 0, %s46
      %s66 = sphi 0, %s66
      %s68 = sphi 0, %s66
      %s69 = sphi 0, %s68
      %s83 = sphi 0, %s69
      %s87 = sphi 0, %s87
      %s89 = sphi 0, %s87
      %s90 = sphi 0, %s89
      %s104 = sphi 0, %s90
      %s108 = sphi 0, %s108
      %s110 = sphi 0, %s108
      %s111 = sphi 0, %s110
      %s125 = sphi 0, %s111
      %s129 = sphi 0, %s129
      %s131 = sphi 0, %s129
      %s132 = sphi 0, %s131
      %s146 = sphi 0, %s132
      %s150 = sphi 0, %s150
      %s152 = sphi 0, %s150
      %s153 = sphi 0, %s152
      %s167 = sphi 0, %s153
      %s171 = sphi 0, %s171
      %s173 = sphi 0, %s171
      %s174 = sphi 0, %s173
      %s188 = sphi 0, %s174
      %s194 = sphi 0, %s196
      %s197 = sphi 0, %s194
      %s198 = sphi 0, %s197
      %s214 = sphi 0, %s198
    $region4: #{tpu_custom_call.1} parent=1 // loop_header_branch
      %21 = sbr.rel (%p19) target = $region8
    $region5: #{tpu_custom_call.1} parent=1 // loop_body
      %s23 = ssub.s32 %s18, 1
      %s24 = ssub.s32 %s18, 2
      %s31 = sadd.s32 1, %s26
      %p32 = scmp.ge.s32.totalorder %s31, 1
      %s33 = scalar_select %p32, 0, %s31
      %s34 = sadd.s32 1, %s25
      %s35 = scalar_select %p32, %s34, %s25
      %p36 = scmp.ge.s32.totalorder %s35, 2
      %s37 = scalar_select %p36, 0, %s35
      %s38 = ssub.s32 %s25, %s37
      %s39 = ssub.s32 %s26, %s33
      %s40 = sor.u32 %s38, %s39
      %p41 = scmp.eq.s32.totalorder %s40, 0
      %s43 = sadd.s32 %s42, 1
      %s44 = scalar_select %p41, %s42, %s43
      %p47 = pneg %p41
      %p48 = scmp.eq.s32.totalorder %s18, 1
      %p49 = por %p47, %p48
      %p50 = scmp.ne.s32.totalorder %s42, %s45
      %p51 = scmp.eq.s32.totalorder %s18, 0
      %p52 = por %p50, %p51
      %p53 = scmp.ne.s32.totalorder %s42, %s45
      %p54 = scmp.eq.s32.totalorder %s23, 1
      %p55 = por %p53, %p54
      %p56 = scmp.ne.s32.totalorder %s45, %s46
      %p57 = scmp.eq.s32.totalorder %s23, 0
      %p58 = por %p56, %p57
      %p59 = scmp.ne.s32.totalorder %s45, %s46
      %p60 = scmp.eq.s32.totalorder %s24, 1
      %p61 = por %p59, %p60
      %p63 = scmp.ne.s32.totalorder %s46, %s62
      %p64 = scmp.eq.s32.totalorder %s24, 0
      %p65 = por %p63, %p64
      %s67 = sadd.s32 %s66, 1
      %p70 = scmp.eq.s32.totalorder %s18, 1
      %p71 = scmp.ne.s32.totalorder %s66, %s68
      %p72 = scmp.eq.s32.totalorder %s18, 0
      %p73 = por %p71, %p72
      %p74 = scmp.ne.s32.totalorder %s66, %s68
      %p75 = scmp.eq.s32.totalorder %s23, 1
      %p76 = por %p74, %p75
      %p77 = scmp.ne.s32.totalorder %s68, %s69
      %p78 = scmp.eq.s32.totalorder %s23, 0
      %p79 = por %p77, %p78
      %p80 = scmp.ne.s32.totalorder %s68, %s69
      %p81 = scmp.eq.s32.totalorder %s24, 1
      %p82 = por %p80, %p81
      %p84 = scmp.ne.s32.totalorder %s69, %s83
      %p85 = scmp.eq.s32.totalorder %s24, 0
      %p86 = por %p84, %p85
      %s88 = sadd.s32 %s87, 1
      %p91 = scmp.eq.s32.totalorder %s18, 1
      %p92 = scmp.ne.s32.totalorder %s87, %s89
      %p93 = scmp.eq.s32.totalorder %s18, 0
      %p94 = por %p92, %p93
      %p95 = scmp.ne.s32.totalorder %s87, %s89
      %p96 = scmp.eq.s32.totalorder %s23, 1
      %p97 = por %p95, %p96
      %p98 = scmp.ne.s32.totalorder %s89, %s90
      %p99 = scmp.eq.s32.totalorder %s23, 0
      %p100 = por %p98, %p99
      %p101 = scmp.ne.s32.totalorder %s89, %s90
      %p102 = scmp.eq.s32.totalorder %s24, 1
      %p103 = por %p101, %p102
      %p105 = scmp.ne.s32.totalorder %s90, %s104
      %p106 = scmp.eq.s32.totalorder %s24, 0
      %p107 = por %p105, %p106
      %s109 = sadd.s32 %s108, 1
      %p112 = scmp.eq.s32.totalorder %s18, 1
      %p113 = scmp.ne.s32.totalorder %s108, %s110
      %p114 = scmp.eq.s32.totalorder %s18, 0
      %p115 = por %p113, %p114
      %p116 = scmp.ne.s32.totalorder %s108, %s110
      %p117 = scmp.eq.s32.totalorder %s23, 1
      %p118 = por %p116, %p117
      %p119 = scmp.ne.s32.totalorder %s110, %s111
      %p120 = scmp.eq.s32.totalorder %s23, 0
      %p121 = por %p119, %p120
      %p122 = scmp.ne.s32.totalorder %s110, %s111
      %p123 = scmp.eq.s32.totalorder %s24, 1
      %p124 = por %p122, %p123
      %p126 = scmp.ne.s32.totalorder %s111, %s125
      %p127 = scmp.eq.s32.totalorder %s24, 0
      %p128 = por %p126, %p127
      %s130 = sadd.s32 %s129, 1
      %p133 = scmp.eq.s32.totalorder %s18, 1
      %p134 = scmp.ne.s32.totalorder %s129, %s131
      %p135 = scmp.eq.s32.totalorder %s18, 0
      %p136 = por %p134, %p135
      %p137 = scmp.ne.s32.totalorder %s129, %s131
      %p138 = scmp.eq.s32.totalorder %s23, 1
      %p139 = por %p137, %p138
      %p140 = scmp.ne.s32.totalorder %s131, %s132
      %p141 = scmp.eq.s32.totalorder %s23, 0
      %p142 = por %p140, %p141
      %p143 = scmp.ne.s32.totalorder %s131, %s132
      %p144 = scmp.eq.s32.totalorder %s24, 1
      %p145 = por %p143, %p144
      %p147 = scmp.ne.s32.totalorder %s132, %s146
      %p148 = scmp.eq.s32.totalorder %s24, 0
      %p149 = por %p147, %p148
      %s151 = sadd.s32 %s150, 1
      %p154 = scmp.eq.s32.totalorder %s18, 1
      %p155 = scmp.ne.s32.totalorder %s150, %s152
      %p156 = scmp.eq.s32.totalorder %s18, 0
      %p157 = por %p155, %p156
      %p158 = scmp.ne.s32.totalorder %s150, %s152
      %p159 = scmp.eq.s32.totalorder %s23, 1
      %p160 = por %p158, %p159
      %p161 = scmp.ne.s32.totalorder %s152, %s153
      %p162 = scmp.eq.s32.totalorder %s23, 0
      %p163 = por %p161, %p162
      %p164 = scmp.ne.s32.totalorder %s152, %s153
      %p165 = scmp.eq.s32.totalorder %s24, 1
      %p166 = por %p164, %p165
      %p168 = scmp.ne.s32.totalorder %s153, %s167
      %p169 = scmp.eq.s32.totalorder %s24, 0
      %p170 = por %p168, %p169
      %s172 = sadd.s32 %s171, 1
      %p175 = scmp.eq.s32.totalorder %s18, 1
      %p176 = scmp.ne.s32.totalorder %s171, %s173
      %p177 = scmp.eq.s32.totalorder %s18, 0
      %p178 = por %p176, %p177
      %p179 = scmp.ne.s32.totalorder %s171, %s173
      %p180 = scmp.eq.s32.totalorder %s23, 1
      %p181 = por %p179, %p180
      %p182 = scmp.ne.s32.totalorder %s173, %s174
      %p183 = scmp.eq.s32.totalorder %s23, 0
      %p184 = por %p182, %p183
      %p185 = scmp.ne.s32.totalorder %s173, %s174
      %p186 = scmp.eq.s32.totalorder %s24, 1
      %p187 = por %p185, %p186
      %p189 = scmp.ne.s32.totalorder %s174, %s188
      %p190 = scmp.eq.s32.totalorder %s24, 0
      %p191 = por %p189, %p190
      %s192 = ssub.s32 %s25, %s37
      %p193 = scmp.eq.s32.totalorder %s192, 0
      %s195 = sadd.s32 %s194, 1
      %s196 = scalar_select %p193, %s194, %s195
      %p199 = pneg %p193
      %p200 = scmp.eq.s32.totalorder %s18, 1
      %p201 = por %p199, %p200
      %p202 = scmp.ne.s32.totalorder %s194, %s197
      %p203 = scmp.eq.s32.totalorder %s18, 0
      %p204 = por %p202, %p203
      %p205 = scmp.ne.s32.totalorder %s194, %s197
      %p206 = scmp.eq.s32.totalorder %s23, 1
      %p207 = por %p205, %p206
      %p208 = scmp.ne.s32.totalorder %s197, %s198
      %p209 = scmp.eq.s32.totalorder %s23, 0
      %p210 = por %p208, %p209
      %p211 = scmp.ne.s32.totalorder %s197, %s198
      %p212 = scmp.eq.s32.totalorder %s24, 1
      %p213 = por %p211, %p212
      %p215 = scmp.ne.s32.totalorder %s198, %s214
      %p216 = scmp.eq.s32.totalorder %s24, 0
      %p217 = por %p215, %p216
      %p218 = scmp.le.s32.totalorder 1, %s18
      %p219 = scmp.lt.s32.totalorder %s18, 3
      %p220 = pnand %p218, %p219
      %p221 = pneg %p220
      // Predicated region
      $region9: #{tpu_custom_call.1} parent=5 // pred_check
        _
      $region10: #{tpu_custom_call.1} parent=5 // pred_check_branch
        %223 = sbr.rel (%p220) target = $region12
      $region11: #{tpu_custom_call.1} parent=5 // pred_region
        %s224 = ssub.s32 %s18, 1
        // Predicated region
        $region13: #{tpu_custom_call.1} parent=11 // pred_check
          %p225 = pneg %p79
        $region14: #{tpu_custom_call.1} parent=11 // pred_check_branch
          %227 = sbr.rel (%p225) target = $region16
        $region15: #{tpu_custom_call.1} parent=11 // pred_region
          _
        $region16: #{tpu_custom_call.1} parent=11 // pred_fallthru
          _
        // Predicated region
        $region17: #{tpu_custom_call.1} parent=11 // pred_check
          %p228 = pneg %p100
        $region18: #{tpu_custom_call.1} parent=11 // pred_check_branch
          %230 = sbr.rel (%p228) target = $region20
        $region19: #{tpu_custom_call.1} parent=11 // pred_region
          _
        $region20: #{tpu_custom_call.1} parent=11 // pred_fallthru
          _
        // Predicated region
        $region21: #{tpu_custom_call.1} parent=11 // pred_check
          %p231 = pneg %p121
        $region22: #{tpu_custom_call.1} parent=11 // pred_check_branch
          %233 = sbr.rel (%p231) target = $region24
        $region23: #{tpu_custom_call.1} parent=11 // pred_region
          _
        $region24: #{tpu_custom_call.1} parent=11 // pred_fallthru
          _
        // Predicated region
        $region25: #{tpu_custom_call.1} parent=11 // pred_check
          %p234 = pneg %p142
        $region26: #{tpu_custom_call.1} parent=11 // pred_check_branch
          %236 = sbr.rel (%p234) target = $region28
        $region27: #{tpu_custom_call.1} parent=11 // pred_region
          %s238 = ssub.s32 256, 256
          %239 = vsyncadd [#allocation4], %s238
          %s241 = sshll.u32 [#allocation3], 4
          %s242 = int_to_ptr.vmem [resolvable:$true] %s241
          %244 = dma.hbm_to_vmem [thread:$0]  %s4, 256, %s242, [#allocation4]
        $region28: #{tpu_custom_call.1} parent=11 // pred_fallthru
          _
        // Predicated region
        $region29: #{tpu_custom_call.1} parent=11 // pred_check
          %p245 = pneg %p163
        $region30: #{tpu_custom_call.1} parent=11 // pred_check_branch
          %247 = sbr.rel (%p245) target = $region32
        $region31: #{tpu_custom_call.1} parent=11 // pred_region
          %s249 = ssub.s32 32768, 32768
          %250 = vsyncadd [#allocation7], %s249
          %s251 = sshll.u32 [#allocation6], 4
          %s252 = int_to_ptr.vmem [resolvable:$true] %s251
          %257 = dma.hbm_to_vmem [thread:$0]  %s5, 32768, %s252, [#allocation7], 128, 128, 8
        $region32: #{tpu_custom_call.1} parent=11 // pred_fallthru
          _
        // Predicated region
        $region33: #{tpu_custom_call.1} parent=11 // pred_check
          %p258 = pneg %p184
        $region34: #{tpu_custom_call.1} parent=11 // pred_check_branch
          %260 = sbr.rel (%p258) target = $region36
        $region35: #{tpu_custom_call.1} parent=11 // pred_region
          _
        $region36: #{tpu_custom_call.1} parent=11 // pred_fallthru
          _
      $region12: #{tpu_custom_call.1} parent=5 // pred_fallthru
        _
      %p261 = scmp.lt.s32.totalorder %s18, 2
      // Predicated region
      $region37: #{tpu_custom_call.1} parent=5 // pred_check
        %p262 = pneg %p261
      $region38: #{tpu_custom_call.1} parent=5 // pred_check_branch
        %264 = sbr.rel (%p262) target = $region40
      $region39: #{tpu_custom_call.1} parent=5 // pred_region
        // Predicated region
        $region41: #{tpu_custom_call.1} parent=39 // pred_check
          %p265 = pneg %p52
        $region42: #{tpu_custom_call.1} parent=39 // pred_check_branch
          %267 = sbr.rel (%p265) target = $region44
        $region43: #{tpu_custom_call.1} parent=39 // pred_region
          %s268 = smul.u32 26, %s26
          %p269 = scmp.lt.s32.totalorder %s25, 1
          %s270 = scalar_select %p269, %s25, 1
          %p271 = scmp.lt.s32.totalorder %s268, 25
          %s272 = scalar_select %p271, %s268, 25
          %s273 = smul.addr %s270, 26
          %s274 = sadd.s32 %s272, %s273
          %s275 = smul.addr %s274, 4
          %s276 = scalar_lea.vmem %s0, %s275
          %s277 = smul.u32 26, %s26
        $region44: #{tpu_custom_call.1} parent=39 // pred_fallthru
          _
      $region40: #{tpu_custom_call.1} parent=5 // pred_fallthru
        _
      %p278 = scmp.le.s32.totalorder 1, %s18
      %p279 = scmp.lt.s32.totalorder %s18, 3
      %p280 = pnand %p278, %p279
      %p281 = pneg %p280
      // Predicated region
      $region45: #{tpu_custom_call.1} parent=5 // pred_check
        _
      $region46: #{tpu_custom_call.1} parent=5 // pred_check_branch
        %283 = sbr.rel (%p280) target = $region48
      $region47: #{tpu_custom_call.1} parent=5 // pred_region
        %s284 = ssub.s32 %s18, 1
        // Predicated region
        $region49: #{tpu_custom_call.1} parent=47 // pred_check
          %p285 = pneg %p142
        $region50: #{tpu_custom_call.1} parent=47 // pred_check_branch
          %287 = sbr.rel (%p285) target = $region52
        $region51: #{tpu_custom_call.1} parent=47 // pred_region
          %288 = dma.done [#allocation4], 256
        $region52: #{tpu_custom_call.1} parent=47 // pred_fallthru
          _
        // Predicated region
        $region53: #{tpu_custom_call.1} parent=47 // pred_check
          %p289 = pneg %p163
        $region54: #{tpu_custom_call.1} parent=47 // pred_check_branch
          %291 = sbr.rel (%p289) target = $region56
        $region55: #{tpu_custom_call.1} parent=47 // pred_region
          %292 = dma.done [#allocation7], 32768
        $region56: #{tpu_custom_call.1} parent=47 // pred_fallthru
          _
        %s293 = smul.u32 26, %s28
        %p294 = scmp.lt.s32.totalorder %s27, 1
        %s295 = scalar_select %p294, %s27, 1
        %p296 = scmp.lt.s32.totalorder %s293, 25
        %s297 = scalar_select %p296, %s293, 25
        %s298 = smul.addr %s295, 26
        %s299 = sadd.s32 %s297, %s298
        %s300 = smul.addr %s299, 4
        %s301 = scalar_lea.vmem %s0, %s300
        %p302 = pneg %p58
        %p303 = pneg %p55
        %p304 = pneg %p79
        %p305 = pneg %p76
        %p306 = pneg %p100
        %p307 = pneg %p97
        %p308 = pneg %p121
        %p309 = pneg %p118
        %p310 = pneg %p142
        %p311 = pneg %p139
        %p312 = pneg %p163
        %p313 = pneg %p160
        %p314 = pneg %p184
        %p315 = pneg %p181
        %p316 = pneg %p210
        %p317 = pneg %p207
        %s318 = sand.u32 %s197, 1
        %s319 = scalar_lea.sflag [#allocation5], %s318
        %s320 = sand.u32 %s197, 1
        %s321 = smul.addr %s320, 2
        %s322 = scalar_lea.vmem [#allocation8], %s321
        %s323 = smul.u32 26, %s28
        %p324 = scmp.lt.s32.totalorder %s27, 1
        %s325 = scalar_select %p324, %s27, 1
        %p326 = scmp.lt.s32.totalorder %s323, 25
        %s327 = scalar_select %p326, %s323, 25
        %s328 = smul.addr %s325, 26
        %s329 = sadd.s32 %s327, %s328
        %s330 = smul.addr %s329, 4
        %s331 = scalar_lea.vmem %s0, %s330
        %s332 = smul.u32 26, %s28
        %p334 = scmp.eq.s32.totalorder %s28, 0
        // Predicated region
        $region57: #{tpu_custom_call.1} parent=47 // pred_check
          %p335 = pneg %p334
        $region58: #{tpu_custom_call.1} parent=47 // pred_check_branch
          %337 = sbr.rel (%p335) target = $region60
        $region59: #{tpu_custom_call.1} parent=47 // pred_region
          %338 = vst [vmem:[#allocation2] sm:$0xff] 0.0
          %339 = vst [vmem:[#allocation2 + $0x8] sm:$0xff] 0.0
        $region60: #{tpu_custom_call.1} parent=47 // pred_fallthru
          _
        %v340 = vld [vmem:[%s331] sm:$0xf]
        %v341 = vld [vmem:[%s331 + $0x4] sm:$0xf]
        %v342 = vld [vmem:[%s331 + $0x8] sm:$0xf]
        %v343 = vld [vmem:[%s331 + $0xc] sm:$0xf]
        %v344 = vld [vmem:[%s331 + $0x10] sm:$0xf]
        %v345 = vld [vmem:[%s331 + $0x14] sm:$0xf]
        %v346 = vld [vmem:[%s331 + $0x18] sm:$0xf]
        %v347 = vld [vmem:[%s331 + $0x1c] sm:$0xf]
        %v348 = vld [vmem:[%s331 + $0x20] sm:$0xf]
        %v349 = vld [vmem:[%s331 + $0x24] sm:$0xf]
        %v350 = vld [vmem:[%s331 + $0x28] sm:$0xf]
        %v351 = vld [vmem:[%s331 + $0x2c] sm:$0xf]
        %v352 = vld [vmem:[%s331 + $0x30] sm:$0xf]
        %v353 = vld [vmem:[%s331 + $0x34] sm:$0xf]
        %v354 = vld [vmem:[%s331 + $0x38] sm:$0xf]
        %v355 = vld [vmem:[%s331 + $0x3c] sm:$0xf]
        %v356 = vld [vmem:[%s331 + $0x40] sm:$0xf]
        %v357 = vld [vmem:[%s331 + $0x44] sm:$0xf]
        %v358 = vld [vmem:[%s331 + $0x48] sm:$0xf]
        %v359 = vld [vmem:[%s331 + $0x4c] sm:$0xf]
        %v360 = vld [vmem:[%s331 + $0x50] sm:$0xf]
        %v361 = vld [vmem:[%s331 + $0x54] sm:$0xf]
        %v362 = vld [vmem:[%s331 + $0x58] sm:$0xf]
        %v363 = vld [vmem:[%s331 + $0x5c] sm:$0xf]
        %v364 = vld [vmem:[%s331 + $0x60] sm:$0xf]
        %v365 = vld [vmem:[%s331 + $0x64] sm:$0xf]
        %v366 = vld [vmem:[%s1] sm:$0xf]
        %v367 = vld [vmem:[%s1 + $0x4] sm:$0xf]
        %v368 = vld [vmem:[%s1 + $0x8] sm:$0xf]
        %v369 = vld [vmem:[%s1 + $0xc] sm:$0xf]
        %v370 = vld [vmem:[%s2] sm:$0x1]
        %v372 = vlaneseq
        %v373 = vshrl.u32 %v372, 7
        %v374 = vsub.s32 0, %v373
        %v375 = vrot.slane %v370, %v374
        %v403 = vunpack.c.l.b16 %v340
        %v404 = vunpack.c.l.b16 %v341
        %v405 = vunpack.c.l.b16 %v342
        %v406 = vunpack.c.l.b16 %v343
        %v407 = vunpack.c.l.b16 %v344
        %v408 = vunpack.c.l.b16 %v345
        %v409 = vunpack.c.l.b16 %v346
        %v410 = vunpack.c.l.b16 %v347
        %v411 = vunpack.c.l.b16 %v348
        %v412 = vunpack.c.l.b16 %v349
        %v413 = vunpack.c.l.b16 %v350
        %v414 = vunpack.c.l.b16 %v351
        %v415 = vunpack.c.l.b16 %v352
        %v416 = vunpack.c.l.b16 %v353
        %v417 = vunpack.c.l.b16 %v354
        %v418 = vunpack.c.l.b16 %v355
        %v419 = vunpack.c.l.b16 %v356
        %v420 = vunpack.c.l.b16 %v357
        %v421 = vunpack.c.l.b16 %v358
        %v422 = vunpack.c.l.b16 %v359
        %v423 = vunpack.c.l.b16 %v360
        %v424 = vunpack.c.l.b16 %v361
        %v425 = vunpack.c.l.b16 %v362
        %v426 = vunpack.c.l.b16 %v363
        %v427 = vunpack.c.l.b16 %v364
        %v428 = vunpack.c.l.b16 %v365
        %v429 = vpack.c.b16 %v404, %v403
        %v430 = vpack.c.b16 %v406, %v405
        %v431 = vpack.c.b16 %v408, %v407
        %v432 = vpack.c.b16 %v410, %v409
        %v433 = vpack.c.b16 %v412, %v411
        %v434 = vpack.c.b16 %v414, %v413
        %v435 = vpack.c.b16 %v416, %v415
        %v436 = vpack.c.b16 %v418, %v417
        %v437 = vpack.c.b16 %v420, %v419
        %v438 = vpack.c.b16 %v422, %v421
        %v439 = vpack.c.b16 %v424, %v423
        %v440 = vpack.c.b16 %v426, %v425
        %v441 = vpack.c.b16 %v428, %v427
        %v446 = vunpack.c.l.b16 %v366
        %v447 = vunpack.c.l.b16 %v367
        %v448 = vunpack.c.l.b16 %v368
        %v449 = vunpack.c.l.b16 %v369
        %v450 = vpack.c.b16 %v447, %v446
        %v451 = vpack.c.b16 %v449, %v448
        %vm454 = vcmask 261120
        %v456 = vsel %vm454, %v429, 0
        %v459 = vsel %vm454, %v430, 0
        %v462 = vsel %vm454, %v431, 0
        %v465 = vsel %vm454, %v432, 0
        %v468 = vsel %vm454, %v433, 0
        %v471 = vsel %vm454, %v434, 0
        %v474 = vsel %vm454, %v435, 0
        %v477 = vsel %vm454, %v436, 0
        %v480 = vsel %vm454, %v437, 0
        %v483 = vsel %vm454, %v438, 0
        %v486 = vsel %vm454, %v439, 0
        %v489 = vsel %vm454, %v440, 0
        %v492 = vsel %vm454, %v441, 0
        %494 = vmatprep.subr.bf16.mxu0 0
        %495 = vmatpush1.bf16.msra.mxu0 0
        %496 = vmatprep.subr.bf16.mxu0 0
        %497 = vmatpush1.bf16.msra.mxu0 0
        %498 = vmatprep.subr.bf16.mxu0 0
        %499 = vmatpush1.bf16.msra.mxu0 0
        %500 = vmatprep.subr.bf16.mxu0 0
        %501 = vmatpush1.bf16.msra.mxu0 0
        %502 = vmatprep.subr.bf16.mxu0 0
        %503 = vmatpush1.bf16.msra.mxu0 0
        %504 = vmatprep.subr.bf16.mxu0 0
        %505 = vmatpush1.bf16.msra.mxu0 0
        %506 = vmatprep.subr.bf16.mxu0 0
        %507 = vmatpush1.bf16.msra.mxu0 %v451
        %508 = vmatprep.subr.bf16.mxu0 0
        %509 = vmatpush1.bf16.msra.mxu0 %v450
        %510 = vmatprep.subr.bf16.mxu0 0
        %511 = vmatpush2.bf16.msra.mxu0 0
        %512 = vmatprep.subr.bf16.mxu0 0
        %513 = vmatpush2.bf16.msra.mxu0 0
        %514 = vmatprep.subr.bf16.mxu0 0
        %515 = vmatpush2.bf16.msra.mxu0 0
        %516 = vmatprep.subr.bf16.mxu0 0
        %517 = vmatpush2.bf16.msra.mxu0 0
        %518 = vmatprep.subr.bf16.mxu0 0
        %519 = vmatpush2.bf16.msra.mxu0 0
        %520 = vmatprep.subr.bf16.mxu0 0
        %521 = vmatpush2.bf16.msra.mxu0 0
        %522 = vmatprep.subr.bf16.mxu0 0
        %523 = vmatpush2.bf16.msra.mxu0 0
        %524 = vmatprep.subr.bf16.mxu0 0
        %525 = vmatpush2.bf16.msra.mxu0 0
        %526 = vmatprep.mubr.bf16.mxu0 0
        %527 = vmatmul.mubr.bf16.gmra.mxu0 %v456
        %v528 = vpop.f32.mrf.mxu0
        %v529 = vadd.f32 %v375, %v528
        %v530 = vpop.f32.mrf.mxu0
        %v531 = vpop.f32.mrf.mxu0
        %v532 = vadd.f32 %v375, %v531
        %v533 = vpop.f32.mrf.mxu0
        %534 = vmatprep.mubr.bf16.mxu0 0
        %535 = vmatmul.mubr.bf16.gmra.mxu0 %v459
        %v536 = vpop.f32.mrf.mxu0
        %v537 = vadd.f32 %v375, %v536
        %v538 = vpop.f32.mrf.mxu0
        %v539 = vpop.f32.mrf.mxu0
        %v540 = vadd.f32 %v375, %v539
        %v541 = vpop.f32.mrf.mxu0
        %542 = vmatprep.mubr.bf16.mxu0 0
        %543 = vmatmul.mubr.bf16.gmra.mxu0 %v462
        %v544 = vpop.f32.mrf.mxu0
        %v545 = vadd.f32 %v375, %v544
        %v546 = vpop.f32.mrf.mxu0
        %v547 = vpop.f32.mrf.mxu0
        %v548 = vadd.f32 %v375, %v547
        %v549 = vpop.f32.mrf.mxu0
        %550 = vmatprep.mubr.bf16.mxu0 0
        %551 = vmatmul.mubr.bf16.gmra.mxu0 %v465
        %v552 = vpop.f32.mrf.mxu0
        %v553 = vadd.f32 %v375, %v552
        %v554 = vpop.f32.mrf.mxu0
        %v555 = vpop.f32.mrf.mxu0
        %v556 = vadd.f32 %v375, %v555
        %v557 = vpop.f32.mrf.mxu0
        %558 = vmatprep.mubr.bf16.mxu0 0
        %559 = vmatmul.mubr.bf16.gmra.mxu0 %v468
        %v560 = vpop.f32.mrf.mxu0
        %v561 = vadd.f32 %v375, %v560
        %v562 = vpop.f32.mrf.mxu0
        %v563 = vpop.f32.mrf.mxu0
        %v564 = vadd.f32 %v375, %v563
        %v565 = vpop.f32.mrf.mxu0
        %566 = vmatprep.mubr.bf16.mxu0 0
        %567 = vmatmul.mubr.bf16.gmra.mxu0 %v471
        %v568 = vpop.f32.mrf.mxu0
        %v569 = vadd.f32 %v375, %v568
        %v570 = vpop.f32.mrf.mxu0
        %v571 = vpop.f32.mrf.mxu0
        %v572 = vadd.f32 %v375, %v571
        %v573 = vpop.f32.mrf.mxu0
        %574 = vmatprep.mubr.bf16.mxu0 0
        %575 = vmatmul.mubr.bf16.gmra.mxu0 %v474
        %v576 = vpop.f32.mrf.mxu0
        %v577 = vadd.f32 %v375, %v576
        %v578 = vpop.f32.mrf.mxu0
        %v579 = vpop.f32.mrf.mxu0
        %v580 = vadd.f32 %v375, %v579
        %v581 = vpop.f32.mrf.mxu0
        %582 = vmatprep.mubr.bf16.mxu0 0
        %583 = vmatmul.mubr.bf16.gmra.mxu0 %v477
        %v584 = vpop.f32.mrf.mxu0
        %v585 = vadd.f32 %v375, %v584
        %v586 = vpop.f32.mrf.mxu0
        %v587 = vpop.f32.mrf.mxu0
        %v588 = vadd.f32 %v375, %v587
        %v589 = vpop.f32.mrf.mxu0
        %590 = vmatprep.mubr.bf16.mxu0 0
        %591 = vmatmul.mubr.bf16.gmra.mxu0 %v480
        %v592 = vpop.f32.mrf.mxu0
        %v593 = vadd.f32 %v375, %v592
        %v594 = vpop.f32.mrf.mxu0
        %v595 = vpop.f32.mrf.mxu0
        %v596 = vadd.f32 %v375, %v595
        %v597 = vpop.f32.mrf.mxu0
        %598 = vmatprep.mubr.bf16.mxu0 0
        %599 = vmatmul.mubr.bf16.gmra.mxu0 %v483
        %v600 = vpop.f32.mrf.mxu0
        %v601 = vadd.f32 %v375, %v600
        %v602 = vpop.f32.mrf.mxu0
        %v603 = vpop.f32.mrf.mxu0
        %v604 = vadd.f32 %v375, %v603
        %v605 = vpop.f32.mrf.mxu0
        %606 = vmatprep.mubr.bf16.mxu0 0
        %607 = vmatmul.mubr.bf16.gmra.mxu0 %v486
        %v608 = vpop.f32.mrf.mxu0
        %v609 = vadd.f32 %v375, %v608
        %v610 = vpop.f32.mrf.mxu0
        %v611 = vpop.f32.mrf.mxu0
        %v612 = vadd.f32 %v375, %v611
        %v613 = vpop.f32.mrf.mxu0
        %614 = vmatprep.mubr.bf16.mxu0 0
        %615 = vmatmul.mubr.bf16.gmra.mxu0 %v489
        %v616 = vpop.f32.mrf.mxu0
        %v617 = vadd.f32 %v375, %v616
        %v618 = vpop.f32.mrf.mxu0
        %v619 = vpop.f32.mrf.mxu0
        %v620 = vadd.f32 %v375, %v619
        %v621 = vpop.f32.mrf.mxu0
        %622 = vmatprep.mubr.bf16.mxu0 0
        %623 = vmatmul.mubr.bf16.gmra.mxu0 %v492
        %v624 = vpop.f32.mrf.mxu0
        %v625 = vadd.f32 %v375, %v624
        %v626 = vpop.f32.mrf.mxu0
        %v627 = vpop.f32.mrf.mxu0
        %v628 = vadd.f32 %v375, %v627
        %v629 = vpop.f32.mrf.mxu0
        %630 = vdwg.mxu0
        %v631 = vmax.f32 %v529, 0.0
        %v632 = vmax.f32 %v532, 0.0
        %v633 = vmax.f32 %v537, 0.0
        %v634 = vmax.f32 %v540, 0.0
        %v635 = vmax.f32 %v545, 0.0
        %v636 = vmax.f32 %v548, 0.0
        %v637 = vmax.f32 %v553, 0.0
        %v638 = vmax.f32 %v556, 0.0
        %v639 = vmax.f32 %v561, 0.0
        %v640 = vmax.f32 %v564, 0.0
        %v641 = vmax.f32 %v569, 0.0
        %v642 = vmax.f32 %v572, 0.0
        %v643 = vmax.f32 %v577, 0.0
        %v644 = vmax.f32 %v580, 0.0
        %v645 = vmax.f32 %v585, 0.0
        %v646 = vmax.f32 %v588, 0.0
        %v647 = vmax.f32 %v593, 0.0
        %v648 = vmax.f32 %v596, 0.0
        %v649 = vmax.f32 %v601, 0.0
        %v650 = vmax.f32 %v604, 0.0
        %v651 = vmax.f32 %v609, 0.0
        %v652 = vmax.f32 %v612, 0.0
        %v653 = vmax.f32 %v617, 0.0
        %v654 = vmax.f32 %v620, 0.0
        %v655 = vmax.f32 %v625, 0.0
        %v656 = vmax.f32 %v628, 0.0
        %v657 = vlaneseq
        %v658 = vand.u32 %v657, 127
        %v659 = vadd.s32 %v658, 128
        %s660 = smul.u32 %s28, 208
        %v661 = vstv %s660
        %v662 = vadd.s32 %v658, %v661
        %v663 = vadd.s32 %v659, %v661
        %vm664 = vcmp.lt.s32.totalorder %v662, 196
        %vm665 = vcmp.lt.s32.totalorder %v663, 196
        %v666 = vsel %vm664, 1, 0
        %v667 = vsel %vm665, 1, 0
        %v668 = vcvt.s32.f32 %v666
        %v669 = vcvt.s32.f32 %v667
        %v670 = vld [vmem:[#allocation2] sm:$0xff]
        %v671 = vld [vmem:[#allocation2 + $0x8] sm:$0xff]
        %v672 = vpack.c.bf16 %v632, %v631
        %v673 = vpack.c.bf16 %v634, %v633
        %v674 = vpack.c.bf16 %v636, %v635
        %v675 = vpack.c.bf16 %v638, %v637
        %v676 = vpack.c.bf16 %v640, %v639
        %v677 = vpack.c.bf16 %v642, %v641
        %v678 = vpack.c.bf16 %v644, %v643
        %v679 = vpack.c.bf16 %v646, %v645
        %v680 = vpack.c.bf16 %v648, %v647
        %v681 = vpack.c.bf16 %v650, %v649
        %v682 = vpack.c.bf16 %v652, %v651
        %v683 = vpack.c.bf16 %v654, %v653
        %v684 = vpack.c.bf16 %v656, %v655
        %v685 = vld [vmem:[%s3] sm:$0xff]
        %v686 = vld [vmem:[%s3 + $0x8] sm:$0xff]
        %v687 = vld [vmem:[%s3 + $0x10] sm:$0xff]
        %v688 = vld [vmem:[%s3 + $0x18] sm:$0xff]
        %v689 = vld [vmem:[%s3 + $0x20] sm:$0xff]
        %v690 = vld [vmem:[%s3 + $0x28] sm:$0xff]
        %v691 = vld [vmem:[%s3 + $0x30] sm:$0xff]
        %v692 = vld [vmem:[%s3 + $0x38] sm:$0xff]
        %v693 = vld [vmem:[%s3 + $0x40] sm:$0xff]
        %v694 = vld [vmem:[%s3 + $0x48] sm:$0xff]
        %v695 = vld [vmem:[%s3 + $0x50] sm:$0xff]
        %v696 = vld [vmem:[%s3 + $0x58] sm:$0xff]
        %v697 = vld [vmem:[%s3 + $0x60] sm:$0xff]
        %v698 = vld [vmem:[%s3 + $0x68] sm:$0xff]
        %v699 = vld [vmem:[%s3 + $0x70] sm:$0xff]
        %v700 = vld [vmem:[%s3 + $0x78] sm:$0xff]
        %v701 = vld [vmem:[%s3 + $0x80] sm:$0xff]
        %v702 = vld [vmem:[%s3 + $0x88] sm:$0xff]
        %v703 = vld [vmem:[%s3 + $0x90] sm:$0xff]
        %v704 = vld [vmem:[%s3 + $0x98] sm:$0xff]
        %v705 = vld [vmem:[%s3 + $0xa0] sm:$0xff]
        %v706 = vld [vmem:[%s3 + $0xa8] sm:$0xff]
        %v707 = vld [vmem:[%s3 + $0xb0] sm:$0xff]
        %v708 = vld [vmem:[%s3 + $0xb8] sm:$0xff]
        %v709 = vld [vmem:[%s3 + $0xc0] sm:$0xff]
        %v710 = vld [vmem:[%s3 + $0xc8] sm:$0xff]
        %v711 = vld [vmem:[%s3 + $0xd0] sm:$0xff]
        %v712 = vld [vmem:[%s3 + $0xd8] sm:$0xff]
        %v713 = vld [vmem:[%s3 + $0xe0] sm:$0xff]
        %v714 = vld [vmem:[%s3 + $0xe8] sm:$0xff]
        %v715 = vld [vmem:[%s3 + $0xf0] sm:$0xff]
        %v716 = vld [vmem:[%s3 + $0xf8] sm:$0xff]
        %v717 = vld [vmem:[#allocation3] sm:$0xff]
        %v718 = vld [vmem:[#allocation3 + $0x8] sm:$0xff]
        %v721 = vlaneseq
        %v722 = vshrl.u32 %v721, 7
        %v723 = vsub.s32 0, %v722
        %v724 = vrot.slane %v717, %v723
        %v725 = vlaneseq
        %v726 = vshrl.u32 %v725, 7
        %v727 = vsub.s32 1, %v726
        %v728 = vrot.slane %v717, %v727
        %v729 = vlaneseq
        %v730 = vshrl.u32 %v729, 7
        %v731 = vsub.s32 2, %v730
        %v732 = vrot.slane %v717, %v731
        %v733 = vlaneseq
        %v734 = vshrl.u32 %v733, 7
        %v735 = vsub.s32 3, %v734
        %v736 = vrot.slane %v717, %v735
        %v737 = vlaneseq
        %v738 = vshrl.u32 %v737, 7
        %v739 = vsub.s32 4, %v738
        %v740 = vrot.slane %v717, %v739
        %v741 = vlaneseq
        %v742 = vshrl.u32 %v741, 7
        %v743 = vsub.s32 5, %v742
        %v744 = vrot.slane %v717, %v743
        %v745 = vlaneseq
        %v746 = vshrl.u32 %v745, 7
        %v747 = vsub.s32 6, %v746
        %v748 = vrot.slane %v717, %v747
        %v749 = vlaneseq
        %v750 = vshrl.u32 %v749, 7
        %v751 = vsub.s32 7, %v750
        %v752 = vrot.slane %v717, %v751
        %v753 = vlaneseq
        %v754 = vshrl.u32 %v753, 7
        %v755 = vsub.s32 0, %v754
        %v756 = vrot.slane %v718, %v755
        %v757 = vlaneseq
        %v758 = vshrl.u32 %v757, 7
        %v759 = vsub.s32 1, %v758
        %v760 = vrot.slane %v718, %v759
        %v761 = vlaneseq
        %v762 = vshrl.u32 %v761, 7
        %v763 = vsub.s32 2, %v762
        %v764 = vrot.slane %v718, %v763
        %v765 = vlaneseq
        %v766 = vshrl.u32 %v765, 7
        %v767 = vsub.s32 3, %v766
        %v768 = vrot.slane %v718, %v767
        %v769 = vlaneseq
        %v770 = vshrl.u32 %v769, 7
        %v771 = vsub.s32 4, %v770
        %v772 = vrot.slane %v718, %v771
        %v773 = vlaneseq
        %v774 = vshrl.u32 %v773, 7
        %v775 = vsub.s32 5, %v774
        %v776 = vrot.slane %v718, %v775
        %v777 = vlaneseq
        %v778 = vshrl.u32 %v777, 7
        %v779 = vsub.s32 6, %v778
        %v780 = vrot.slane %v718, %v779
        %v781 = vlaneseq
        %v782 = vshrl.u32 %v781, 7
        %v783 = vsub.s32 7, %v782
        %v784 = vrot.slane %v718, %v783
        %v833 = vunpack.c.l.b16 %v685
        %v834 = vunpack.c.h.b16 %v685
        %v835 = vunpack.c.l.b16 %v686
        %v836 = vunpack.c.h.b16 %v686
        %v837 = vunpack.c.l.b16 %v687
        %v838 = vunpack.c.h.b16 %v687
        %v839 = vunpack.c.l.b16 %v688
        %v840 = vunpack.c.h.b16 %v688
        %v841 = vunpack.c.l.b16 %v689
        %v842 = vunpack.c.h.b16 %v689
        %v843 = vunpack.c.l.b16 %v690
        %v844 = vunpack.c.h.b16 %v690
        %v845 = vunpack.c.l.b16 %v691
        %v846 = vunpack.c.h.b16 %v691
        %v847 = vunpack.c.l.b16 %v692
        %v848 = vunpack.c.h.b16 %v692
        %v849 = vunpack.c.l.b16 %v693
        %v850 = vunpack.c.h.b16 %v693
        %v851 = vunpack.c.l.b16 %v694
        %v852 = vunpack.c.h.b16 %v694
        %v853 = vunpack.c.l.b16 %v695
        %v854 = vunpack.c.h.b16 %v695
        %v855 = vunpack.c.l.b16 %v696
        %v856 = vunpack.c.h.b16 %v696
        %v857 = vunpack.c.l.b16 %v697
        %v858 = vunpack.c.h.b16 %v697
        %v859 = vunpack.c.l.b16 %v698
        %v860 = vunpack.c.h.b16 %v698
        %v861 = vunpack.c.l.b16 %v699
        %v862 = vunpack.c.h.b16 %v699
        %v863 = vunpack.c.l.b16 %v700
        %v864 = vunpack.c.h.b16 %v700
        %v865 = vunpack.c.l.b16 %v701
        %v866 = vunpack.c.h.b16 %v701
        %v867 = vunpack.c.l.b16 %v702
        %v868 = vunpack.c.h.b16 %v702
        %v869 = vunpack.c.l.b16 %v703
        %v870 = vunpack.c.h.b16 %v703
        %v871 = vunpack.c.l.b16 %v704
        %v872 = vunpack.c.h.b16 %v704
        %v873 = vunpack.c.l.b16 %v705
        %v874 = vunpack.c.h.b16 %v705
        %v875 = vunpack.c.l.b16 %v706
        %v876 = vunpack.c.h.b16 %v706
        %v877 = vunpack.c.l.b16 %v707
        %v878 = vunpack.c.h.b16 %v707
        %v879 = vunpack.c.l.b16 %v708
        %v880 = vunpack.c.h.b16 %v708
        %v881 = vunpack.c.l.b16 %v709
        %v882 = vunpack.c.h.b16 %v709
        %v883 = vunpack.c.l.b16 %v710
        %v884 = vunpack.c.h.b16 %v710
        %v885 = vunpack.c.l.b16 %v711
        %v886 = vunpack.c.h.b16 %v711
        %v887 = vunpack.c.l.b16 %v712
        %v888 = vunpack.c.h.b16 %v712
        %v889 = vunpack.c.l.b16 %v713
        %v890 = vunpack.c.h.b16 %v713
        %v891 = vunpack.c.l.b16 %v714
        %v892 = vunpack.c.h.b16 %v714
        %v893 = vunpack.c.l.b16 %v715
        %v894 = vunpack.c.h.b16 %v715
        %v895 = vunpack.c.l.b16 %v716
        %v896 = vunpack.c.h.b16 %v716
        %v897 = vpack.c.b16 %v849, %v833
        %v898 = vpack.c.b16 %v850, %v834
        %v899 = vpack.c.b16 %v851, %v835
        %v900 = vpack.c.b16 %v852, %v836
        %v901 = vpack.c.b16 %v853, %v837
        %v902 = vpack.c.b16 %v854, %v838
        %v903 = vpack.c.b16 %v855, %v839
        %v904 = vpack.c.b16 %v856, %v840
        %v905 = vpack.c.b16 %v857, %v841
        %v906 = vpack.c.b16 %v858, %v842
        %v907 = vpack.c.b16 %v859, %v843
        %v908 = vpack.c.b16 %v860, %v844
        %v909 = vpack.c.b16 %v861, %v845
        %v910 = vpack.c.b16 %v862, %v846
        %v911 = vpack.c.b16 %v863, %v847
        %v912 = vpack.c.b16 %v864, %v848
        %v913 = vpack.c.b16 %v881, %v865
        %v914 = vpack.c.b16 %v882, %v866
        %v915 = vpack.c.b16 %v883, %v867
        %v916 = vpack.c.b16 %v884, %v868
        %v917 = vpack.c.b16 %v885, %v869
        %v918 = vpack.c.b16 %v886, %v870
        %v919 = vpack.c.b16 %v887, %v871
        %v920 = vpack.c.b16 %v888, %v872
        %v921 = vpack.c.b16 %v889, %v873
        %v922 = vpack.c.b16 %v890, %v874
        %v923 = vpack.c.b16 %v891, %v875
        %v924 = vpack.c.b16 %v892, %v876
        %v925 = vpack.c.b16 %v893, %v877
        %v926 = vpack.c.b16 %v894, %v878
        %v927 = vpack.c.b16 %v895, %v879
        %v928 = vpack.c.b16 %v896, %v880
        %v962 = vsel %vm454, %v672, 0
        %v965 = vsel %vm454, %v673, 0
        %v968 = vsel %vm454, %v674, 0
        %v971 = vsel %vm454, %v675, 0
        %v974 = vsel %vm454, %v676, 0
        %v977 = vsel %vm454, %v677, 0
        %v980 = vsel %vm454, %v678, 0
        %v983 = vsel %vm454, %v679, 0
        %v986 = vsel %vm454, %v680, 0
        %v989 = vsel %vm454, %v681, 0
        %v992 = vsel %vm454, %v682, 0
        %v995 = vsel %vm454, %v683, 0
        %v998 = vsel %vm454, %v684, 0
        %1000 = vmatprep.subr.bf16.mxu0 0
        %1001 = vmatpush1.bf16.msra.mxu0 0
        %1002 = vmatprep.subr.bf16.mxu0 0
        %1003 = vmatpush1.bf16.msra.mxu0 0
        %1004 = vmatprep.subr.bf16.mxu0 0
        %1005 = vmatpush1.bf16.msra.mxu0 0
        %1006 = vmatprep.subr.bf16.mxu0 0
        %1007 = vmatpush1.bf16.msra.mxu0 0
        %1008 = vmatprep.subr.bf16.mxu0 0
        %1009 = vmatpush1.bf16.msra.mxu0 0
        %1010 = vmatprep.subr.bf16.mxu0 0
        %1011 = vmatpush1.bf16.msra.mxu0 0
        %1012 = vmatprep.subr.bf16.mxu0 %v914
        %1013 = vmatpush1.bf16.msra.mxu0 %v913
        %1014 = vmatprep.subr.bf16.mxu0 %v898
        %1015 = vmatpush1.bf16.msra.mxu0 %v897
        %1016 = vmatprep.subr.bf16.mxu0 0
        %1017 = vmatpush2.bf16.msra.mxu0 0
        %1018 = vmatprep.subr.bf16.mxu0 0
        %1019 = vmatpush2.bf16.msra.mxu0 0
        %1020 = vmatprep.subr.bf16.mxu0 0
        %1021 = vmatpush2.bf16.msra.mxu0 0
        %1022 = vmatprep.subr.bf16.mxu0 0
        %1023 = vmatpush2.bf16.msra.mxu0 0
        %1024 = vmatprep.subr.bf16.mxu0 0
        %1025 = vmatpush2.bf16.msra.mxu0 0
        %1026 = vmatprep.subr.bf16.mxu0 0
        %1027 = vmatpush2.bf16.msra.mxu0 0
        %1028 = vmatprep.subr.bf16.mxu0 0
        %1029 = vmatpush2.bf16.msra.mxu0 0
        %1030 = vmatprep.subr.bf16.mxu0 0
        %1031 = vmatpush2.bf16.msra.mxu0 0
        %1032 = vmatprep.mubr.bf16.mxu0 0
        %1033 = vmatmul.mubr.bf16.gmra.mxu0 %v962
        %v1034 = vpop.f32.mrf.mxu0
        %v1035 = vadd.f32 %v724, %v1034
        %v1036 = vpop.f32.mrf.mxu0
        %v1037 = vadd.f32 %v728, %v1036
        %v1038 = vpop.f32.mrf.mxu0
        %v1039 = vadd.f32 %v724, %v1038
        %v1040 = vpop.f32.mrf.mxu0
        %v1041 = vadd.f32 %v728, %v1040
        %1042 = vmatprep.mubr.bf16.mxu0 0
        %1043 = vmatmul.mubr.bf16.gmra.mxu0 %v965
        %v1044 = vpop.f32.mrf.mxu0
        %v1045 = vadd.f32 %v724, %v1044
        %v1046 = vpop.f32.mrf.mxu0
        %v1047 = vadd.f32 %v728, %v1046
        %v1048 = vpop.f32.mrf.mxu0
        %v1049 = vadd.f32 %v724, %v1048
        %v1050 = vpop.f32.mrf.mxu0
        %v1051 = vadd.f32 %v728, %v1050
        %1052 = vmatprep.mubr.bf16.mxu0 0
        %1053 = vmatmul.mubr.bf16.gmra.mxu0 %v968
        %v1054 = vpop.f32.mrf.mxu0
        %v1055 = vadd.f32 %v724, %v1054
        %v1056 = vpop.f32.mrf.mxu0
        %v1057 = vadd.f32 %v728, %v1056
        %v1058 = vpop.f32.mrf.mxu0
        %v1059 = vadd.f32 %v724, %v1058
        %v1060 = vpop.f32.mrf.mxu0
        %v1061 = vadd.f32 %v728, %v1060
        %1062 = vmatprep.mubr.bf16.mxu0 0
        %1063 = vmatmul.mubr.bf16.gmra.mxu0 %v971
        %v1064 = vpop.f32.mrf.mxu0
        %v1065 = vadd.f32 %v724, %v1064
        %v1066 = vpop.f32.mrf.mxu0
        %v1067 = vadd.f32 %v728, %v1066
        %v1068 = vpop.f32.mrf.mxu0
        %v1069 = vadd.f32 %v724, %v1068
        %v1070 = vpop.f32.mrf.mxu0
        %v1071 = vadd.f32 %v728, %v1070
        %1072 = vmatprep.mubr.bf16.mxu0 0
        %1073 = vmatmul.mubr.bf16.gmra.mxu0 %v974
        %v1074 = vpop.f32.mrf.mxu0
        %v1075 = vadd.f32 %v724, %v1074
        %v1076 = vpop.f32.mrf.mxu0
        %v1077 = vadd.f32 %v728, %v1076
        %v1078 = vpop.f32.mrf.mxu0
        %v1079 = vadd.f32 %v724, %v1078
        %v1080 = vpop.f32.mrf.mxu0
        %v1081 = vadd.f32 %v728, %v1080
        %1082 = vmatprep.mubr.bf16.mxu0 0
        %1083 = vmatmul.mubr.bf16.gmra.mxu0 %v977
        %v1084 = vpop.f32.mrf.mxu0
        %v1085 = vadd.f32 %v724, %v1084
        %v1086 = vpop.f32.mrf.mxu0
        %v1087 = vadd.f32 %v728, %v1086
        %v1088 = vpop.f32.mrf.mxu0
        %v1089 = vadd.f32 %v724, %v1088
        %v1090 = vpop.f32.mrf.mxu0
        %v1091 = vadd.f32 %v728, %v1090
        %1092 = vmatprep.mubr.bf16.mxu0 0
        %1093 = vmatmul.mubr.bf16.gmra.mxu0 %v980
        %v1094 = vpop.f32.mrf.mxu0
        %v1095 = vadd.f32 %v724, %v1094
        %v1096 = vpop.f32.mrf.mxu0
        %v1097 = vadd.f32 %v728, %v1096
        %v1098 = vpop.f32.mrf.mxu0
        %v1099 = vadd.f32 %v724, %v1098
        %v1100 = vpop.f32.mrf.mxu0
        %v1101 = vadd.f32 %v728, %v1100
        %1102 = vmatprep.mubr.bf16.mxu0 0
        %1103 = vmatmul.mubr.bf16.gmra.mxu0 %v983
        %v1104 = vpop.f32.mrf.mxu0
        %v1105 = vadd.f32 %v724, %v1104
        %v1106 = vpop.f32.mrf.mxu0
        %v1107 = vadd.f32 %v728, %v1106
        %v1108 = vpop.f32.mrf.mxu0
        %v1109 = vadd.f32 %v724, %v1108
        %v1110 = vpop.f32.mrf.mxu0
        %v1111 = vadd.f32 %v728, %v1110
        %1112 = vmatprep.mubr.bf16.mxu0 0
        %1113 = vmatmul.mubr.bf16.gmra.mxu0 %v986
        %v1114 = vpop.f32.mrf.mxu0
        %v1115 = vadd.f32 %v724, %v1114
        %v1116 = vpop.f32.mrf.mxu0
        %v1117 = vadd.f32 %v728, %v1116
        %v1118 = vpop.f32.mrf.mxu0
        %v1119 = vadd.f32 %v724, %v1118
        %v1120 = vpop.f32.mrf.mxu0
        %v1121 = vadd.f32 %v728, %v1120
        %1122 = vmatprep.mubr.bf16.mxu0 0
        %1123 = vmatmul.mubr.bf16.gmra.mxu0 %v989
        %v1124 = vpop.f32.mrf.mxu0
        %v1125 = vadd.f32 %v724, %v1124
        %v1126 = vpop.f32.mrf.mxu0
        %v1127 = vadd.f32 %v728, %v1126
        %v1128 = vpop.f32.mrf.mxu0
        %v1129 = vadd.f32 %v724, %v1128
        %v1130 = vpop.f32.mrf.mxu0
        %v1131 = vadd.f32 %v728, %v1130
        %1132 = vmatprep.mubr.bf16.mxu0 0
        %1133 = vmatmul.mubr.bf16.gmra.mxu0 %v992
        %v1134 = vpop.f32.mrf.mxu0
        %v1135 = vadd.f32 %v724, %v1134
        %v1136 = vpop.f32.mrf.mxu0
        %v1137 = vadd.f32 %v728, %v1136
        %v1138 = vpop.f32.mrf.mxu0
        %v1139 = vadd.f32 %v724, %v1138
        %v1140 = vpop.f32.mrf.mxu0
        %v1141 = vadd.f32 %v728, %v1140
        %1142 = vmatprep.mubr.bf16.mxu0 0
        %1143 = vmatmul.mubr.bf16.gmra.mxu0 %v995
        %v1144 = vpop.f32.mrf.mxu0
        %v1145 = vadd.f32 %v724, %v1144
        %v1146 = vpop.f32.mrf.mxu0
        %v1147 = vadd.f32 %v728, %v1146
        %v1148 = vpop.f32.mrf.mxu0
        %v1149 = vadd.f32 %v724, %v1148
        %v1150 = vpop.f32.mrf.mxu0
        %v1151 = vadd.f32 %v728, %v1150
        %1152 = vmatprep.mubr.bf16.mxu0 0
        %1153 = vmatmul.mubr.bf16.gmra.mxu0 %v998
        %v1154 = vpop.f32.mrf.mxu0
        %v1155 = vadd.f32 %v724, %v1154
        %v1156 = vpop.f32.mrf.mxu0
        %v1157 = vadd.f32 %v728, %v1156
        %v1158 = vpop.f32.mrf.mxu0
        %v1159 = vadd.f32 %v724, %v1158
        %v1160 = vpop.f32.mrf.mxu0
        %v1161 = vadd.f32 %v728, %v1160
        %1162 = vdwg.mxu0
        %1163 = vmatprep.subr.bf16.mxu0 0
        %1164 = vmatpush1.bf16.msra.mxu0 0
        %1165 = vmatprep.subr.bf16.mxu0 0
        %1166 = vmatpush1.bf16.msra.mxu0 0
        %1167 = vmatprep.subr.bf16.mxu0 0
        %1168 = vmatpush1.bf16.msra.mxu0 0
        %1169 = vmatprep.subr.bf16.mxu0 0
        %1170 = vmatpush1.bf16.msra.mxu0 0
        %1171 = vmatprep.subr.bf16.mxu0 0
        %1172 = vmatpush1.bf16.msra.mxu0 0
        %1173 = vmatprep.subr.bf16.mxu0 0
        %1174 = vmatpush1.bf16.msra.mxu0 0
        %1175 = vmatprep.subr.bf16.mxu0 %v916
        %1176 = vmatpush1.bf16.msra.mxu0 %v915
        %1177 = vmatprep.subr.bf16.mxu0 %v900
        %1178 = vmatpush1.bf16.msra.mxu0 %v899
        %1179 = vmatprep.subr.bf16.mxu0 0
        %1180 = vmatpush2.bf16.msra.mxu0 0
        %1181 = vmatprep.subr.bf16.mxu0 0
        %1182 = vmatpush2.bf16.msra.mxu0 0
        %1183 = vmatprep.subr.bf16.mxu0 0
        %1184 = vmatpush2.bf16.msra.mxu0 0
        %1185 = vmatprep.subr.bf16.mxu0 0
        %1186 = vmatpush2.bf16.msra.mxu0 0
        %1187 = vmatprep.subr.bf16.mxu0 0
        %1188 = vmatpush2.bf16.msra.mxu0 0
        %1189 = vmatprep.subr.bf16.mxu0 0
        %1190 = vmatpush2.bf16.msra.mxu0 0
        %1191 = vmatprep.subr.bf16.mxu0 0
        %1192 = vmatpush2.bf16.msra.mxu0 0
        %1193 = vmatprep.subr.bf16.mxu0 0
        %1194 = vmatpush2.bf16.msra.mxu0 0
        %1195 = vmatprep.mubr.bf16.mxu0 0
        %1196 = vmatmul.mubr.bf16.gmra.mxu0 %v962
        %v1197 = vpop.f32.mrf.mxu0
        %v1198 = vadd.f32 %v732, %v1197
        %v1199 = vpop.f32.mrf.mxu0
        %v1200 = vadd.f32 %v736, %v1199
        %v1201 = vpop.f32.mrf.mxu0
        %v1202 = vadd.f32 %v732, %v1201
        %v1203 = vpop.f32.mrf.mxu0
        %v1204 = vadd.f32 %v736, %v1203
        %1205 = vmatprep.mubr.bf16.mxu0 0
        %1206 = vmatmul.mubr.bf16.gmra.mxu0 %v965
        %v1207 = vpop.f32.mrf.mxu0
        %v1208 = vadd.f32 %v732, %v1207
        %v1209 = vpop.f32.mrf.mxu0
        %v1210 = vadd.f32 %v736, %v1209
        %v1211 = vpop.f32.mrf.mxu0
        %v1212 = vadd.f32 %v732, %v1211
        %v1213 = vpop.f32.mrf.mxu0
        %v1214 = vadd.f32 %v736, %v1213
        %1215 = vmatprep.mubr.bf16.mxu0 0
        %1216 = vmatmul.mubr.bf16.gmra.mxu0 %v968
        %v1217 = vpop.f32.mrf.mxu0
        %v1218 = vadd.f32 %v732, %v1217
        %v1219 = vpop.f32.mrf.mxu0
        %v1220 = vadd.f32 %v736, %v1219
        %v1221 = vpop.f32.mrf.mxu0
        %v1222 = vadd.f32 %v732, %v1221
        %v1223 = vpop.f32.mrf.mxu0
        %v1224 = vadd.f32 %v736, %v1223
        %1225 = vmatprep.mubr.bf16.mxu0 0
        %1226 = vmatmul.mubr.bf16.gmra.mxu0 %v971
        %v1227 = vpop.f32.mrf.mxu0
        %v1228 = vadd.f32 %v732, %v1227
        %v1229 = vpop.f32.mrf.mxu0
        %v1230 = vadd.f32 %v736, %v1229
        %v1231 = vpop.f32.mrf.mxu0
        %v1232 = vadd.f32 %v732, %v1231
        %v1233 = vpop.f32.mrf.mxu0
        %v1234 = vadd.f32 %v736, %v1233
        %1235 = vmatprep.mubr.bf16.mxu0 0
        %1236 = vmatmul.mubr.bf16.gmra.mxu0 %v974
        %v1237 = vpop.f32.mrf.mxu0
        %v1238 = vadd.f32 %v732, %v1237
        %v1239 = vpop.f32.mrf.mxu0
        %v1240 = vadd.f32 %v736, %v1239
        %v1241 = vpop.f32.mrf.mxu0
        %v1242 = vadd.f32 %v732, %v1241
        %v1243 = vpop.f32.mrf.mxu0
        %v1244 = vadd.f32 %v736, %v1243
        %1245 = vmatprep.mubr.bf16.mxu0 0
        %1246 = vmatmul.mubr.bf16.gmra.mxu0 %v977
        %v1247 = vpop.f32.mrf.mxu0
        %v1248 = vadd.f32 %v732, %v1247
        %v1249 = vpop.f32.mrf.mxu0
        %v1250 = vadd.f32 %v736, %v1249
        %v1251 = vpop.f32.mrf.mxu0
        %v1252 = vadd.f32 %v732, %v1251
        %v1253 = vpop.f32.mrf.mxu0
        %v1254 = vadd.f32 %v736, %v1253
        %1255 = vmatprep.mubr.bf16.mxu0 0
        %1256 = vmatmul.mubr.bf16.gmra.mxu0 %v980
        %v1257 = vpop.f32.mrf.mxu0
        %v1258 = vadd.f32 %v732, %v1257
        %v1259 = vpop.f32.mrf.mxu0
        %v1260 = vadd.f32 %v736, %v1259
        %v1261 = vpop.f32.mrf.mxu0
        %v1262 = vadd.f32 %v732, %v1261
        %v1263 = vpop.f32.mrf.mxu0
        %v1264 = vadd.f32 %v736, %v1263
        %1265 = vmatprep.mubr.bf16.mxu0 0
        %1266 = vmatmul.mubr.bf16.gmra.mxu0 %v983
        %v1267 = vpop.f32.mrf.mxu0
        %v1268 = vadd.f32 %v732, %v1267
        %v1269 = vpop.f32.mrf.mxu0
        %v1270 = vadd.f32 %v736, %v1269
        %v1271 = vpop.f32.mrf.mxu0
        %v1272 = vadd.f32 %v732, %v1271
        %v1273 = vpop.f32.mrf.mxu0
        %v1274 = vadd.f32 %v736, %v1273
        %1275 = vmatprep.mubr.bf16.mxu0 0
        %1276 = vmatmul.mubr.bf16.gmra.mxu0 %v986
        %v1277 = vpop.f32.mrf.mxu0
        %v1278 = vadd.f32 %v732, %v1277
        %v1279 = vpop.f32.mrf.mxu0
        %v1280 = vadd.f32 %v736, %v1279
        %v1281 = vpop.f32.mrf.mxu0
        %v1282 = vadd.f32 %v732, %v1281
        %v1283 = vpop.f32.mrf.mxu0
        %v1284 = vadd.f32 %v736, %v1283
        %1285 = vmatprep.mubr.bf16.mxu0 0
        %1286 = vmatmul.mubr.bf16.gmra.mxu0 %v989
        %v1287 = vpop.f32.mrf.mxu0
        %v1288 = vadd.f32 %v732, %v1287
        %v1289 = vpop.f32.mrf.mxu0
        %v1290 = vadd.f32 %v736, %v1289
        %v1291 = vpop.f32.mrf.mxu0
        %v1292 = vadd.f32 %v732, %v1291
        %v1293 = vpop.f32.mrf.mxu0
        %v1294 = vadd.f32 %v736, %v1293
        %1295 = vmatprep.mubr.bf16.mxu0 0
        %1296 = vmatmul.mubr.bf16.gmra.mxu0 %v992
        %v1297 = vpop.f32.mrf.mxu0
        %v1298 = vadd.f32 %v732, %v1297
        %v1299 = vpop.f32.mrf.mxu0
        %v1300 = vadd.f32 %v736, %v1299
        %v1301 = vpop.f32.mrf.mxu0
        %v1302 = vadd.f32 %v732, %v1301
        %v1303 = vpop.f32.mrf.mxu0
        %v1304 = vadd.f32 %v736, %v1303
        %1305 = vmatprep.mubr.bf16.mxu0 0
        %1306 = vmatmul.mubr.bf16.gmra.mxu0 %v995
        %v1307 = vpop.f32.mrf.mxu0
        %v1308 = vadd.f32 %v732, %v1307
        %v1309 = vpop.f32.mrf.mxu0
        %v1310 = vadd.f32 %v736, %v1309
        %v1311 = vpop.f32.mrf.mxu0
        %v1312 = vadd.f32 %v732, %v1311
        %v1313 = vpop.f32.mrf.mxu0
        %v1314 = vadd.f32 %v736, %v1313
        %1315 = vmatprep.mubr.bf16.mxu0 0
        %1316 = vmatmul.mubr.bf16.gmra.mxu0 %v998
        %v1317 = vpop.f32.mrf.mxu0
        %v1318 = vadd.f32 %v732, %v1317
        %v1319 = vpop.f32.mrf.mxu0
        %v1320 = vadd.f32 %v736, %v1319
        %v1321 = vpop.f32.mrf.mxu0
        %v1322 = vadd.f32 %v732, %v1321
        %v1323 = vpop.f32.mrf.mxu0
        %v1324 = vadd.f32 %v736, %v1323
        %1325 = vdwg.mxu0
        %1326 = vmatprep.subr.bf16.mxu0 0
        %1327 = vmatpush1.bf16.msra.mxu0 0
        %1328 = vmatprep.subr.bf16.mxu0 0
        %1329 = vmatpush1.bf16.msra.mxu0 0
        %1330 = vmatprep.subr.bf16.mxu0 0
        %1331 = vmatpush1.bf16.msra.mxu0 0
        %1332 = vmatprep.subr.bf16.mxu0 0
        %1333 = vmatpush1.bf16.msra.mxu0 0
        %1334 = vmatprep.subr.bf16.mxu0 0
        %1335 = vmatpush1.bf16.msra.mxu0 0
        %1336 = vmatprep.subr.bf16.mxu0 0
        %1337 = vmatpush1.bf16.msra.mxu0 0
        %1338 = vmatprep.subr.bf16.mxu0 %v918
        %1339 = vmatpush1.bf16.msra.mxu0 %v917
        %1340 = vmatprep.subr.bf16.mxu0 %v902
        %1341 = vmatpush1.bf16.msra.mxu0 %v901
        %1342 = vmatprep.subr.bf16.mxu0 0
        %1343 = vmatpush2.bf16.msra.mxu0 0
        %1344 = vmatprep.subr.bf16.mxu0 0
        %1345 = vmatpush2.bf16.msra.mxu0 0
        %1346 = vmatprep.subr.bf16.mxu0 0
        %1347 = vmatpush2.bf16.msra.mxu0 0
        %1348 = vmatprep.subr.bf16.mxu0 0
        %1349 = vmatpush2.bf16.msra.mxu0 0
        %1350 = vmatprep.subr.bf16.mxu0 0
        %1351 = vmatpush2.bf16.msra.mxu0 0
        %1352 = vmatprep.subr.bf16.mxu0 0
        %1353 = vmatpush2.bf16.msra.mxu0 0
        %1354 = vmatprep.subr.bf16.mxu0 0
        %1355 = vmatpush2.bf16.msra.mxu0 0
        %1356 = vmatprep.subr.bf16.mxu0 0
        %1357 = vmatpush2.bf16.msra.mxu0 0
        %1358 = vmatprep.mubr.bf16.mxu0 0
        %1359 = vmatmul.mubr.bf16.gmra.mxu0 %v962
        %v1360 = vpop.f32.mrf.mxu0
        %v1361 = vadd.f32 %v740, %v1360
        %v1362 = vpop.f32.mrf.mxu0
        %v1363 = vadd.f32 %v744, %v1362
        %v1364 = vpop.f32.mrf.mxu0
        %v1365 = vadd.f32 %v740, %v1364
        %v1366 = vpop.f32.mrf.mxu0
        %v1367 = vadd.f32 %v744, %v1366
        %1368 = vmatprep.mubr.bf16.mxu0 0
        %1369 = vmatmul.mubr.bf16.gmra.mxu0 %v965
        %v1370 = vpop.f32.mrf.mxu0
        %v1371 = vadd.f32 %v740, %v1370
        %v1372 = vpop.f32.mrf.mxu0
        %v1373 = vadd.f32 %v744, %v1372
        %v1374 = vpop.f32.mrf.mxu0
        %v1375 = vadd.f32 %v740, %v1374
        %v1376 = vpop.f32.mrf.mxu0
        %v1377 = vadd.f32 %v744, %v1376
        %1378 = vmatprep.mubr.bf16.mxu0 0
        %1379 = vmatmul.mubr.bf16.gmra.mxu0 %v968
        %v1380 = vpop.f32.mrf.mxu0
        %v1381 = vadd.f32 %v740, %v1380
        %v1382 = vpop.f32.mrf.mxu0
        %v1383 = vadd.f32 %v744, %v1382
        %v1384 = vpop.f32.mrf.mxu0
        %v1385 = vadd.f32 %v740, %v1384
        %v1386 = vpop.f32.mrf.mxu0
        %v1387 = vadd.f32 %v744, %v1386
        %1388 = vmatprep.mubr.bf16.mxu0 0
        %1389 = vmatmul.mubr.bf16.gmra.mxu0 %v971
        %v1390 = vpop.f32.mrf.mxu0
        %v1391 = vadd.f32 %v740, %v1390
        %v1392 = vpop.f32.mrf.mxu0
        %v1393 = vadd.f32 %v744, %v1392
        %v1394 = vpop.f32.mrf.mxu0
        %v1395 = vadd.f32 %v740, %v1394
        %v1396 = vpop.f32.mrf.mxu0
        %v1397 = vadd.f32 %v744, %v1396
        %1398 = vmatprep.mubr.bf16.mxu0 0
        %1399 = vmatmul.mubr.bf16.gmra.mxu0 %v974
        %v1400 = vpop.f32.mrf.mxu0
        %v1401 = vadd.f32 %v740, %v1400
        %v1402 = vpop.f32.mrf.mxu0
        %v1403 = vadd.f32 %v744, %v1402
        %v1404 = vpop.f32.mrf.mxu0
        %v1405 = vadd.f32 %v740, %v1404
        %v1406 = vpop.f32.mrf.mxu0
        %v1407 = vadd.f32 %v744, %v1406
        %1408 = vmatprep.mubr.bf16.mxu0 0
        %1409 = vmatmul.mubr.bf16.gmra.mxu0 %v977
        %v1410 = vpop.f32.mrf.mxu0
        %v1411 = vadd.f32 %v740, %v1410
        %v1412 = vpop.f32.mrf.mxu0
        %v1413 = vadd.f32 %v744, %v1412
        %v1414 = vpop.f32.mrf.mxu0
        %v1415 = vadd.f32 %v740, %v1414
        %v1416 = vpop.f32.mrf.mxu0
        %v1417 = vadd.f32 %v744, %v1416
        %1418 = vmatprep.mubr.bf16.mxu0 0
        %1419 = vmatmul.mubr.bf16.gmra.mxu0 %v980
        %v1420 = vpop.f32.mrf.mxu0
        %v1421 = vadd.f32 %v740, %v1420
        %v1422 = vpop.f32.mrf.mxu0
        %v1423 = vadd.f32 %v744, %v1422
        %v1424 = vpop.f32.mrf.mxu0
        %v1425 = vadd.f32 %v740, %v1424
        %v1426 = vpop.f32.mrf.mxu0
        %v1427 = vadd.f32 %v744, %v1426
        %1428 = vmatprep.mubr.bf16.mxu0 0
        %1429 = vmatmul.mubr.bf16.gmra.mxu0 %v983
        %v1430 = vpop.f32.mrf.mxu0
        %v1431 = vadd.f32 %v740, %v1430
        %v1432 = vpop.f32.mrf.mxu0
        %v1433 = vadd.f32 %v744, %v1432
        %v1434 = vpop.f32.mrf.mxu0
        %v1435 = vadd.f32 %v740, %v1434
        %v1436 = vpop.f32.mrf.mxu0
        %v1437 = vadd.f32 %v744, %v1436
        %1438 = vmatprep.mubr.bf16.mxu0 0
        %1439 = vmatmul.mubr.bf16.gmra.mxu0 %v986
        %v1440 = vpop.f32.mrf.mxu0
        %v1441 = vadd.f32 %v740, %v1440
        %v1442 = vpop.f32.mrf.mxu0
        %v1443 = vadd.f32 %v744, %v1442
        %v1444 = vpop.f32.mrf.mxu0
        %v1445 = vadd.f32 %v740, %v1444
        %v1446 = vpop.f32.mrf.mxu0
        %v1447 = vadd.f32 %v744, %v1446
        %1448 = vmatprep.mubr.bf16.mxu0 0
        %1449 = vmatmul.mubr.bf16.gmra.mxu0 %v989
        %v1450 = vpop.f32.mrf.mxu0
        %v1451 = vadd.f32 %v740, %v1450
        %v1452 = vpop.f32.mrf.mxu0
        %v1453 = vadd.f32 %v744, %v1452
        %v1454 = vpop.f32.mrf.mxu0
        %v1455 = vadd.f32 %v740, %v1454
        %v1456 = vpop.f32.mrf.mxu0
        %v1457 = vadd.f32 %v744, %v1456
        %1458 = vmatprep.mubr.bf16.mxu0 0
        %1459 = vmatmul.mubr.bf16.gmra.mxu0 %v992
        %v1460 = vpop.f32.mrf.mxu0
        %v1461 = vadd.f32 %v740, %v1460
        %v1462 = vpop.f32.mrf.mxu0
        %v1463 = vadd.f32 %v744, %v1462
        %v1464 = vpop.f32.mrf.mxu0
        %v1465 = vadd.f32 %v740, %v1464
        %v1466 = vpop.f32.mrf.mxu0
        %v1467 = vadd.f32 %v744, %v1466
        %1468 = vmatprep.mubr.bf16.mxu0 0
        %1469 = vmatmul.mubr.bf16.gmra.mxu0 %v995
        %v1470 = vpop.f32.mrf.mxu0
        %v1471 = vadd.f32 %v740, %v1470
        %v1472 = vpop.f32.mrf.mxu0
        %v1473 = vadd.f32 %v744, %v1472
        %v1474 = vpop.f32.mrf.mxu0
        %v1475 = vadd.f32 %v740, %v1474
        %v1476 = vpop.f32.mrf.mxu0
        %v1477 = vadd.f32 %v744, %v1476
        %1478 = vmatprep.mubr.bf16.mxu0 0
        %1479 = vmatmul.mubr.bf16.gmra.mxu0 %v998
        %v1480 = vpop.f32.mrf.mxu0
        %v1481 = vadd.f32 %v740, %v1480
        %v1482 = vpop.f32.mrf.mxu0
        %v1483 = vadd.f32 %v744, %v1482
        %v1484 = vpop.f32.mrf.mxu0
        %v1485 = vadd.f32 %v740, %v1484
        %v1486 = vpop.f32.mrf.mxu0
        %v1487 = vadd.f32 %v744, %v1486
        %1488 = vdwg.mxu0
        %1489 = vmatprep.subr.bf16.mxu0 0
        %1490 = vmatpush1.bf16.msra.mxu0 0
        %1491 = vmatprep.subr.bf16.mxu0 0
        %1492 = vmatpush1.bf16.msra.mxu0 0
        %1493 = vmatprep.subr.bf16.mxu0 0
        %1494 = vmatpush1.bf16.msra.mxu0 0
        %1495 = vmatprep.subr.bf16.mxu0 0
        %1496 = vmatpush1.bf16.msra.mxu0 0
        %1497 = vmatprep.subr.bf16.mxu0 0
        %1498 = vmatpush1.bf16.msra.mxu0 0
        %1499 = vmatprep.subr.bf16.mxu0 0
        %1500 = vmatpush1.bf16.msra.mxu0 0
        %1501 = vmatprep.subr.bf16.mxu0 %v920
        %1502 = vmatpush1.bf16.msra.mxu0 %v919
        %1503 = vmatprep.subr.bf16.mxu0 %v904
        %1504 = vmatpush1.bf16.msra.mxu0 %v903
        %1505 = vmatprep.subr.bf16.mxu0 0
        %1506 = vmatpush2.bf16.msra.mxu0 0
        %1507 = vmatprep.subr.bf16.mxu0 0
        %1508 = vmatpush2.bf16.msra.mxu0 0
        %1509 = vmatprep.subr.bf16.mxu0 0
        %1510 = vmatpush2.bf16.msra.mxu0 0
        %1511 = vmatprep.subr.bf16.mxu0 0
        %1512 = vmatpush2.bf16.msra.mxu0 0
        %1513 = vmatprep.subr.bf16.mxu0 0
        %1514 = vmatpush2.bf16.msra.mxu0 0
        %1515 = vmatprep.subr.bf16.mxu0 0
        %1516 = vmatpush2.bf16.msra.mxu0 0
        %1517 = vmatprep.subr.bf16.mxu0 0
        %1518 = vmatpush2.bf16.msra.mxu0 0
        %1519 = vmatprep.subr.bf16.mxu0 0
        %1520 = vmatpush2.bf16.msra.mxu0 0
        %1521 = vmatprep.mubr.bf16.mxu0 0
        %1522 = vmatmul.mubr.bf16.gmra.mxu0 %v962
        %v1523 = vpop.f32.mrf.mxu0
        %v1524 = vadd.f32 %v748, %v1523
        %v1525 = vpop.f32.mrf.mxu0
        %v1526 = vadd.f32 %v752, %v1525
        %v1527 = vpop.f32.mrf.mxu0
        %v1528 = vadd.f32 %v748, %v1527
        %v1529 = vpop.f32.mrf.mxu0
        %v1530 = vadd.f32 %v752, %v1529
        %1531 = vmatprep.mubr.bf16.mxu0 0
        %1532 = vmatmul.mubr.bf16.gmra.mxu0 %v965
        %v1533 = vpop.f32.mrf.mxu0
        %v1534 = vadd.f32 %v748, %v1533
        %v1535 = vpop.f32.mrf.mxu0
        %v1536 = vadd.f32 %v752, %v1535
        %v1537 = vpop.f32.mrf.mxu0
        %v1538 = vadd.f32 %v748, %v1537
        %v1539 = vpop.f32.mrf.mxu0
        %v1540 = vadd.f32 %v752, %v1539
        %1541 = vmatprep.mubr.bf16.mxu0 0
        %1542 = vmatmul.mubr.bf16.gmra.mxu0 %v968
        %v1543 = vpop.f32.mrf.mxu0
        %v1544 = vadd.f32 %v748, %v1543
        %v1545 = vpop.f32.mrf.mxu0
        %v1546 = vadd.f32 %v752, %v1545
        %v1547 = vpop.f32.mrf.mxu0
        %v1548 = vadd.f32 %v748, %v1547
        %v1549 = vpop.f32.mrf.mxu0
        %v1550 = vadd.f32 %v752, %v1549
        %1551 = vmatprep.mubr.bf16.mxu0 0
        %1552 = vmatmul.mubr.bf16.gmra.mxu0 %v971
        %v1553 = vpop.f32.mrf.mxu0
        %v1554 = vadd.f32 %v748, %v1553
        %v1555 = vpop.f32.mrf.mxu0
        %v1556 = vadd.f32 %v752, %v1555
        %v1557 = vpop.f32.mrf.mxu0
        %v1558 = vadd.f32 %v748, %v1557
        %v1559 = vpop.f32.mrf.mxu0
        %v1560 = vadd.f32 %v752, %v1559
        %1561 = vmatprep.mubr.bf16.mxu0 0
        %1562 = vmatmul.mubr.bf16.gmra.mxu0 %v974
        %v1563 = vpop.f32.mrf.mxu0
        %v1564 = vadd.f32 %v748, %v1563
        %v1565 = vpop.f32.mrf.mxu0
        %v1566 = vadd.f32 %v752, %v1565
        %v1567 = vpop.f32.mrf.mxu0
        %v1568 = vadd.f32 %v748, %v1567
        %v1569 = vpop.f32.mrf.mxu0
        %v1570 = vadd.f32 %v752, %v1569
        %1571 = vmatprep.mubr.bf16.mxu0 0
        %1572 = vmatmul.mubr.bf16.gmra.mxu0 %v977
        %v1573 = vpop.f32.mrf.mxu0
        %v1574 = vadd.f32 %v748, %v1573
        %v1575 = vpop.f32.mrf.mxu0
        %v1576 = vadd.f32 %v752, %v1575
        %v1577 = vpop.f32.mrf.mxu0
        %v1578 = vadd.f32 %v748, %v1577
        %v1579 = vpop.f32.mrf.mxu0
        %v1580 = vadd.f32 %v752, %v1579
        %1581 = vmatprep.mubr.bf16.mxu0 0
        %1582 = vmatmul.mubr.bf16.gmra.mxu0 %v980
        %v1583 = vpop.f32.mrf.mxu0
        %v1584 = vadd.f32 %v748, %v1583
        %v1585 = vpop.f32.mrf.mxu0
        %v1586 = vadd.f32 %v752, %v1585
        %v1587 = vpop.f32.mrf.mxu0
        %v1588 = vadd.f32 %v748, %v1587
        %v1589 = vpop.f32.mrf.mxu0
        %v1590 = vadd.f32 %v752, %v1589
        %1591 = vmatprep.mubr.bf16.mxu0 0
        %1592 = vmatmul.mubr.bf16.gmra.mxu0 %v983
        %v1593 = vpop.f32.mrf.mxu0
        %v1594 = vadd.f32 %v748, %v1593
        %v1595 = vpop.f32.mrf.mxu0
        %v1596 = vadd.f32 %v752, %v1595
        %v1597 = vpop.f32.mrf.mxu0
        %v1598 = vadd.f32 %v748, %v1597
        %v1599 = vpop.f32.mrf.mxu0
        %v1600 = vadd.f32 %v752, %v1599
        %1601 = vmatprep.mubr.bf16.mxu0 0
        %1602 = vmatmul.mubr.bf16.gmra.mxu0 %v986
        %v1603 = vpop.f32.mrf.mxu0
        %v1604 = vadd.f32 %v748, %v1603
        %v1605 = vpop.f32.mrf.mxu0
        %v1606 = vadd.f32 %v752, %v1605
        %v1607 = vpop.f32.mrf.mxu0
        %v1608 = vadd.f32 %v748, %v1607
        %v1609 = vpop.f32.mrf.mxu0
        %v1610 = vadd.f32 %v752, %v1609
        %1611 = vmatprep.mubr.bf16.mxu0 0
        %1612 = vmatmul.mubr.bf16.gmra.mxu0 %v989
        %v1613 = vpop.f32.mrf.mxu0
        %v1614 = vadd.f32 %v748, %v1613
        %v1615 = vpop.f32.mrf.mxu0
        %v1616 = vadd.f32 %v752, %v1615
        %v1617 = vpop.f32.mrf.mxu0
        %v1618 = vadd.f32 %v748, %v1617
        %v1619 = vpop.f32.mrf.mxu0
        %v1620 = vadd.f32 %v752, %v1619
        %1621 = vmatprep.mubr.bf16.mxu0 0
        %1622 = vmatmul.mubr.bf16.gmra.mxu0 %v992
        %v1623 = vpop.f32.mrf.mxu0
        %v1624 = vadd.f32 %v748, %v1623
        %v1625 = vpop.f32.mrf.mxu0
        %v1626 = vadd.f32 %v752, %v1625
        %v1627 = vpop.f32.mrf.mxu0
        %v1628 = vadd.f32 %v748, %v1627
        %v1629 = vpop.f32.mrf.mxu0
        %v1630 = vadd.f32 %v752, %v1629
        %1631 = vmatprep.mubr.bf16.mxu0 0
        %1632 = vmatmul.mubr.bf16.gmra.mxu0 %v995
        %v1633 = vpop.f32.mrf.mxu0
        %v1634 = vadd.f32 %v748, %v1633
        %v1635 = vpop.f32.mrf.mxu0
        %v1636 = vadd.f32 %v752, %v1635
        %v1637 = vpop.f32.mrf.mxu0
        %v1638 = vadd.f32 %v748, %v1637
        %v1639 = vpop.f32.mrf.mxu0
        %v1640 = vadd.f32 %v752, %v1639
        %1641 = vmatprep.mubr.bf16.mxu0 0
        %1642 = vmatmul.mubr.bf16.gmra.mxu0 %v998
        %v1643 = vpop.f32.mrf.mxu0
        %v1644 = vadd.f32 %v748, %v1643
        %v1645 = vpop.f32.mrf.mxu0
        %v1646 = vadd.f32 %v752, %v1645
        %v1647 = vpop.f32.mrf.mxu0
        %v1648 = vadd.f32 %v748, %v1647
        %v1649 = vpop.f32.mrf.mxu0
        %v1650 = vadd.f32 %v752, %v1649
        %1651 = vdwg.mxu0
        %1652 = vmatprep.subr.bf16.mxu0 0
        %1653 = vmatpush1.bf16.msra.mxu0 0
        %1654 = vmatprep.subr.bf16.mxu0 0
        %1655 = vmatpush1.bf16.msra.mxu0 0
        %1656 = vmatprep.subr.bf16.mxu0 0
        %1657 = vmatpush1.bf16.msra.mxu0 0
        %1658 = vmatprep.subr.bf16.mxu0 0
        %1659 = vmatpush1.bf16.msra.mxu0 0
        %1660 = vmatprep.subr.bf16.mxu0 0
        %1661 = vmatpush1.bf16.msra.mxu0 0
        %1662 = vmatprep.subr.bf16.mxu0 0
        %1663 = vmatpush1.bf16.msra.mxu0 0
        %1664 = vmatprep.subr.bf16.mxu0 %v922
        %1665 = vmatpush1.bf16.msra.mxu0 %v921
        %1666 = vmatprep.subr.bf16.mxu0 %v906
        %1667 = vmatpush1.bf16.msra.mxu0 %v905
        %1668 = vmatprep.subr.bf16.mxu0 0
        %1669 = vmatpush2.bf16.msra.mxu0 0
        %1670 = vmatprep.subr.bf16.mxu0 0
        %1671 = vmatpush2.bf16.msra.mxu0 0
        %1672 = vmatprep.subr.bf16.mxu0 0
        %1673 = vmatpush2.bf16.msra.mxu0 0
        %1674 = vmatprep.subr.bf16.mxu0 0
        %1675 = vmatpush2.bf16.msra.mxu0 0
        %1676 = vmatprep.subr.bf16.mxu0 0
        %1677 = vmatpush2.bf16.msra.mxu0 0
        %1678 = vmatprep.subr.bf16.mxu0 0
        %1679 = vmatpush2.bf16.msra.mxu0 0
        %1680 = vmatprep.subr.bf16.mxu0 0
        %1681 = vmatpush2.bf16.msra.mxu0 0
        %1682 = vmatprep.subr.bf16.mxu0 0
        %1683 = vmatpush2.bf16.msra.mxu0 0
        %1684 = vmatprep.mubr.bf16.mxu0 0
        %1685 = vmatmul.mubr.bf16.gmra.mxu0 %v962
        %v1686 = vpop.f32.mrf.mxu0
        %v1687 = vadd.f32 %v756, %v1686
        %v1688 = vpop.f32.mrf.mxu0
        %v1689 = vadd.f32 %v760, %v1688
        %v1690 = vpop.f32.mrf.mxu0
        %v1691 = vadd.f32 %v756, %v1690
        %v1692 = vpop.f32.mrf.mxu0
        %v1693 = vadd.f32 %v760, %v1692
        %1694 = vmatprep.mubr.bf16.mxu0 0
        %1695 = vmatmul.mubr.bf16.gmra.mxu0 %v965
        %v1696 = vpop.f32.mrf.mxu0
        %v1697 = vadd.f32 %v756, %v1696
        %v1698 = vpop.f32.mrf.mxu0
        %v1699 = vadd.f32 %v760, %v1698
        %v1700 = vpop.f32.mrf.mxu0
        %v1701 = vadd.f32 %v756, %v1700
        %v1702 = vpop.f32.mrf.mxu0
        %v1703 = vadd.f32 %v760, %v1702
        %1704 = vmatprep.mubr.bf16.mxu0 0
        %1705 = vmatmul.mubr.bf16.gmra.mxu0 %v968
        %v1706 = vpop.f32.mrf.mxu0
        %v1707 = vadd.f32 %v756, %v1706
        %v1708 = vpop.f32.mrf.mxu0
        %v1709 = vadd.f32 %v760, %v1708
        %v1710 = vpop.f32.mrf.mxu0
        %v1711 = vadd.f32 %v756, %v1710
        %v1712 = vpop.f32.mrf.mxu0
        %v1713 = vadd.f32 %v760, %v1712
        %1714 = vmatprep.mubr.bf16.mxu0 0
        %1715 = vmatmul.mubr.bf16.gmra.mxu0 %v971
        %v1716 = vpop.f32.mrf.mxu0
        %v1717 = vadd.f32 %v756, %v1716
        %v1718 = vpop.f32.mrf.mxu0
        %v1719 = vadd.f32 %v760, %v1718
        %v1720 = vpop.f32.mrf.mxu0
        %v1721 = vadd.f32 %v756, %v1720
        %v1722 = vpop.f32.mrf.mxu0
        %v1723 = vadd.f32 %v760, %v1722
        %1724 = vmatprep.mubr.bf16.mxu0 0
        %1725 = vmatmul.mubr.bf16.gmra.mxu0 %v974
        %v1726 = vpop.f32.mrf.mxu0
        %v1727 = vadd.f32 %v756, %v1726
        %v1728 = vpop.f32.mrf.mxu0
        %v1729 = vadd.f32 %v760, %v1728
        %v1730 = vpop.f32.mrf.mxu0
        %v1731 = vadd.f32 %v756, %v1730
        %v1732 = vpop.f32.mrf.mxu0
        %v1733 = vadd.f32 %v760, %v1732
        %1734 = vmatprep.mubr.bf16.mxu0 0
        %1735 = vmatmul.mubr.bf16.gmra.mxu0 %v977
        %v1736 = vpop.f32.mrf.mxu0
        %v1737 = vadd.f32 %v756, %v1736
        %v1738 = vpop.f32.mrf.mxu0
        %v1739 = vadd.f32 %v760, %v1738
        %v1740 = vpop.f32.mrf.mxu0
        %v1741 = vadd.f32 %v756, %v1740
        %v1742 = vpop.f32.mrf.mxu0
        %v1743 = vadd.f32 %v760, %v1742
        %1744 = vmatprep.mubr.bf16.mxu0 0
        %1745 = vmatmul.mubr.bf16.gmra.mxu0 %v980
        %v1746 = vpop.f32.mrf.mxu0
        %v1747 = vadd.f32 %v756, %v1746
        %v1748 = vpop.f32.mrf.mxu0
        %v1749 = vadd.f32 %v760, %v1748
        %v1750 = vpop.f32.mrf.mxu0
        %v1751 = vadd.f32 %v756, %v1750
        %v1752 = vpop.f32.mrf.mxu0
        %v1753 = vadd.f32 %v760, %v1752
        %1754 = vmatprep.mubr.bf16.mxu0 0
        %1755 = vmatmul.mubr.bf16.gmra.mxu0 %v983
        %v1756 = vpop.f32.mrf.mxu0
        %v1757 = vadd.f32 %v756, %v1756
        %v1758 = vpop.f32.mrf.mxu0
        %v1759 = vadd.f32 %v760, %v1758
        %v1760 = vpop.f32.mrf.mxu0
        %v1761 = vadd.f32 %v756, %v1760
        %v1762 = vpop.f32.mrf.mxu0
        %v1763 = vadd.f32 %v760, %v1762
        %1764 = vmatprep.mubr.bf16.mxu0 0
        %1765 = vmatmul.mubr.bf16.gmra.mxu0 %v986
        %v1766 = vpop.f32.mrf.mxu0
        %v1767 = vadd.f32 %v756, %v1766
        %v1768 = vpop.f32.mrf.mxu0
        %v1769 = vadd.f32 %v760, %v1768
        %v1770 = vpop.f32.mrf.mxu0
        %v1771 = vadd.f32 %v756, %v1770
        %v1772 = vpop.f32.mrf.mxu0
        %v1773 = vadd.f32 %v760, %v1772
        %1774 = vmatprep.mubr.bf16.mxu0 0
        %1775 = vmatmul.mubr.bf16.gmra.mxu0 %v989
        %v1776 = vpop.f32.mrf.mxu0
        %v1777 = vadd.f32 %v756, %v1776
        %v1778 = vpop.f32.mrf.mxu0
        %v1779 = vadd.f32 %v760, %v1778
        %v1780 = vpop.f32.mrf.mxu0
        %v1781 = vadd.f32 %v756, %v1780
        %v1782 = vpop.f32.mrf.mxu0
        %v1783 = vadd.f32 %v760, %v1782
        %1784 = vmatprep.mubr.bf16.mxu0 0
        %1785 = vmatmul.mubr.bf16.gmra.mxu0 %v992
        %v1786 = vpop.f32.mrf.mxu0
        %v1787 = vadd.f32 %v756, %v1786
        %v1788 = vpop.f32.mrf.mxu0
        %v1789 = vadd.f32 %v760, %v1788
        %v1790 = vpop.f32.mrf.mxu0
        %v1791 = vadd.f32 %v756, %v1790
        %v1792 = vpop.f32.mrf.mxu0
        %v1793 = vadd.f32 %v760, %v1792
        %1794 = vmatprep.mubr.bf16.mxu0 0
        %1795 = vmatmul.mubr.bf16.gmra.mxu0 %v995
        %v1796 = vpop.f32.mrf.mxu0
        %v1797 = vadd.f32 %v756, %v1796
        %v1798 = vpop.f32.mrf.mxu0
        %v1799 = vadd.f32 %v760, %v1798
        %v1800 = vpop.f32.mrf.mxu0
        %v1801 = vadd.f32 %v756, %v1800
        %v1802 = vpop.f32.mrf.mxu0
        %v1803 = vadd.f32 %v760, %v1802
        %1804 = vmatprep.mubr.bf16.mxu0 0
        %1805 = vmatmul.mubr.bf16.gmra.mxu0 %v998
        %v1806 = vpop.f32.mrf.mxu0
        %v1807 = vadd.f32 %v756, %v1806
        %v1808 = vpop.f32.mrf.mxu0
        %v1809 = vadd.f32 %v760, %v1808
        %v1810 = vpop.f32.mrf.mxu0
        %v1811 = vadd.f32 %v756, %v1810
        %v1812 = vpop.f32.mrf.mxu0
        %v1813 = vadd.f32 %v760, %v1812
        %1814 = vdwg.mxu0
        %1815 = vmatprep.subr.bf16.mxu0 0
        %1816 = vmatpush1.bf16.msra.mxu0 0
        %1817 = vmatprep.subr.bf16.mxu0 0
        %1818 = vmatpush1.bf16.msra.mxu0 0
        %1819 = vmatprep.subr.bf16.mxu0 0
        %1820 = vmatpush1.bf16.msra.mxu0 0
        %1821 = vmatprep.subr.bf16.mxu0 0
        %1822 = vmatpush1.bf16.msra.mxu0 0
        %1823 = vmatprep.subr.bf16.mxu0 0
        %1824 = vmatpush1.bf16.msra.mxu0 0
        %1825 = vmatprep.subr.bf16.mxu0 0
        %1826 = vmatpush1.bf16.msra.mxu0 0
        %1827 = vmatprep.subr.bf16.mxu0 %v924
        %1828 = vmatpush1.bf16.msra.mxu0 %v923
        %1829 = vmatprep.subr.bf16.mxu0 %v908
        %1830 = vmatpush1.bf16.msra.mxu0 %v907
        %1831 = vmatprep.subr.bf16.mxu0 0
        %1832 = vmatpush2.bf16.msra.mxu0 0
        %1833 = vmatprep.subr.bf16.mxu0 0
        %1834 = vmatpush2.bf16.msra.mxu0 0
        %1835 = vmatprep.subr.bf16.mxu0 0
        %1836 = vmatpush2.bf16.msra.mxu0 0
        %1837 = vmatprep.subr.bf16.mxu0 0
        %1838 = vmatpush2.bf16.msra.mxu0 0
        %1839 = vmatprep.subr.bf16.mxu0 0
        %1840 = vmatpush2.bf16.msra.mxu0 0
        %1841 = vmatprep.subr.bf16.mxu0 0
        %1842 = vmatpush2.bf16.msra.mxu0 0
        %1843 = vmatprep.subr.bf16.mxu0 0
        %1844 = vmatpush2.bf16.msra.mxu0 0
        %1845 = vmatprep.subr.bf16.mxu0 0
        %1846 = vmatpush2.bf16.msra.mxu0 0
        %1847 = vmatprep.mubr.bf16.mxu0 0
        %1848 = vmatmul.mubr.bf16.gmra.mxu0 %v962
        %v1849 = vpop.f32.mrf.mxu0
        %v1850 = vadd.f32 %v764, %v1849
        %v1851 = vpop.f32.mrf.mxu0
        %v1852 = vadd.f32 %v768, %v1851
        %v1853 = vpop.f32.mrf.mxu0
        %v1854 = vadd.f32 %v764, %v1853
        %v1855 = vpop.f32.mrf.mxu0
        %v1856 = vadd.f32 %v768, %v1855
        %1857 = vmatprep.mubr.bf16.mxu0 0
        %1858 = vmatmul.mubr.bf16.gmra.mxu0 %v965
        %v1859 = vpop.f32.mrf.mxu0
        %v1860 = vadd.f32 %v764, %v1859
        %v1861 = vpop.f32.mrf.mxu0
        %v1862 = vadd.f32 %v768, %v1861
        %v1863 = vpop.f32.mrf.mxu0
        %v1864 = vadd.f32 %v764, %v1863
        %v1865 = vpop.f32.mrf.mxu0
        %v1866 = vadd.f32 %v768, %v1865
        %1867 = vmatprep.mubr.bf16.mxu0 0
        %1868 = vmatmul.mubr.bf16.gmra.mxu0 %v968
        %v1869 = vpop.f32.mrf.mxu0
        %v1870 = vadd.f32 %v764, %v1869
        %v1871 = vpop.f32.mrf.mxu0
        %v1872 = vadd.f32 %v768, %v1871
        %v1873 = vpop.f32.mrf.mxu0
        %v1874 = vadd.f32 %v764, %v1873
        %v1875 = vpop.f32.mrf.mxu0
        %v1876 = vadd.f32 %v768, %v1875
        %1877 = vmatprep.mubr.bf16.mxu0 0
        %1878 = vmatmul.mubr.bf16.gmra.mxu0 %v971
        %v1879 = vpop.f32.mrf.mxu0
        %v1880 = vadd.f32 %v764, %v1879
        %v1881 = vpop.f32.mrf.mxu0
        %v1882 = vadd.f32 %v768, %v1881
        %v1883 = vpop.f32.mrf.mxu0
        %v1884 = vadd.f32 %v764, %v1883
        %v1885 = vpop.f32.mrf.mxu0
        %v1886 = vadd.f32 %v768, %v1885
        %1887 = vmatprep.mubr.bf16.mxu0 0
        %1888 = vmatmul.mubr.bf16.gmra.mxu0 %v974
        %v1889 = vpop.f32.mrf.mxu0
        %v1890 = vadd.f32 %v764, %v1889
        %v1891 = vpop.f32.mrf.mxu0
        %v1892 = vadd.f32 %v768, %v1891
        %v1893 = vpop.f32.mrf.mxu0
        %v1894 = vadd.f32 %v764, %v1893
        %v1895 = vpop.f32.mrf.mxu0
        %v1896 = vadd.f32 %v768, %v1895
        %1897 = vmatprep.mubr.bf16.mxu0 0
        %1898 = vmatmul.mubr.bf16.gmra.mxu0 %v977
        %v1899 = vpop.f32.mrf.mxu0
        %v1900 = vadd.f32 %v764, %v1899
        %v1901 = vpop.f32.mrf.mxu0
        %v1902 = vadd.f32 %v768, %v1901
        %v1903 = vpop.f32.mrf.mxu0
        %v1904 = vadd.f32 %v764, %v1903
        %v1905 = vpop.f32.mrf.mxu0
        %v1906 = vadd.f32 %v768, %v1905
        %1907 = vmatprep.mubr.bf16.mxu0 0
        %1908 = vmatmul.mubr.bf16.gmra.mxu0 %v980
        %v1909 = vpop.f32.mrf.mxu0
        %v1910 = vadd.f32 %v764, %v1909
        %v1911 = vpop.f32.mrf.mxu0
        %v1912 = vadd.f32 %v768, %v1911
        %v1913 = vpop.f32.mrf.mxu0
        %v1914 = vadd.f32 %v764, %v1913
        %v1915 = vpop.f32.mrf.mxu0
        %v1916 = vadd.f32 %v768, %v1915
        %1917 = vmatprep.mubr.bf16.mxu0 0
        %1918 = vmatmul.mubr.bf16.gmra.mxu0 %v983
        %v1919 = vpop.f32.mrf.mxu0
        %v1920 = vadd.f32 %v764, %v1919
        %v1921 = vpop.f32.mrf.mxu0
        %v1922 = vadd.f32 %v768, %v1921
        %v1923 = vpop.f32.mrf.mxu0
        %v1924 = vadd.f32 %v764, %v1923
        %v1925 = vpop.f32.mrf.mxu0
        %v1926 = vadd.f32 %v768, %v1925
        %1927 = vmatprep.mubr.bf16.mxu0 0
        %1928 = vmatmul.mubr.bf16.gmra.mxu0 %v986
        %v1929 = vpop.f32.mrf.mxu0
        %v1930 = vadd.f32 %v764, %v1929
        %v1931 = vpop.f32.mrf.mxu0
        %v1932 = vadd.f32 %v768, %v1931
        %v1933 = vpop.f32.mrf.mxu0
        %v1934 = vadd.f32 %v764, %v1933
        %v1935 = vpop.f32.mrf.mxu0
        %v1936 = vadd.f32 %v768, %v1935
        %1937 = vmatprep.mubr.bf16.mxu0 0
        %1938 = vmatmul.mubr.bf16.gmra.mxu0 %v989
        %v1939 = vpop.f32.mrf.mxu0
        %v1940 = vadd.f32 %v764, %v1939
        %v1941 = vpop.f32.mrf.mxu0
        %v1942 = vadd.f32 %v768, %v1941
        %v1943 = vpop.f32.mrf.mxu0
        %v1944 = vadd.f32 %v764, %v1943
        %v1945 = vpop.f32.mrf.mxu0
        %v1946 = vadd.f32 %v768, %v1945
        %1947 = vmatprep.mubr.bf16.mxu0 0
        %1948 = vmatmul.mubr.bf16.gmra.mxu0 %v992
        %v1949 = vpop.f32.mrf.mxu0
        %v1950 = vadd.f32 %v764, %v1949
        %v1951 = vpop.f32.mrf.mxu0
        %v1952 = vadd.f32 %v768, %v1951
        %v1953 = vpop.f32.mrf.mxu0
        %v1954 = vadd.f32 %v764, %v1953
        %v1955 = vpop.f32.mrf.mxu0
        %v1956 = vadd.f32 %v768, %v1955
        %1957 = vmatprep.mubr.bf16.mxu0 0
        %1958 = vmatmul.mubr.bf16.gmra.mxu0 %v995
        %v1959 = vpop.f32.mrf.mxu0
        %v1960 = vadd.f32 %v764, %v1959
        %v1961 = vpop.f32.mrf.mxu0
        %v1962 = vadd.f32 %v768, %v1961
        %v1963 = vpop.f32.mrf.mxu0
        %v1964 = vadd.f32 %v764, %v1963
        %v1965 = vpop.f32.mrf.mxu0
        %v1966 = vadd.f32 %v768, %v1965
        %1967 = vmatprep.mubr.bf16.mxu0 0
        %1968 = vmatmul.mubr.bf16.gmra.mxu0 %v998
        %v1969 = vpop.f32.mrf.mxu0
        %v1970 = vadd.f32 %v764, %v1969
        %v1971 = vpop.f32.mrf.mxu0
        %v1972 = vadd.f32 %v768, %v1971
        %v1973 = vpop.f32.mrf.mxu0
        %v1974 = vadd.f32 %v764, %v1973
        %v1975 = vpop.f32.mrf.mxu0
        %v1976 = vadd.f32 %v768, %v1975
        %1977 = vdwg.mxu0
        %1978 = vmatprep.subr.bf16.mxu0 0
        %1979 = vmatpush1.bf16.msra.mxu0 0
        %1980 = vmatprep.subr.bf16.mxu0 0
        %1981 = vmatpush1.bf16.msra.mxu0 0
        %1982 = vmatprep.subr.bf16.mxu0 0
        %1983 = vmatpush1.bf16.msra.mxu0 0
        %1984 = vmatprep.subr.bf16.mxu0 0
        %1985 = vmatpush1.bf16.msra.mxu0 0
        %1986 = vmatprep.subr.bf16.mxu0 0
        %1987 = vmatpush1.bf16.msra.mxu0 0
        %1988 = vmatprep.subr.bf16.mxu0 0
        %1989 = vmatpush1.bf16.msra.mxu0 0
        %1990 = vmatprep.subr.bf16.mxu0 %v926
        %1991 = vmatpush1.bf16.msra.mxu0 %v925
        %1992 = vmatprep.subr.bf16.mxu0 %v910
        %1993 = vmatpush1.bf16.msra.mxu0 %v909
        %1994 = vmatprep.subr.bf16.mxu0 0
        %1995 = vmatpush2.bf16.msra.mxu0 0
        %1996 = vmatprep.subr.bf16.mxu0 0
        %1997 = vmatpush2.bf16.msra.mxu0 0
        %1998 = vmatprep.subr.bf16.mxu0 0
        %1999 = vmatpush2.bf16.msra.mxu0 0
        %2000 = vmatprep.subr.bf16.mxu0 0
        %2001 = vmatpush2.bf16.msra.mxu0 0
        %2002 = vmatprep.subr.bf16.mxu0 0
        %2003 = vmatpush2.bf16.msra.mxu0 0
        %2004 = vmatprep.subr.bf16.mxu0 0
        %2005 = vmatpush2.bf16.msra.mxu0 0
        %2006 = vmatprep.subr.bf16.mxu0 0
        %2007 = vmatpush2.bf16.msra.mxu0 0
        %2008 = vmatprep.subr.bf16.mxu0 0
        %2009 = vmatpush2.bf16.msra.mxu0 0
        %2010 = vmatprep.mubr.bf16.mxu0 0
        %2011 = vmatmul.mubr.bf16.gmra.mxu0 %v962
        %v2012 = vpop.f32.mrf.mxu0
        %v2013 = vadd.f32 %v772, %v2012
        %v2014 = vpop.f32.mrf.mxu0
        %v2015 = vadd.f32 %v776, %v2014
        %v2016 = vpop.f32.mrf.mxu0
        %v2017 = vadd.f32 %v772, %v2016
        %v2018 = vpop.f32.mrf.mxu0
        %v2019 = vadd.f32 %v776, %v2018
        %2020 = vmatprep.mubr.bf16.mxu0 0
        %2021 = vmatmul.mubr.bf16.gmra.mxu0 %v965
        %v2022 = vpop.f32.mrf.mxu0
        %v2023 = vadd.f32 %v772, %v2022
        %v2024 = vpop.f32.mrf.mxu0
        %v2025 = vadd.f32 %v776, %v2024
        %v2026 = vpop.f32.mrf.mxu0
        %v2027 = vadd.f32 %v772, %v2026
        %v2028 = vpop.f32.mrf.mxu0
        %v2029 = vadd.f32 %v776, %v2028
        %2030 = vmatprep.mubr.bf16.mxu0 0
        %2031 = vmatmul.mubr.bf16.gmra.mxu0 %v968
        %v2032 = vpop.f32.mrf.mxu0
        %v2033 = vadd.f32 %v772, %v2032
        %v2034 = vpop.f32.mrf.mxu0
        %v2035 = vadd.f32 %v776, %v2034
        %v2036 = vpop.f32.mrf.mxu0
        %v2037 = vadd.f32 %v772, %v2036
        %v2038 = vpop.f32.mrf.mxu0
        %v2039 = vadd.f32 %v776, %v2038
        %2040 = vmatprep.mubr.bf16.mxu0 0
        %2041 = vmatmul.mubr.bf16.gmra.mxu0 %v971
        %v2042 = vpop.f32.mrf.mxu0
        %v2043 = vadd.f32 %v772, %v2042
        %v2044 = vpop.f32.mrf.mxu0
        %v2045 = vadd.f32 %v776, %v2044
        %v2046 = vpop.f32.mrf.mxu0
        %v2047 = vadd.f32 %v772, %v2046
        %v2048 = vpop.f32.mrf.mxu0
        %v2049 = vadd.f32 %v776, %v2048
        %2050 = vmatprep.mubr.bf16.mxu0 0
        %2051 = vmatmul.mubr.bf16.gmra.mxu0 %v974
        %v2052 = vpop.f32.mrf.mxu0
        %v2053 = vadd.f32 %v772, %v2052
        %v2054 = vpop.f32.mrf.mxu0
        %v2055 = vadd.f32 %v776, %v2054
        %v2056 = vpop.f32.mrf.mxu0
        %v2057 = vadd.f32 %v772, %v2056
        %v2058 = vpop.f32.mrf.mxu0
        %v2059 = vadd.f32 %v776, %v2058
        %2060 = vmatprep.mubr.bf16.mxu0 0
        %2061 = vmatmul.mubr.bf16.gmra.mxu0 %v977
        %v2062 = vpop.f32.mrf.mxu0
        %v2063 = vadd.f32 %v772, %v2062
        %v2064 = vpop.f32.mrf.mxu0
        %v2065 = vadd.f32 %v776, %v2064
        %v2066 = vpop.f32.mrf.mxu0
        %v2067 = vadd.f32 %v772, %v2066
        %v2068 = vpop.f32.mrf.mxu0
        %v2069 = vadd.f32 %v776, %v2068
        %2070 = vmatprep.mubr.bf16.mxu0 0
        %2071 = vmatmul.mubr.bf16.gmra.mxu0 %v980
        %v2072 = vpop.f32.mrf.mxu0
        %v2073 = vadd.f32 %v772, %v2072
        %v2074 = vpop.f32.mrf.mxu0
        %v2075 = vadd.f32 %v776, %v2074
        %v2076 = vpop.f32.mrf.mxu0
        %v2077 = vadd.f32 %v772, %v2076
        %v2078 = vpop.f32.mrf.mxu0
        %v2079 = vadd.f32 %v776, %v2078
        %2080 = vmatprep.mubr.bf16.mxu0 0
        %2081 = vmatmul.mubr.bf16.gmra.mxu0 %v983
        %v2082 = vpop.f32.mrf.mxu0
        %v2083 = vadd.f32 %v772, %v2082
        %v2084 = vpop.f32.mrf.mxu0
        %v2085 = vadd.f32 %v776, %v2084
        %v2086 = vpop.f32.mrf.mxu0
        %v2087 = vadd.f32 %v772, %v2086
        %v2088 = vpop.f32.mrf.mxu0
        %v2089 = vadd.f32 %v776, %v2088
        %2090 = vmatprep.mubr.bf16.mxu0 0
        %2091 = vmatmul.mubr.bf16.gmra.mxu0 %v986
        %v2092 = vpop.f32.mrf.mxu0
        %v2093 = vadd.f32 %v772, %v2092
        %v2094 = vpop.f32.mrf.mxu0
        %v2095 = vadd.f32 %v776, %v2094
        %v2096 = vpop.f32.mrf.mxu0
        %v2097 = vadd.f32 %v772, %v2096
        %v2098 = vpop.f32.mrf.mxu0
        %v2099 = vadd.f32 %v776, %v2098
        %2100 = vmatprep.mubr.bf16.mxu0 0
        %2101 = vmatmul.mubr.bf16.gmra.mxu0 %v989
        %v2102 = vpop.f32.mrf.mxu0
        %v2103 = vadd.f32 %v772, %v2102
        %v2104 = vpop.f32.mrf.mxu0
        %v2105 = vadd.f32 %v776, %v2104
        %v2106 = vpop.f32.mrf.mxu0
        %v2107 = vadd.f32 %v772, %v2106
        %v2108 = vpop.f32.mrf.mxu0
        %v2109 = vadd.f32 %v776, %v2108
        %2110 = vmatprep.mubr.bf16.mxu0 0
        %2111 = vmatmul.mubr.bf16.gmra.mxu0 %v992
        %v2112 = vpop.f32.mrf.mxu0
        %v2113 = vadd.f32 %v772, %v2112
        %v2114 = vpop.f32.mrf.mxu0
        %v2115 = vadd.f32 %v776, %v2114
        %v2116 = vpop.f32.mrf.mxu0
        %v2117 = vadd.f32 %v772, %v2116
        %v2118 = vpop.f32.mrf.mxu0
        %v2119 = vadd.f32 %v776, %v2118
        %2120 = vmatprep.mubr.bf16.mxu0 0
        %2121 = vmatmul.mubr.bf16.gmra.mxu0 %v995
        %v2122 = vpop.f32.mrf.mxu0
        %v2123 = vadd.f32 %v772, %v2122
        %v2124 = vpop.f32.mrf.mxu0
        %v2125 = vadd.f32 %v776, %v2124
        %v2126 = vpop.f32.mrf.mxu0
        %v2127 = vadd.f32 %v772, %v2126
        %v2128 = vpop.f32.mrf.mxu0
        %v2129 = vadd.f32 %v776, %v2128
        %2130 = vmatprep.mubr.bf16.mxu0 0
        %2131 = vmatmul.mubr.bf16.gmra.mxu0 %v998
        %v2132 = vpop.f32.mrf.mxu0
        %v2133 = vadd.f32 %v772, %v2132
        %v2134 = vpop.f32.mrf.mxu0
        %v2135 = vadd.f32 %v776, %v2134
        %v2136 = vpop.f32.mrf.mxu0
        %v2137 = vadd.f32 %v772, %v2136
        %v2138 = vpop.f32.mrf.mxu0
        %v2139 = vadd.f32 %v776, %v2138
        %2140 = vdwg.mxu0
        %2141 = vmatprep.subr.bf16.mxu0 0
        %2142 = vmatpush1.bf16.msra.mxu0 0
        %2143 = vmatprep.subr.bf16.mxu0 0
        %2144 = vmatpush1.bf16.msra.mxu0 0
        %2145 = vmatprep.subr.bf16.mxu0 0
        %2146 = vmatpush1.bf16.msra.mxu0 0
        %2147 = vmatprep.subr.bf16.mxu0 0
        %2148 = vmatpush1.bf16.msra.mxu0 0
        %2149 = vmatprep.subr.bf16.mxu0 0
        %2150 = vmatpush1.bf16.msra.mxu0 0
        %2151 = vmatprep.subr.bf16.mxu0 0
        %2152 = vmatpush1.bf16.msra.mxu0 0
        %2153 = vmatprep.subr.bf16.mxu0 %v928
        %2154 = vmatpush1.bf16.msra.mxu0 %v927
        %2155 = vmatprep.subr.bf16.mxu0 %v912
        %2156 = vmatpush1.bf16.msra.mxu0 %v911
        %2157 = vmatprep.subr.bf16.mxu0 0
        %2158 = vmatpush2.bf16.msra.mxu0 0
        %2159 = vmatprep.subr.bf16.mxu0 0
        %2160 = vmatpush2.bf16.msra.mxu0 0
        %2161 = vmatprep.subr.bf16.mxu0 0
        %2162 = vmatpush2.bf16.msra.mxu0 0
        %2163 = vmatprep.subr.bf16.mxu0 0
        %2164 = vmatpush2.bf16.msra.mxu0 0
        %2165 = vmatprep.subr.bf16.mxu0 0
        %2166 = vmatpush2.bf16.msra.mxu0 0
        %2167 = vmatprep.subr.bf16.mxu0 0
        %2168 = vmatpush2.bf16.msra.mxu0 0
        %2169 = vmatprep.subr.bf16.mxu0 0
        %2170 = vmatpush2.bf16.msra.mxu0 0
        %2171 = vmatprep.subr.bf16.mxu0 0
        %2172 = vmatpush2.bf16.msra.mxu0 0
        %2173 = vmatprep.mubr.bf16.mxu0 0
        %2174 = vmatmul.mubr.bf16.gmra.mxu0 %v962
        %v2175 = vpop.f32.mrf.mxu0
        %v2176 = vadd.f32 %v780, %v2175
        %v2177 = vpop.f32.mrf.mxu0
        %v2178 = vadd.f32 %v784, %v2177
        %v2179 = vpop.f32.mrf.mxu0
        %v2180 = vadd.f32 %v780, %v2179
        %v2181 = vpop.f32.mrf.mxu0
        %v2182 = vadd.f32 %v784, %v2181
        %2183 = vmatprep.mubr.bf16.mxu0 0
        %2184 = vmatmul.mubr.bf16.gmra.mxu0 %v965
        %v2185 = vpop.f32.mrf.mxu0
        %v2186 = vadd.f32 %v780, %v2185
        %v2187 = vpop.f32.mrf.mxu0
        %v2188 = vadd.f32 %v784, %v2187
        %v2189 = vpop.f32.mrf.mxu0
        %v2190 = vadd.f32 %v780, %v2189
        %v2191 = vpop.f32.mrf.mxu0
        %v2192 = vadd.f32 %v784, %v2191
        %2193 = vmatprep.mubr.bf16.mxu0 0
        %2194 = vmatmul.mubr.bf16.gmra.mxu0 %v968
        %v2195 = vpop.f32.mrf.mxu0
        %v2196 = vadd.f32 %v780, %v2195
        %v2197 = vpop.f32.mrf.mxu0
        %v2198 = vadd.f32 %v784, %v2197
        %v2199 = vpop.f32.mrf.mxu0
        %v2200 = vadd.f32 %v780, %v2199
        %v2201 = vpop.f32.mrf.mxu0
        %v2202 = vadd.f32 %v784, %v2201
        %2203 = vmatprep.mubr.bf16.mxu0 0
        %2204 = vmatmul.mubr.bf16.gmra.mxu0 %v971
        %v2205 = vpop.f32.mrf.mxu0
        %v2206 = vadd.f32 %v780, %v2205
        %v2207 = vpop.f32.mrf.mxu0
        %v2208 = vadd.f32 %v784, %v2207
        %v2209 = vpop.f32.mrf.mxu0
        %v2210 = vadd.f32 %v780, %v2209
        %v2211 = vpop.f32.mrf.mxu0
        %v2212 = vadd.f32 %v784, %v2211
        %2213 = vmatprep.mubr.bf16.mxu0 0
        %2214 = vmatmul.mubr.bf16.gmra.mxu0 %v974
        %v2215 = vpop.f32.mrf.mxu0
        %v2216 = vadd.f32 %v780, %v2215
        %v2217 = vpop.f32.mrf.mxu0
        %v2218 = vadd.f32 %v784, %v2217
        %v2219 = vpop.f32.mrf.mxu0
        %v2220 = vadd.f32 %v780, %v2219
        %v2221 = vpop.f32.mrf.mxu0
        %v2222 = vadd.f32 %v784, %v2221
        %2223 = vmatprep.mubr.bf16.mxu0 0
        %2224 = vmatmul.mubr.bf16.gmra.mxu0 %v977
        %v2225 = vpop.f32.mrf.mxu0
        %v2226 = vadd.f32 %v780, %v2225
        %v2227 = vpop.f32.mrf.mxu0
        %v2228 = vadd.f32 %v784, %v2227
        %v2229 = vpop.f32.mrf.mxu0
        %v2230 = vadd.f32 %v780, %v2229
        %v2231 = vpop.f32.mrf.mxu0
        %v2232 = vadd.f32 %v784, %v2231
        %2233 = vmatprep.mubr.bf16.mxu0 0
        %2234 = vmatmul.mubr.bf16.gmra.mxu0 %v980
        %v2235 = vpop.f32.mrf.mxu0
        %v2236 = vadd.f32 %v780, %v2235
        %v2237 = vpop.f32.mrf.mxu0
        %v2238 = vadd.f32 %v784, %v2237
        %v2239 = vpop.f32.mrf.mxu0
        %v2240 = vadd.f32 %v780, %v2239
        %v2241 = vpop.f32.mrf.mxu0
        %v2242 = vadd.f32 %v784, %v2241
        %2243 = vmatprep.mubr.bf16.mxu0 0
        %2244 = vmatmul.mubr.bf16.gmra.mxu0 %v983
        %v2245 = vpop.f32.mrf.mxu0
        %v2246 = vadd.f32 %v780, %v2245
        %v2247 = vpop.f32.mrf.mxu0
        %v2248 = vadd.f32 %v784, %v2247
        %v2249 = vpop.f32.mrf.mxu0
        %v2250 = vadd.f32 %v780, %v2249
        %v2251 = vpop.f32.mrf.mxu0
        %v2252 = vadd.f32 %v784, %v2251
        %2253 = vmatprep.mubr.bf16.mxu0 0
        %2254 = vmatmul.mubr.bf16.gmra.mxu0 %v986
        %v2255 = vpop.f32.mrf.mxu0
        %v2256 = vadd.f32 %v780, %v2255
        %v2257 = vpop.f32.mrf.mxu0
        %v2258 = vadd.f32 %v784, %v2257
        %v2259 = vpop.f32.mrf.mxu0
        %v2260 = vadd.f32 %v780, %v2259
        %v2261 = vpop.f32.mrf.mxu0
        %v2262 = vadd.f32 %v784, %v2261
        %2263 = vmatprep.mubr.bf16.mxu0 0
        %2264 = vmatmul.mubr.bf16.gmra.mxu0 %v989
        %v2265 = vpop.f32.mrf.mxu0
        %v2266 = vadd.f32 %v780, %v2265
        %v2267 = vpop.f32.mrf.mxu0
        %v2268 = vadd.f32 %v784, %v2267
        %v2269 = vpop.f32.mrf.mxu0
        %v2270 = vadd.f32 %v780, %v2269
        %v2271 = vpop.f32.mrf.mxu0
        %v2272 = vadd.f32 %v784, %v2271
        %2273 = vmatprep.mubr.bf16.mxu0 0
        %2274 = vmatmul.mubr.bf16.gmra.mxu0 %v992
        %v2275 = vpop.f32.mrf.mxu0
        %v2276 = vadd.f32 %v780, %v2275
        %v2277 = vpop.f32.mrf.mxu0
        %v2278 = vadd.f32 %v784, %v2277
        %v2279 = vpop.f32.mrf.mxu0
        %v2280 = vadd.f32 %v780, %v2279
        %v2281 = vpop.f32.mrf.mxu0
        %v2282 = vadd.f32 %v784, %v2281
        %2283 = vmatprep.mubr.bf16.mxu0 0
        %2284 = vmatmul.mubr.bf16.gmra.mxu0 %v995
        %v2285 = vpop.f32.mrf.mxu0
        %v2286 = vadd.f32 %v780, %v2285
        %v2287 = vpop.f32.mrf.mxu0
        %v2288 = vadd.f32 %v784, %v2287
        %v2289 = vpop.f32.mrf.mxu0
        %v2290 = vadd.f32 %v780, %v2289
        %v2291 = vpop.f32.mrf.mxu0
        %v2292 = vadd.f32 %v784, %v2291
        %2293 = vmatprep.mubr.bf16.mxu0 0
        %2294 = vmatmul.mubr.bf16.gmra.mxu0 %v998
        %v2295 = vpop.f32.mrf.mxu0
        %v2296 = vadd.f32 %v780, %v2295
        %v2297 = vpop.f32.mrf.mxu0
        %v2298 = vadd.f32 %v784, %v2297
        %v2299 = vpop.f32.mrf.mxu0
        %v2300 = vadd.f32 %v780, %v2299
        %v2301 = vpop.f32.mrf.mxu0
        %v2302 = vadd.f32 %v784, %v2301
        %2303 = vdwg.mxu0
        %v2304 = vmax.f32 %v1035, 0.0
        %v2305 = vmax.f32 %v1037, 0.0
        %v2306 = vmax.f32 %v1198, 0.0
        %v2307 = vmax.f32 %v1200, 0.0
        %v2308 = vmax.f32 %v1361, 0.0
        %v2309 = vmax.f32 %v1363, 0.0
        %v2310 = vmax.f32 %v1524, 0.0
        %v2311 = vmax.f32 %v1526, 0.0
        %v2312 = vmax.f32 %v1687, 0.0
        %v2313 = vmax.f32 %v1689, 0.0
        %v2314 = vmax.f32 %v1850, 0.0
        %v2315 = vmax.f32 %v1852, 0.0
        %v2316 = vmax.f32 %v2013, 0.0
        %v2317 = vmax.f32 %v2015, 0.0
        %v2318 = vmax.f32 %v2176, 0.0
        %v2319 = vmax.f32 %v2178, 0.0
        %v2320 = vmax.f32 %v1039, 0.0
        %v2321 = vmax.f32 %v1041, 0.0
        %v2322 = vmax.f32 %v1202, 0.0
        %v2323 = vmax.f32 %v1204, 0.0
        %v2324 = vmax.f32 %v1365, 0.0
        %v2325 = vmax.f32 %v1367, 0.0
        %v2326 = vmax.f32 %v1528, 0.0
        %v2327 = vmax.f32 %v1530, 0.0
        %v2328 = vmax.f32 %v1691, 0.0
        %v2329 = vmax.f32 %v1693, 0.0
        %v2330 = vmax.f32 %v1854, 0.0
        %v2331 = vmax.f32 %v1856, 0.0
        %v2332 = vmax.f32 %v2017, 0.0
        %v2333 = vmax.f32 %v2019, 0.0
        %v2334 = vmax.f32 %v2180, 0.0
        %v2335 = vmax.f32 %v2182, 0.0
        %v2336 = vmax.f32 %v1045, 0.0
        %v2337 = vmax.f32 %v1047, 0.0
        %v2338 = vmax.f32 %v1208, 0.0
        %v2339 = vmax.f32 %v1210, 0.0
        %v2340 = vmax.f32 %v1371, 0.0
        %v2341 = vmax.f32 %v1373, 0.0
        %v2342 = vmax.f32 %v1534, 0.0
        %v2343 = vmax.f32 %v1536, 0.0
        %v2344 = vmax.f32 %v1697, 0.0
        %v2345 = vmax.f32 %v1699, 0.0
        %v2346 = vmax.f32 %v1860, 0.0
        %v2347 = vmax.f32 %v1862, 0.0
        %v2348 = vmax.f32 %v2023, 0.0
        %v2349 = vmax.f32 %v2025, 0.0
        %v2350 = vmax.f32 %v2186, 0.0
        %v2351 = vmax.f32 %v2188, 0.0
        %v2352 = vmax.f32 %v1049, 0.0
        %v2353 = vmax.f32 %v1051, 0.0
        %v2354 = vmax.f32 %v1212, 0.0
        %v2355 = vmax.f32 %v1214, 0.0
        %v2356 = vmax.f32 %v1375, 0.0
        %v2357 = vmax.f32 %v1377, 0.0
        %v2358 = vmax.f32 %v1538, 0.0
        %v2359 = vmax.f32 %v1540, 0.0
        %v2360 = vmax.f32 %v1701, 0.0
        %v2361 = vmax.f32 %v1703, 0.0
        %v2362 = vmax.f32 %v1864, 0.0
        %v2363 = vmax.f32 %v1866, 0.0
        %v2364 = vmax.f32 %v2027, 0.0
        %v2365 = vmax.f32 %v2029, 0.0
        %v2366 = vmax.f32 %v2190, 0.0
        %v2367 = vmax.f32 %v2192, 0.0
        %v2368 = vmax.f32 %v1055, 0.0
        %v2369 = vmax.f32 %v1057, 0.0
        %v2370 = vmax.f32 %v1218, 0.0
        %v2371 = vmax.f32 %v1220, 0.0
        %v2372 = vmax.f32 %v1381, 0.0
        %v2373 = vmax.f32 %v1383, 0.0
        %v2374 = vmax.f32 %v1544, 0.0
        %v2375 = vmax.f32 %v1546, 0.0
        %v2376 = vmax.f32 %v1707, 0.0
        %v2377 = vmax.f32 %v1709, 0.0
        %v2378 = vmax.f32 %v1870, 0.0
        %v2379 = vmax.f32 %v1872, 0.0
        %v2380 = vmax.f32 %v2033, 0.0
        %v2381 = vmax.f32 %v2035, 0.0
        %v2382 = vmax.f32 %v2196, 0.0
        %v2383 = vmax.f32 %v2198, 0.0
        %v2384 = vmax.f32 %v1059, 0.0
        %v2385 = vmax.f32 %v1061, 0.0
        %v2386 = vmax.f32 %v1222, 0.0
        %v2387 = vmax.f32 %v1224, 0.0
        %v2388 = vmax.f32 %v1385, 0.0
        %v2389 = vmax.f32 %v1387, 0.0
        %v2390 = vmax.f32 %v1548, 0.0
        %v2391 = vmax.f32 %v1550, 0.0
        %v2392 = vmax.f32 %v1711, 0.0
        %v2393 = vmax.f32 %v1713, 0.0
        %v2394 = vmax.f32 %v1874, 0.0
        %v2395 = vmax.f32 %v1876, 0.0
        %v2396 = vmax.f32 %v2037, 0.0
        %v2397 = vmax.f32 %v2039, 0.0
        %v2398 = vmax.f32 %v2200, 0.0
        %v2399 = vmax.f32 %v2202, 0.0
        %v2400 = vmax.f32 %v1065, 0.0
        %v2401 = vmax.f32 %v1067, 0.0
        %v2402 = vmax.f32 %v1228, 0.0
        %v2403 = vmax.f32 %v1230, 0.0
        %v2404 = vmax.f32 %v1391, 0.0
        %v2405 = vmax.f32 %v1393, 0.0
        %v2406 = vmax.f32 %v1554, 0.0
        %v2407 = vmax.f32 %v1556, 0.0
        %v2408 = vmax.f32 %v1717, 0.0
        %v2409 = vmax.f32 %v1719, 0.0
        %v2410 = vmax.f32 %v1880, 0.0
        %v2411 = vmax.f32 %v1882, 0.0
        %v2412 = vmax.f32 %v2043, 0.0
        %v2413 = vmax.f32 %v2045, 0.0
        %v2414 = vmax.f32 %v2206, 0.0
        %v2415 = vmax.f32 %v2208, 0.0
        %v2416 = vmax.f32 %v1069, 0.0
        %v2417 = vmax.f32 %v1071, 0.0
        %v2418 = vmax.f32 %v1232, 0.0
        %v2419 = vmax.f32 %v1234, 0.0
        %v2420 = vmax.f32 %v1395, 0.0
        %v2421 = vmax.f32 %v1397, 0.0
        %v2422 = vmax.f32 %v1558, 0.0
        %v2423 = vmax.f32 %v1560, 0.0
        %v2424 = vmax.f32 %v1721, 0.0
        %v2425 = vmax.f32 %v1723, 0.0
        %v2426 = vmax.f32 %v1884, 0.0
        %v2427 = vmax.f32 %v1886, 0.0
        %v2428 = vmax.f32 %v2047, 0.0
        %v2429 = vmax.f32 %v2049, 0.0
        %v2430 = vmax.f32 %v2210, 0.0
        %v2431 = vmax.f32 %v2212, 0.0
        %v2432 = vmax.f32 %v1075, 0.0
        %v2433 = vmax.f32 %v1077, 0.0
        %v2434 = vmax.f32 %v1238, 0.0
        %v2435 = vmax.f32 %v1240, 0.0
        %v2436 = vmax.f32 %v1401, 0.0
        %v2437 = vmax.f32 %v1403, 0.0
        %v2438 = vmax.f32 %v1564, 0.0
        %v2439 = vmax.f32 %v1566, 0.0
        %v2440 = vmax.f32 %v1727, 0.0
        %v2441 = vmax.f32 %v1729, 0.0
        %v2442 = vmax.f32 %v1890, 0.0
        %v2443 = vmax.f32 %v1892, 0.0
        %v2444 = vmax.f32 %v2053, 0.0
        %v2445 = vmax.f32 %v2055, 0.0
        %v2446 = vmax.f32 %v2216, 0.0
        %v2447 = vmax.f32 %v2218, 0.0
        %v2448 = vmax.f32 %v1079, 0.0
        %v2449 = vmax.f32 %v1081, 0.0
        %v2450 = vmax.f32 %v1242, 0.0
        %v2451 = vmax.f32 %v1244, 0.0
        %v2452 = vmax.f32 %v1405, 0.0
        %v2453 = vmax.f32 %v1407, 0.0
        %v2454 = vmax.f32 %v1568, 0.0
        %v2455 = vmax.f32 %v1570, 0.0
        %v2456 = vmax.f32 %v1731, 0.0
        %v2457 = vmax.f32 %v1733, 0.0
        %v2458 = vmax.f32 %v1894, 0.0
        %v2459 = vmax.f32 %v1896, 0.0
        %v2460 = vmax.f32 %v2057, 0.0
        %v2461 = vmax.f32 %v2059, 0.0
        %v2462 = vmax.f32 %v2220, 0.0
        %v2463 = vmax.f32 %v2222, 0.0
        %v2464 = vmax.f32 %v1085, 0.0
        %v2465 = vmax.f32 %v1087, 0.0
        %v2466 = vmax.f32 %v1248, 0.0
        %v2467 = vmax.f32 %v1250, 0.0
        %v2468 = vmax.f32 %v1411, 0.0
        %v2469 = vmax.f32 %v1413, 0.0
        %v2470 = vmax.f32 %v1574, 0.0
        %v2471 = vmax.f32 %v1576, 0.0
        %v2472 = vmax.f32 %v1737, 0.0
        %v2473 = vmax.f32 %v1739, 0.0
        %v2474 = vmax.f32 %v1900, 0.0
        %v2475 = vmax.f32 %v1902, 0.0
        %v2476 = vmax.f32 %v2063, 0.0
        %v2477 = vmax.f32 %v2065, 0.0
        %v2478 = vmax.f32 %v2226, 0.0
        %v2479 = vmax.f32 %v2228, 0.0
        %v2480 = vmax.f32 %v1089, 0.0
        %v2481 = vmax.f32 %v1091, 0.0
        %v2482 = vmax.f32 %v1252, 0.0
        %v2483 = vmax.f32 %v1254, 0.0
        %v2484 = vmax.f32 %v1415, 0.0
        %v2485 = vmax.f32 %v1417, 0.0
        %v2486 = vmax.f32 %v1578, 0.0
        %v2487 = vmax.f32 %v1580, 0.0
        %v2488 = vmax.f32 %v1741, 0.0
        %v2489 = vmax.f32 %v1743, 0.0
        %v2490 = vmax.f32 %v1904, 0.0
        %v2491 = vmax.f32 %v1906, 0.0
        %v2492 = vmax.f32 %v2067, 0.0
        %v2493 = vmax.f32 %v2069, 0.0
        %v2494 = vmax.f32 %v2230, 0.0
        %v2495 = vmax.f32 %v2232, 0.0
        %v2496 = vmax.f32 %v1095, 0.0
        %v2497 = vmax.f32 %v1097, 0.0
        %v2498 = vmax.f32 %v1258, 0.0
        %v2499 = vmax.f32 %v1260, 0.0
        %v2500 = vmax.f32 %v1421, 0.0
        %v2501 = vmax.f32 %v1423, 0.0
        %v2502 = vmax.f32 %v1584, 0.0
        %v2503 = vmax.f32 %v1586, 0.0
        %v2504 = vmax.f32 %v1747, 0.0
        %v2505 = vmax.f32 %v1749, 0.0
        %v2506 = vmax.f32 %v1910, 0.0
        %v2507 = vmax.f32 %v1912, 0.0
        %v2508 = vmax.f32 %v2073, 0.0
        %v2509 = vmax.f32 %v2075, 0.0
        %v2510 = vmax.f32 %v2236, 0.0
        %v2511 = vmax.f32 %v2238, 0.0
        %v2512 = vmax.f32 %v1099, 0.0
        %v2513 = vmax.f32 %v1101, 0.0
        %v2514 = vmax.f32 %v1262, 0.0
        %v2515 = vmax.f32 %v1264, 0.0
        %v2516 = vmax.f32 %v1425, 0.0
        %v2517 = vmax.f32 %v1427, 0.0
        %v2518 = vmax.f32 %v1588, 0.0
        %v2519 = vmax.f32 %v1590, 0.0
        %v2520 = vmax.f32 %v1751, 0.0
        %v2521 = vmax.f32 %v1753, 0.0
        %v2522 = vmax.f32 %v1914, 0.0
        %v2523 = vmax.f32 %v1916, 0.0
        %v2524 = vmax.f32 %v2077, 0.0
        %v2525 = vmax.f32 %v2079, 0.0
        %v2526 = vmax.f32 %v2240, 0.0
        %v2527 = vmax.f32 %v2242, 0.0
        %v2528 = vmax.f32 %v1105, 0.0
        %v2529 = vmax.f32 %v1107, 0.0
        %v2530 = vmax.f32 %v1268, 0.0
        %v2531 = vmax.f32 %v1270, 0.0
        %v2532 = vmax.f32 %v1431, 0.0
        %v2533 = vmax.f32 %v1433, 0.0
        %v2534 = vmax.f32 %v1594, 0.0
        %v2535 = vmax.f32 %v1596, 0.0
        %v2536 = vmax.f32 %v1757, 0.0
        %v2537 = vmax.f32 %v1759, 0.0
        %v2538 = vmax.f32 %v1920, 0.0
        %v2539 = vmax.f32 %v1922, 0.0
        %v2540 = vmax.f32 %v2083, 0.0
        %v2541 = vmax.f32 %v2085, 0.0
        %v2542 = vmax.f32 %v2246, 0.0
        %v2543 = vmax.f32 %v2248, 0.0
        %v2544 = vmax.f32 %v1109, 0.0
        %v2545 = vmax.f32 %v1111, 0.0
        %v2546 = vmax.f32 %v1272, 0.0
        %v2547 = vmax.f32 %v1274, 0.0
        %v2548 = vmax.f32 %v1435, 0.0
        %v2549 = vmax.f32 %v1437, 0.0
        %v2550 = vmax.f32 %v1598, 0.0
        %v2551 = vmax.f32 %v1600, 0.0
        %v2552 = vmax.f32 %v1761, 0.0
        %v2553 = vmax.f32 %v1763, 0.0
        %v2554 = vmax.f32 %v1924, 0.0
        %v2555 = vmax.f32 %v1926, 0.0
        %v2556 = vmax.f32 %v2087, 0.0
        %v2557 = vmax.f32 %v2089, 0.0
        %v2558 = vmax.f32 %v2250, 0.0
        %v2559 = vmax.f32 %v2252, 0.0
        %v2560 = vmax.f32 %v1115, 0.0
        %v2561 = vmax.f32 %v1117, 0.0
        %v2562 = vmax.f32 %v1278, 0.0
        %v2563 = vmax.f32 %v1280, 0.0
        %v2564 = vmax.f32 %v1441, 0.0
        %v2565 = vmax.f32 %v1443, 0.0
        %v2566 = vmax.f32 %v1604, 0.0
        %v2567 = vmax.f32 %v1606, 0.0
        %v2568 = vmax.f32 %v1767, 0.0
        %v2569 = vmax.f32 %v1769, 0.0
        %v2570 = vmax.f32 %v1930, 0.0
        %v2571 = vmax.f32 %v1932, 0.0
        %v2572 = vmax.f32 %v2093, 0.0
        %v2573 = vmax.f32 %v2095, 0.0
        %v2574 = vmax.f32 %v2256, 0.0
        %v2575 = vmax.f32 %v2258, 0.0
        %v2576 = vmax.f32 %v1119, 0.0
        %v2577 = vmax.f32 %v1121, 0.0
        %v2578 = vmax.f32 %v1282, 0.0
        %v2579 = vmax.f32 %v1284, 0.0
        %v2580 = vmax.f32 %v1445, 0.0
        %v2581 = vmax.f32 %v1447, 0.0
        %v2582 = vmax.f32 %v1608, 0.0
        %v2583 = vmax.f32 %v1610, 0.0
        %v2584 = vmax.f32 %v1771, 0.0
        %v2585 = vmax.f32 %v1773, 0.0
        %v2586 = vmax.f32 %v1934, 0.0
        %v2587 = vmax.f32 %v1936, 0.0
        %v2588 = vmax.f32 %v2097, 0.0
        %v2589 = vmax.f32 %v2099, 0.0
        %v2590 = vmax.f32 %v2260, 0.0
        %v2591 = vmax.f32 %v2262, 0.0
        %v2592 = vmax.f32 %v1125, 0.0
        %v2593 = vmax.f32 %v1127, 0.0
        %v2594 = vmax.f32 %v1288, 0.0
        %v2595 = vmax.f32 %v1290, 0.0
        %v2596 = vmax.f32 %v1451, 0.0
        %v2597 = vmax.f32 %v1453, 0.0
        %v2598 = vmax.f32 %v1614, 0.0
        %v2599 = vmax.f32 %v1616, 0.0
        %v2600 = vmax.f32 %v1777, 0.0
        %v2601 = vmax.f32 %v1779, 0.0
        %v2602 = vmax.f32 %v1940, 0.0
        %v2603 = vmax.f32 %v1942, 0.0
        %v2604 = vmax.f32 %v2103, 0.0
        %v2605 = vmax.f32 %v2105, 0.0
        %v2606 = vmax.f32 %v2266, 0.0
        %v2607 = vmax.f32 %v2268, 0.0
        %v2608 = vmax.f32 %v1129, 0.0
        %v2609 = vmax.f32 %v1131, 0.0
        %v2610 = vmax.f32 %v1292, 0.0
        %v2611 = vmax.f32 %v1294, 0.0
        %v2612 = vmax.f32 %v1455, 0.0
        %v2613 = vmax.f32 %v1457, 0.0
        %v2614 = vmax.f32 %v1618, 0.0
        %v2615 = vmax.f32 %v1620, 0.0
        %v2616 = vmax.f32 %v1781, 0.0
        %v2617 = vmax.f32 %v1783, 0.0
        %v2618 = vmax.f32 %v1944, 0.0
        %v2619 = vmax.f32 %v1946, 0.0
        %v2620 = vmax.f32 %v2107, 0.0
        %v2621 = vmax.f32 %v2109, 0.0
        %v2622 = vmax.f32 %v2270, 0.0
        %v2623 = vmax.f32 %v2272, 0.0
        %v2624 = vmax.f32 %v1135, 0.0
        %v2625 = vmax.f32 %v1137, 0.0
        %v2626 = vmax.f32 %v1298, 0.0
        %v2627 = vmax.f32 %v1300, 0.0
        %v2628 = vmax.f32 %v1461, 0.0
        %v2629 = vmax.f32 %v1463, 0.0
        %v2630 = vmax.f32 %v1624, 0.0
        %v2631 = vmax.f32 %v1626, 0.0
        %v2632 = vmax.f32 %v1787, 0.0
        %v2633 = vmax.f32 %v1789, 0.0
        %v2634 = vmax.f32 %v1950, 0.0
        %v2635 = vmax.f32 %v1952, 0.0
        %v2636 = vmax.f32 %v2113, 0.0
        %v2637 = vmax.f32 %v2115, 0.0
        %v2638 = vmax.f32 %v2276, 0.0
        %v2639 = vmax.f32 %v2278, 0.0
        %v2640 = vmax.f32 %v1139, 0.0
        %v2641 = vmax.f32 %v1141, 0.0
        %v2642 = vmax.f32 %v1302, 0.0
        %v2643 = vmax.f32 %v1304, 0.0
        %v2644 = vmax.f32 %v1465, 0.0
        %v2645 = vmax.f32 %v1467, 0.0
        %v2646 = vmax.f32 %v1628, 0.0
        %v2647 = vmax.f32 %v1630, 0.0
        %v2648 = vmax.f32 %v1791, 0.0
        %v2649 = vmax.f32 %v1793, 0.0
        %v2650 = vmax.f32 %v1954, 0.0
        %v2651 = vmax.f32 %v1956, 0.0
        %v2652 = vmax.f32 %v2117, 0.0
        %v2653 = vmax.f32 %v2119, 0.0
        %v2654 = vmax.f32 %v2280, 0.0
        %v2655 = vmax.f32 %v2282, 0.0
        %v2656 = vmax.f32 %v1145, 0.0
        %v2657 = vmax.f32 %v1147, 0.0
        %v2658 = vmax.f32 %v1308, 0.0
        %v2659 = vmax.f32 %v1310, 0.0
        %v2660 = vmax.f32 %v1471, 0.0
        %v2661 = vmax.f32 %v1473, 0.0
        %v2662 = vmax.f32 %v1634, 0.0
        %v2663 = vmax.f32 %v1636, 0.0
        %v2664 = vmax.f32 %v1797, 0.0
        %v2665 = vmax.f32 %v1799, 0.0
        %v2666 = vmax.f32 %v1960, 0.0
        %v2667 = vmax.f32 %v1962, 0.0
        %v2668 = vmax.f32 %v2123, 0.0
        %v2669 = vmax.f32 %v2125, 0.0
        %v2670 = vmax.f32 %v2286, 0.0
        %v2671 = vmax.f32 %v2288, 0.0
        %v2672 = vmax.f32 %v1149, 0.0
        %v2673 = vmax.f32 %v1151, 0.0
        %v2674 = vmax.f32 %v1312, 0.0
        %v2675 = vmax.f32 %v1314, 0.0
        %v2676 = vmax.f32 %v1475, 0.0
        %v2677 = vmax.f32 %v1477, 0.0
        %v2678 = vmax.f32 %v1638, 0.0
        %v2679 = vmax.f32 %v1640, 0.0
        %v2680 = vmax.f32 %v1801, 0.0
        %v2681 = vmax.f32 %v1803, 0.0
        %v2682 = vmax.f32 %v1964, 0.0
        %v2683 = vmax.f32 %v1966, 0.0
        %v2684 = vmax.f32 %v2127, 0.0
        %v2685 = vmax.f32 %v2129, 0.0
        %v2686 = vmax.f32 %v2290, 0.0
        %v2687 = vmax.f32 %v2292, 0.0
        %v2688 = vmax.f32 %v1155, 0.0
        %v2689 = vmax.f32 %v1157, 0.0
        %v2690 = vmax.f32 %v1318, 0.0
        %v2691 = vmax.f32 %v1320, 0.0
        %v2692 = vmax.f32 %v1481, 0.0
        %v2693 = vmax.f32 %v1483, 0.0
        %v2694 = vmax.f32 %v1644, 0.0
        %v2695 = vmax.f32 %v1646, 0.0
        %v2696 = vmax.f32 %v1807, 0.0
        %v2697 = vmax.f32 %v1809, 0.0
        %v2698 = vmax.f32 %v1970, 0.0
        %v2699 = vmax.f32 %v1972, 0.0
        %v2700 = vmax.f32 %v2133, 0.0
        %v2701 = vmax.f32 %v2135, 0.0
        %v2702 = vmax.f32 %v2296, 0.0
        %v2703 = vmax.f32 %v2298, 0.0
        %v2704 = vmax.f32 %v1159, 0.0
        %v2705 = vmax.f32 %v1161, 0.0
        %v2706 = vmax.f32 %v1322, 0.0
        %v2707 = vmax.f32 %v1324, 0.0
        %v2708 = vmax.f32 %v1485, 0.0
        %v2709 = vmax.f32 %v1487, 0.0
        %v2710 = vmax.f32 %v1648, 0.0
        %v2711 = vmax.f32 %v1650, 0.0
        %v2712 = vmax.f32 %v1811, 0.0
        %v2713 = vmax.f32 %v1813, 0.0
        %v2714 = vmax.f32 %v1974, 0.0
        %v2715 = vmax.f32 %v1976, 0.0
        %v2716 = vmax.f32 %v2137, 0.0
        %v2717 = vmax.f32 %v2139, 0.0
        %v2718 = vmax.f32 %v2300, 0.0
        %v2719 = vmax.f32 %v2302, 0.0
        %vm2720 = vcmask 654336
        %v2722 = vsel %vm2720, %v669, 0
        %2724 = vmatprep.subr.mxu0 %v2545
        %2725 = vmatpush1.msra.mxu0 %v2544
        %2726 = vmatprep.subr.mxu0 %v2529
        %2727 = vmatpush1.msra.mxu0 %v2528
        %2728 = vmatprep.subr.mxu0 %v2513
        %2729 = vmatpush1.msra.mxu0 %v2512
        %2730 = vmatprep.subr.mxu0 %v2497
        %2731 = vmatpush1.msra.mxu0 %v2496
        %2732 = vmatprep.subr.mxu0 %v2481
        %2733 = vmatpush1.msra.mxu0 %v2480
        %2734 = vmatprep.subr.mxu0 %v2465
        %2735 = vmatpush1.msra.mxu0 %v2464
        %2736 = vmatprep.subr.mxu0 %v2449
        %2737 = vmatpush1.msra.mxu0 %v2448
        %2738 = vmatprep.subr.mxu0 %v2433
        %2739 = vmatpush1.msra.mxu0 %v2432
        %2740 = vmatprep.subr.mxu0 %v2417
        %2741 = vmatpush1.msra.mxu0 %v2416
        %2742 = vmatprep.subr.mxu0 %v2401
        %2743 = vmatpush1.msra.mxu0 %v2400
        %2744 = vmatprep.subr.mxu0 %v2385
        %2745 = vmatpush1.msra.mxu0 %v2384
        %2746 = vmatprep.subr.mxu0 %v2369
        %2747 = vmatpush1.msra.mxu0 %v2368
        %2748 = vmatprep.subr.mxu0 %v2353
        %2749 = vmatpush1.msra.mxu0 %v2352
        %2750 = vmatprep.subr.mxu0 %v2337
        %2751 = vmatpush1.msra.mxu0 %v2336
        %2752 = vmatprep.subr.mxu0 %v2321
        %2753 = vmatpush1.msra.mxu0 %v2320
        %2754 = vmatprep.subr.mxu0 %v2305
        %2755 = vmatpush1.msra.mxu0 %v2304
        %2756 = vmatprep.subr.mxu0 0.0
        %2757 = vmatpush2.msra.mxu0 0.0
        %2758 = vmatprep.subr.mxu0 0.0
        %2759 = vmatpush2.msra.mxu0 0.0
        %2760 = vmatprep.subr.mxu0 0.0
        %2761 = vmatpush2.msra.mxu0 0.0
        %2762 = vmatprep.subr.mxu0 0.0
        %2763 = vmatpush2.msra.mxu0 0.0
        %2764 = vmatprep.subr.mxu0 0.0
        %2765 = vmatpush2.msra.mxu0 0.0
        %2766 = vmatprep.subr.mxu0 0.0
        %2767 = vmatpush2.msra.mxu0 0.0
        %2768 = vmatprep.subr.mxu0 %v2705
        %2769 = vmatpush2.msra.mxu0 %v2704
        %2770 = vmatprep.subr.mxu0 %v2689
        %2771 = vmatpush2.msra.mxu0 %v2688
        %2772 = vmatprep.subr.mxu0 %v2673
        %2773 = vmatpush2.msra.mxu0 %v2672
        %2774 = vmatprep.subr.mxu0 %v2657
        %2775 = vmatpush2.msra.mxu0 %v2656
        %2776 = vmatprep.subr.mxu0 %v2641
        %2777 = vmatpush2.msra.mxu0 %v2640
        %2778 = vmatprep.subr.mxu0 %v2625
        %2779 = vmatpush2.msra.mxu0 %v2624
        %2780 = vmatprep.subr.mxu0 %v2609
        %2781 = vmatpush2.msra.mxu0 %v2608
        %2782 = vmatprep.subr.mxu0 %v2593
        %2783 = vmatpush2.msra.mxu0 %v2592
        %2784 = vmatprep.subr.mxu0 %v2577
        %2785 = vmatpush2.msra.mxu0 %v2576
        %2786 = vmatprep.subr.mxu0 %v2561
        %2787 = vmatpush2.msra.mxu0 %v2560
        %2788 = vmatprep.mubr.f32.mxu0 %v2722
        %2789 = vmatmul.mubr.f32.gmra.mxu0 %v668
        %v2790 = vpop.f32.mrf.mxu0
        %v2791 = vadd.f32 0.0, %v2790
        %v2792 = vpop.f32.mrf.mxu0
        %v2793 = vadd.f32 0.0, %v2792
        %2794 = vdwg.mxu0
        %2795 = vmatprep.subr.mxu0 %v2547
        %2796 = vmatpush1.msra.mxu0 %v2546
        %2797 = vmatprep.subr.mxu0 %v2531
        %2798 = vmatpush1.msra.mxu0 %v2530
        %2799 = vmatprep.subr.mxu0 %v2515
        %2800 = vmatpush1.msra.mxu0 %v2514
        %2801 = vmatprep.subr.mxu0 %v2499
        %2802 = vmatpush1.msra.mxu0 %v2498
        %2803 = vmatprep.subr.mxu0 %v2483
        %2804 = vmatpush1.msra.mxu0 %v2482
        %2805 = vmatprep.subr.mxu0 %v2467
        %2806 = vmatpush1.msra.mxu0 %v2466
        %2807 = vmatprep.subr.mxu0 %v2451
        %2808 = vmatpush1.msra.mxu0 %v2450
        %2809 = vmatprep.subr.mxu0 %v2435
        %2810 = vmatpush1.msra.mxu0 %v2434
        %2811 = vmatprep.subr.mxu0 %v2419
        %2812 = vmatpush1.msra.mxu0 %v2418
        %2813 = vmatprep.subr.mxu0 %v2403
        %2814 = vmatpush1.msra.mxu0 %v2402
        %2815 = vmatprep.subr.mxu0 %v2387
        %2816 = vmatpush1.msra.mxu0 %v2386
        %2817 = vmatprep.subr.mxu0 %v2371
        %2818 = vmatpush1.msra.mxu0 %v2370
        %2819 = vmatprep.subr.mxu0 %v2355
        %2820 = vmatpush1.msra.mxu0 %v2354
        %2821 = vmatprep.subr.mxu0 %v2339
        %2822 = vmatpush1.msra.mxu0 %v2338
        %2823 = vmatprep.subr.mxu0 %v2323
        %2824 = vmatpush1.msra.mxu0 %v2322
        %2825 = vmatprep.subr.mxu0 %v2307
        %2826 = vmatpush1.msra.mxu0 %v2306
        %2827 = vmatprep.subr.mxu0 0.0
        %2828 = vmatpush2.msra.mxu0 0.0
        %2829 = vmatprep.subr.mxu0 0.0
        %2830 = vmatpush2.msra.mxu0 0.0
        %2831 = vmatprep.subr.mxu0 0.0
        %2832 = vmatpush2.msra.mxu0 0.0
        %2833 = vmatprep.subr.mxu0 0.0
        %2834 = vmatpush2.msra.mxu0 0.0
        %2835 = vmatprep.subr.mxu0 0.0
        %2836 = vmatpush2.msra.mxu0 0.0
        %2837 = vmatprep.subr.mxu0 0.0
        %2838 = vmatpush2.msra.mxu0 0.0
        %2839 = vmatprep.subr.mxu0 %v2707
        %2840 = vmatpush2.msra.mxu0 %v2706
        %2841 = vmatprep.subr.mxu0 %v2691
        %2842 = vmatpush2.msra.mxu0 %v2690
        %2843 = vmatprep.subr.mxu0 %v2675
        %2844 = vmatpush2.msra.mxu0 %v2674
        %2845 = vmatprep.subr.mxu0 %v2659
        %2846 = vmatpush2.msra.mxu0 %v2658
        %2847 = vmatprep.subr.mxu0 %v2643
        %2848 = vmatpush2.msra.mxu0 %v2642
        %2849 = vmatprep.subr.mxu0 %v2627
        %2850 = vmatpush2.msra.mxu0 %v2626
        %2851 = vmatprep.subr.mxu0 %v2611
        %2852 = vmatpush2.msra.mxu0 %v2610
        %2853 = vmatprep.subr.mxu0 %v2595
        %2854 = vmatpush2.msra.mxu0 %v2594
        %2855 = vmatprep.subr.mxu0 %v2579
        %2856 = vmatpush2.msra.mxu0 %v2578
        %2857 = vmatprep.subr.mxu0 %v2563
        %2858 = vmatpush2.msra.mxu0 %v2562
        %2859 = vmatprep.mubr.f32.mxu0 %v2722
        %2860 = vmatmul.mubr.f32.gmra.mxu0 %v668
        %v2861 = vpop.f32.mrf.mxu0
        %v2862 = vadd.f32 0.0, %v2861
        %v2863 = vpop.f32.mrf.mxu0
        %v2864 = vadd.f32 0.0, %v2863
        %2865 = vdwg.mxu0
        %2866 = vmatprep.subr.mxu0 %v2549
        %2867 = vmatpush1.msra.mxu0 %v2548
        %2868 = vmatprep.subr.mxu0 %v2533
        %2869 = vmatpush1.msra.mxu0 %v2532
        %2870 = vmatprep.subr.mxu0 %v2517
        %2871 = vmatpush1.msra.mxu0 %v2516
        %2872 = vmatprep.subr.mxu0 %v2501
        %2873 = vmatpush1.msra.mxu0 %v2500
        %2874 = vmatprep.subr.mxu0 %v2485
        %2875 = vmatpush1.msra.mxu0 %v2484
        %2876 = vmatprep.subr.mxu0 %v2469
        %2877 = vmatpush1.msra.mxu0 %v2468
        %2878 = vmatprep.subr.mxu0 %v2453
        %2879 = vmatpush1.msra.mxu0 %v2452
        %2880 = vmatprep.subr.mxu0 %v2437
        %2881 = vmatpush1.msra.mxu0 %v2436
        %2882 = vmatprep.subr.mxu0 %v2421
        %2883 = vmatpush1.msra.mxu0 %v2420
        %2884 = vmatprep.subr.mxu0 %v2405
        %2885 = vmatpush1.msra.mxu0 %v2404
        %2886 = vmatprep.subr.mxu0 %v2389
        %2887 = vmatpush1.msra.mxu0 %v2388
        %2888 = vmatprep.subr.mxu0 %v2373
        %2889 = vmatpush1.msra.mxu0 %v2372
        %2890 = vmatprep.subr.mxu0 %v2357
        %2891 = vmatpush1.msra.mxu0 %v2356
        %2892 = vmatprep.subr.mxu0 %v2341
        %2893 = vmatpush1.msra.mxu0 %v2340
        %2894 = vmatprep.subr.mxu0 %v2325
        %2895 = vmatpush1.msra.mxu0 %v2324
        %2896 = vmatprep.subr.mxu0 %v2309
        %2897 = vmatpush1.msra.mxu0 %v2308
        %2898 = vmatprep.subr.mxu0 0.0
        %2899 = vmatpush2.msra.mxu0 0.0
        %2900 = vmatprep.subr.mxu0 0.0
        %2901 = vmatpush2.msra.mxu0 0.0
        %2902 = vmatprep.subr.mxu0 0.0
        %2903 = vmatpush2.msra.mxu0 0.0
        %2904 = vmatprep.subr.mxu0 0.0
        %2905 = vmatpush2.msra.mxu0 0.0
        %2906 = vmatprep.subr.mxu0 0.0
        %2907 = vmatpush2.msra.mxu0 0.0
        %2908 = vmatprep.subr.mxu0 0.0
        %2909 = vmatpush2.msra.mxu0 0.0
        %2910 = vmatprep.subr.mxu0 %v2709
        %2911 = vmatpush2.msra.mxu0 %v2708
        %2912 = vmatprep.subr.mxu0 %v2693
        %2913 = vmatpush2.msra.mxu0 %v2692
        %2914 = vmatprep.subr.mxu0 %v2677
        %2915 = vmatpush2.msra.mxu0 %v2676
        %2916 = vmatprep.subr.mxu0 %v2661
        %2917 = vmatpush2.msra.mxu0 %v2660
        %2918 = vmatprep.subr.mxu0 %v2645
        %2919 = vmatpush2.msra.mxu0 %v2644
        %2920 = vmatprep.subr.mxu0 %v2629
        %2921 = vmatpush2.msra.mxu0 %v2628
        %2922 = vmatprep.subr.mxu0 %v2613
        %2923 = vmatpush2.msra.mxu0 %v2612
        %2924 = vmatprep.subr.mxu0 %v2597
        %2925 = vmatpush2.msra.mxu0 %v2596
        %2926 = vmatprep.subr.mxu0 %v2581
        %2927 = vmatpush2.msra.mxu0 %v2580
        %2928 = vmatprep.subr.mxu0 %v2565
        %2929 = vmatpush2.msra.mxu0 %v2564
        %2930 = vmatprep.mubr.f32.mxu0 %v2722
        %2931 = vmatmul.mubr.f32.gmra.mxu0 %v668
        %v2932 = vpop.f32.mrf.mxu0
        %v2933 = vadd.f32 0.0, %v2932
        %v2934 = vpop.f32.mrf.mxu0
        %v2935 = vadd.f32 0.0, %v2934
        %2936 = vdwg.mxu0
        %2937 = vmatprep.subr.mxu0 %v2551
        %2938 = vmatpush1.msra.mxu0 %v2550
        %2939 = vmatprep.subr.mxu0 %v2535
        %2940 = vmatpush1.msra.mxu0 %v2534
        %2941 = vmatprep.subr.mxu0 %v2519
        %2942 = vmatpush1.msra.mxu0 %v2518
        %2943 = vmatprep.subr.mxu0 %v2503
        %2944 = vmatpush1.msra.mxu0 %v2502
        %2945 = vmatprep.subr.mxu0 %v2487
        %2946 = vmatpush1.msra.mxu0 %v2486
        %2947 = vmatprep.subr.mxu0 %v2471
        %2948 = vmatpush1.msra.mxu0 %v2470
        %2949 = vmatprep.subr.mxu0 %v2455
        %2950 = vmatpush1.msra.mxu0 %v2454
        %2951 = vmatprep.subr.mxu0 %v2439
        %2952 = vmatpush1.msra.mxu0 %v2438
        %2953 = vmatprep.subr.mxu0 %v2423
        %2954 = vmatpush1.msra.mxu0 %v2422
        %2955 = vmatprep.subr.mxu0 %v2407
        %2956 = vmatpush1.msra.mxu0 %v2406
        %2957 = vmatprep.subr.mxu0 %v2391
        %2958 = vmatpush1.msra.mxu0 %v2390
        %2959 = vmatprep.subr.mxu0 %v2375
        %2960 = vmatpush1.msra.mxu0 %v2374
        %2961 = vmatprep.subr.mxu0 %v2359
        %2962 = vmatpush1.msra.mxu0 %v2358
        %2963 = vmatprep.subr.mxu0 %v2343
        %2964 = vmatpush1.msra.mxu0 %v2342
        %2965 = vmatprep.subr.mxu0 %v2327
        %2966 = vmatpush1.msra.mxu0 %v2326
        %2967 = vmatprep.subr.mxu0 %v2311
        %2968 = vmatpush1.msra.mxu0 %v2310
        %2969 = vmatprep.subr.mxu0 0.0
        %2970 = vmatpush2.msra.mxu0 0.0
        %2971 = vmatprep.subr.mxu0 0.0
        %2972 = vmatpush2.msra.mxu0 0.0
        %2973 = vmatprep.subr.mxu0 0.0
        %2974 = vmatpush2.msra.mxu0 0.0
        %2975 = vmatprep.subr.mxu0 0.0
        %2976 = vmatpush2.msra.mxu0 0.0
        %2977 = vmatprep.subr.mxu0 0.0
        %2978 = vmatpush2.msra.mxu0 0.0
        %2979 = vmatprep.subr.mxu0 0.0
        %2980 = vmatpush2.msra.mxu0 0.0
        %2981 = vmatprep.subr.mxu0 %v2711
        %2982 = vmatpush2.msra.mxu0 %v2710
        %2983 = vmatprep.subr.mxu0 %v2695
        %2984 = vmatpush2.msra.mxu0 %v2694
        %2985 = vmatprep.subr.mxu0 %v2679
        %2986 = vmatpush2.msra.mxu0 %v2678
        %2987 = vmatprep.subr.mxu0 %v2663
        %2988 = vmatpush2.msra.mxu0 %v2662
        %2989 = vmatprep.subr.mxu0 %v2647
        %2990 = vmatpush2.msra.mxu0 %v2646
        %2991 = vmatprep.subr.mxu0 %v2631
        %2992 = vmatpush2.msra.mxu0 %v2630
        %2993 = vmatprep.subr.mxu0 %v2615
        %2994 = vmatpush2.msra.mxu0 %v2614
        %2995 = vmatprep.subr.mxu0 %v2599
        %2996 = vmatpush2.msra.mxu0 %v2598
        %2997 = vmatprep.subr.mxu0 %v2583
        %2998 = vmatpush2.msra.mxu0 %v2582
        %2999 = vmatprep.subr.mxu0 %v2567
        %3000 = vmatpush2.msra.mxu0 %v2566
        %3001 = vmatprep.mubr.f32.mxu0 %v2722
        %3002 = vmatmul.mubr.f32.gmra.mxu0 %v668
        %v3003 = vpop.f32.mrf.mxu0
        %v3004 = vadd.f32 0.0, %v3003
        %v3005 = vpop.f32.mrf.mxu0
        %v3006 = vadd.f32 0.0, %v3005
        %3007 = vdwg.mxu0
        %3008 = vmatprep.subr.mxu0 %v2553
        %3009 = vmatpush1.msra.mxu0 %v2552
        %3010 = vmatprep.subr.mxu0 %v2537
        %3011 = vmatpush1.msra.mxu0 %v2536
        %3012 = vmatprep.subr.mxu0 %v2521
        %3013 = vmatpush1.msra.mxu0 %v2520
        %3014 = vmatprep.subr.mxu0 %v2505
        %3015 = vmatpush1.msra.mxu0 %v2504
        %3016 = vmatprep.subr.mxu0 %v2489
        %3017 = vmatpush1.msra.mxu0 %v2488
        %3018 = vmatprep.subr.mxu0 %v2473
        %3019 = vmatpush1.msra.mxu0 %v2472
        %3020 = vmatprep.subr.mxu0 %v2457
        %3021 = vmatpush1.msra.mxu0 %v2456
        %3022 = vmatprep.subr.mxu0 %v2441
        %3023 = vmatpush1.msra.mxu0 %v2440
        %3024 = vmatprep.subr.mxu0 %v2425
        %3025 = vmatpush1.msra.mxu0 %v2424
        %3026 = vmatprep.subr.mxu0 %v2409
        %3027 = vmatpush1.msra.mxu0 %v2408
        %3028 = vmatprep.subr.mxu0 %v2393
        %3029 = vmatpush1.msra.mxu0 %v2392
        %3030 = vmatprep.subr.mxu0 %v2377
        %3031 = vmatpush1.msra.mxu0 %v2376
        %3032 = vmatprep.subr.mxu0 %v2361
        %3033 = vmatpush1.msra.mxu0 %v2360
        %3034 = vmatprep.subr.mxu0 %v2345
        %3035 = vmatpush1.msra.mxu0 %v2344
        %3036 = vmatprep.subr.mxu0 %v2329
        %3037 = vmatpush1.msra.mxu0 %v2328
        %3038 = vmatprep.subr.mxu0 %v2313
        %3039 = vmatpush1.msra.mxu0 %v2312
        %3040 = vmatprep.subr.mxu0 0.0
        %3041 = vmatpush2.msra.mxu0 0.0
        %3042 = vmatprep.subr.mxu0 0.0
        %3043 = vmatpush2.msra.mxu0 0.0
        %3044 = vmatprep.subr.mxu0 0.0
        %3045 = vmatpush2.msra.mxu0 0.0
        %3046 = vmatprep.subr.mxu0 0.0
        %3047 = vmatpush2.msra.mxu0 0.0
        %3048 = vmatprep.subr.mxu0 0.0
        %3049 = vmatpush2.msra.mxu0 0.0
        %3050 = vmatprep.subr.mxu0 0.0
        %3051 = vmatpush2.msra.mxu0 0.0
        %3052 = vmatprep.subr.mxu0 %v2713
        %3053 = vmatpush2.msra.mxu0 %v2712
        %3054 = vmatprep.subr.mxu0 %v2697
        %3055 = vmatpush2.msra.mxu0 %v2696
        %3056 = vmatprep.subr.mxu0 %v2681
        %3057 = vmatpush2.msra.mxu0 %v2680
        %3058 = vmatprep.subr.mxu0 %v2665
        %3059 = vmatpush2.msra.mxu0 %v2664
        %3060 = vmatprep.subr.mxu0 %v2649
        %3061 = vmatpush2.msra.mxu0 %v2648
        %3062 = vmatprep.subr.mxu0 %v2633
        %3063 = vmatpush2.msra.mxu0 %v2632
        %3064 = vmatprep.subr.mxu0 %v2617
        %3065 = vmatpush2.msra.mxu0 %v2616
        %3066 = vmatprep.subr.mxu0 %v2601
        %3067 = vmatpush2.msra.mxu0 %v2600
        %3068 = vmatprep.subr.mxu0 %v2585
        %3069 = vmatpush2.msra.mxu0 %v2584
        %3070 = vmatprep.subr.mxu0 %v2569
        %3071 = vmatpush2.msra.mxu0 %v2568
        %3072 = vmatprep.mubr.f32.mxu0 %v2722
        %3073 = vmatmul.mubr.f32.gmra.mxu0 %v668
        %v3074 = vpop.f32.mrf.mxu0
        %v3075 = vadd.f32 0.0, %v3074
        %v3076 = vpop.f32.mrf.mxu0
        %v3077 = vadd.f32 0.0, %v3076
        %3078 = vdwg.mxu0
        %3079 = vmatprep.subr.mxu0 %v2555
        %3080 = vmatpush1.msra.mxu0 %v2554
        %3081 = vmatprep.subr.mxu0 %v2539
        %3082 = vmatpush1.msra.mxu0 %v2538
        %3083 = vmatprep.subr.mxu0 %v2523
        %3084 = vmatpush1.msra.mxu0 %v2522
        %3085 = vmatprep.subr.mxu0 %v2507
        %3086 = vmatpush1.msra.mxu0 %v2506
        %3087 = vmatprep.subr.mxu0 %v2491
        %3088 = vmatpush1.msra.mxu0 %v2490
        %3089 = vmatprep.subr.mxu0 %v2475
        %3090 = vmatpush1.msra.mxu0 %v2474
        %3091 = vmatprep.subr.mxu0 %v2459
        %3092 = vmatpush1.msra.mxu0 %v2458
        %3093 = vmatprep.subr.mxu0 %v2443
        %3094 = vmatpush1.msra.mxu0 %v2442
        %3095 = vmatprep.subr.mxu0 %v2427
        %3096 = vmatpush1.msra.mxu0 %v2426
        %3097 = vmatprep.subr.mxu0 %v2411
        %3098 = vmatpush1.msra.mxu0 %v2410
        %3099 = vmatprep.subr.mxu0 %v2395
        %3100 = vmatpush1.msra.mxu0 %v2394
        %3101 = vmatprep.subr.mxu0 %v2379
        %3102 = vmatpush1.msra.mxu0 %v2378
        %3103 = vmatprep.subr.mxu0 %v2363
        %3104 = vmatpush1.msra.mxu0 %v2362
        %3105 = vmatprep.subr.mxu0 %v2347
        %3106 = vmatpush1.msra.mxu0 %v2346
        %3107 = vmatprep.subr.mxu0 %v2331
        %3108 = vmatpush1.msra.mxu0 %v2330
        %3109 = vmatprep.subr.mxu0 %v2315
        %3110 = vmatpush1.msra.mxu0 %v2314
        %3111 = vmatprep.subr.mxu0 0.0
        %3112 = vmatpush2.msra.mxu0 0.0
        %3113 = vmatprep.subr.mxu0 0.0
        %3114 = vmatpush2.msra.mxu0 0.0
        %3115 = vmatprep.subr.mxu0 0.0
        %3116 = vmatpush2.msra.mxu0 0.0
        %3117 = vmatprep.subr.mxu0 0.0
        %3118 = vmatpush2.msra.mxu0 0.0
        %3119 = vmatprep.subr.mxu0 0.0
        %3120 = vmatpush2.msra.mxu0 0.0
        %3121 = vmatprep.subr.mxu0 0.0
        %3122 = vmatpush2.msra.mxu0 0.0
        %3123 = vmatprep.subr.mxu0 %v2715
        %3124 = vmatpush2.msra.mxu0 %v2714
        %3125 = vmatprep.subr.mxu0 %v2699
        %3126 = vmatpush2.msra.mxu0 %v2698
        %3127 = vmatprep.subr.mxu0 %v2683
        %3128 = vmatpush2.msra.mxu0 %v2682
        %3129 = vmatprep.subr.mxu0 %v2667
        %3130 = vmatpush2.msra.mxu0 %v2666
        %3131 = vmatprep.subr.mxu0 %v2651
        %3132 = vmatpush2.msra.mxu0 %v2650
        %3133 = vmatprep.subr.mxu0 %v2635
        %3134 = vmatpush2.msra.mxu0 %v2634
        %3135 = vmatprep.subr.mxu0 %v2619
        %3136 = vmatpush2.msra.mxu0 %v2618
        %3137 = vmatprep.subr.mxu0 %v2603
        %3138 = vmatpush2.msra.mxu0 %v2602
        %3139 = vmatprep.subr.mxu0 %v2587
        %3140 = vmatpush2.msra.mxu0 %v2586
        %3141 = vmatprep.subr.mxu0 %v2571
        %3142 = vmatpush2.msra.mxu0 %v2570
        %3143 = vmatprep.mubr.f32.mxu0 %v2722
        %3144 = vmatmul.mubr.f32.gmra.mxu0 %v668
        %v3145 = vpop.f32.mrf.mxu0
        %v3146 = vadd.f32 0.0, %v3145
        %v3147 = vpop.f32.mrf.mxu0
        %v3148 = vadd.f32 0.0, %v3147
        %3149 = vdwg.mxu0
        %3150 = vmatprep.subr.mxu0 %v2557
        %3151 = vmatpush1.msra.mxu0 %v2556
        %3152 = vmatprep.subr.mxu0 %v2541
        %3153 = vmatpush1.msra.mxu0 %v2540
        %3154 = vmatprep.subr.mxu0 %v2525
        %3155 = vmatpush1.msra.mxu0 %v2524
        %3156 = vmatprep.subr.mxu0 %v2509
        %3157 = vmatpush1.msra.mxu0 %v2508
        %3158 = vmatprep.subr.mxu0 %v2493
        %3159 = vmatpush1.msra.mxu0 %v2492
        %3160 = vmatprep.subr.mxu0 %v2477
        %3161 = vmatpush1.msra.mxu0 %v2476
        %3162 = vmatprep.subr.mxu0 %v2461
        %3163 = vmatpush1.msra.mxu0 %v2460
        %3164 = vmatprep.subr.mxu0 %v2445
        %3165 = vmatpush1.msra.mxu0 %v2444
        %3166 = vmatprep.subr.mxu0 %v2429
        %3167 = vmatpush1.msra.mxu0 %v2428
        %3168 = vmatprep.subr.mxu0 %v2413
        %3169 = vmatpush1.msra.mxu0 %v2412
        %3170 = vmatprep.subr.mxu0 %v2397
        %3171 = vmatpush1.msra.mxu0 %v2396
        %3172 = vmatprep.subr.mxu0 %v2381
        %3173 = vmatpush1.msra.mxu0 %v2380
        %3174 = vmatprep.subr.mxu0 %v2365
        %3175 = vmatpush1.msra.mxu0 %v2364
        %3176 = vmatprep.subr.mxu0 %v2349
        %3177 = vmatpush1.msra.mxu0 %v2348
        %3178 = vmatprep.subr.mxu0 %v2333
        %3179 = vmatpush1.msra.mxu0 %v2332
        %3180 = vmatprep.subr.mxu0 %v2317
        %3181 = vmatpush1.msra.mxu0 %v2316
        %3182 = vmatprep.subr.mxu0 0.0
        %3183 = vmatpush2.msra.mxu0 0.0
        %3184 = vmatprep.subr.mxu0 0.0
        %3185 = vmatpush2.msra.mxu0 0.0
        %3186 = vmatprep.subr.mxu0 0.0
        %3187 = vmatpush2.msra.mxu0 0.0
        %3188 = vmatprep.subr.mxu0 0.0
        %3189 = vmatpush2.msra.mxu0 0.0
        %3190 = vmatprep.subr.mxu0 0.0
        %3191 = vmatpush2.msra.mxu0 0.0
        %3192 = vmatprep.subr.mxu0 0.0
        %3193 = vmatpush2.msra.mxu0 0.0
        %3194 = vmatprep.subr.mxu0 %v2717
        %3195 = vmatpush2.msra.mxu0 %v2716
        %3196 = vmatprep.subr.mxu0 %v2701
        %3197 = vmatpush2.msra.mxu0 %v2700
        %3198 = vmatprep.subr.mxu0 %v2685
        %3199 = vmatpush2.msra.mxu0 %v2684
        %3200 = vmatprep.subr.mxu0 %v2669
        %3201 = vmatpush2.msra.mxu0 %v2668
        %3202 = vmatprep.subr.mxu0 %v2653
        %3203 = vmatpush2.msra.mxu0 %v2652
        %3204 = vmatprep.subr.mxu0 %v2637
        %3205 = vmatpush2.msra.mxu0 %v2636
        %3206 = vmatprep.subr.mxu0 %v2621
        %3207 = vmatpush2.msra.mxu0 %v2620
        %3208 = vmatprep.subr.mxu0 %v2605
        %3209 = vmatpush2.msra.mxu0 %v2604
        %3210 = vmatprep.subr.mxu0 %v2589
        %3211 = vmatpush2.msra.mxu0 %v2588
        %3212 = vmatprep.subr.mxu0 %v2573
        %3213 = vmatpush2.msra.mxu0 %v2572
        %3214 = vmatprep.mubr.f32.mxu0 %v2722
        %3215 = vmatmul.mubr.f32.gmra.mxu0 %v668
        %v3216 = vpop.f32.mrf.mxu0
        %v3217 = vadd.f32 0.0, %v3216
        %v3218 = vpop.f32.mrf.mxu0
        %v3219 = vadd.f32 0.0, %v3218
        %3220 = vdwg.mxu0
        %3221 = vmatprep.subr.mxu0 %v2559
        %3222 = vmatpush1.msra.mxu0 %v2558
        %3223 = vmatprep.subr.mxu0 %v2543
        %3224 = vmatpush1.msra.mxu0 %v2542
        %3225 = vmatprep.subr.mxu0 %v2527
        %3226 = vmatpush1.msra.mxu0 %v2526
        %3227 = vmatprep.subr.mxu0 %v2511
        %3228 = vmatpush1.msra.mxu0 %v2510
        %3229 = vmatprep.subr.mxu0 %v2495
        %3230 = vmatpush1.msra.mxu0 %v2494
        %3231 = vmatprep.subr.mxu0 %v2479
        %3232 = vmatpush1.msra.mxu0 %v2478
        %3233 = vmatprep.subr.mxu0 %v2463
        %3234 = vmatpush1.msra.mxu0 %v2462
        %3235 = vmatprep.subr.mxu0 %v2447
        %3236 = vmatpush1.msra.mxu0 %v2446
        %3237 = vmatprep.subr.mxu0 %v2431
        %3238 = vmatpush1.msra.mxu0 %v2430
        %3239 = vmatprep.subr.mxu0 %v2415
        %3240 = vmatpush1.msra.mxu0 %v2414
        %3241 = vmatprep.subr.mxu0 %v2399
        %3242 = vmatpush1.msra.mxu0 %v2398
        %3243 = vmatprep.subr.mxu0 %v2383
        %3244 = vmatpush1.msra.mxu0 %v2382
        %3245 = vmatprep.subr.mxu0 %v2367
        %3246 = vmatpush1.msra.mxu0 %v2366
        %3247 = vmatprep.subr.mxu0 %v2351
        %3248 = vmatpush1.msra.mxu0 %v2350
        %3249 = vmatprep.subr.mxu0 %v2335
        %3250 = vmatpush1.msra.mxu0 %v2334
        %3251 = vmatprep.subr.mxu0 %v2319
        %3252 = vmatpush1.msra.mxu0 %v2318
        %3253 = vmatprep.subr.mxu0 0.0
        %3254 = vmatpush2.msra.mxu0 0.0
        %3255 = vmatprep.subr.mxu0 0.0
        %3256 = vmatpush2.msra.mxu0 0.0
        %3257 = vmatprep.subr.mxu0 0.0
        %3258 = vmatpush2.msra.mxu0 0.0
        %3259 = vmatprep.subr.mxu0 0.0
        %3260 = vmatpush2.msra.mxu0 0.0
        %3261 = vmatprep.subr.mxu0 0.0
        %3262 = vmatpush2.msra.mxu0 0.0
        %3263 = vmatprep.subr.mxu0 0.0
        %3264 = vmatpush2.msra.mxu0 0.0
        %3265 = vmatprep.subr.mxu0 %v2719
        %3266 = vmatpush2.msra.mxu0 %v2718
        %3267 = vmatprep.subr.mxu0 %v2703
        %3268 = vmatpush2.msra.mxu0 %v2702
        %3269 = vmatprep.subr.mxu0 %v2687
        %3270 = vmatpush2.msra.mxu0 %v2686
        %3271 = vmatprep.subr.mxu0 %v2671
        %3272 = vmatpush2.msra.mxu0 %v2670
        %3273 = vmatprep.subr.mxu0 %v2655
        %3274 = vmatpush2.msra.mxu0 %v2654
        %3275 = vmatprep.subr.mxu0 %v2639
        %3276 = vmatpush2.msra.mxu0 %v2638
        %3277 = vmatprep.subr.mxu0 %v2623
        %3278 = vmatpush2.msra.mxu0 %v2622
        %3279 = vmatprep.subr.mxu0 %v2607
        %3280 = vmatpush2.msra.mxu0 %v2606
        %3281 = vmatprep.subr.mxu0 %v2591
        %3282 = vmatpush2.msra.mxu0 %v2590
        %3283 = vmatprep.subr.mxu0 %v2575
        %3284 = vmatpush2.msra.mxu0 %v2574
        %3285 = vmatprep.mubr.f32.mxu0 %v2722
        %3286 = vmatmul.mubr.f32.gmra.mxu0 %v668
        %v3287 = vpop.f32.mrf.mxu0
        %v3288 = vadd.f32 0.0, %v3287
        %v3289 = vpop.f32.mrf.mxu0
        %v3290 = vadd.f32 0.0, %v3289
        %3291 = vdwg.mxu0
        %v3308 = vcombine.low %v2791, %v2793
        %v3309 = vcombine.low %v2862, %v2864
        %v3310 = vcombine.low %v2933, %v2935
        %v3311 = vcombine.low %v3004, %v3006
        %v3313 = vunpack.c.l.s4 1966171168
        %v3314 = vunpack.c.0.s8 %v3313
        %v3315 = vlaneseq
        %v3316 = vshrl.u32 %v3315, 7
        %v3317 = vsub.s32 %v3314, %v3316
        %v3318 = vrot.slane %v3308, %v3317
        %v3320 = vunpack.c.l.s4 1966171168
        %v3321 = vunpack.c.0.s8 %v3320
        %v3322 = vlaneseq
        %v3323 = vshrl.u32 %v3322, 7
        %v3324 = vsub.s32 %v3321, %v3323
        %v3325 = vrot.slane %v3309, %v3324
        %v3327 = vunpack.c.l.s4 1966171168
        %v3328 = vunpack.c.0.s8 %v3327
        %v3329 = vlaneseq
        %v3330 = vshrl.u32 %v3329, 7
        %v3331 = vsub.s32 %v3328, %v3330
        %v3332 = vrot.slane %v3310, %v3331
        %v3334 = vunpack.c.l.s4 1966171168
        %v3335 = vunpack.c.0.s8 %v3334
        %v3336 = vlaneseq
        %v3337 = vshrl.u32 %v3336, 7
        %v3338 = vsub.s32 %v3335, %v3337
        %v3339 = vrot.slane %v3311, %v3338
        %v3340 = vcombine.low %v3318, %v3325
        %v3341 = vcombine.low %v3332, %v3339
        %v3343 = vunpack.c.l.s4 1966171168
        %v3344 = vunpack.c.0.s8 %v3343
        %v3345 = vlaneseq
        %v3346 = vshrl.u32 %v3345, 7
        %v3347 = vsub.s32 %v3344, %v3346
        %v3348 = vrot.slane %v3340, %v3347
        %v3350 = vunpack.c.l.s4 1966171168
        %v3351 = vunpack.c.0.s8 %v3350
        %v3352 = vlaneseq
        %v3353 = vshrl.u32 %v3352, 7
        %v3354 = vsub.s32 %v3351, %v3353
        %v3355 = vrot.slane %v3341, %v3354
        %v3356 = vcombine.low %v3348, %v3355
        %v3357 = vcombine.low %v3075, %v3077
        %v3358 = vcombine.low %v3146, %v3148
        %v3359 = vcombine.low %v3217, %v3219
        %v3360 = vcombine.low %v3288, %v3290
        %v3362 = vunpack.c.l.s4 1966171168
        %v3363 = vunpack.c.0.s8 %v3362
        %v3364 = vlaneseq
        %v3365 = vshrl.u32 %v3364, 7
        %v3366 = vsub.s32 %v3363, %v3365
        %v3367 = vrot.slane %v3357, %v3366
        %v3369 = vunpack.c.l.s4 1966171168
        %v3370 = vunpack.c.0.s8 %v3369
        %v3371 = vlaneseq
        %v3372 = vshrl.u32 %v3371, 7
        %v3373 = vsub.s32 %v3370, %v3372
        %v3374 = vrot.slane %v3358, %v3373
        %v3376 = vunpack.c.l.s4 1966171168
        %v3377 = vunpack.c.0.s8 %v3376
        %v3378 = vlaneseq
        %v3379 = vshrl.u32 %v3378, 7
        %v3380 = vsub.s32 %v3377, %v3379
        %v3381 = vrot.slane %v3359, %v3380
        %v3383 = vunpack.c.l.s4 1966171168
        %v3384 = vunpack.c.0.s8 %v3383
        %v3385 = vlaneseq
        %v3386 = vshrl.u32 %v3385, 7
        %v3387 = vsub.s32 %v3384, %v3386
        %v3388 = vrot.slane %v3360, %v3387
        %v3389 = vcombine.low %v3367, %v3374
        %v3390 = vcombine.low %v3381, %v3388
        %v3392 = vunpack.c.l.s4 1966171168
        %v3393 = vunpack.c.0.s8 %v3392
        %v3394 = vlaneseq
        %v3395 = vshrl.u32 %v3394, 7
        %v3396 = vsub.s32 %v3393, %v3395
        %v3397 = vrot.slane %v3389, %v3396
        %v3399 = vunpack.c.l.s4 1966171168
        %v3400 = vunpack.c.0.s8 %v3399
        %v3401 = vlaneseq
        %v3402 = vshrl.u32 %v3401, 7
        %v3403 = vsub.s32 %v3400, %v3402
        %v3404 = vrot.slane %v3390, %v3403
        %v3405 = vcombine.low %v3397, %v3404
        %v3408 = vadd.f32 %v670, %v3356
        %v3409 = vadd.f32 %v671, %v3405
        %3410 = vst [vmem:[#allocation2] sm:$0xff] %v3408
        %3411 = vst [vmem:[#allocation2 + $0x8] sm:$0xff] %v3409
        // Predicated region
        $region61: #{tpu_custom_call.1} parent=47 // pred_check
          %p3412 = pneg %p334
        $region62: #{tpu_custom_call.1} parent=47 // pred_check_branch
          %3414 = sbr.rel (%p3412) target = $region64
        $region63: #{tpu_custom_call.1} parent=47 // pred_region
          %v3415 = vld [vmem:[#allocation2] sm:$0xff]
          %v3416 = vld [vmem:[#allocation2 + $0x8] sm:$0xff]
          %v3417 = vmul.f32 %v3415, 0.0051020407
          %v3418 = vmul.f32 %v3416, 0.0051020407
          %v3421 = vlaneseq
          %v3422 = vshrl.u32 %v3421, 7
          %v3423 = vsub.s32 0, %v3422
          %v3424 = vrot.slane %v3417, %v3423
          %v3425 = vlaneseq
          %v3426 = vshrl.u32 %v3425, 7
          %v3427 = vsub.s32 1, %v3426
          %v3428 = vrot.slane %v3417, %v3427
          %v3429 = vlaneseq
          %v3430 = vshrl.u32 %v3429, 7
          %v3431 = vsub.s32 2, %v3430
          %v3432 = vrot.slane %v3417, %v3431
          %v3433 = vlaneseq
          %v3434 = vshrl.u32 %v3433, 7
          %v3435 = vsub.s32 3, %v3434
          %v3436 = vrot.slane %v3417, %v3435
          %v3437 = vlaneseq
          %v3438 = vshrl.u32 %v3437, 7
          %v3439 = vsub.s32 4, %v3438
          %v3440 = vrot.slane %v3417, %v3439
          %v3441 = vlaneseq
          %v3442 = vshrl.u32 %v3441, 7
          %v3443 = vsub.s32 5, %v3442
          %v3444 = vrot.slane %v3417, %v3443
          %v3445 = vlaneseq
          %v3446 = vshrl.u32 %v3445, 7
          %v3447 = vsub.s32 6, %v3446
          %v3448 = vrot.slane %v3417, %v3447
          %v3449 = vlaneseq
          %v3450 = vshrl.u32 %v3449, 7
          %v3451 = vsub.s32 7, %v3450
          %v3452 = vrot.slane %v3417, %v3451
          %v3453 = vlaneseq
          %v3454 = vshrl.u32 %v3453, 7
          %v3455 = vsub.s32 0, %v3454
          %v3456 = vrot.slane %v3418, %v3455
          %v3457 = vlaneseq
          %v3458 = vshrl.u32 %v3457, 7
          %v3459 = vsub.s32 1, %v3458
          %v3460 = vrot.slane %v3418, %v3459
          %v3461 = vlaneseq
          %v3462 = vshrl.u32 %v3461, 7
          %v3463 = vsub.s32 2, %v3462
          %v3464 = vrot.slane %v3418, %v3463
          %v3465 = vlaneseq
          %v3466 = vshrl.u32 %v3465, 7
          %v3467 = vsub.s32 3, %v3466
          %v3468 = vrot.slane %v3418, %v3467
          %v3469 = vlaneseq
          %v3470 = vshrl.u32 %v3469, 7
          %v3471 = vsub.s32 4, %v3470
          %v3472 = vrot.slane %v3418, %v3471
          %v3473 = vlaneseq
          %v3474 = vshrl.u32 %v3473, 7
          %v3475 = vsub.s32 5, %v3474
          %v3476 = vrot.slane %v3418, %v3475
          %v3477 = vlaneseq
          %v3478 = vshrl.u32 %v3477, 7
          %v3479 = vsub.s32 6, %v3478
          %v3480 = vrot.slane %v3418, %v3479
          %v3481 = vlaneseq
          %v3482 = vshrl.u32 %v3481, 7
          %v3483 = vsub.s32 7, %v3482
          %v3484 = vrot.slane %v3418, %v3483
          %v3501 = vpack.c.bf16 %v3424, %v3424
          %v3502 = vpack.c.bf16 %v3428, %v3428
          %v3503 = vpack.c.bf16 %v3432, %v3432
          %v3504 = vpack.c.bf16 %v3436, %v3436
          %v3505 = vpack.c.bf16 %v3440, %v3440
          %v3506 = vpack.c.bf16 %v3444, %v3444
          %v3507 = vpack.c.bf16 %v3448, %v3448
          %v3508 = vpack.c.bf16 %v3452, %v3452
          %v3509 = vpack.c.bf16 %v3456, %v3456
          %v3510 = vpack.c.bf16 %v3460, %v3460
          %v3511 = vpack.c.bf16 %v3464, %v3464
          %v3512 = vpack.c.bf16 %v3468, %v3468
          %v3513 = vpack.c.bf16 %v3472, %v3472
          %v3514 = vpack.c.bf16 %v3476, %v3476
          %v3515 = vpack.c.bf16 %v3480, %v3480
          %v3516 = vpack.c.bf16 %v3484, %v3484
          %v3517 = vld [vmem:[#allocation6] sm:$0xff]
          %v3518 = vld [vmem:[#allocation6 + $0x8] sm:$0xff]
          %v3519 = vld [vmem:[#allocation6 + $0x10] sm:$0xff]
          %v3520 = vld [vmem:[#allocation6 + $0x18] sm:$0xff]
          %v3521 = vld [vmem:[#allocation6 + $0x20] sm:$0xff]
          %v3522 = vld [vmem:[#allocation6 + $0x28] sm:$0xff]
          %v3523 = vld [vmem:[#allocation6 + $0x30] sm:$0xff]
          %v3524 = vld [vmem:[#allocation6 + $0x38] sm:$0xff]
          %v3525 = vld [vmem:[#allocation6 + $0x40] sm:$0xff]
          %v3526 = vld [vmem:[#allocation6 + $0x48] sm:$0xff]
          %v3527 = vld [vmem:[#allocation6 + $0x50] sm:$0xff]
          %v3528 = vld [vmem:[#allocation6 + $0x58] sm:$0xff]
          %v3529 = vld [vmem:[#allocation6 + $0x60] sm:$0xff]
          %v3530 = vld [vmem:[#allocation6 + $0x68] sm:$0xff]
          %v3531 = vld [vmem:[#allocation6 + $0x70] sm:$0xff]
          %v3532 = vld [vmem:[#allocation6 + $0x78] sm:$0xff]
          %v3533 = vld [vmem:[#allocation6 + $0x80] sm:$0xff]
          %v3534 = vld [vmem:[#allocation6 + $0x88] sm:$0xff]
          %v3535 = vld [vmem:[#allocation6 + $0x90] sm:$0xff]
          %v3536 = vld [vmem:[#allocation6 + $0x98] sm:$0xff]
          %v3537 = vld [vmem:[#allocation6 + $0xa0] sm:$0xff]
          %v3538 = vld [vmem:[#allocation6 + $0xa8] sm:$0xff]
          %v3539 = vld [vmem:[#allocation6 + $0xb0] sm:$0xff]
          %v3540 = vld [vmem:[#allocation6 + $0xb8] sm:$0xff]
          %v3541 = vld [vmem:[#allocation6 + $0xc0] sm:$0xff]
          %v3542 = vld [vmem:[#allocation6 + $0xc8] sm:$0xff]
          %v3543 = vld [vmem:[#allocation6 + $0xd0] sm:$0xff]
          %v3544 = vld [vmem:[#allocation6 + $0xd8] sm:$0xff]
          %v3545 = vld [vmem:[#allocation6 + $0xe0] sm:$0xff]
          %v3546 = vld [vmem:[#allocation6 + $0xe8] sm:$0xff]
          %v3547 = vld [vmem:[#allocation6 + $0xf0] sm:$0xff]
          %v3548 = vld [vmem:[#allocation6 + $0xf8] sm:$0xff]
          %v3549 = vld [vmem:[#allocation6 + $0x100] sm:$0xff]
          %v3550 = vld [vmem:[#allocation6 + $0x108] sm:$0xff]
          %v3551 = vld [vmem:[#allocation6 + $0x110] sm:$0xff]
          %v3552 = vld [vmem:[#allocation6 + $0x118] sm:$0xff]
          %v3553 = vld [vmem:[#allocation6 + $0x120] sm:$0xff]
          %v3554 = vld [vmem:[#allocation6 + $0x128] sm:$0xff]
          %v3555 = vld [vmem:[#allocation6 + $0x130] sm:$0xff]
          %v3556 = vld [vmem:[#allocation6 + $0x138] sm:$0xff]
          %v3557 = vld [vmem:[#allocation6 + $0x140] sm:$0xff]
          %v3558 = vld [vmem:[#allocation6 + $0x148] sm:$0xff]
          %v3559 = vld [vmem:[#allocation6 + $0x150] sm:$0xff]
          %v3560 = vld [vmem:[#allocation6 + $0x158] sm:$0xff]
          %v3561 = vld [vmem:[#allocation6 + $0x160] sm:$0xff]
          %v3562 = vld [vmem:[#allocation6 + $0x168] sm:$0xff]
          %v3563 = vld [vmem:[#allocation6 + $0x170] sm:$0xff]
          %v3564 = vld [vmem:[#allocation6 + $0x178] sm:$0xff]
          %v3565 = vld [vmem:[#allocation6 + $0x180] sm:$0xff]
          %v3566 = vld [vmem:[#allocation6 + $0x188] sm:$0xff]
          %v3567 = vld [vmem:[#allocation6 + $0x190] sm:$0xff]
          %v3568 = vld [vmem:[#allocation6 + $0x198] sm:$0xff]
          %v3569 = vld [vmem:[#allocation6 + $0x1a0] sm:$0xff]
          %v3570 = vld [vmem:[#allocation6 + $0x1a8] sm:$0xff]
          %v3571 = vld [vmem:[#allocation6 + $0x1b0] sm:$0xff]
          %v3572 = vld [vmem:[#allocation6 + $0x1b8] sm:$0xff]
          %v3573 = vld [vmem:[#allocation6 + $0x1c0] sm:$0xff]
          %v3574 = vld [vmem:[#allocation6 + $0x1c8] sm:$0xff]
          %v3575 = vld [vmem:[#allocation6 + $0x1d0] sm:$0xff]
          %v3576 = vld [vmem:[#allocation6 + $0x1d8] sm:$0xff]
          %v3577 = vld [vmem:[#allocation6 + $0x1e0] sm:$0xff]
          %v3578 = vld [vmem:[#allocation6 + $0x1e8] sm:$0xff]
          %v3579 = vld [vmem:[#allocation6 + $0x1f0] sm:$0xff]
          %v3580 = vld [vmem:[#allocation6 + $0x1f8] sm:$0xff]
          %v3581 = vld [vmem:[#allocation6 + $0x200] sm:$0xff]
          %v3582 = vld [vmem:[#allocation6 + $0x208] sm:$0xff]
          %v3583 = vld [vmem:[#allocation6 + $0x210] sm:$0xff]
          %v3584 = vld [vmem:[#allocation6 + $0x218] sm:$0xff]
          %v3585 = vld [vmem:[#allocation6 + $0x220] sm:$0xff]
          %v3586 = vld [vmem:[#allocation6 + $0x228] sm:$0xff]
          %v3587 = vld [vmem:[#allocation6 + $0x230] sm:$0xff]
          %v3588 = vld [vmem:[#allocation6 + $0x238] sm:$0xff]
          %v3589 = vld [vmem:[#allocation6 + $0x240] sm:$0xff]
          %v3590 = vld [vmem:[#allocation6 + $0x248] sm:$0xff]
          %v3591 = vld [vmem:[#allocation6 + $0x250] sm:$0xff]
          %v3592 = vld [vmem:[#allocation6 + $0x258] sm:$0xff]
          %v3593 = vld [vmem:[#allocation6 + $0x260] sm:$0xff]
          %v3594 = vld [vmem:[#allocation6 + $0x268] sm:$0xff]
          %v3595 = vld [vmem:[#allocation6 + $0x270] sm:$0xff]
          %v3596 = vld [vmem:[#allocation6 + $0x278] sm:$0xff]
          %v3597 = vld [vmem:[#allocation6 + $0x280] sm:$0xff]
          %v3598 = vld [vmem:[#allocation6 + $0x288] sm:$0xff]
          %v3599 = vld [vmem:[#allocation6 + $0x290] sm:$0xff]
          %v3600 = vld [vmem:[#allocation6 + $0x298] sm:$0xff]
          %v3601 = vld [vmem:[#allocation6 + $0x2a0] sm:$0xff]
          %v3602 = vld [vmem:[#allocation6 + $0x2a8] sm:$0xff]
          %v3603 = vld [vmem:[#allocation6 + $0x2b0] sm:$0xff]
          %v3604 = vld [vmem:[#allocation6 + $0x2b8] sm:$0xff]
          %v3605 = vld [vmem:[#allocation6 + $0x2c0] sm:$0xff]
          %v3606 = vld [vmem:[#allocation6 + $0x2c8] sm:$0xff]
          %v3607 = vld [vmem:[#allocation6 + $0x2d0] sm:$0xff]
          %v3608 = vld [vmem:[#allocation6 + $0x2d8] sm:$0xff]
          %v3609 = vld [vmem:[#allocation6 + $0x2e0] sm:$0xff]
          %v3610 = vld [vmem:[#allocation6 + $0x2e8] sm:$0xff]
          %v3611 = vld [vmem:[#allocation6 + $0x2f0] sm:$0xff]
          %v3612 = vld [vmem:[#allocation6 + $0x2f8] sm:$0xff]
          %v3613 = vld [vmem:[#allocation6 + $0x300] sm:$0xff]
          %v3614 = vld [vmem:[#allocation6 + $0x308] sm:$0xff]
          %v3615 = vld [vmem:[#allocation6 + $0x310] sm:$0xff]
          %v3616 = vld [vmem:[#allocation6 + $0x318] sm:$0xff]
          %v3617 = vld [vmem:[#allocation6 + $0x320] sm:$0xff]
          %v3618 = vld [vmem:[#allocation6 + $0x328] sm:$0xff]
          %v3619 = vld [vmem:[#allocation6 + $0x330] sm:$0xff]
          %v3620 = vld [vmem:[#allocation6 + $0x338] sm:$0xff]
          %v3621 = vld [vmem:[#allocation6 + $0x340] sm:$0xff]
          %v3622 = vld [vmem:[#allocation6 + $0x348] sm:$0xff]
          %v3623 = vld [vmem:[#allocation6 + $0x350] sm:$0xff]
          %v3624 = vld [vmem:[#allocation6 + $0x358] sm:$0xff]
          %v3625 = vld [vmem:[#allocation6 + $0x360] sm:$0xff]
          %v3626 = vld [vmem:[#allocation6 + $0x368] sm:$0xff]
          %v3627 = vld [vmem:[#allocation6 + $0x370] sm:$0xff]
          %v3628 = vld [vmem:[#allocation6 + $0x378] sm:$0xff]
          %v3629 = vld [vmem:[#allocation6 + $0x380] sm:$0xff]
          %v3630 = vld [vmem:[#allocation6 + $0x388] sm:$0xff]
          %v3631 = vld [vmem:[#allocation6 + $0x390] sm:$0xff]
          %v3632 = vld [vmem:[#allocation6 + $0x398] sm:$0xff]
          %v3633 = vld [vmem:[#allocation6 + $0x3a0] sm:$0xff]
          %v3634 = vld [vmem:[#allocation6 + $0x3a8] sm:$0xff]
          %v3635 = vld [vmem:[#allocation6 + $0x3b0] sm:$0xff]
          %v3636 = vld [vmem:[#allocation6 + $0x3b8] sm:$0xff]
          %v3637 = vld [vmem:[#allocation6 + $0x3c0] sm:$0xff]
          %v3638 = vld [vmem:[#allocation6 + $0x3c8] sm:$0xff]
          %v3639 = vld [vmem:[#allocation6 + $0x3d0] sm:$0xff]
          %v3640 = vld [vmem:[#allocation6 + $0x3d8] sm:$0xff]
          %v3641 = vld [vmem:[#allocation6 + $0x3e0] sm:$0xff]
          %v3642 = vld [vmem:[#allocation6 + $0x3e8] sm:$0xff]
          %v3643 = vld [vmem:[#allocation6 + $0x3f0] sm:$0xff]
          %v3644 = vld [vmem:[#allocation6 + $0x3f8] sm:$0xff]
          %v3645 = vld [vmem:[#allocation6 + $0x400] sm:$0xff]
          %v3646 = vld [vmem:[#allocation6 + $0x408] sm:$0xff]
          %v3647 = vld [vmem:[#allocation6 + $0x410] sm:$0xff]
          %v3648 = vld [vmem:[#allocation6 + $0x418] sm:$0xff]
          %v3649 = vld [vmem:[#allocation6 + $0x420] sm:$0xff]
          %v3650 = vld [vmem:[#allocation6 + $0x428] sm:$0xff]
          %v3651 = vld [vmem:[#allocation6 + $0x430] sm:$0xff]
          %v3652 = vld [vmem:[#allocation6 + $0x438] sm:$0xff]
          %v3653 = vld [vmem:[#allocation6 + $0x440] sm:$0xff]
          %v3654 = vld [vmem:[#allocation6 + $0x448] sm:$0xff]
          %v3655 = vld [vmem:[#allocation6 + $0x450] sm:$0xff]
          %v3656 = vld [vmem:[#allocation6 + $0x458] sm:$0xff]
          %v3657 = vld [vmem:[#allocation6 + $0x460] sm:$0xff]
          %v3658 = vld [vmem:[#allocation6 + $0x468] sm:$0xff]
          %v3659 = vld [vmem:[#allocation6 + $0x470] sm:$0xff]
          %v3660 = vld [vmem:[#allocation6 + $0x478] sm:$0xff]
          %v3661 = vld [vmem:[#allocation6 + $0x480] sm:$0xff]
          %v3662 = vld [vmem:[#allocation6 + $0x488] sm:$0xff]
          %v3663 = vld [vmem:[#allocation6 + $0x490] sm:$0xff]
          %v3664 = vld [vmem:[#allocation6 + $0x498] sm:$0xff]
          %v3665 = vld [vmem:[#allocation6 + $0x4a0] sm:$0xff]
          %v3666 = vld [vmem:[#allocation6 + $0x4a8] sm:$0xff]
          %v3667 = vld [vmem:[#allocation6 + $0x4b0] sm:$0xff]
          %v3668 = vld [vmem:[#allocation6 + $0x4b8] sm:$0xff]
          %v3669 = vld [vmem:[#allocation6 + $0x4c0] sm:$0xff]
          %v3670 = vld [vmem:[#allocation6 + $0x4c8] sm:$0xff]
          %v3671 = vld [vmem:[#allocation6 + $0x4d0] sm:$0xff]
          %v3672 = vld [vmem:[#allocation6 + $0x4d8] sm:$0xff]
          %v3673 = vld [vmem:[#allocation6 + $0x4e0] sm:$0xff]
          %v3674 = vld [vmem:[#allocation6 + $0x4e8] sm:$0xff]
          %v3675 = vld [vmem:[#allocation6 + $0x4f0] sm:$0xff]
          %v3676 = vld [vmem:[#allocation6 + $0x4f8] sm:$0xff]
          %v3677 = vld [vmem:[#allocation6 + $0x500] sm:$0xff]
          %v3678 = vld [vmem:[#allocation6 + $0x508] sm:$0xff]
          %v3679 = vld [vmem:[#allocation6 + $0x510] sm:$0xff]
          %v3680 = vld [vmem:[#allocation6 + $0x518] sm:$0xff]
          %v3681 = vld [vmem:[#allocation6 + $0x520] sm:$0xff]
          %v3682 = vld [vmem:[#allocation6 + $0x528] sm:$0xff]
          %v3683 = vld [vmem:[#allocation6 + $0x530] sm:$0xff]
          %v3684 = vld [vmem:[#allocation6 + $0x538] sm:$0xff]
          %v3685 = vld [vmem:[#allocation6 + $0x540] sm:$0xff]
          %v3686 = vld [vmem:[#allocation6 + $0x548] sm:$0xff]
          %v3687 = vld [vmem:[#allocation6 + $0x550] sm:$0xff]
          %v3688 = vld [vmem:[#allocation6 + $0x558] sm:$0xff]
          %v3689 = vld [vmem:[#allocation6 + $0x560] sm:$0xff]
          %v3690 = vld [vmem:[#allocation6 + $0x568] sm:$0xff]
          %v3691 = vld [vmem:[#allocation6 + $0x570] sm:$0xff]
          %v3692 = vld [vmem:[#allocation6 + $0x578] sm:$0xff]
          %v3693 = vld [vmem:[#allocation6 + $0x580] sm:$0xff]
          %v3694 = vld [vmem:[#allocation6 + $0x588] sm:$0xff]
          %v3695 = vld [vmem:[#allocation6 + $0x590] sm:$0xff]
          %v3696 = vld [vmem:[#allocation6 + $0x598] sm:$0xff]
          %v3697 = vld [vmem:[#allocation6 + $0x5a0] sm:$0xff]
          %v3698 = vld [vmem:[#allocation6 + $0x5a8] sm:$0xff]
          %v3699 = vld [vmem:[#allocation6 + $0x5b0] sm:$0xff]
          %v3700 = vld [vmem:[#allocation6 + $0x5b8] sm:$0xff]
          %v3701 = vld [vmem:[#allocation6 + $0x5c0] sm:$0xff]
          %v3702 = vld [vmem:[#allocation6 + $0x5c8] sm:$0xff]
          %v3703 = vld [vmem:[#allocation6 + $0x5d0] sm:$0xff]
          %v3704 = vld [vmem:[#allocation6 + $0x5d8] sm:$0xff]
          %v3705 = vld [vmem:[#allocation6 + $0x5e0] sm:$0xff]
          %v3706 = vld [vmem:[#allocation6 + $0x5e8] sm:$0xff]
          %v3707 = vld [vmem:[#allocation6 + $0x5f0] sm:$0xff]
          %v3708 = vld [vmem:[#allocation6 + $0x5f8] sm:$0xff]
          %v3709 = vld [vmem:[#allocation6 + $0x600] sm:$0xff]
          %v3710 = vld [vmem:[#allocation6 + $0x608] sm:$0xff]
          %v3711 = vld [vmem:[#allocation6 + $0x610] sm:$0xff]
          %v3712 = vld [vmem:[#allocation6 + $0x618] sm:$0xff]
          %v3713 = vld [vmem:[#allocation6 + $0x620] sm:$0xff]
          %v3714 = vld [vmem:[#allocation6 + $0x628] sm:$0xff]
          %v3715 = vld [vmem:[#allocation6 + $0x630] sm:$0xff]
          %v3716 = vld [vmem:[#allocation6 + $0x638] sm:$0xff]
          %v3717 = vld [vmem:[#allocation6 + $0x640] sm:$0xff]
          %v3718 = vld [vmem:[#allocation6 + $0x648] sm:$0xff]
          %v3719 = vld [vmem:[#allocation6 + $0x650] sm:$0xff]
          %v3720 = vld [vmem:[#allocation6 + $0x658] sm:$0xff]
          %v3721 = vld [vmem:[#allocation6 + $0x660] sm:$0xff]
          %v3722 = vld [vmem:[#allocation6 + $0x668] sm:$0xff]
          %v3723 = vld [vmem:[#allocation6 + $0x670] sm:$0xff]
          %v3724 = vld [vmem:[#allocation6 + $0x678] sm:$0xff]
          %v3725 = vld [vmem:[#allocation6 + $0x680] sm:$0xff]
          %v3726 = vld [vmem:[#allocation6 + $0x688] sm:$0xff]
          %v3727 = vld [vmem:[#allocation6 + $0x690] sm:$0xff]
          %v3728 = vld [vmem:[#allocation6 + $0x698] sm:$0xff]
          %v3729 = vld [vmem:[#allocation6 + $0x6a0] sm:$0xff]
          %v3730 = vld [vmem:[#allocation6 + $0x6a8] sm:$0xff]
          %v3731 = vld [vmem:[#allocation6 + $0x6b0] sm:$0xff]
          %v3732 = vld [vmem:[#allocation6 + $0x6b8] sm:$0xff]
          %v3733 = vld [vmem:[#allocation6 + $0x6c0] sm:$0xff]
          %v3734 = vld [vmem:[#allocation6 + $0x6c8] sm:$0xff]
          %v3735 = vld [vmem:[#allocation6 + $0x6d0] sm:$0xff]
          %v3736 = vld [vmem:[#allocation6 + $0x6d8] sm:$0xff]
          %v3737 = vld [vmem:[#allocation6 + $0x6e0] sm:$0xff]
          %v3738 = vld [vmem:[#allocation6 + $0x6e8] sm:$0xff]
          %v3739 = vld [vmem:[#allocation6 + $0x6f0] sm:$0xff]
          %v3740 = vld [vmem:[#allocation6 + $0x6f8] sm:$0xff]
          %v3741 = vld [vmem:[#allocation6 + $0x700] sm:$0xff]
          %v3742 = vld [vmem:[#allocation6 + $0x708] sm:$0xff]
          %v3743 = vld [vmem:[#allocation6 + $0x710] sm:$0xff]
          %v3744 = vld [vmem:[#allocation6 + $0x718] sm:$0xff]
          %v3745 = vld [vmem:[#allocation6 + $0x720] sm:$0xff]
          %v3746 = vld [vmem:[#allocation6 + $0x728] sm:$0xff]
          %v3747 = vld [vmem:[#allocation6 + $0x730] sm:$0xff]
          %v3748 = vld [vmem:[#allocation6 + $0x738] sm:$0xff]
          %v3749 = vld [vmem:[#allocation6 + $0x740] sm:$0xff]
          %v3750 = vld [vmem:[#allocation6 + $0x748] sm:$0xff]
          %v3751 = vld [vmem:[#allocation6 + $0x750] sm:$0xff]
          %v3752 = vld [vmem:[#allocation6 + $0x758] sm:$0xff]
          %v3753 = vld [vmem:[#allocation6 + $0x760] sm:$0xff]
          %v3754 = vld [vmem:[#allocation6 + $0x768] sm:$0xff]
          %v3755 = vld [vmem:[#allocation6 + $0x770] sm:$0xff]
          %v3756 = vld [vmem:[#allocation6 + $0x778] sm:$0xff]
          %v3757 = vld [vmem:[#allocation6 + $0x780] sm:$0xff]
          %v3758 = vld [vmem:[#allocation6 + $0x788] sm:$0xff]
          %v3759 = vld [vmem:[#allocation6 + $0x790] sm:$0xff]
          %v3760 = vld [vmem:[#allocation6 + $0x798] sm:$0xff]
          %v3761 = vld [vmem:[#allocation6 + $0x7a0] sm:$0xff]
          %v3762 = vld [vmem:[#allocation6 + $0x7a8] sm:$0xff]
          %v3763 = vld [vmem:[#allocation6 + $0x7b0] sm:$0xff]
          %v3764 = vld [vmem:[#allocation6 + $0x7b8] sm:$0xff]
          %v3765 = vld [vmem:[#allocation6 + $0x7c0] sm:$0xff]
          %v3766 = vld [vmem:[#allocation6 + $0x7c8] sm:$0xff]
          %v3767 = vld [vmem:[#allocation6 + $0x7d0] sm:$0xff]
          %v3768 = vld [vmem:[#allocation6 + $0x7d8] sm:$0xff]
          %v3769 = vld [vmem:[#allocation6 + $0x7e0] sm:$0xff]
          %v3770 = vld [vmem:[#allocation6 + $0x7e8] sm:$0xff]
          %v3771 = vld [vmem:[#allocation6 + $0x7f0] sm:$0xff]
          %v3772 = vld [vmem:[#allocation6 + $0x7f8] sm:$0xff]
          %v3773 = vld [vmem:[%s6] sm:$0x3]
          %v4030 = vunpack.c.l.b16 %v3517
          %v4031 = vunpack.c.h.b16 %v3517
          %v4032 = vunpack.c.l.b16 %v3518
          %v4033 = vunpack.c.h.b16 %v3518
          %v4034 = vunpack.c.l.b16 %v3519
          %v4035 = vunpack.c.h.b16 %v3519
          %v4036 = vunpack.c.l.b16 %v3520
          %v4037 = vunpack.c.h.b16 %v3520
          %v4038 = vunpack.c.l.b16 %v3521
          %v4039 = vunpack.c.h.b16 %v3521
          %v4040 = vunpack.c.l.b16 %v3522
          %v4041 = vunpack.c.h.b16 %v3522
          %v4042 = vunpack.c.l.b16 %v3523
          %v4043 = vunpack.c.h.b16 %v3523
          %v4044 = vunpack.c.l.b16 %v3524
          %v4045 = vunpack.c.h.b16 %v3524
          %v4046 = vunpack.c.l.b16 %v3525
          %v4047 = vunpack.c.h.b16 %v3525
          %v4048 = vunpack.c.l.b16 %v3526
          %v4049 = vunpack.c.h.b16 %v3526
          %v4050 = vunpack.c.l.b16 %v3527
          %v4051 = vunpack.c.h.b16 %v3527
          %v4052 = vunpack.c.l.b16 %v3528
          %v4053 = vunpack.c.h.b16 %v3528
          %v4054 = vunpack.c.l.b16 %v3529
          %v4055 = vunpack.c.h.b16 %v3529
          %v4056 = vunpack.c.l.b16 %v3530
          %v4057 = vunpack.c.h.b16 %v3530
          %v4058 = vunpack.c.l.b16 %v3531
          %v4059 = vunpack.c.h.b16 %v3531
          %v4060 = vunpack.c.l.b16 %v3532
          %v4061 = vunpack.c.h.b16 %v3532
          %v4062 = vunpack.c.l.b16 %v3533
          %v4063 = vunpack.c.h.b16 %v3533
          %v4064 = vunpack.c.l.b16 %v3534
          %v4065 = vunpack.c.h.b16 %v3534
          %v4066 = vunpack.c.l.b16 %v3535
          %v4067 = vunpack.c.h.b16 %v3535
          %v4068 = vunpack.c.l.b16 %v3536
          %v4069 = vunpack.c.h.b16 %v3536
          %v4070 = vunpack.c.l.b16 %v3537
          %v4071 = vunpack.c.h.b16 %v3537
          %v4072 = vunpack.c.l.b16 %v3538
          %v4073 = vunpack.c.h.b16 %v3538
          %v4074 = vunpack.c.l.b16 %v3539
          %v4075 = vunpack.c.h.b16 %v3539
          %v4076 = vunpack.c.l.b16 %v3540
          %v4077 = vunpack.c.h.b16 %v3540
          %v4078 = vunpack.c.l.b16 %v3541
          %v4079 = vunpack.c.h.b16 %v3541
          %v4080 = vunpack.c.l.b16 %v3542
          %v4081 = vunpack.c.h.b16 %v3542
          %v4082 = vunpack.c.l.b16 %v3543
          %v4083 = vunpack.c.h.b16 %v3543
          %v4084 = vunpack.c.l.b16 %v3544
          %v4085 = vunpack.c.h.b16 %v3544
          %v4086 = vunpack.c.l.b16 %v3545
          %v4087 = vunpack.c.h.b16 %v3545
          %v4088 = vunpack.c.l.b16 %v3546
          %v4089 = vunpack.c.h.b16 %v3546
          %v4090 = vunpack.c.l.b16 %v3547
          %v4091 = vunpack.c.h.b16 %v3547
          %v4092 = vunpack.c.l.b16 %v3548
          %v4093 = vunpack.c.h.b16 %v3548
          %v4094 = vunpack.c.l.b16 %v3549
          %v4095 = vunpack.c.h.b16 %v3549
          %v4096 = vunpack.c.l.b16 %v3550
          %v4097 = vunpack.c.h.b16 %v3550
          %v4098 = vunpack.c.l.b16 %v3551
          %v4099 = vunpack.c.h.b16 %v3551
          %v4100 = vunpack.c.l.b16 %v3552
          %v4101 = vunpack.c.h.b16 %v3552
          %v4102 = vunpack.c.l.b16 %v3553
          %v4103 = vunpack.c.h.b16 %v3553
          %v4104 = vunpack.c.l.b16 %v3554
          %v4105 = vunpack.c.h.b16 %v3554
          %v4106 = vunpack.c.l.b16 %v3555
          %v4107 = vunpack.c.h.b16 %v3555
          %v4108 = vunpack.c.l.b16 %v3556
          %v4109 = vunpack.c.h.b16 %v3556
          %v4110 = vunpack.c.l.b16 %v3557
          %v4111 = vunpack.c.h.b16 %v3557
          %v4112 = vunpack.c.l.b16 %v3558
          %v4113 = vunpack.c.h.b16 %v3558
          %v4114 = vunpack.c.l.b16 %v3559
          %v4115 = vunpack.c.h.b16 %v3559
          %v4116 = vunpack.c.l.b16 %v3560
          %v4117 = vunpack.c.h.b16 %v3560
          %v4118 = vunpack.c.l.b16 %v3561
          %v4119 = vunpack.c.h.b16 %v3561
          %v4120 = vunpack.c.l.b16 %v3562
          %v4121 = vunpack.c.h.b16 %v3562
          %v4122 = vunpack.c.l.b16 %v3563
          %v4123 = vunpack.c.h.b16 %v3563
          %v4124 = vunpack.c.l.b16 %v3564
          %v4125 = vunpack.c.h.b16 %v3564
          %v4126 = vunpack.c.l.b16 %v3565
          %v4127 = vunpack.c.h.b16 %v3565
          %v4128 = vunpack.c.l.b16 %v3566
          %v4129 = vunpack.c.h.b16 %v3566
          %v4130 = vunpack.c.l.b16 %v3567
          %v4131 = vunpack.c.h.b16 %v3567
          %v4132 = vunpack.c.l.b16 %v3568
          %v4133 = vunpack.c.h.b16 %v3568
          %v4134 = vunpack.c.l.b16 %v3569
          %v4135 = vunpack.c.h.b16 %v3569
          %v4136 = vunpack.c.l.b16 %v3570
          %v4137 = vunpack.c.h.b16 %v3570
          %v4138 = vunpack.c.l.b16 %v3571
          %v4139 = vunpack.c.h.b16 %v3571
          %v4140 = vunpack.c.l.b16 %v3572
          %v4141 = vunpack.c.h.b16 %v3572
          %v4142 = vunpack.c.l.b16 %v3573
          %v4143 = vunpack.c.h.b16 %v3573
          %v4144 = vunpack.c.l.b16 %v3574
          %v4145 = vunpack.c.h.b16 %v3574
          %v4146 = vunpack.c.l.b16 %v3575
          %v4147 = vunpack.c.h.b16 %v3575
          %v4148 = vunpack.c.l.b16 %v3576
          %v4149 = vunpack.c.h.b16 %v3576
          %v4150 = vunpack.c.l.b16 %v3577
          %v4151 = vunpack.c.h.b16 %v3577
          %v4152 = vunpack.c.l.b16 %v3578
          %v4153 = vunpack.c.h.b16 %v3578
          %v4154 = vunpack.c.l.b16 %v3579
          %v4155 = vunpack.c.h.b16 %v3579
          %v4156 = vunpack.c.l.b16 %v3580
          %v4157 = vunpack.c.h.b16 %v3580
          %v4158 = vunpack.c.l.b16 %v3581
          %v4159 = vunpack.c.h.b16 %v3581
          %v4160 = vunpack.c.l.b16 %v3582
          %v4161 = vunpack.c.h.b16 %v3582
          %v4162 = vunpack.c.l.b16 %v3583
          %v4163 = vunpack.c.h.b16 %v3583
          %v4164 = vunpack.c.l.b16 %v3584
          %v4165 = vunpack.c.h.b16 %v3584
          %v4166 = vunpack.c.l.b16 %v3585
          %v4167 = vunpack.c.h.b16 %v3585
          %v4168 = vunpack.c.l.b16 %v3586
          %v4169 = vunpack.c.h.b16 %v3586
          %v4170 = vunpack.c.l.b16 %v3587
          %v4171 = vunpack.c.h.b16 %v3587
          %v4172 = vunpack.c.l.b16 %v3588
          %v4173 = vunpack.c.h.b16 %v3588
          %v4174 = vunpack.c.l.b16 %v3589
          %v4175 = vunpack.c.h.b16 %v3589
          %v4176 = vunpack.c.l.b16 %v3590
          %v4177 = vunpack.c.h.b16 %v3590
          %v4178 = vunpack.c.l.b16 %v3591
          %v4179 = vunpack.c.h.b16 %v3591
          %v4180 = vunpack.c.l.b16 %v3592
          %v4181 = vunpack.c.h.b16 %v3592
          %v4182 = vunpack.c.l.b16 %v3593
          %v4183 = vunpack.c.h.b16 %v3593
          %v4184 = vunpack.c.l.b16 %v3594
          %v4185 = vunpack.c.h.b16 %v3594
          %v4186 = vunpack.c.l.b16 %v3595
          %v4187 = vunpack.c.h.b16 %v3595
          %v4188 = vunpack.c.l.b16 %v3596
          %v4189 = vunpack.c.h.b16 %v3596
          %v4190 = vunpack.c.l.b16 %v3597
          %v4191 = vunpack.c.h.b16 %v3597
          %v4192 = vunpack.c.l.b16 %v3598
          %v4193 = vunpack.c.h.b16 %v3598
          %v4194 = vunpack.c.l.b16 %v3599
          %v4195 = vunpack.c.h.b16 %v3599
          %v4196 = vunpack.c.l.b16 %v3600
          %v4197 = vunpack.c.h.b16 %v3600
          %v4198 = vunpack.c.l.b16 %v3601
          %v4199 = vunpack.c.h.b16 %v3601
          %v4200 = vunpack.c.l.b16 %v3602
          %v4201 = vunpack.c.h.b16 %v3602
          %v4202 = vunpack.c.l.b16 %v3603
          %v4203 = vunpack.c.h.b16 %v3603
          %v4204 = vunpack.c.l.b16 %v3604
          %v4205 = vunpack.c.h.b16 %v3604
          %v4206 = vunpack.c.l.b16 %v3605
          %v4207 = vunpack.c.h.b16 %v3605
          %v4208 = vunpack.c.l.b16 %v3606
          %v4209 = vunpack.c.h.b16 %v3606
          %v4210 = vunpack.c.l.b16 %v3607
          %v4211 = vunpack.c.h.b16 %v3607
          %v4212 = vunpack.c.l.b16 %v3608
          %v4213 = vunpack.c.h.b16 %v3608
          %v4214 = vunpack.c.l.b16 %v3609
          %v4215 = vunpack.c.h.b16 %v3609
          %v4216 = vunpack.c.l.b16 %v3610
          %v4217 = vunpack.c.h.b16 %v3610
          %v4218 = vunpack.c.l.b16 %v3611
          %v4219 = vunpack.c.h.b16 %v3611
          %v4220 = vunpack.c.l.b16 %v3612
          %v4221 = vunpack.c.h.b16 %v3612
          %v4222 = vunpack.c.l.b16 %v3613
          %v4223 = vunpack.c.h.b16 %v3613
          %v4224 = vunpack.c.l.b16 %v3614
          %v4225 = vunpack.c.h.b16 %v3614
          %v4226 = vunpack.c.l.b16 %v3615
          %v4227 = vunpack.c.h.b16 %v3615
          %v4228 = vunpack.c.l.b16 %v3616
          %v4229 = vunpack.c.h.b16 %v3616
          %v4230 = vunpack.c.l.b16 %v3617
          %v4231 = vunpack.c.h.b16 %v3617
          %v4232 = vunpack.c.l.b16 %v3618
          %v4233 = vunpack.c.h.b16 %v3618
          %v4234 = vunpack.c.l.b16 %v3619
          %v4235 = vunpack.c.h.b16 %v3619
          %v4236 = vunpack.c.l.b16 %v3620
          %v4237 = vunpack.c.h.b16 %v3620
          %v4238 = vunpack.c.l.b16 %v3621
          %v4239 = vunpack.c.h.b16 %v3621
          %v4240 = vunpack.c.l.b16 %v3622
          %v4241 = vunpack.c.h.b16 %v3622
          %v4242 = vunpack.c.l.b16 %v3623
          %v4243 = vunpack.c.h.b16 %v3623
          %v4244 = vunpack.c.l.b16 %v3624
          %v4245 = vunpack.c.h.b16 %v3624
          %v4246 = vunpack.c.l.b16 %v3625
          %v4247 = vunpack.c.h.b16 %v3625
          %v4248 = vunpack.c.l.b16 %v3626
          %v4249 = vunpack.c.h.b16 %v3626
          %v4250 = vunpack.c.l.b16 %v3627
          %v4251 = vunpack.c.h.b16 %v3627
          %v4252 = vunpack.c.l.b16 %v3628
          %v4253 = vunpack.c.h.b16 %v3628
          %v4254 = vunpack.c.l.b16 %v3629
          %v4255 = vunpack.c.h.b16 %v3629
          %v4256 = vunpack.c.l.b16 %v3630
          %v4257 = vunpack.c.h.b16 %v3630
          %v4258 = vunpack.c.l.b16 %v3631
          %v4259 = vunpack.c.h.b16 %v3631
          %v4260 = vunpack.c.l.b16 %v3632
          %v4261 = vunpack.c.h.b16 %v3632
          %v4262 = vunpack.c.l.b16 %v3633
          %v4263 = vunpack.c.h.b16 %v3633
          %v4264 = vunpack.c.l.b16 %v3634
          %v4265 = vunpack.c.h.b16 %v3634
          %v4266 = vunpack.c.l.b16 %v3635
          %v4267 = vunpack.c.h.b16 %v3635
          %v4268 = vunpack.c.l.b16 %v3636
          %v4269 = vunpack.c.h.b16 %v3636
          %v4270 = vunpack.c.l.b16 %v3637
          %v4271 = vunpack.c.h.b16 %v3637
          %v4272 = vunpack.c.l.b16 %v3638
          %v4273 = vunpack.c.h.b16 %v3638
          %v4274 = vunpack.c.l.b16 %v3639
          %v4275 = vunpack.c.h.b16 %v3639
          %v4276 = vunpack.c.l.b16 %v3640
          %v4277 = vunpack.c.h.b16 %v3640
          %v4278 = vunpack.c.l.b16 %v3641
          %v4279 = vunpack.c.h.b16 %v3641
          %v4280 = vunpack.c.l.b16 %v3642
          %v4281 = vunpack.c.h.b16 %v3642
          %v4282 = vunpack.c.l.b16 %v3643
          %v4283 = vunpack.c.h.b16 %v3643
          %v4284 = vunpack.c.l.b16 %v3644
          %v4285 = vunpack.c.h.b16 %v3644
          %v4286 = vunpack.c.l.b16 %v3645
          %v4287 = vunpack.c.h.b16 %v3645
          %v4288 = vunpack.c.l.b16 %v3646
          %v4289 = vunpack.c.h.b16 %v3646
          %v4290 = vunpack.c.l.b16 %v3647
          %v4291 = vunpack.c.h.b16 %v3647
          %v4292 = vunpack.c.l.b16 %v3648
          %v4293 = vunpack.c.h.b16 %v3648
          %v4294 = vunpack.c.l.b16 %v3649
          %v4295 = vunpack.c.h.b16 %v3649
          %v4296 = vunpack.c.l.b16 %v3650
          %v4297 = vunpack.c.h.b16 %v3650
          %v4298 = vunpack.c.l.b16 %v3651
          %v4299 = vunpack.c.h.b16 %v3651
          %v4300 = vunpack.c.l.b16 %v3652
          %v4301 = vunpack.c.h.b16 %v3652
          %v4302 = vunpack.c.l.b16 %v3653
          %v4303 = vunpack.c.h.b16 %v3653
          %v4304 = vunpack.c.l.b16 %v3654
          %v4305 = vunpack.c.h.b16 %v3654
          %v4306 = vunpack.c.l.b16 %v3655
          %v4307 = vunpack.c.h.b16 %v3655
          %v4308 = vunpack.c.l.b16 %v3656
          %v4309 = vunpack.c.h.b16 %v3656
          %v4310 = vunpack.c.l.b16 %v3657
          %v4311 = vunpack.c.h.b16 %v3657
          %v4312 = vunpack.c.l.b16 %v3658
          %v4313 = vunpack.c.h.b16 %v3658
          %v4314 = vunpack.c.l.b16 %v3659
          %v4315 = vunpack.c.h.b16 %v3659
          %v4316 = vunpack.c.l.b16 %v3660
          %v4317 = vunpack.c.h.b16 %v3660
          %v4318 = vunpack.c.l.b16 %v3661
          %v4319 = vunpack.c.h.b16 %v3661
          %v4320 = vunpack.c.l.b16 %v3662
          %v4321 = vunpack.c.h.b16 %v3662
          %v4322 = vunpack.c.l.b16 %v3663
          %v4323 = vunpack.c.h.b16 %v3663
          %v4324 = vunpack.c.l.b16 %v3664
          %v4325 = vunpack.c.h.b16 %v3664
          %v4326 = vunpack.c.l.b16 %v3665
          %v4327 = vunpack.c.h.b16 %v3665
          %v4328 = vunpack.c.l.b16 %v3666
          %v4329 = vunpack.c.h.b16 %v3666
          %v4330 = vunpack.c.l.b16 %v3667
          %v4331 = vunpack.c.h.b16 %v3667
          %v4332 = vunpack.c.l.b16 %v3668
          %v4333 = vunpack.c.h.b16 %v3668
          %v4334 = vunpack.c.l.b16 %v3669
          %v4335 = vunpack.c.h.b16 %v3669
          %v4336 = vunpack.c.l.b16 %v3670
          %v4337 = vunpack.c.h.b16 %v3670
          %v4338 = vunpack.c.l.b16 %v3671
          %v4339 = vunpack.c.h.b16 %v3671
          %v4340 = vunpack.c.l.b16 %v3672
          %v4341 = vunpack.c.h.b16 %v3672
          %v4342 = vunpack.c.l.b16 %v3673
          %v4343 = vunpack.c.h.b16 %v3673
          %v4344 = vunpack.c.l.b16 %v3674
          %v4345 = vunpack.c.h.b16 %v3674
          %v4346 = vunpack.c.l.b16 %v3675
          %v4347 = vunpack.c.h.b16 %v3675
          %v4348 = vunpack.c.l.b16 %v3676
          %v4349 = vunpack.c.h.b16 %v3676
          %v4350 = vunpack.c.l.b16 %v3677
          %v4351 = vunpack.c.h.b16 %v3677
          %v4352 = vunpack.c.l.b16 %v3678
          %v4353 = vunpack.c.h.b16 %v3678
          %v4354 = vunpack.c.l.b16 %v3679
          %v4355 = vunpack.c.h.b16 %v3679
          %v4356 = vunpack.c.l.b16 %v3680
          %v4357 = vunpack.c.h.b16 %v3680
          %v4358 = vunpack.c.l.b16 %v3681
          %v4359 = vunpack.c.h.b16 %v3681
          %v4360 = vunpack.c.l.b16 %v3682
          %v4361 = vunpack.c.h.b16 %v3682
          %v4362 = vunpack.c.l.b16 %v3683
          %v4363 = vunpack.c.h.b16 %v3683
          %v4364 = vunpack.c.l.b16 %v3684
          %v4365 = vunpack.c.h.b16 %v3684
          %v4366 = vunpack.c.l.b16 %v3685
          %v4367 = vunpack.c.h.b16 %v3685
          %v4368 = vunpack.c.l.b16 %v3686
          %v4369 = vunpack.c.h.b16 %v3686
          %v4370 = vunpack.c.l.b16 %v3687
          %v4371 = vunpack.c.h.b16 %v3687
          %v4372 = vunpack.c.l.b16 %v3688
          %v4373 = vunpack.c.h.b16 %v3688
          %v4374 = vunpack.c.l.b16 %v3689
          %v4375 = vunpack.c.h.b16 %v3689
          %v4376 = vunpack.c.l.b16 %v3690
          %v4377 = vunpack.c.h.b16 %v3690
          %v4378 = vunpack.c.l.b16 %v3691
          %v4379 = vunpack.c.h.b16 %v3691
          %v4380 = vunpack.c.l.b16 %v3692
          %v4381 = vunpack.c.h.b16 %v3692
          %v4382 = vunpack.c.l.b16 %v3693
          %v4383 = vunpack.c.h.b16 %v3693
          %v4384 = vunpack.c.l.b16 %v3694
          %v4385 = vunpack.c.h.b16 %v3694
          %v4386 = vunpack.c.l.b16 %v3695
          %v4387 = vunpack.c.h.b16 %v3695
          %v4388 = vunpack.c.l.b16 %v3696
          %v4389 = vunpack.c.h.b16 %v3696
          %v4390 = vunpack.c.l.b16 %v3697
          %v4391 = vunpack.c.h.b16 %v3697
          %v4392 = vunpack.c.l.b16 %v3698
          %v4393 = vunpack.c.h.b16 %v3698
          %v4394 = vunpack.c.l.b16 %v3699
          %v4395 = vunpack.c.h.b16 %v3699
          %v4396 = vunpack.c.l.b16 %v3700
          %v4397 = vunpack.c.h.b16 %v3700
          %v4398 = vunpack.c.l.b16 %v3701
          %v4399 = vunpack.c.h.b16 %v3701
          %v4400 = vunpack.c.l.b16 %v3702
          %v4401 = vunpack.c.h.b16 %v3702
          %v4402 = vunpack.c.l.b16 %v3703
          %v4403 = vunpack.c.h.b16 %v3703
          %v4404 = vunpack.c.l.b16 %v3704
          %v4405 = vunpack.c.h.b16 %v3704
          %v4406 = vunpack.c.l.b16 %v3705
          %v4407 = vunpack.c.h.b16 %v3705
          %v4408 = vunpack.c.l.b16 %v3706
          %v4409 = vunpack.c.h.b16 %v3706
          %v4410 = vunpack.c.l.b16 %v3707
          %v4411 = vunpack.c.h.b16 %v3707
          %v4412 = vunpack.c.l.b16 %v3708
          %v4413 = vunpack.c.h.b16 %v3708
          %v4414 = vunpack.c.l.b16 %v3709
          %v4415 = vunpack.c.h.b16 %v3709
          %v4416 = vunpack.c.l.b16 %v3710
          %v4417 = vunpack.c.h.b16 %v3710
          %v4418 = vunpack.c.l.b16 %v3711
          %v4419 = vunpack.c.h.b16 %v3711
          %v4420 = vunpack.c.l.b16 %v3712
          %v4421 = vunpack.c.h.b16 %v3712
          %v4422 = vunpack.c.l.b16 %v3713
          %v4423 = vunpack.c.h.b16 %v3713
          %v4424 = vunpack.c.l.b16 %v3714
          %v4425 = vunpack.c.h.b16 %v3714
          %v4426 = vunpack.c.l.b16 %v3715
          %v4427 = vunpack.c.h.b16 %v3715
          %v4428 = vunpack.c.l.b16 %v3716
          %v4429 = vunpack.c.h.b16 %v3716
          %v4430 = vunpack.c.l.b16 %v3717
          %v4431 = vunpack.c.h.b16 %v3717
          %v4432 = vunpack.c.l.b16 %v3718
          %v4433 = vunpack.c.h.b16 %v3718
          %v4434 = vunpack.c.l.b16 %v3719
          %v4435 = vunpack.c.h.b16 %v3719
          %v4436 = vunpack.c.l.b16 %v3720
          %v4437 = vunpack.c.h.b16 %v3720
          %v4438 = vunpack.c.l.b16 %v3721
          %v4439 = vunpack.c.h.b16 %v3721
          %v4440 = vunpack.c.l.b16 %v3722
          %v4441 = vunpack.c.h.b16 %v3722
          %v4442 = vunpack.c.l.b16 %v3723
          %v4443 = vunpack.c.h.b16 %v3723
          %v4444 = vunpack.c.l.b16 %v3724
          %v4445 = vunpack.c.h.b16 %v3724
          %v4446 = vunpack.c.l.b16 %v3725
          %v4447 = vunpack.c.h.b16 %v3725
          %v4448 = vunpack.c.l.b16 %v3726
          %v4449 = vunpack.c.h.b16 %v3726
          %v4450 = vunpack.c.l.b16 %v3727
          %v4451 = vunpack.c.h.b16 %v3727
          %v4452 = vunpack.c.l.b16 %v3728
          %v4453 = vunpack.c.h.b16 %v3728
          %v4454 = vunpack.c.l.b16 %v3729
          %v4455 = vunpack.c.h.b16 %v3729
          %v4456 = vunpack.c.l.b16 %v3730
          %v4457 = vunpack.c.h.b16 %v3730
          %v4458 = vunpack.c.l.b16 %v3731
          %v4459 = vunpack.c.h.b16 %v3731
          %v4460 = vunpack.c.l.b16 %v3732
          %v4461 = vunpack.c.h.b16 %v3732
          %v4462 = vunpack.c.l.b16 %v3733
          %v4463 = vunpack.c.h.b16 %v3733
          %v4464 = vunpack.c.l.b16 %v3734
          %v4465 = vunpack.c.h.b16 %v3734
          %v4466 = vunpack.c.l.b16 %v3735
          %v4467 = vunpack.c.h.b16 %v3735
          %v4468 = vunpack.c.l.b16 %v3736
          %v4469 = vunpack.c.h.b16 %v3736
          %v4470 = vunpack.c.l.b16 %v3737
          %v4471 = vunpack.c.h.b16 %v3737
          %v4472 = vunpack.c.l.b16 %v3738
          %v4473 = vunpack.c.h.b16 %v3738
          %v4474 = vunpack.c.l.b16 %v3739
          %v4475 = vunpack.c.h.b16 %v3739
          %v4476 = vunpack.c.l.b16 %v3740
          %v4477 = vunpack.c.h.b16 %v3740
          %v4478 = vunpack.c.l.b16 %v3741
          %v4479 = vunpack.c.h.b16 %v3741
          %v4480 = vunpack.c.l.b16 %v3742
          %v4481 = vunpack.c.h.b16 %v3742
          %v4482 = vunpack.c.l.b16 %v3743
          %v4483 = vunpack.c.h.b16 %v3743
          %v4484 = vunpack.c.l.b16 %v3744
          %v4485 = vunpack.c.h.b16 %v3744
          %v4486 = vunpack.c.l.b16 %v3745
          %v4487 = vunpack.c.h.b16 %v3745
          %v4488 = vunpack.c.l.b16 %v3746
          %v4489 = vunpack.c.h.b16 %v3746
          %v4490 = vunpack.c.l.b16 %v3747
          %v4491 = vunpack.c.h.b16 %v3747
          %v4492 = vunpack.c.l.b16 %v3748
          %v4493 = vunpack.c.h.b16 %v3748
          %v4494 = vunpack.c.l.b16 %v3749
          %v4495 = vunpack.c.h.b16 %v3749
          %v4496 = vunpack.c.l.b16 %v3750
          %v4497 = vunpack.c.h.b16 %v3750
          %v4498 = vunpack.c.l.b16 %v3751
          %v4499 = vunpack.c.h.b16 %v3751
          %v4500 = vunpack.c.l.b16 %v3752
          %v4501 = vunpack.c.h.b16 %v3752
          %v4502 = vunpack.c.l.b16 %v3753
          %v4503 = vunpack.c.h.b16 %v3753
          %v4504 = vunpack.c.l.b16 %v3754
          %v4505 = vunpack.c.h.b16 %v3754
          %v4506 = vunpack.c.l.b16 %v3755
          %v4507 = vunpack.c.h.b16 %v3755
          %v4508 = vunpack.c.l.b16 %v3756
          %v4509 = vunpack.c.h.b16 %v3756
          %v4510 = vunpack.c.l.b16 %v3757
          %v4511 = vunpack.c.h.b16 %v3757
          %v4512 = vunpack.c.l.b16 %v3758
          %v4513 = vunpack.c.h.b16 %v3758
          %v4514 = vunpack.c.l.b16 %v3759
          %v4515 = vunpack.c.h.b16 %v3759
          %v4516 = vunpack.c.l.b16 %v3760
          %v4517 = vunpack.c.h.b16 %v3760
          %v4518 = vunpack.c.l.b16 %v3761
          %v4519 = vunpack.c.h.b16 %v3761
          %v4520 = vunpack.c.l.b16 %v3762
          %v4521 = vunpack.c.h.b16 %v3762
          %v4522 = vunpack.c.l.b16 %v3763
          %v4523 = vunpack.c.h.b16 %v3763
          %v4524 = vunpack.c.l.b16 %v3764
          %v4525 = vunpack.c.h.b16 %v3764
          %v4526 = vunpack.c.l.b16 %v3765
          %v4527 = vunpack.c.h.b16 %v3765
          %v4528 = vunpack.c.l.b16 %v3766
          %v4529 = vunpack.c.h.b16 %v3766
          %v4530 = vunpack.c.l.b16 %v3767
          %v4531 = vunpack.c.h.b16 %v3767
          %v4532 = vunpack.c.l.b16 %v3768
          %v4533 = vunpack.c.h.b16 %v3768
          %v4534 = vunpack.c.l.b16 %v3769
          %v4535 = vunpack.c.h.b16 %v3769
          %v4536 = vunpack.c.l.b16 %v3770
          %v4537 = vunpack.c.h.b16 %v3770
          %v4538 = vunpack.c.l.b16 %v3771
          %v4539 = vunpack.c.h.b16 %v3771
          %v4540 = vunpack.c.l.b16 %v3772
          %v4541 = vunpack.c.h.b16 %v3772
          %v4542 = vpack.c.b16 %v4032, %v4030
          %v4543 = vpack.c.b16 %v4033, %v4031
          %v4544 = vpack.c.b16 %v4036, %v4034
          %v4545 = vpack.c.b16 %v4037, %v4035
          %v4546 = vpack.c.b16 %v4040, %v4038
          %v4547 = vpack.c.b16 %v4041, %v4039
          %v4548 = vpack.c.b16 %v4044, %v4042
          %v4549 = vpack.c.b16 %v4045, %v4043
          %v4550 = vpack.c.b16 %v4048, %v4046
          %v4551 = vpack.c.b16 %v4049, %v4047
          %v4552 = vpack.c.b16 %v4052, %v4050
          %v4553 = vpack.c.b16 %v4053, %v4051
          %v4554 = vpack.c.b16 %v4056, %v4054
          %v4555 = vpack.c.b16 %v4057, %v4055
          %v4556 = vpack.c.b16 %v4060, %v4058
          %v4557 = vpack.c.b16 %v4061, %v4059
          %v4558 = vpack.c.b16 %v4064, %v4062
          %v4559 = vpack.c.b16 %v4065, %v4063
          %v4560 = vpack.c.b16 %v4068, %v4066
          %v4561 = vpack.c.b16 %v4069, %v4067
          %v4562 = vpack.c.b16 %v4072, %v4070
          %v4563 = vpack.c.b16 %v4073, %v4071
          %v4564 = vpack.c.b16 %v4076, %v4074
          %v4565 = vpack.c.b16 %v4077, %v4075
          %v4566 = vpack.c.b16 %v4080, %v4078
          %v4567 = vpack.c.b16 %v4081, %v4079
          %v4568 = vpack.c.b16 %v4084, %v4082
          %v4569 = vpack.c.b16 %v4085, %v4083
          %v4570 = vpack.c.b16 %v4088, %v4086
          %v4571 = vpack.c.b16 %v4089, %v4087
          %v4572 = vpack.c.b16 %v4092, %v4090
          %v4573 = vpack.c.b16 %v4093, %v4091
          %v4574 = vpack.c.b16 %v4096, %v4094
          %v4575 = vpack.c.b16 %v4097, %v4095
          %v4576 = vpack.c.b16 %v4100, %v4098
          %v4577 = vpack.c.b16 %v4101, %v4099
          %v4578 = vpack.c.b16 %v4104, %v4102
          %v4579 = vpack.c.b16 %v4105, %v4103
          %v4580 = vpack.c.b16 %v4108, %v4106
          %v4581 = vpack.c.b16 %v4109, %v4107
          %v4582 = vpack.c.b16 %v4112, %v4110
          %v4583 = vpack.c.b16 %v4113, %v4111
          %v4584 = vpack.c.b16 %v4116, %v4114
          %v4585 = vpack.c.b16 %v4117, %v4115
          %v4586 = vpack.c.b16 %v4120, %v4118
          %v4587 = vpack.c.b16 %v4121, %v4119
          %v4588 = vpack.c.b16 %v4124, %v4122
          %v4589 = vpack.c.b16 %v4125, %v4123
          %v4590 = vpack.c.b16 %v4128, %v4126
          %v4591 = vpack.c.b16 %v4129, %v4127
          %v4592 = vpack.c.b16 %v4132, %v4130
          %v4593 = vpack.c.b16 %v4133, %v4131
          %v4594 = vpack.c.b16 %v4136, %v4134
          %v4595 = vpack.c.b16 %v4137, %v4135
          %v4596 = vpack.c.b16 %v4140, %v4138
          %v4597 = vpack.c.b16 %v4141, %v4139
          %v4598 = vpack.c.b16 %v4144, %v4142
          %v4599 = vpack.c.b16 %v4145, %v4143
          %v4600 = vpack.c.b16 %v4148, %v4146
          %v4601 = vpack.c.b16 %v4149, %v4147
          %v4602 = vpack.c.b16 %v4152, %v4150
          %v4603 = vpack.c.b16 %v4153, %v4151
          %v4604 = vpack.c.b16 %v4156, %v4154
          %v4605 = vpack.c.b16 %v4157, %v4155
          %v4606 = vpack.c.b16 %v4160, %v4158
          %v4607 = vpack.c.b16 %v4161, %v4159
          %v4608 = vpack.c.b16 %v4164, %v4162
          %v4609 = vpack.c.b16 %v4165, %v4163
          %v4610 = vpack.c.b16 %v4168, %v4166
          %v4611 = vpack.c.b16 %v4169, %v4167
          %v4612 = vpack.c.b16 %v4172, %v4170
          %v4613 = vpack.c.b16 %v4173, %v4171
          %v4614 = vpack.c.b16 %v4176, %v4174
          %v4615 = vpack.c.b16 %v4177, %v4175
          %v4616 = vpack.c.b16 %v4180, %v4178
          %v4617 = vpack.c.b16 %v4181, %v4179
          %v4618 = vpack.c.b16 %v4184, %v4182
          %v4619 = vpack.c.b16 %v4185, %v4183
          %v4620 = vpack.c.b16 %v4188, %v4186
          %v4621 = vpack.c.b16 %v4189, %v4187
          %v4622 = vpack.c.b16 %v4192, %v4190
          %v4623 = vpack.c.b16 %v4193, %v4191
          %v4624 = vpack.c.b16 %v4196, %v4194
          %v4625 = vpack.c.b16 %v4197, %v4195
          %v4626 = vpack.c.b16 %v4200, %v4198
          %v4627 = vpack.c.b16 %v4201, %v4199
          %v4628 = vpack.c.b16 %v4204, %v4202
          %v4629 = vpack.c.b16 %v4205, %v4203
          %v4630 = vpack.c.b16 %v4208, %v4206
          %v4631 = vpack.c.b16 %v4209, %v4207
          %v4632 = vpack.c.b16 %v4212, %v4210
          %v4633 = vpack.c.b16 %v4213, %v4211
          %v4634 = vpack.c.b16 %v4216, %v4214
          %v4635 = vpack.c.b16 %v4217, %v4215
          %v4636 = vpack.c.b16 %v4220, %v4218
          %v4637 = vpack.c.b16 %v4221, %v4219
          %v4638 = vpack.c.b16 %v4224, %v4222
          %v4639 = vpack.c.b16 %v4225, %v4223
          %v4640 = vpack.c.b16 %v4228, %v4226
          %v4641 = vpack.c.b16 %v4229, %v4227
          %v4642 = vpack.c.b16 %v4232, %v4230
          %v4643 = vpack.c.b16 %v4233, %v4231
          %v4644 = vpack.c.b16 %v4236, %v4234
          %v4645 = vpack.c.b16 %v4237, %v4235
          %v4646 = vpack.c.b16 %v4240, %v4238
          %v4647 = vpack.c.b16 %v4241, %v4239
          %v4648 = vpack.c.b16 %v4244, %v4242
          %v4649 = vpack.c.b16 %v4245, %v4243
          %v4650 = vpack.c.b16 %v4248, %v4246
          %v4651 = vpack.c.b16 %v4249, %v4247
          %v4652 = vpack.c.b16 %v4252, %v4250
          %v4653 = vpack.c.b16 %v4253, %v4251
          %v4654 = vpack.c.b16 %v4256, %v4254
          %v4655 = vpack.c.b16 %v4257, %v4255
          %v4656 = vpack.c.b16 %v4260, %v4258
          %v4657 = vpack.c.b16 %v4261, %v4259
          %v4658 = vpack.c.b16 %v4264, %v4262
          %v4659 = vpack.c.b16 %v4265, %v4263
          %v4660 = vpack.c.b16 %v4268, %v4266
          %v4661 = vpack.c.b16 %v4269, %v4267
          %v4662 = vpack.c.b16 %v4272, %v4270
          %v4663 = vpack.c.b16 %v4273, %v4271
          %v4664 = vpack.c.b16 %v4276, %v4274
          %v4665 = vpack.c.b16 %v4277, %v4275
          %v4666 = vpack.c.b16 %v4280, %v4278
          %v4667 = vpack.c.b16 %v4281, %v4279
          %v4668 = vpack.c.b16 %v4284, %v4282
          %v4669 = vpack.c.b16 %v4285, %v4283
          %v4670 = vpack.c.b16 %v4288, %v4286
          %v4671 = vpack.c.b16 %v4289, %v4287
          %v4672 = vpack.c.b16 %v4292, %v4290
          %v4673 = vpack.c.b16 %v4293, %v4291
          %v4674 = vpack.c.b16 %v4296, %v4294
          %v4675 = vpack.c.b16 %v4297, %v4295
          %v4676 = vpack.c.b16 %v4300, %v4298
          %v4677 = vpack.c.b16 %v4301, %v4299
          %v4678 = vpack.c.b16 %v4304, %v4302
          %v4679 = vpack.c.b16 %v4305, %v4303
          %v4680 = vpack.c.b16 %v4308, %v4306
          %v4681 = vpack.c.b16 %v4309, %v4307
          %v4682 = vpack.c.b16 %v4312, %v4310
          %v4683 = vpack.c.b16 %v4313, %v4311
          %v4684 = vpack.c.b16 %v4316, %v4314
          %v4685 = vpack.c.b16 %v4317, %v4315
          %v4686 = vpack.c.b16 %v4320, %v4318
          %v4687 = vpack.c.b16 %v4321, %v4319
          %v4688 = vpack.c.b16 %v4324, %v4322
          %v4689 = vpack.c.b16 %v4325, %v4323
          %v4690 = vpack.c.b16 %v4328, %v4326
          %v4691 = vpack.c.b16 %v4329, %v4327
          %v4692 = vpack.c.b16 %v4332, %v4330
          %v4693 = vpack.c.b16 %v4333, %v4331
          %v4694 = vpack.c.b16 %v4336, %v4334
          %v4695 = vpack.c.b16 %v4337, %v4335
          %v4696 = vpack.c.b16 %v4340, %v4338
          %v4697 = vpack.c.b16 %v4341, %v4339
          %v4698 = vpack.c.b16 %v4344, %v4342
          %v4699 = vpack.c.b16 %v4345, %v4343
          %v4700 = vpack.c.b16 %v4348, %v4346
          %v4701 = vpack.c.b16 %v4349, %v4347
          %v4702 = vpack.c.b16 %v4352, %v4350
          %v4703 = vpack.c.b16 %v4353, %v4351
          %v4704 = vpack.c.b16 %v4356, %v4354
          %v4705 = vpack.c.b16 %v4357, %v4355
          %v4706 = vpack.c.b16 %v4360, %v4358
          %v4707 = vpack.c.b16 %v4361, %v4359
          %v4708 = vpack.c.b16 %v4364, %v4362
          %v4709 = vpack.c.b16 %v4365, %v4363
          %v4710 = vpack.c.b16 %v4368, %v4366
          %v4711 = vpack.c.b16 %v4369, %v4367
          %v4712 = vpack.c.b16 %v4372, %v4370
          %v4713 = vpack.c.b16 %v4373, %v4371
          %v4714 = vpack.c.b16 %v4376, %v4374
          %v4715 = vpack.c.b16 %v4377, %v4375
          %v4716 = vpack.c.b16 %v4380, %v4378
          %v4717 = vpack.c.b16 %v4381, %v4379
          %v4718 = vpack.c.b16 %v4384, %v4382
          %v4719 = vpack.c.b16 %v4385, %v4383
          %v4720 = vpack.c.b16 %v4388, %v4386
          %v4721 = vpack.c.b16 %v4389, %v4387
          %v4722 = vpack.c.b16 %v4392, %v4390
          %v4723 = vpack.c.b16 %v4393, %v4391
          %v4724 = vpack.c.b16 %v4396, %v4394
          %v4725 = vpack.c.b16 %v4397, %v4395
          %v4726 = vpack.c.b16 %v4400, %v4398
          %v4727 = vpack.c.b16 %v4401, %v4399
          %v4728 = vpack.c.b16 %v4404, %v4402
          %v4729 = vpack.c.b16 %v4405, %v4403
          %v4730 = vpack.c.b16 %v4408, %v4406
          %v4731 = vpack.c.b16 %v4409, %v4407
          %v4732 = vpack.c.b16 %v4412, %v4410
          %v4733 = vpack.c.b16 %v4413, %v4411
          %v4734 = vpack.c.b16 %v4416, %v4414
          %v4735 = vpack.c.b16 %v4417, %v4415
          %v4736 = vpack.c.b16 %v4420, %v4418
          %v4737 = vpack.c.b16 %v4421, %v4419
          %v4738 = vpack.c.b16 %v4424, %v4422
          %v4739 = vpack.c.b16 %v4425, %v4423
          %v4740 = vpack.c.b16 %v4428, %v4426
          %v4741 = vpack.c.b16 %v4429, %v4427
          %v4742 = vpack.c.b16 %v4432, %v4430
          %v4743 = vpack.c.b16 %v4433, %v4431
          %v4744 = vpack.c.b16 %v4436, %v4434
          %v4745 = vpack.c.b16 %v4437, %v4435
          %v4746 = vpack.c.b16 %v4440, %v4438
          %v4747 = vpack.c.b16 %v4441, %v4439
          %v4748 = vpack.c.b16 %v4444, %v4442
          %v4749 = vpack.c.b16 %v4445, %v4443
          %v4750 = vpack.c.b16 %v4448, %v4446
          %v4751 = vpack.c.b16 %v4449, %v4447
          %v4752 = vpack.c.b16 %v4452, %v4450
          %v4753 = vpack.c.b16 %v4453, %v4451
          %v4754 = vpack.c.b16 %v4456, %v4454
          %v4755 = vpack.c.b16 %v4457, %v4455
          %v4756 = vpack.c.b16 %v4460, %v4458
          %v4757 = vpack.c.b16 %v4461, %v4459
          %v4758 = vpack.c.b16 %v4464, %v4462
          %v4759 = vpack.c.b16 %v4465, %v4463
          %v4760 = vpack.c.b16 %v4468, %v4466
          %v4761 = vpack.c.b16 %v4469, %v4467
          %v4762 = vpack.c.b16 %v4472, %v4470
          %v4763 = vpack.c.b16 %v4473, %v4471
          %v4764 = vpack.c.b16 %v4476, %v4474
          %v4765 = vpack.c.b16 %v4477, %v4475
          %v4766 = vpack.c.b16 %v4480, %v4478
          %v4767 = vpack.c.b16 %v4481, %v4479
          %v4768 = vpack.c.b16 %v4484, %v4482
          %v4769 = vpack.c.b16 %v4485, %v4483
          %v4770 = vpack.c.b16 %v4488, %v4486
          %v4771 = vpack.c.b16 %v4489, %v4487
          %v4772 = vpack.c.b16 %v4492, %v4490
          %v4773 = vpack.c.b16 %v4493, %v4491
          %v4774 = vpack.c.b16 %v4496, %v4494
          %v4775 = vpack.c.b16 %v4497, %v4495
          %v4776 = vpack.c.b16 %v4500, %v4498
          %v4777 = vpack.c.b16 %v4501, %v4499
          %v4778 = vpack.c.b16 %v4504, %v4502
          %v4779 = vpack.c.b16 %v4505, %v4503
          %v4780 = vpack.c.b16 %v4508, %v4506
          %v4781 = vpack.c.b16 %v4509, %v4507
          %v4782 = vpack.c.b16 %v4512, %v4510
          %v4783 = vpack.c.b16 %v4513, %v4511
          %v4784 = vpack.c.b16 %v4516, %v4514
          %v4785 = vpack.c.b16 %v4517, %v4515
          %v4786 = vpack.c.b16 %v4520, %v4518
          %v4787 = vpack.c.b16 %v4521, %v4519
          %v4788 = vpack.c.b16 %v4524, %v4522
          %v4789 = vpack.c.b16 %v4525, %v4523
          %v4790 = vpack.c.b16 %v4528, %v4526
          %v4791 = vpack.c.b16 %v4529, %v4527
          %v4792 = vpack.c.b16 %v4532, %v4530
          %v4793 = vpack.c.b16 %v4533, %v4531
          %v4794 = vpack.c.b16 %v4536, %v4534
          %v4795 = vpack.c.b16 %v4537, %v4535
          %v4796 = vpack.c.b16 %v4540, %v4538
          %v4797 = vpack.c.b16 %v4541, %v4539
          %v5055 = vlaneseq
          %v5056 = vshrl.u32 %v5055, 7
          %v5057 = vsub.s32 0, %v5056
          %v5058 = vrot.slane %v3773, %v5057
          %v5059 = vlaneseq
          %v5060 = vshrl.u32 %v5059, 7
          %v5061 = vsub.s32 1, %v5060
          %v5062 = vrot.slane %v3773, %v5061
          %5065 = vmatprep.subr.bf16.mxu0 %v4557
          %5066 = vmatpush1.bf16.msra.mxu0 %v4556
          %5067 = vmatprep.subr.bf16.mxu0 %v4555
          %5068 = vmatpush1.bf16.msra.mxu0 %v4554
          %5069 = vmatprep.subr.bf16.mxu0 %v4553
          %5070 = vmatpush1.bf16.msra.mxu0 %v4552
          %5071 = vmatprep.subr.bf16.mxu0 %v4551
          %5072 = vmatpush1.bf16.msra.mxu0 %v4550
          %5073 = vmatprep.subr.bf16.mxu0 %v4549
          %5074 = vmatpush1.bf16.msra.mxu0 %v4548
          %5075 = vmatprep.subr.bf16.mxu0 %v4547
          %5076 = vmatpush1.bf16.msra.mxu0 %v4546
          %5077 = vmatprep.subr.bf16.mxu0 %v4545
          %5078 = vmatpush1.bf16.msra.mxu0 %v4544
          %5079 = vmatprep.subr.bf16.mxu0 %v4543
          %5080 = vmatpush1.bf16.msra.mxu0 %v4542
          %5081 = vmatprep.subr.bf16.mxu0 %v4573
          %5082 = vmatpush2.bf16.msra.mxu0 %v4572
          %5083 = vmatprep.subr.bf16.mxu0 %v4571
          %5084 = vmatpush2.bf16.msra.mxu0 %v4570
          %5085 = vmatprep.subr.bf16.mxu0 %v4569
          %5086 = vmatpush2.bf16.msra.mxu0 %v4568
          %5087 = vmatprep.subr.bf16.mxu0 %v4567
          %5088 = vmatpush2.bf16.msra.mxu0 %v4566
          %5089 = vmatprep.subr.bf16.mxu0 %v4565
          %5090 = vmatpush2.bf16.msra.mxu0 %v4564
          %5091 = vmatprep.subr.bf16.mxu0 %v4563
          %5092 = vmatpush2.bf16.msra.mxu0 %v4562
          %5093 = vmatprep.subr.bf16.mxu0 %v4561
          %5094 = vmatpush2.bf16.msra.mxu0 %v4560
          %5095 = vmatprep.subr.bf16.mxu0 %v4559
          %5096 = vmatpush2.bf16.msra.mxu0 %v4558
          %5097 = vmatprep.mubr.bf16.mxu0 %v3502
          %5098 = vmatmul.mubr.bf16.gmra.mxu0 %v3501
          %v5099 = vpop.f32.mrf.mxu0
          %v5100 = vadd.f32 %v5058, %v5099
          %v5101 = vpop.f32.mrf.mxu0
          %v5102 = vadd.f32 %v5062, %v5101
          %v5103 = vpop.f32.mrf.mxu0
          %v5104 = vpop.f32.mrf.mxu0
          %5105 = vdwg.mxu0
          %5106 = vmatprep.subr.bf16.mxu0 %v4589
          %5107 = vmatpush1.bf16.msra.mxu0 %v4588
          %5108 = vmatprep.subr.bf16.mxu0 %v4587
          %5109 = vmatpush1.bf16.msra.mxu0 %v4586
          %5110 = vmatprep.subr.bf16.mxu0 %v4585
          %5111 = vmatpush1.bf16.msra.mxu0 %v4584
          %5112 = vmatprep.subr.bf16.mxu0 %v4583
          %5113 = vmatpush1.bf16.msra.mxu0 %v4582
          %5114 = vmatprep.subr.bf16.mxu0 %v4581
          %5115 = vmatpush1.bf16.msra.mxu0 %v4580
          %5116 = vmatprep.subr.bf16.mxu0 %v4579
          %5117 = vmatpush1.bf16.msra.mxu0 %v4578
          %5118 = vmatprep.subr.bf16.mxu0 %v4577
          %5119 = vmatpush1.bf16.msra.mxu0 %v4576
          %5120 = vmatprep.subr.bf16.mxu0 %v4575
          %5121 = vmatpush1.bf16.msra.mxu0 %v4574
          %5122 = vmatprep.subr.bf16.mxu0 %v4605
          %5123 = vmatpush2.bf16.msra.mxu0 %v4604
          %5124 = vmatprep.subr.bf16.mxu0 %v4603
          %5125 = vmatpush2.bf16.msra.mxu0 %v4602
          %5126 = vmatprep.subr.bf16.mxu0 %v4601
          %5127 = vmatpush2.bf16.msra.mxu0 %v4600
          %5128 = vmatprep.subr.bf16.mxu0 %v4599
          %5129 = vmatpush2.bf16.msra.mxu0 %v4598
          %5130 = vmatprep.subr.bf16.mxu0 %v4597
          %5131 = vmatpush2.bf16.msra.mxu0 %v4596
          %5132 = vmatprep.subr.bf16.mxu0 %v4595
          %5133 = vmatpush2.bf16.msra.mxu0 %v4594
          %5134 = vmatprep.subr.bf16.mxu0 %v4593
          %5135 = vmatpush2.bf16.msra.mxu0 %v4592
          %5136 = vmatprep.subr.bf16.mxu0 %v4591
          %5137 = vmatpush2.bf16.msra.mxu0 %v4590
          %5138 = vmatprep.mubr.bf16.mxu0 %v3504
          %5139 = vmatmul.mubr.bf16.gmra.mxu0 %v3503
          %v5140 = vpop.f32.mrf.mxu0
          %v5141 = vadd.f32 %v5100, %v5140
          %v5142 = vpop.f32.mrf.mxu0
          %v5143 = vadd.f32 %v5102, %v5142
          %v5144 = vpop.f32.mrf.mxu0
          %v5145 = vpop.f32.mrf.mxu0
          %5146 = vdwg.mxu0
          %5147 = vmatprep.subr.bf16.mxu0 %v4621
          %5148 = vmatpush1.bf16.msra.mxu0 %v4620
          %5149 = vmatprep.subr.bf16.mxu0 %v4619
          %5150 = vmatpush1.bf16.msra.mxu0 %v4618
          %5151 = vmatprep.subr.bf16.mxu0 %v4617
          %5152 = vmatpush1.bf16.msra.mxu0 %v4616
          %5153 = vmatprep.subr.bf16.mxu0 %v4615
          %5154 = vmatpush1.bf16.msra.mxu0 %v4614
          %5155 = vmatprep.subr.bf16.mxu0 %v4613
          %5156 = vmatpush1.bf16.msra.mxu0 %v4612
          %5157 = vmatprep.subr.bf16.mxu0 %v4611
          %5158 = vmatpush1.bf16.msra.mxu0 %v4610
          %5159 = vmatprep.subr.bf16.mxu0 %v4609
          %5160 = vmatpush1.bf16.msra.mxu0 %v4608
          %5161 = vmatprep.subr.bf16.mxu0 %v4607
          %5162 = vmatpush1.bf16.msra.mxu0 %v4606
          %5163 = vmatprep.subr.bf16.mxu0 %v4637
          %5164 = vmatpush2.bf16.msra.mxu0 %v4636
          %5165 = vmatprep.subr.bf16.mxu0 %v4635
          %5166 = vmatpush2.bf16.msra.mxu0 %v4634
          %5167 = vmatprep.subr.bf16.mxu0 %v4633
          %5168 = vmatpush2.bf16.msra.mxu0 %v4632
          %5169 = vmatprep.subr.bf16.mxu0 %v4631
          %5170 = vmatpush2.bf16.msra.mxu0 %v4630
          %5171 = vmatprep.subr.bf16.mxu0 %v4629
          %5172 = vmatpush2.bf16.msra.mxu0 %v4628
          %5173 = vmatprep.subr.bf16.mxu0 %v4627
          %5174 = vmatpush2.bf16.msra.mxu0 %v4626
          %5175 = vmatprep.subr.bf16.mxu0 %v4625
          %5176 = vmatpush2.bf16.msra.mxu0 %v4624
          %5177 = vmatprep.subr.bf16.mxu0 %v4623
          %5178 = vmatpush2.bf16.msra.mxu0 %v4622
          %5179 = vmatprep.mubr.bf16.mxu0 %v3506
          %5180 = vmatmul.mubr.bf16.gmra.mxu0 %v3505
          %v5181 = vpop.f32.mrf.mxu0
          %v5182 = vadd.f32 %v5141, %v5181
          %v5183 = vpop.f32.mrf.mxu0
          %v5184 = vadd.f32 %v5143, %v5183
          %v5185 = vpop.f32.mrf.mxu0
          %v5186 = vpop.f32.mrf.mxu0
          %5187 = vdwg.mxu0
          %5188 = vmatprep.subr.bf16.mxu0 %v4653
          %5189 = vmatpush1.bf16.msra.mxu0 %v4652
          %5190 = vmatprep.subr.bf16.mxu0 %v4651
          %5191 = vmatpush1.bf16.msra.mxu0 %v4650
          %5192 = vmatprep.subr.bf16.mxu0 %v4649
          %5193 = vmatpush1.bf16.msra.mxu0 %v4648
          %5194 = vmatprep.subr.bf16.mxu0 %v4647
          %5195 = vmatpush1.bf16.msra.mxu0 %v4646
          %5196 = vmatprep.subr.bf16.mxu0 %v4645
          %5197 = vmatpush1.bf16.msra.mxu0 %v4644
          %5198 = vmatprep.subr.bf16.mxu0 %v4643
          %5199 = vmatpush1.bf16.msra.mxu0 %v4642
          %5200 = vmatprep.subr.bf16.mxu0 %v4641
          %5201 = vmatpush1.bf16.msra.mxu0 %v4640
          %5202 = vmatprep.subr.bf16.mxu0 %v4639
          %5203 = vmatpush1.bf16.msra.mxu0 %v4638
          %5204 = vmatprep.subr.bf16.mxu0 %v4669
          %5205 = vmatpush2.bf16.msra.mxu0 %v4668
          %5206 = vmatprep.subr.bf16.mxu0 %v4667
          %5207 = vmatpush2.bf16.msra.mxu0 %v4666
          %5208 = vmatprep.subr.bf16.mxu0 %v4665
          %5209 = vmatpush2.bf16.msra.mxu0 %v4664
          %5210 = vmatprep.subr.bf16.mxu0 %v4663
          %5211 = vmatpush2.bf16.msra.mxu0 %v4662
          %5212 = vmatprep.subr.bf16.mxu0 %v4661
          %5213 = vmatpush2.bf16.msra.mxu0 %v4660
          %5214 = vmatprep.subr.bf16.mxu0 %v4659
          %5215 = vmatpush2.bf16.msra.mxu0 %v4658
          %5216 = vmatprep.subr.bf16.mxu0 %v4657
          %5217 = vmatpush2.bf16.msra.mxu0 %v4656
          %5218 = vmatprep.subr.bf16.mxu0 %v4655
          %5219 = vmatpush2.bf16.msra.mxu0 %v4654
          %5220 = vmatprep.mubr.bf16.mxu0 %v3508
          %5221 = vmatmul.mubr.bf16.gmra.mxu0 %v3507
          %v5222 = vpop.f32.mrf.mxu0
          %v5223 = vadd.f32 %v5182, %v5222
          %v5224 = vpop.f32.mrf.mxu0
          %v5225 = vadd.f32 %v5184, %v5224
          %v5226 = vpop.f32.mrf.mxu0
          %v5227 = vpop.f32.mrf.mxu0
          %5228 = vdwg.mxu0
          %5229 = vmatprep.subr.bf16.mxu0 %v4685
          %5230 = vmatpush1.bf16.msra.mxu0 %v4684
          %5231 = vmatprep.subr.bf16.mxu0 %v4683
          %5232 = vmatpush1.bf16.msra.mxu0 %v4682
          %5233 = vmatprep.subr.bf16.mxu0 %v4681
          %5234 = vmatpush1.bf16.msra.mxu0 %v4680
          %5235 = vmatprep.subr.bf16.mxu0 %v4679
          %5236 = vmatpush1.bf16.msra.mxu0 %v4678
          %5237 = vmatprep.subr.bf16.mxu0 %v4677
          %5238 = vmatpush1.bf16.msra.mxu0 %v4676
          %5239 = vmatprep.subr.bf16.mxu0 %v4675
          %5240 = vmatpush1.bf16.msra.mxu0 %v4674
          %5241 = vmatprep.subr.bf16.mxu0 %v4673
          %5242 = vmatpush1.bf16.msra.mxu0 %v4672
          %5243 = vmatprep.subr.bf16.mxu0 %v4671
          %5244 = vmatpush1.bf16.msra.mxu0 %v4670
          %5245 = vmatprep.subr.bf16.mxu0 %v4701
          %5246 = vmatpush2.bf16.msra.mxu0 %v4700
          %5247 = vmatprep.subr.bf16.mxu0 %v4699
          %5248 = vmatpush2.bf16.msra.mxu0 %v4698
          %5249 = vmatprep.subr.bf16.mxu0 %v4697
          %5250 = vmatpush2.bf16.msra.mxu0 %v4696
          %5251 = vmatprep.subr.bf16.mxu0 %v4695
          %5252 = vmatpush2.bf16.msra.mxu0 %v4694
          %5253 = vmatprep.subr.bf16.mxu0 %v4693
          %5254 = vmatpush2.bf16.msra.mxu0 %v4692
          %5255 = vmatprep.subr.bf16.mxu0 %v4691
          %5256 = vmatpush2.bf16.msra.mxu0 %v4690
          %5257 = vmatprep.subr.bf16.mxu0 %v4689
          %5258 = vmatpush2.bf16.msra.mxu0 %v4688
          %5259 = vmatprep.subr.bf16.mxu0 %v4687
          %5260 = vmatpush2.bf16.msra.mxu0 %v4686
          %5261 = vmatprep.mubr.bf16.mxu0 %v3510
          %5262 = vmatmul.mubr.bf16.gmra.mxu0 %v3509
          %v5263 = vpop.f32.mrf.mxu0
          %v5264 = vadd.f32 %v5223, %v5263
          %v5265 = vpop.f32.mrf.mxu0
          %v5266 = vadd.f32 %v5225, %v5265
          %v5267 = vpop.f32.mrf.mxu0
          %v5268 = vpop.f32.mrf.mxu0
          %5269 = vdwg.mxu0
          %5270 = vmatprep.subr.bf16.mxu0 %v4717
          %5271 = vmatpush1.bf16.msra.mxu0 %v4716
          %5272 = vmatprep.subr.bf16.mxu0 %v4715
          %5273 = vmatpush1.bf16.msra.mxu0 %v4714
          %5274 = vmatprep.subr.bf16.mxu0 %v4713
          %5275 = vmatpush1.bf16.msra.mxu0 %v4712
          %5276 = vmatprep.subr.bf16.mxu0 %v4711
          %5277 = vmatpush1.bf16.msra.mxu0 %v4710
          %5278 = vmatprep.subr.bf16.mxu0 %v4709
          %5279 = vmatpush1.bf16.msra.mxu0 %v4708
          %5280 = vmatprep.subr.bf16.mxu0 %v4707
          %5281 = vmatpush1.bf16.msra.mxu0 %v4706
          %5282 = vmatprep.subr.bf16.mxu0 %v4705
          %5283 = vmatpush1.bf16.msra.mxu0 %v4704
          %5284 = vmatprep.subr.bf16.mxu0 %v4703
          %5285 = vmatpush1.bf16.msra.mxu0 %v4702
          %5286 = vmatprep.subr.bf16.mxu0 %v4733
          %5287 = vmatpush2.bf16.msra.mxu0 %v4732
          %5288 = vmatprep.subr.bf16.mxu0 %v4731
          %5289 = vmatpush2.bf16.msra.mxu0 %v4730
          %5290 = vmatprep.subr.bf16.mxu0 %v4729
          %5291 = vmatpush2.bf16.msra.mxu0 %v4728
          %5292 = vmatprep.subr.bf16.mxu0 %v4727
          %5293 = vmatpush2.bf16.msra.mxu0 %v4726
          %5294 = vmatprep.subr.bf16.mxu0 %v4725
          %5295 = vmatpush2.bf16.msra.mxu0 %v4724
          %5296 = vmatprep.subr.bf16.mxu0 %v4723
          %5297 = vmatpush2.bf16.msra.mxu0 %v4722
          %5298 = vmatprep.subr.bf16.mxu0 %v4721
          %5299 = vmatpush2.bf16.msra.mxu0 %v4720
          %5300 = vmatprep.subr.bf16.mxu0 %v4719
          %5301 = vmatpush2.bf16.msra.mxu0 %v4718
          %5302 = vmatprep.mubr.bf16.mxu0 %v3512
          %5303 = vmatmul.mubr.bf16.gmra.mxu0 %v3511
          %v5304 = vpop.f32.mrf.mxu0
          %v5305 = vadd.f32 %v5264, %v5304
          %v5306 = vpop.f32.mrf.mxu0
          %v5307 = vadd.f32 %v5266, %v5306
          %v5308 = vpop.f32.mrf.mxu0
          %v5309 = vpop.f32.mrf.mxu0
          %5310 = vdwg.mxu0
          %5311 = vmatprep.subr.bf16.mxu0 %v4749
          %5312 = vmatpush1.bf16.msra.mxu0 %v4748
          %5313 = vmatprep.subr.bf16.mxu0 %v4747
          %5314 = vmatpush1.bf16.msra.mxu0 %v4746
          %5315 = vmatprep.subr.bf16.mxu0 %v4745
          %5316 = vmatpush1.bf16.msra.mxu0 %v4744
          %5317 = vmatprep.subr.bf16.mxu0 %v4743
          %5318 = vmatpush1.bf16.msra.mxu0 %v4742
          %5319 = vmatprep.subr.bf16.mxu0 %v4741
          %5320 = vmatpush1.bf16.msra.mxu0 %v4740
          %5321 = vmatprep.subr.bf16.mxu0 %v4739
          %5322 = vmatpush1.bf16.msra.mxu0 %v4738
          %5323 = vmatprep.subr.bf16.mxu0 %v4737
          %5324 = vmatpush1.bf16.msra.mxu0 %v4736
          %5325 = vmatprep.subr.bf16.mxu0 %v4735
          %5326 = vmatpush1.bf16.msra.mxu0 %v4734
          %5327 = vmatprep.subr.bf16.mxu0 %v4765
          %5328 = vmatpush2.bf16.msra.mxu0 %v4764
          %5329 = vmatprep.subr.bf16.mxu0 %v4763
          %5330 = vmatpush2.bf16.msra.mxu0 %v4762
          %5331 = vmatprep.subr.bf16.mxu0 %v4761
          %5332 = vmatpush2.bf16.msra.mxu0 %v4760
          %5333 = vmatprep.subr.bf16.mxu0 %v4759
          %5334 = vmatpush2.bf16.msra.mxu0 %v4758
          %5335 = vmatprep.subr.bf16.mxu0 %v4757
          %5336 = vmatpush2.bf16.msra.mxu0 %v4756
          %5337 = vmatprep.subr.bf16.mxu0 %v4755
          %5338 = vmatpush2.bf16.msra.mxu0 %v4754
          %5339 = vmatprep.subr.bf16.mxu0 %v4753
          %5340 = vmatpush2.bf16.msra.mxu0 %v4752
          %5341 = vmatprep.subr.bf16.mxu0 %v4751
          %5342 = vmatpush2.bf16.msra.mxu0 %v4750
          %5343 = vmatprep.mubr.bf16.mxu0 %v3514
          %5344 = vmatmul.mubr.bf16.gmra.mxu0 %v3513
          %v5345 = vpop.f32.mrf.mxu0
          %v5346 = vadd.f32 %v5305, %v5345
          %v5347 = vpop.f32.mrf.mxu0
          %v5348 = vadd.f32 %v5307, %v5347
          %v5349 = vpop.f32.mrf.mxu0
          %v5350 = vpop.f32.mrf.mxu0
          %5351 = vdwg.mxu0
          %5352 = vmatprep.subr.bf16.mxu0 %v4781
          %5353 = vmatpush1.bf16.msra.mxu0 %v4780
          %5354 = vmatprep.subr.bf16.mxu0 %v4779
          %5355 = vmatpush1.bf16.msra.mxu0 %v4778
          %5356 = vmatprep.subr.bf16.mxu0 %v4777
          %5357 = vmatpush1.bf16.msra.mxu0 %v4776
          %5358 = vmatprep.subr.bf16.mxu0 %v4775
          %5359 = vmatpush1.bf16.msra.mxu0 %v4774
          %5360 = vmatprep.subr.bf16.mxu0 %v4773
          %5361 = vmatpush1.bf16.msra.mxu0 %v4772
          %5362 = vmatprep.subr.bf16.mxu0 %v4771
          %5363 = vmatpush1.bf16.msra.mxu0 %v4770
          %5364 = vmatprep.subr.bf16.mxu0 %v4769
          %5365 = vmatpush1.bf16.msra.mxu0 %v4768
          %5366 = vmatprep.subr.bf16.mxu0 %v4767
          %5367 = vmatpush1.bf16.msra.mxu0 %v4766
          %5368 = vmatprep.subr.bf16.mxu0 %v4797
          %5369 = vmatpush2.bf16.msra.mxu0 %v4796
          %5370 = vmatprep.subr.bf16.mxu0 %v4795
          %5371 = vmatpush2.bf16.msra.mxu0 %v4794
          %5372 = vmatprep.subr.bf16.mxu0 %v4793
          %5373 = vmatpush2.bf16.msra.mxu0 %v4792
          %5374 = vmatprep.subr.bf16.mxu0 %v4791
          %5375 = vmatpush2.bf16.msra.mxu0 %v4790
          %5376 = vmatprep.subr.bf16.mxu0 %v4789
          %5377 = vmatpush2.bf16.msra.mxu0 %v4788
          %5378 = vmatprep.subr.bf16.mxu0 %v4787
          %5379 = vmatpush2.bf16.msra.mxu0 %v4786
          %5380 = vmatprep.subr.bf16.mxu0 %v4785
          %5381 = vmatpush2.bf16.msra.mxu0 %v4784
          %5382 = vmatprep.subr.bf16.mxu0 %v4783
          %5383 = vmatpush2.bf16.msra.mxu0 %v4782
          %5384 = vmatprep.mubr.bf16.mxu0 %v3516
          %5385 = vmatmul.mubr.bf16.gmra.mxu0 %v3515
          %v5386 = vpop.f32.mrf.mxu0
          %v5387 = vadd.f32 %v5346, %v5386
          %v5388 = vpop.f32.mrf.mxu0
          %v5389 = vadd.f32 %v5348, %v5388
          %v5390 = vpop.f32.mrf.mxu0
          %v5391 = vpop.f32.mrf.mxu0
          %5392 = vdwg.mxu0
          %v5395 = vcombine.low %v5387, %v5389
          %v5397 = vunpack.c.l.s4 1966171168
          %v5398 = vunpack.c.0.s8 %v5397
          %v5399 = vlaneseq
          %v5400 = vshrl.u32 %v5399, 7
          %v5401 = vsub.s32 %v5398, %v5400
          %v5402 = vrot.slane %v5395, %v5401
          %v5404 = vunpack.c.l.s4 1966171168
          %v5405 = vunpack.c.0.s8 %v5404
          %v5406 = vlaneseq
          %v5407 = vshrl.u32 %v5406, 7
          %v5408 = vsub.s32 %v5405, %v5407
          %v5409 = vrot.slane %v5402, %v5408
          %v5411 = vlaneseq
          %vm5412 = vcmp.ge.s32.totalorder %v5411, 0
          %vm5413 = vcmp.lt.s32.totalorder %v5411, 256
          %vm5414 = vmand %vm5412, %vm5413
          %5415 = vst.msk [vmem:[%s322] sm:$0x3] %vm5414, %v5409
        $region64: #{tpu_custom_call.1} parent=47 // pred_fallthru
          _
        %s5416 = sand.u32 %s197, 1
        %s5417 = scalar_lea.sflag [#allocation5], %s5416
        %s5418 = sand.u32 %s197, 1
        %s5419 = smul.addr %s5418, 2
        %s5420 = scalar_lea.vmem [#allocation8], %s5419
        // Predicated region
        $region65: #{tpu_custom_call.1} parent=47 // pred_check
          %p5421 = pneg %p207
        $region66: #{tpu_custom_call.1} parent=47 // pred_check_branch
          %5423 = sbr.rel (%p5421) target = $region68
        $region67: #{tpu_custom_call.1} parent=47 // pred_region
          %s5425 = ssub.s32 32, 32
          %5426 = vsyncadd %s5417, %s5425
          %s5427 = smul.addr %s27, 2
          %s5428 = smul.addr %s5427, 16
          %s5429 = scalar_lea.hbm %s7, %s5428
          %s5431 = sshll.u32 %s5420, 4
          %s5432 = int_to_ptr.vmem [resolvable:$true] %s5431
          %5434 = dma.vmem_to_hbm [thread:$0]  %s5432, 32, %s5429, %s5417
        $region68: #{tpu_custom_call.1} parent=47 // pred_fallthru
          _
      $region48: #{tpu_custom_call.1} parent=5 // pred_fallthru
        _
      %p5435 = scmp.le.s32.totalorder 2, %s18
      // Predicated region
      $region69: #{tpu_custom_call.1} parent=5 // pred_check
        %p5436 = pneg %p5435
      $region70: #{tpu_custom_call.1} parent=5 // pred_check_branch
        %5438 = sbr.rel (%p5436) target = $region72
      $region71: #{tpu_custom_call.1} parent=5 // pred_region
        %s5439 = ssub.s32 %s18, 2
        // Predicated region
        $region73: #{tpu_custom_call.1} parent=71 // pred_check
          %p5440 = pneg %p213
        $region74: #{tpu_custom_call.1} parent=71 // pred_check_branch
          %5442 = sbr.rel (%p5440) target = $region76
        $region75: #{tpu_custom_call.1} parent=71 // pred_region
          %s5443 = sand.u32 %s198, 1
          %s5444 = scalar_lea.sflag [#allocation5], %s5443
          %s5445 = sand.u32 %s198, 1
          %s5446 = smul.addr %s5445, 2
          %s5447 = scalar_lea.vmem [#allocation8], %s5446
          %5448 = dma.done %s5444, 32
        $region76: #{tpu_custom_call.1} parent=71 // pred_fallthru
          _
      $region72: #{tpu_custom_call.1} parent=5 // pred_fallthru
        _
    $region6: #{tpu_custom_call.1} parent=1 // loop_footer
      %s22 = sadd.s32 1, %s18
    $region7: #{tpu_custom_call.1} parent=1 // loop_footer_branch
      %17 = sbr.rel target = $region3
    $region8: #{tpu_custom_call.1} parent=1 // loop_exit
      _
    %5449 = vsyncpa [#allocation4], 1
    %s5450 = scalar_lea.sflag [#allocation4], 1
    %5451 = vsyncpa %s5450, 1
    %5452 = vsyncpa [#allocation7], 1
    %5453 = vsyncpa [#allocation5], 1
    %s5454 = scalar_lea.sflag [#allocation5], 1
    %5455 = vsyncpa %s5454, 1

// kernel: tpu_custom_call.1
$region0: #{tpu_custom_call.1}
  #allocation0 [shape = 'u32[]', space=smem, size = 0x4, offset = 0x4, fixed_abs, tag = 'smem constant byte address 0x4 - core index']
  #allocation1 [shape = 'u32[144,128]{1,0:T(1,128)}', space=vmem, size = 0x12000, scoped, tag = 'internal scratch']
  #allocation2 [shape = 'f32[1,2048]{1,0:T(1,128)}', space=vmem, size = 0x2000, scoped, tag = 'scratch operand']
  %s0 = inlined_call_operand.vmem [shape: bf16[2,208,32], index: 0, kind: input, shape index: {}]
  %s1 = inlined_call_operand.vmem [shape: bf16[32,32], index: 1, kind: input, shape index: {}]
  %s2 = inlined_call_operand.vmem [shape: f32[1,32], index: 2, kind: input, shape index: {}]
  %s3 = inlined_call_operand.vmem [shape: bf16[32,2048], index: 3, kind: input, shape index: {}]
  %s4 = inlined_call_operand.hbm [shape: f32[1,2048], index: 4, kind: input, shape index: {}]
  %s5 = inlined_call_operand.hbm [shape: bf16[2048,256], index: 5, kind: input, shape index: {}]
  %s6 = inlined_call_operand.vmem [shape: f32[1,256], index: 6, kind: input, shape index: {}]
  %s7 = inlined_call_operand.hbm [shape: f32[2,1,256], index: 7, kind: output, shape index: {}]
  %s8 = sld [smem:[#allocation0]]
  $region77: #{tpu_custom_call.1} parent=0
    _
  %s10 = ssub.s32 1, %s8
  %s11 = scalar_select 0, %s10, %s8
  $region1: #{tpu_custom_call.1} parent=0
    #allocation3 [shape = 'u8[8192]{0}', space=vmem, size = 0x2000, scoped, tag = 'input window, operand 4, single buffered']
    #allocation4 [shape = 's32[2]{0}', space=sflag, size = 0x8, scoped, tag = 'scoped memory for tpu_custom_call.1']
    #allocation5 [shape = 's32[2]{0}', space=sflag, size = 0x8, scoped, tag = 'scoped memory for tpu_custom_call.1']
    #allocation6 [shape = 'u8[1048576]{0}', space=vmem, size = 0x100000, scoped, tag = 'input window, operand 5, single buffered']
    #allocation7 [shape = 's32[1]{0}', space=sflag, size = 0x4, scoped, tag = 'scoped memory for tpu_custom_call.1']
    #allocation8 [shape = 'u8[2048]{0}', space=vmem, size = 0x800, scoped, tag = 'output window, operand 0']
    %12 = vsyncpa [#allocation4], 0
    %13 = vsyncpa [#allocation7], 0
    %14 = vsyncpa [#allocation5], 0
    %s15 = scalar_lea.sflag [#allocation5], 1
    %16 = vsyncpa %s15, 0
    loop: start=0, step=1, limit=4
    $region2: #{tpu_custom_call.1} parent=1 // loop_pre_header
      _
    $region3: #{tpu_custom_call.1} parent=1 // loop_header
      %s18 = sphi 0, %s22
      %p19 = scmp.ge.s32.totalorder %s18, 4
      %s25 = sphi 0, %s37
      %s26 = sphi 0, %s33
      %s27 = sphi 0, %s25
      %s28 = sphi 0, %s26
      %s29 = sphi 0, %s27
      %s30 = sphi 0, %s28
      %s42 = sphi 0, %s44
      %s45 = sphi 0, %s42
      %s46 = sphi 0, %s45
      %s62 = sphi 0, %s46
      %s66 = sphi 0, %s66
      %s68 = sphi 0, %s66
      %s69 = sphi 0, %s68
      %s83 = sphi 0, %s69
      %s87 = sphi 0, %s87
      %s89 = sphi 0, %s87
      %s90 = sphi 0, %s89
      %s104 = sphi 0, %s90
      %s108 = sphi 0, %s108
      %s110 = sphi 0, %s108
      %s111 = sphi 0, %s110
      %s125 = sphi 0, %s111
      %s129 = sphi 0, %s129
      %s131 = sphi 0, %s129
      %s132 = sphi 0, %s131
      %s146 = sphi 0, %s132
      %s150 = sphi 0, %s150
      %s152 = sphi 0, %s150
      %s153 = sphi 0, %s152
      %s167 = sphi 0, %s153
      %s171 = sphi 0, %s171
      %s173 = sphi 0, %s171
      %s174 = sphi 0, %s173
      %s188 = sphi 0, %s174
      %s194 = sphi 0, %s196
      %s197 = sphi 0, %s194
      %s198 = sphi 0, %s197
      %s214 = sphi 0, %s198
    $region4: #{tpu_custom_call.1} parent=1 // loop_header_branch
      %21 = sbr.rel (%p19) target = $region8
    $region5: #{tpu_custom_call.1} parent=1 // loop_body
      %s23 = ssub.s32 %s18, 1
      %s24 = ssub.s32 %s18, 2
      %s31 = sadd.s32 1, %s26
      %p32 = scmp.ge.s32.totalorder %s31, 1
      %s33 = scalar_select %p32, 0, %s31
      %s34 = sadd.s32 1, %s25
      %s35 = scalar_select %p32, %s34, %s25
      %p36 = scmp.ge.s32.totalorder %s35, 2
      %s37 = scalar_select %p36, 0, %s35
      %s38 = ssub.s32 %s25, %s37
      %s39 = ssub.s32 %s26, %s33
      %s40 = sor.u32 %s38, %s39
      %p41 = scmp.eq.s32.totalorder %s40, 0
      %s43 = sadd.s32 %s42, 1
      %s44 = scalar_select %p41, %s42, %s43
      %p47 = pneg %p41
      %p48 = scmp.eq.s32.totalorder %s18, 1
      %p49 = por %p47, %p48
      %p50 = scmp.ne.s32.totalorder %s42, %s45
      %p51 = scmp.eq.s32.totalorder %s18, 0
      %p52 = por %p50, %p51
      %p53 = scmp.ne.s32.totalorder %s42, %s45
      %p54 = scmp.eq.s32.totalorder %s23, 1
      %p55 = por %p53, %p54
      %p56 = scmp.ne.s32.totalorder %s45, %s46
      %p57 = scmp.eq.s32.totalorder %s23, 0
      %p58 = por %p56, %p57
      %p59 = scmp.ne.s32.totalorder %s45, %s46
      %p60 = scmp.eq.s32.totalorder %s24, 1
      %p61 = por %p59, %p60
      %p63 = scmp.ne.s32.totalorder %s46, %s62
      %p64 = scmp.eq.s32.totalorder %s24, 0
      %p65 = por %p63, %p64
      %s67 = sadd.s32 %s66, 1
      %p70 = scmp.eq.s32.totalorder %s18, 1
      %p71 = scmp.ne.s32.totalorder %s66, %s68
      %p72 = scmp.eq.s32.totalorder %s18, 0
      %p73 = por %p71, %p72
      %p74 = scmp.ne.s32.totalorder %s66, %s68
      %p75 = scmp.eq.s32.totalorder %s23, 1
      %p76 = por %p74, %p75
      %p77 = scmp.ne.s32.totalorder %s68, %s69
      %p78 = scmp.eq.s32.totalorder %s23, 0
      %p79 = por %p77, %p78
      %p80 = scmp.ne.s32.totalorder %s68, %s69
      %p81 = scmp.eq.s32.totalorder %s24, 1
      %p82 = por %p80, %p81
      %p84 = scmp.ne.s32.totalorder %s69, %s83
      %p85 = scmp.eq.s32.totalorder %s24, 0
      %p86 = por %p84, %p85
      %s88 = sadd.s32 %s87, 1
      %p91 = scmp.eq.s32.totalorder %s18, 1
      %p92 = scmp.ne.s32.totalorder %s87, %s89
      %p93 = scmp.eq.s32.totalorder %s18, 0
      %p94 = por %p92, %p93
      %p95 = scmp.ne.s32.totalorder %s87, %s89
      %p96 = scmp.eq.s32.totalorder %s23, 1
      %p97 = por %p95, %p96
      %p98 = scmp.ne.s32.totalorder %s89, %s90
      %p99 = scmp.eq.s32.totalorder %s23, 0
      %p100 = por %p98, %p99
      %p101 = scmp.ne.s32.totalorder %s89, %s90
      %p102 = scmp.eq.s32.totalorder %s24, 1
      %p103 = por %p101, %p102
      %p105 = scmp.ne.s32.totalorder %s90, %s104
      %p106 = scmp.eq.s32.totalorder %s24, 0
      %p107 = por %p105, %p106
      %s109 = sadd.s32 %s108, 1
      %p112 = scmp.eq.s32.totalorder %s18, 1
      %p113 = scmp.ne.s32.totalorder %s108, %s110
      %p114 = scmp.eq.s32.totalorder %s18, 0
      %p115 = por %p113, %p114
      %p116 = scmp.ne.s32.totalorder %s108, %s110
      %p117 = scmp.eq.s32.totalorder %s23, 1
      %p118 = por %p116, %p117
      %p119 = scmp.ne.s32.totalorder %s110, %s111
      %p120 = scmp.eq.s32.totalorder %s23, 0
      %p121 = por %p119, %p120
      %p122 = scmp.ne.s32.totalorder %s110, %s111
      %p123 = scmp.eq.s32.totalorder %s24, 1
      %p124 = por %p122, %p123
      %p126 = scmp.ne.s32.totalorder %s111, %s125
      %p127 = scmp.eq.s32.totalorder %s24, 0
      %p128 = por %p126, %p127
      %s130 = sadd.s32 %s129, 1
      %p133 = scmp.eq.s32.totalorder %s18, 1
      %p134 = scmp.ne.s32.totalorder %s129, %s131
      %p135 = scmp.eq.s32.totalorder %s18, 0
      %p136 = por %p134, %p135
      %p137 = scmp.ne.s32.totalorder %s129, %s131
      %p138 = scmp.eq.s32.totalorder %s23, 1
      %p139 = por %p137, %p138
      %p140 = scmp.ne.s32.totalorder %s131, %s132
      %p141 = scmp.eq.s32.totalorder %s23, 0
      %p142 = por %p140, %p141
      %p143 = scmp.ne.s32.totalorder %s131, %s132
      %p144 = scmp.eq.s32.totalorder %s24, 1
      %p145 = por %p143, %p144
      %p147 = scmp.ne.s32.totalorder %s132, %s146
      %p148 = scmp.eq.s32.totalorder %s24, 0
      %p149 = por %p147, %p148
      %s151 = sadd.s32 %s150, 1
      %p154 = scmp.eq.s32.totalorder %s18, 1
      %p155 = scmp.ne.s32.totalorder %s150, %s152
      %p156 = scmp.eq.s32.totalorder %s18, 0
      %p157 = por %p155, %p156
      %p158 = scmp.ne.s32.totalorder %s150, %s152
      %p159 = scmp.eq.s32.totalorder %s23, 1
      %p160 = por %p158, %p159
      %p161 = scmp.ne.s32.totalorder %s152, %s153
      %p162 = scmp.eq.s32.totalorder %s23, 0
      %p163 = por %p161, %p162
      %p164 = scmp.ne.s32.totalorder %s152, %s153
      %p165 = scmp.eq.s32.totalorder %s24, 1
      %p166 = por %p164, %p165
      %p168 = scmp.ne.s32.totalorder %s153, %s167
      %p169 = scmp.eq.s32.totalorder %s24, 0
      %p170 = por %p168, %p169
      %s172 = sadd.s32 %s171, 1
      %p175 = scmp.eq.s32.totalorder %s18, 1
      %p176 = scmp.ne.s32.totalorder %s171, %s173
      %p177 = scmp.eq.s32.totalorder %s18, 0
      %p178 = por %p176, %p177
      %p179 = scmp.ne.s32.totalorder %s171, %s173
      %p180 = scmp.eq.s32.totalorder %s23, 1
      %p181 = por %p179, %p180
      %p182 = scmp.ne.s32.totalorder %s173, %s174
      %p183 = scmp.eq.s32.totalorder %s23, 0
      %p184 = por %p182, %p183
      %p185 = scmp.ne.s32.totalorder %s173, %s174
      %p186 = scmp.eq.s32.totalorder %s24, 1
      %p187 = por %p185, %p186
      %p189 = scmp.ne.s32.totalorder %s174, %s188
      %p190 = scmp.eq.s32.totalorder %s24, 0
      %p191 = por %p189, %p190
      %s192 = ssub.s32 %s25, %s37
      %p193 = scmp.eq.s32.totalorder %s192, 0
      %s195 = sadd.s32 %s194, 1
      %s196 = scalar_select %p193, %s194, %s195
      %p199 = pneg %p193
      %p200 = scmp.eq.s32.totalorder %s18, 1
      %p201 = por %p199, %p200
      %p202 = scmp.ne.s32.totalorder %s194, %s197
      %p203 = scmp.eq.s32.totalorder %s18, 0
      %p204 = por %p202, %p203
      %p205 = scmp.ne.s32.totalorder %s194, %s197
      %p206 = scmp.eq.s32.totalorder %s23, 1
      %p207 = por %p205, %p206
      %p208 = scmp.ne.s32.totalorder %s197, %s198
      %p209 = scmp.eq.s32.totalorder %s23, 0
      %p210 = por %p208, %p209
      %p211 = scmp.ne.s32.totalorder %s197, %s198
      %p212 = scmp.eq.s32.totalorder %s24, 1
      %p213 = por %p211, %p212
      %p215 = scmp.ne.s32.totalorder %s198, %s214
      %p216 = scmp.eq.s32.totalorder %s24, 0
      %p217 = por %p215, %p216
      %p218 = scmp.le.s32.totalorder 1, %s18
      %p219 = scmp.lt.s32.totalorder %s18, 3
      %p220 = pnand %p218, %p219
      %p221 = pneg %p220
      // Predicated region
      $region9: #{tpu_custom_call.1} parent=5 // pred_check
        _
      $region10: #{tpu_custom_call.1} parent=5 // pred_check_branch
        %223 = sbr.rel (%p220) target = $region12
      $region11: #{tpu_custom_call.1} parent=5 // pred_region
        %s224 = ssub.s32 %s18, 1
        // Predicated region
        $region13: #{tpu_custom_call.1} parent=11 // pred_check
          %p225 = pneg %p79
        $region14: #{tpu_custom_call.1} parent=11 // pred_check_branch
          %227 = sbr.rel (%p225) target = $region16
        $region15: #{tpu_custom_call.1} parent=11 // pred_region
          _
        $region16: #{tpu_custom_call.1} parent=11 // pred_fallthru
          _
        // Predicated region
        $region17: #{tpu_custom_call.1} parent=11 // pred_check
          %p228 = pneg %p100
        $region18: #{tpu_custom_call.1} parent=11 // pred_check_branch
          %230 = sbr.rel (%p228) target = $region20
        $region19: #{tpu_custom_call.1} parent=11 // pred_region
          _
        $region20: #{tpu_custom_call.1} parent=11 // pred_fallthru
          _
        // Predicated region
        $region21: #{tpu_custom_call.1} parent=11 // pred_check
          %p231 = pneg %p121
        $region22: #{tpu_custom_call.1} parent=11 // pred_check_branch
          %233 = sbr.rel (%p231) target = $region24
        $region23: #{tpu_custom_call.1} parent=11 // pred_region
          _
        $region24: #{tpu_custom_call.1} parent=11 // pred_fallthru
          _
        // Predicated region
        $region25: #{tpu_custom_call.1} parent=11 // pred_check
          %p234 = pneg %p142
        $region26: #{tpu_custom_call.1} parent=11 // pred_check_branch
          %236 = sbr.rel (%p234) target = $region28
        $region27: #{tpu_custom_call.1} parent=11 // pred_region
          %s238 = ssub.s32 256, 256
          %239 = vsyncadd [#allocation4], %s238
          %s241 = sshll.u32 [#allocation3], 4
          %s242 = int_to_ptr.vmem [resolvable:$true] %s241
          %244 = dma.hbm_to_vmem [thread:$0]  %s4, 256, %s242, [#allocation4]
        $region28: #{tpu_custom_call.1} parent=11 // pred_fallthru
          _
        // Predicated region
        $region29: #{tpu_custom_call.1} parent=11 // pred_check
          %p245 = pneg %p163
        $region30: #{tpu_custom_call.1} parent=11 // pred_check_branch
          %247 = sbr.rel (%p245) target = $region32
        $region31: #{tpu_custom_call.1} parent=11 // pred_region
          %s249 = ssub.s32 32768, 32768
          %250 = vsyncadd [#allocation7], %s249
          %s251 = sshll.u32 [#allocation6], 4
          %s252 = int_to_ptr.vmem [resolvable:$true] %s251
          %257 = dma.hbm_to_vmem [thread:$0]  %s5, 32768, %s252, [#allocation7], 128, 128, 8
        $region32: #{tpu_custom_call.1} parent=11 // pred_fallthru
          _
        // Predicated region
        $region33: #{tpu_custom_call.1} parent=11 // pred_check
          %p258 = pneg %p184
        $region34: #{tpu_custom_call.1} parent=11 // pred_check_branch
          %260 = sbr.rel (%p258) target = $region36
        $region35: #{tpu_custom_call.1} parent=11 // pred_region
          _
        $region36: #{tpu_custom_call.1} parent=11 // pred_fallthru
          _
      $region12: #{tpu_custom_call.1} parent=5 // pred_fallthru
        _
      %p261 = scmp.lt.s32.totalorder %s18, 2
      // Predicated region
      $region37: #{tpu_custom_call.1} parent=5 // pred_check
        %p262 = pneg %p261
      $region38: #{tpu_custom_call.1} parent=5 // pred_check_branch
        %264 = sbr.rel (%p262) target = $region40
      $region39: #{tpu_custom_call.1} parent=5 // pred_region
        // Predicated region
        $region41: #{tpu_custom_call.1} parent=39 // pred_check
          %p265 = pneg %p52
        $region42: #{tpu_custom_call.1} parent=39 // pred_check_branch
          %267 = sbr.rel (%p265) target = $region44
        $region43: #{tpu_custom_call.1} parent=39 // pred_region
          %s268 = smul.u32 26, %s26
          %p269 = scmp.lt.s32.totalorder %s25, 1
          %s270 = scalar_select %p269, %s25, 1
          %p271 = scmp.lt.s32.totalorder %s268, 25
          %s272 = scalar_select %p271, %s268, 25
          %s273 = smul.addr %s270, 26
          %s274 = sadd.s32 %s272, %s273
          %s275 = smul.addr %s274, 4
          %s276 = scalar_lea.vmem %s0, %s275
          %s277 = smul.u32 26, %s26
        $region44: #{tpu_custom_call.1} parent=39 // pred_fallthru
          _
      $region40: #{tpu_custom_call.1} parent=5 // pred_fallthru
        _
      %p278 = scmp.le.s32.totalorder 1, %s18
      %p279 = scmp.lt.s32.totalorder %s18, 3
      %p280 = pnand %p278, %p279
      %p281 = pneg %p280
      // Predicated region
      $region45: #{tpu_custom_call.1} parent=5 // pred_check
        _
      $region46: #{tpu_custom_call.1} parent=5 // pred_check_branch
        %283 = sbr.rel (%p280) target = $region48
      $region47: #{tpu_custom_call.1} parent=5 // pred_region
        %s284 = ssub.s32 %s18, 1
        // Predicated region
        $region49: #{tpu_custom_call.1} parent=47 // pred_check
          %p285 = pneg %p142
        $region50: #{tpu_custom_call.1} parent=47 // pred_check_branch
          %287 = sbr.rel (%p285) target = $region52
        $region51: #{tpu_custom_call.1} parent=47 // pred_region
          %288 = dma.done [#allocation4], 256
        $region52: #{tpu_custom_call.1} parent=47 // pred_fallthru
          _
        // Predicated region
        $region53: #{tpu_custom_call.1} parent=47 // pred_check
          %p289 = pneg %p163
        $region54: #{tpu_custom_call.1} parent=47 // pred_check_branch
          %291 = sbr.rel (%p289) target = $region56
        $region55: #{tpu_custom_call.1} parent=47 // pred_region
          %292 = dma.done [#allocation7], 32768
        $region56: #{tpu_custom_call.1} parent=47 // pred_fallthru
          _
        %s293 = smul.u32 26, %s28
        %p294 = scmp.lt.s32.totalorder %s27, 1
        %s295 = scalar_select %p294, %s27, 1
        %p296 = scmp.lt.s32.totalorder %s293, 25
        %s297 = scalar_select %p296, %s293, 25
        %s298 = smul.addr %s295, 26
        %s299 = sadd.s32 %s297, %s298
        %s300 = smul.addr %s299, 4
        %s301 = scalar_lea.vmem %s0, %s300
        %p302 = pneg %p58
        %p303 = pneg %p55
        %p304 = pneg %p79
        %p305 = pneg %p76
        %p306 = pneg %p100
        %p307 = pneg %p97
        %p308 = pneg %p121
        %p309 = pneg %p118
        %p310 = pneg %p142
        %p311 = pneg %p139
        %p312 = pneg %p163
        %p313 = pneg %p160
        %p314 = pneg %p184
        %p315 = pneg %p181
        %p316 = pneg %p210
        %p317 = pneg %p207
        %s318 = sand.u32 %s197, 1
        %s319 = scalar_lea.sflag [#allocation5], %s318
        %s320 = sand.u32 %s197, 1
        %s321 = smul.addr %s320, 2
        %s322 = scalar_lea.vmem [#allocation8], %s321
        %s323 = smul.u32 26, %s28
        %p324 = scmp.lt.s32.totalorder %s27, 1
        %s325 = scalar_select %p324, %s27, 1
        %p326 = scmp.lt.s32.totalorder %s323, 25
        %s327 = scalar_select %p326, %s323, 25
        %s328 = smul.addr %s325, 26
        %s329 = sadd.s32 %s327, %s328
        %s330 = smul.addr %s329, 4
        %s331 = scalar_lea.vmem %s0, %s330
        %s332 = smul.u32 26, %s28
        %p334 = scmp.eq.s32.totalorder %s28, 0
        // Predicated region
        $region57: #{tpu_custom_call.1} parent=47 // pred_check
          %p335 = pneg %p334
        $region58: #{tpu_custom_call.1} parent=47 // pred_check_branch
          %337 = sbr.rel (%p335) target = $region60
        $region59: #{tpu_custom_call.1} parent=47 // pred_region
          %338 = vst [vmem:[#allocation2] sm:$0xff] 0.0
          %339 = vst [vmem:[#allocation2 + $0x8] sm:$0xff] 0.0
        $region60: #{tpu_custom_call.1} parent=47 // pred_fallthru
          _
        %v340 = vld [vmem:[%s331] sm:$0xf]
        %v341 = vld [vmem:[%s331 + $0x4] sm:$0xf]
        %v342 = vld [vmem:[%s331 + $0x8] sm:$0xf]
        %v343 = vld [vmem:[%s331 + $0xc] sm:$0xf]
        %v344 = vld [vmem:[%s331 + $0x10] sm:$0xf]
        %v345 = vld [vmem:[%s331 + $0x14] sm:$0xf]
        %v346 = vld [vmem:[%s331 + $0x18] sm:$0xf]
        %v347 = vld [vmem:[%s331 + $0x1c] sm:$0xf]
        %v348 = vld [vmem:[%s331 + $0x20] sm:$0xf]
        %v349 = vld [vmem:[%s331 + $0x24] sm:$0xf]
        %v350 = vld [vmem:[%s331 + $0x28] sm:$0xf]
        %v351 = vld [vmem:[%s331 + $0x2c] sm:$0xf]
        %v352 = vld [vmem:[%s331 + $0x30] sm:$0xf]
        %v353 = vld [vmem:[%s331 + $0x34] sm:$0xf]
        %v354 = vld [vmem:[%s331 + $0x38] sm:$0xf]
        %v355 = vld [vmem:[%s331 + $0x3c] sm:$0xf]
        %v356 = vld [vmem:[%s331 + $0x40] sm:$0xf]
        %v357 = vld [vmem:[%s331 + $0x44] sm:$0xf]
        %v358 = vld [vmem:[%s331 + $0x48] sm:$0xf]
        %v359 = vld [vmem:[%s331 + $0x4c] sm:$0xf]
        %v360 = vld [vmem:[%s331 + $0x50] sm:$0xf]
        %v361 = vld [vmem:[%s331 + $0x54] sm:$0xf]
        %v362 = vld [vmem:[%s331 + $0x58] sm:$0xf]
        %v363 = vld [vmem:[%s331 + $0x5c] sm:$0xf]
        %v364 = vld [vmem:[%s331 + $0x60] sm:$0xf]
        %v365 = vld [vmem:[%s331 + $0x64] sm:$0xf]
        %v366 = vld [vmem:[%s1] sm:$0xf]
        %v367 = vld [vmem:[%s1 + $0x4] sm:$0xf]
        %v368 = vld [vmem:[%s1 + $0x8] sm:$0xf]
        %v369 = vld [vmem:[%s1 + $0xc] sm:$0xf]
        %v370 = vld [vmem:[%s2] sm:$0x1]
        %v372 = vlaneseq
        %v373 = vshrl.u32 %v372, 7
        %v374 = vsub.s32 0, %v373
        %v375 = vrot.slane %v370, %v374
        %v403 = vunpack.c.l.b16 %v340
        %v404 = vunpack.c.l.b16 %v341
        %v405 = vunpack.c.l.b16 %v342
        %v406 = vunpack.c.l.b16 %v343
        %v407 = vunpack.c.l.b16 %v344
        %v408 = vunpack.c.l.b16 %v345
        %v409 = vunpack.c.l.b16 %v346
        %v410 = vunpack.c.l.b16 %v347
        %v411 = vunpack.c.l.b16 %v348
        %v412 = vunpack.c.l.b16 %v349
        %v413 = vunpack.c.l.b16 %v350
        %v414 = vunpack.c.l.b16 %v351
        %v415 = vunpack.c.l.b16 %v352
        %v416 = vunpack.c.l.b16 %v353
        %v417 = vunpack.c.l.b16 %v354
        %v418 = vunpack.c.l.b16 %v355
        %v419 = vunpack.c.l.b16 %v356
        %v420 = vunpack.c.l.b16 %v357
        %v421 = vunpack.c.l.b16 %v358
        %v422 = vunpack.c.l.b16 %v359
        %v423 = vunpack.c.l.b16 %v360
        %v424 = vunpack.c.l.b16 %v361
        %v425 = vunpack.c.l.b16 %v362
        %v426 = vunpack.c.l.b16 %v363
        %v427 = vunpack.c.l.b16 %v364
        %v428 = vunpack.c.l.b16 %v365
        %v429 = vpack.c.b16 %v404, %v403
        %v430 = vpack.c.b16 %v406, %v405
        %v431 = vpack.c.b16 %v408, %v407
        %v432 = vpack.c.b16 %v410, %v409
        %v433 = vpack.c.b16 %v412, %v411
        %v434 = vpack.c.b16 %v414, %v413
        %v435 = vpack.c.b16 %v416, %v415
        %v436 = vpack.c.b16 %v418, %v417
        %v437 = vpack.c.b16 %v420, %v419
        %v438 = vpack.c.b16 %v422, %v421
        %v439 = vpack.c.b16 %v424, %v423
        %v440 = vpack.c.b16 %v426, %v425
        %v441 = vpack.c.b16 %v428, %v427
        %v446 = vunpack.c.l.b16 %v366
        %v447 = vunpack.c.l.b16 %v367
        %v448 = vunpack.c.l.b16 %v368
        %v449 = vunpack.c.l.b16 %v369
        %v450 = vpack.c.b16 %v447, %v446
        %v451 = vpack.c.b16 %v449, %v448
        %vm454 = vcmask 261120
        %v456 = vsel %vm454, %v429, 0
        %v459 = vsel %vm454, %v430, 0
        %v462 = vsel %vm454, %v431, 0
        %v465 = vsel %vm454, %v432, 0
        %v468 = vsel %vm454, %v433, 0
        %v471 = vsel %vm454, %v434, 0
        %v474 = vsel %vm454, %v435, 0
        %v477 = vsel %vm454, %v436, 0
        %v480 = vsel %vm454, %v437, 0
        %v483 = vsel %vm454, %v438, 0
        %v486 = vsel %vm454, %v439, 0
        %v489 = vsel %vm454, %v440, 0
        %v492 = vsel %vm454, %v441, 0
        %494 = vmatprep.subr.bf16.mxu0 0
        %495 = vmatpush1.bf16.msra.mxu0 0
        %496 = vmatprep.subr.bf16.mxu0 0
        %497 = vmatpush1.bf16.msra.mxu0 0
        %498 = vmatprep.subr.bf16.mxu0 0
        %499 = vmatpush1.bf16.msra.mxu0 0
        %500 = vmatprep.subr.bf16.mxu0 0
        %501 = vmatpush1.bf16.msra.mxu0 0
        %502 = vmatprep.subr.bf16.mxu0 0
        %503 = vmatpush1.bf16.msra.mxu0 0
        %504 = vmatprep.subr.bf16.mxu0 0
        %505 = vmatpush1.bf16.msra.mxu0 0
        %506 = vmatprep.subr.bf16.mxu0 0
        %507 = vmatpush1.bf16.msra.mxu0 %v451
        %508 = vmatprep.subr.bf16.mxu0 0
        %509 = vmatpush1.bf16.msra.mxu0 %v450
        %510 = vmatprep.subr.bf16.mxu0 0
        %511 = vmatpush2.bf16.msra.mxu0 0
        %512 = vmatprep.subr.bf16.mxu0 0
        %513 = vmatpush2.bf16.msra.mxu0 0
        %514 = vmatprep.subr.bf16.mxu0 0
        %515 = vmatpush2.bf16.msra.mxu0 0
        %516 = vmatprep.subr.bf16.mxu0 0
        %517 = vmatpush2.bf16.msra.mxu0 0
        %518 = vmatprep.subr.bf16.mxu0 0
        %519 = vmatpush2.bf16.msra.mxu0 0
        %520 = vmatprep.subr.bf16.mxu0 0
        %521 = vmatpush2.bf16.msra.mxu0 0
        %522 = vmatprep.subr.bf16.mxu0 0
        %523 = vmatpush2.bf16.msra.mxu0 0
        %524 = vmatprep.subr.bf16.mxu0 0
        %525 = vmatpush2.bf16.msra.mxu0 0
        %526 = vmatprep.mubr.bf16.mxu0 0
        %527 = vmatmul.mubr.bf16.gmra.mxu0 %v456
        %v528 = vpop.f32.mrf.mxu0
        %v529 = vadd.f32 %v375, %v528
        %v530 = vpop.f32.mrf.mxu0
        %v531 = vpop.f32.mrf.mxu0
        %v532 = vadd.f32 %v375, %v531
        %v533 = vpop.f32.mrf.mxu0
        %534 = vmatprep.mubr.bf16.mxu0 0
        %535 = vmatmul.mubr.bf16.gmra.mxu0 %v459
        %v536 = vpop.f32.mrf.mxu0
        %v537 = vadd.f32 %v375, %v536
        %v538 = vpop.f32.mrf.mxu0
        %v539 = vpop.f32.mrf.mxu0
        %v540 = vadd.f32 %v375, %v539
        %v541 = vpop.f32.mrf.mxu0
        %542 = vmatprep.mubr.bf16.mxu0 0
        %543 = vmatmul.mubr.bf16.gmra.mxu0 %v462
        %v544 = vpop.f32.mrf.mxu0
        %v545 = vadd.f32 %v375, %v544
        %v546 = vpop.f32.mrf.mxu0
        %v547 = vpop.f32.mrf.mxu0
        %v548 = vadd.f32 %v375, %v547
        %v549 = vpop.f32.mrf.mxu0
        %550 = vmatprep.mubr.bf16.mxu0 0
        %551 = vmatmul.mubr.bf16.gmra.mxu0 %v465
        %v552 = vpop.f32.mrf.mxu0
        %v553 = vadd.f32 %v375, %v552
        %v554 = vpop.f32.mrf.mxu0
        %v555 = vpop.f32.mrf.mxu0
        %v556 = vadd.f32 %v375, %v555
        %v557 = vpop.f32.mrf.mxu0
        %558 = vmatprep.mubr.bf16.mxu0 0
        %559 = vmatmul.mubr.bf16.gmra.mxu0 %v468
        %v560 = vpop.f32.mrf.mxu0
        %v561 = vadd.f32 %v375, %v560
        %v562 = vpop.f32.mrf.mxu0
        %v563 = vpop.f32.mrf.mxu0
        %v564 = vadd.f32 %v375, %v563
        %v565 = vpop.f32.mrf.mxu0
        %566 = vmatprep.mubr.bf16.mxu0 0
        %567 = vmatmul.mubr.bf16.gmra.mxu0 %v471
        %v568 = vpop.f32.mrf.mxu0
        %v569 = vadd.f32 %v375, %v568
        %v570 = vpop.f32.mrf.mxu0
        %v571 = vpop.f32.mrf.mxu0
        %v572 = vadd.f32 %v375, %v571
        %v573 = vpop.f32.mrf.mxu0
        %574 = vmatprep.mubr.bf16.mxu0 0
        %575 = vmatmul.mubr.bf16.gmra.mxu0 %v474
        %v576 = vpop.f32.mrf.mxu0
        %v577 = vadd.f32 %v375, %v576
        %v578 = vpop.f32.mrf.mxu0
        %v579 = vpop.f32.mrf.mxu0
        %v580 = vadd.f32 %v375, %v579
        %v581 = vpop.f32.mrf.mxu0
        %582 = vmatprep.mubr.bf16.mxu0 0
        %583 = vmatmul.mubr.bf16.gmra.mxu0 %v477
        %v584 = vpop.f32.mrf.mxu0
        %v585 = vadd.f32 %v375, %v584
        %v586 = vpop.f32.mrf.mxu0
        %v587 = vpop.f32.mrf.mxu0
        %v588 = vadd.f32 %v375, %v587
        %v589 = vpop.f32.mrf.mxu0
        %590 = vmatprep.mubr.bf16.mxu0 0
        %591 = vmatmul.mubr.bf16.gmra.mxu0 %v480
        %v592 = vpop.f32.mrf.mxu0
        %v593 = vadd.f32 %v375, %v592
        %v594 = vpop.f32.mrf.mxu0
        %v595 = vpop.f32.mrf.mxu0
        %v596 = vadd.f32 %v375, %v595
        %v597 = vpop.f32.mrf.mxu0
        %598 = vmatprep.mubr.bf16.mxu0 0
        %599 = vmatmul.mubr.bf16.gmra.mxu0 %v483
        %v600 = vpop.f32.mrf.mxu0
        %v601 = vadd.f32 %v375, %v600
        %v602 = vpop.f32.mrf.mxu0
        %v603 = vpop.f32.mrf.mxu0
        %v604 = vadd.f32 %v375, %v603
        %v605 = vpop.f32.mrf.mxu0
        %606 = vmatprep.mubr.bf16.mxu0 0
        %607 = vmatmul.mubr.bf16.gmra.mxu0 %v486
        %v608 = vpop.f32.mrf.mxu0
        %v609 = vadd.f32 %v375, %v608
        %v610 = vpop.f32.mrf.mxu0
        %v611 = vpop.f32.mrf.mxu0
        %v612 = vadd.f32 %v375, %v611
        %v613 = vpop.f32.mrf.mxu0
        %614 = vmatprep.mubr.bf16.mxu0 0
        %615 = vmatmul.mubr.bf16.gmra.mxu0 %v489
        %v616 = vpop.f32.mrf.mxu0
        %v617 = vadd.f32 %v375, %v616
        %v618 = vpop.f32.mrf.mxu0
        %v619 = vpop.f32.mrf.mxu0
        %v620 = vadd.f32 %v375, %v619
        %v621 = vpop.f32.mrf.mxu0
        %622 = vmatprep.mubr.bf16.mxu0 0
        %623 = vmatmul.mubr.bf16.gmra.mxu0 %v492
        %v624 = vpop.f32.mrf.mxu0
        %v625 = vadd.f32 %v375, %v624
        %v626 = vpop.f32.mrf.mxu0
        %v627 = vpop.f32.mrf.mxu0
        %v628 = vadd.f32 %v375, %v627
        %v629 = vpop.f32.mrf.mxu0
        %630 = vdwg.mxu0
        %v631 = vmax.f32 %v529, 0.0
        %v632 = vmax.f32 %v532, 0.0
        %v633 = vmax.f32 %v537, 0.0
        %v634 = vmax.f32 %v540, 0.0
        %v635 = vmax.f32 %v545, 0.0
        %v636 = vmax.f32 %v548, 0.0
        %v637 = vmax.f32 %v553, 0.0
        %v638 = vmax.f32 %v556, 0.0
        %v639 = vmax.f32 %v561, 0.0
        %v640 = vmax.f32 %v564, 0.0
        %v641 = vmax.f32 %v569, 0.0
        %v642 = vmax.f32 %v572, 0.0
        %v643 = vmax.f32 %v577, 0.0
        %v644 = vmax.f32 %v580, 0.0
        %v645 = vmax.f32 %v585, 0.0
        %v646 = vmax.f32 %v588, 0.0
        %v647 = vmax.f32 %v593, 0.0
        %v648 = vmax.f32 %v596, 0.0
        %v649 = vmax.f32 %v601, 0.0
        %v650 = vmax.f32 %v604, 0.0
        %v651 = vmax.f32 %v609, 0.0
        %v652 = vmax.f32 %v612, 0.0
        %v653 = vmax.f32 %v617, 0.0
        %v654 = vmax.f32 %v620, 0.0
        %v655 = vmax.f32 %v625, 0.0
        %v656 = vmax.f32 %v628, 0.0
        %v657 = vlaneseq
        %v658 = vand.u32 %v657, 127
        %v659 = vadd.s32 %v658, 128
        %s660 = smul.u32 %s28, 208
        %v661 = vstv %s660
        %v662 = vadd.s32 %v658, %v661
        %v663 = vadd.s32 %v659, %v661
        %vm664 = vcmp.lt.s32.totalorder %v662, 196
        %vm665 = vcmp.lt.s32.totalorder %v663, 196
        %v666 = vsel %vm664, 1, 0
        %v667 = vsel %vm665, 1, 0
        %v668 = vcvt.s32.f32 %v666
        %v669 = vcvt.s32.f32 %v667
        %v670 = vld [vmem:[#allocation2] sm:$0xff]
        %v671 = vld [vmem:[#allocation2 + $0x8] sm:$0xff]
        %v672 = vpack.c.bf16 %v632, %v631
        %v673 = vpack.c.bf16 %v634, %v633
        %v674 = vpack.c.bf16 %v636, %v635
        %v675 = vpack.c.bf16 %v638, %v637
        %v676 = vpack.c.bf16 %v640, %v639
        %v677 = vpack.c.bf16 %v642, %v641
        %v678 = vpack.c.bf16 %v644, %v643
        %v679 = vpack.c.bf16 %v646, %v645
        %v680 = vpack.c.bf16 %v648, %v647
        %v681 = vpack.c.bf16 %v650, %v649
        %v682 = vpack.c.bf16 %v652, %v651
        %v683 = vpack.c.bf16 %v654, %v653
        %v684 = vpack.c.bf16 %v656, %v655
        %v685 = vld [vmem:[%s3] sm:$0xff]
        %v686 = vld [vmem:[%s3 + $0x8] sm:$0xff]
        %v687 = vld [vmem:[%s3 + $0x10] sm:$0xff]
        %v688 = vld [vmem:[%s3 + $0x18] sm:$0xff]
        %v689 = vld [vmem:[%s3 + $0x20] sm:$0xff]
        %v690 = vld [vmem:[%s3 + $0x28] sm:$0xff]
        %v691 = vld [vmem:[%s3 + $0x30] sm:$0xff]
        %v692 = vld [vmem:[%s3 + $0x38] sm:$0xff]
        %v693 = vld [vmem:[%s3 + $0x40] sm:$0xff]
        %v694 = vld [vmem:[%s3 + $0x48] sm:$0xff]
        %v695 = vld [vmem:[%s3 + $0x50] sm:$0xff]
        %v696 = vld [vmem:[%s3 + $0x58] sm:$0xff]
        %v697 = vld [vmem:[%s3 + $0x60] sm:$0xff]
        %v698 = vld [vmem:[%s3 + $0x68] sm:$0xff]
        %v699 = vld [vmem:[%s3 + $0x70] sm:$0xff]
        %v700 = vld [vmem:[%s3 + $0x78] sm:$0xff]
        %v701 = vld [vmem:[%s3 + $0x80] sm:$0xff]
        %v702 = vld [vmem:[%s3 + $0x88] sm:$0xff]
        %v703 = vld [vmem:[%s3 + $0x90] sm:$0xff]
        %v704 = vld [vmem:[%s3 + $0x98] sm:$0xff]
        %v705 = vld [vmem:[%s3 + $0xa0] sm:$0xff]
        %v706 = vld [vmem:[%s3 + $0xa8] sm:$0xff]
        %v707 = vld [vmem:[%s3 + $0xb0] sm:$0xff]
        %v708 = vld [vmem:[%s3 + $0xb8] sm:$0xff]
        %v709 = vld [vmem:[%s3 + $0xc0] sm:$0xff]
        %v710 = vld [vmem:[%s3 + $0xc8] sm:$0xff]
        %v711 = vld [vmem:[%s3 + $0xd0] sm:$0xff]
        %v712 = vld [vmem:[%s3 + $0xd8] sm:$0xff]
        %v713 = vld [vmem:[%s3 + $0xe0] sm:$0xff]
        %v714 = vld [vmem:[%s3 + $0xe8] sm:$0xff]
        %v715 = vld [vmem:[%s3 + $0xf0] sm:$0xff]
        %v716 = vld [vmem:[%s3 + $0xf8] sm:$0xff]
        %v717 = vld [vmem:[#allocation3] sm:$0xff]
        %v718 = vld [vmem:[#allocation3 + $0x8] sm:$0xff]
        %v721 = vlaneseq
        %v722 = vshrl.u32 %v721, 7
        %v723 = vsub.s32 0, %v722
        %v724 = vrot.slane %v717, %v723
        %v725 = vlaneseq
        %v726 = vshrl.u32 %v725, 7
        %v727 = vsub.s32 1, %v726
        %v728 = vrot.slane %v717, %v727
        %v729 = vlaneseq
        %v730 = vshrl.u32 %v729, 7
        %v731 = vsub.s32 2, %v730
        %v732 = vrot.slane %v717, %v731
        %v733 = vlaneseq
        %v734 = vshrl.u32 %v733, 7
        %v735 = vsub.s32 3, %v734
        %v736 = vrot.slane %v717, %v735
        %v737 = vlaneseq
        %v738 = vshrl.u32 %v737, 7
        %v739 = vsub.s32 4, %v738
        %v740 = vrot.slane %v717, %v739
        %v741 = vlaneseq
        %v742 = vshrl.u32 %v741, 7
        %v743 = vsub.s32 5, %v742
        %v744 = vrot.slane %v717, %v743
        %v745 = vlaneseq
        %v746 = vshrl.u32 %v745, 7
        %v747 = vsub.s32 6, %v746
        %v748 = vrot.slane %v717, %v747
        %v749 = vlaneseq
        %v750 = vshrl.u32 %v749, 7
        %v751 = vsub.s32 7, %v750
        %v752 = vrot.slane %v717, %v751
        %v753 = vlaneseq
        %v754 = vshrl.u32 %v753, 7
        %v755 = vsub.s32 0, %v754
        %v756 = vrot.slane %v718, %v755
        %v757 = vlaneseq
        %v758 = vshrl.u32 %v757, 7
        %v759 = vsub.s32 1, %v758
        %v760 = vrot.slane %v718, %v759
        %v761 = vlaneseq
        %v762 = vshrl.u32 %v761, 7
        %v763 = vsub.s32 2, %v762
        %v764 = vrot.slane %v718, %v763
        %v765 = vlaneseq
        %v766 = vshrl.u32 %v765, 7
        %v767 = vsub.s32 3, %v766
        %v768 = vrot.slane %v718, %v767
        %v769 = vlaneseq
        %v770 = vshrl.u32 %v769, 7
        %v771 = vsub.s32 4, %v770
        %v772 = vrot.slane %v718, %v771
        %v773 = vlaneseq
        %v774 = vshrl.u32 %v773, 7
        %v775 = vsub.s32 5, %v774
        %v776 = vrot.slane %v718, %v775
        %v777 = vlaneseq
        %v778 = vshrl.u32 %v777, 7
        %v779 = vsub.s32 6, %v778
        %v780 = vrot.slane %v718, %v779
        %v781 = vlaneseq
        %v782 = vshrl.u32 %v781, 7
        %v783 = vsub.s32 7, %v782
        %v784 = vrot.slane %v718, %v783
        %v833 = vunpack.c.l.b16 %v685
        %v834 = vunpack.c.h.b16 %v685
        %v835 = vunpack.c.l.b16 %v686
        %v836 = vunpack.c.h.b16 %v686
        %v837 = vunpack.c.l.b16 %v687
        %v838 = vunpack.c.h.b16 %v687
        %v839 = vunpack.c.l.b16 %v688
        %v840 = vunpack.c.h.b16 %v688
        %v841 = vunpack.c.l.b16 %v689
        %v842 = vunpack.c.h.b16 %v689
        %v843 = vunpack.c.l.b16 %v690
        %v844 = vunpack.c.h.b16 %v690
        %v845 = vunpack.c.l.b16 %v691
        %v846 = vunpack.c.h.b16 %v691
        %v847 = vunpack.c.l.b16 %v692
        %v848 = vunpack.c.h.b16 %v692
        %v849 = vunpack.c.l.b16 %v693
        %v850 = vunpack.c.h.b16 %v693
        %v851 = vunpack.c.l.b16 %v694
        %v852 = vunpack.c.h.b16 %v694
        %v853 = vunpack.c.l.b16 %v695
        %v854 = vunpack.c.h.b16 %v695
        %v855 = vunpack.c.l.b16 %v696
        %v856 = vunpack.c.h.b16 %v696
        %v857 = vunpack.c.l.b16 %v697
        %v858 = vunpack.c.h.b16 %v697
        %v859 = vunpack.c.l.b16 %v698
        %v860 = vunpack.c.h.b16 %v698
        %v861 = vunpack.c.l.b16 %v699
        %v862 = vunpack.c.h.b16 %v699
        %v863 = vunpack.c.l.b16 %v700
        %v864 = vunpack.c.h.b16 %v700
        %v865 = vunpack.c.l.b16 %v701
        %v866 = vunpack.c.h.b16 %v701
        %v867 = vunpack.c.l.b16 %v702
        %v868 = vunpack.c.h.b16 %v702
        %v869 = vunpack.c.l.b16 %v703
        %v870 = vunpack.c.h.b16 %v703
        %v871 = vunpack.c.l.b16 %v704
        %v872 = vunpack.c.h.b16 %v704
        %v873 = vunpack.c.l.b16 %v705
        %v874 = vunpack.c.h.b16 %v705
        %v875 = vunpack.c.l.b16 %v706
        %v876 = vunpack.c.h.b16 %v706
        %v877 = vunpack.c.l.b16 %v707
        %v878 = vunpack.c.h.b16 %v707
        %v879 = vunpack.c.l.b16 %v708
        %v880 = vunpack.c.h.b16 %v708
        %v881 = vunpack.c.l.b16 %v709
        %v882 = vunpack.c.h.b16 %v709
        %v883 = vunpack.c.l.b16 %v710
        %v884 = vunpack.c.h.b16 %v710
        %v885 = vunpack.c.l.b16 %v711
        %v886 = vunpack.c.h.b16 %v711
        %v887 = vunpack.c.l.b16 %v712
        %v888 = vunpack.c.h.b16 %v712
        %v889 = vunpack.c.l.b16 %v713
        %v890 = vunpack.c.h.b16 %v713
        %v891 = vunpack.c.l.b16 %v714
        %v892 = vunpack.c.h.b16 %v714
        %v893 = vunpack.c.l.b16 %v715
        %v894 = vunpack.c.h.b16 %v715
        %v895 = vunpack.c.l.b16 %v716
        %v896 = vunpack.c.h.b16 %v716
        %v897 = vpack.c.b16 %v849, %v833
        %v898 = vpack.c.b16 %v850, %v834
        %v899 = vpack.c.b16 %v851, %v835
        %v900 = vpack.c.b16 %v852, %v836
        %v901 = vpack.c.b16 %v853, %v837
        %v902 = vpack.c.b16 %v854, %v838
        %v903 = vpack.c.b16 %v855, %v839
        %v904 = vpack.c.b16 %v856, %v840
        %v905 = vpack.c.b16 %v857, %v841
        %v906 = vpack.c.b16 %v858, %v842
        %v907 = vpack.c.b16 %v859, %v843
        %v908 = vpack.c.b16 %v860, %v844
        %v909 = vpack.c.b16 %v861, %v845
        %v910 = vpack.c.b16 %v862, %v846
        %v911 = vpack.c.b16 %v863, %v847
        %v912 = vpack.c.b16 %v864, %v848
        %v913 = vpack.c.b16 %v881, %v865
        %v914 = vpack.c.b16 %v882, %v866
        %v915 = vpack.c.b16 %v883, %v867
        %v916 = vpack.c.b16 %v884, %v868
        %v917 = vpack.c.b16 %v885, %v869
        %v918 = vpack.c.b16 %v886, %v870
        %v919 = vpack.c.b16 %v887, %v871
        %v920 = vpack.c.b16 %v888, %v872
        %v921 = vpack.c.b16 %v889, %v873
        %v922 = vpack.c.b16 %v890, %v874
        %v923 = vpack.c.b16 %v891, %v875
        %v924 = vpack.c.b16 %v892, %v876
        %v925 = vpack.c.b16 %v893, %v877
        %v926 = vpack.c.b16 %v894, %v878
        %v927 = vpack.c.b16 %v895, %v879
        %v928 = vpack.c.b16 %v896, %v880
        %v962 = vsel %vm454, %v672, 0
        %v965 = vsel %vm454, %v673, 0
        %v968 = vsel %vm454, %v674, 0
        %v971 = vsel %vm454, %v675, 0
        %v974 = vsel %vm454, %v676, 0
        %v977 = vsel %vm454, %v677, 0
        %v980 = vsel %vm454, %v678, 0
        %v983 = vsel %vm454, %v679, 0
        %v986 = vsel %vm454, %v680, 0
        %v989 = vsel %vm454, %v681, 0
        %v992 = vsel %vm454, %v682, 0
        %v995 = vsel %vm454, %v683, 0
        %v998 = vsel %vm454, %v684, 0
        %1000 = vmatprep.subr.bf16.mxu0 0
        %1001 = vmatpush1.bf16.msra.mxu0 0
        %1002 = vmatprep.subr.bf16.mxu0 0
        %1003 = vmatpush1.bf16.msra.mxu0 0
        %1004 = vmatprep.subr.bf16.mxu0 0
        %1005 = vmatpush1.bf16.msra.mxu0 0
        %1006 = vmatprep.subr.bf16.mxu0 0
        %1007 = vmatpush1.bf16.msra.mxu0 0
        %1008 = vmatprep.subr.bf16.mxu0 0
        %1009 = vmatpush1.bf16.msra.mxu0 0
        %1010 = vmatprep.subr.bf16.mxu0 0
        %1011 = vmatpush1.bf16.msra.mxu0 0
        %1012 = vmatprep.subr.bf16.mxu0 %v914
        %1013 = vmatpush1.bf16.msra.mxu0 %v913
        %1014 = vmatprep.subr.bf16.mxu0 %v898
        %1015 = vmatpush1.bf16.msra.mxu0 %v897
        %1016 = vmatprep.subr.bf16.mxu0 0
        %1017 = vmatpush2.bf16.msra.mxu0 0
        %1018 = vmatprep.subr.bf16.mxu0 0
        %1019 = vmatpush2.bf16.msra.mxu0 0
        %1020 = vmatprep.subr.bf16.mxu0 0
        %1021 = vmatpush2.bf16.msra.mxu0 0
        %1022 = vmatprep.subr.bf16.mxu0 0
        %1023 = vmatpush2.bf16.msra.mxu0 0
        %1024 = vmatprep.subr.bf16.mxu0 0
        %1025 = vmatpush2.bf16.msra.mxu0 0
        %1026 = vmatprep.subr.bf16.mxu0 0
        %1027 = vmatpush2.bf16.msra.mxu0 0
        %1028 = vmatprep.subr.bf16.mxu0 0
        %1029 = vmatpush2.bf16.msra.mxu0 0
        %1030 = vmatprep.subr.bf16.mxu0 0
        %1031 = vmatpush2.bf16.msra.mxu0 0
        %1032 = vmatprep.mubr.bf16.mxu0 0
        %1033 = vmatmul.mubr.bf16.gmra.mxu0 %v962
        %v1034 = vpop.f32.mrf.mxu0
        %v1035 = vadd.f32 %v724, %v1034
        %v1036 = vpop.f32.mrf.mxu0
        %v1037 = vadd.f32 %v728, %v1036
        %v1038 = vpop.f32.mrf.mxu0
        %v1039 = vadd.f32 %v724, %v1038
        %v1040 = vpop.f32.mrf.mxu0
        %v1041 = vadd.f32 %v728, %v1040
        %1042 = vmatprep.mubr.bf16.mxu0 0
        %1043 = vmatmul.mubr.bf16.gmra.mxu0 %v965
        %v1044 = vpop.f32.mrf.mxu0
        %v1045 = vadd.f32 %v724, %v1044
        %v1046 = vpop.f32.mrf.mxu0
        %v1047 = vadd.f32 %v728, %v1046
        %v1048 = vpop.f32.mrf.mxu0
        %v1049 = vadd.f32 %v724, %v1048
        %v1050 = vpop.f32.mrf.mxu0
        %v1051 = vadd.f32 %v728, %v1050
        %1052 = vmatprep.mubr.bf16.mxu0 0
        %1053 = vmatmul.mubr.bf16.gmra.mxu0 %v968
        %v1054 = vpop.f32.mrf.mxu0
        %v1055 = vadd.f32 %v724, %v1054
        %v1056 = vpop.f32.mrf.mxu0
        %v1057 = vadd.f32 %v728, %v1056
        %v1058 = vpop.f32.mrf.mxu0
        %v1059 = vadd.f32 %v724, %v1058
        %v1060 = vpop.f32.mrf.mxu0
        %v1061 = vadd.f32 %v728, %v1060
        %1062 = vmatprep.mubr.bf16.mxu0 0
        %1063 = vmatmul.mubr.bf16.gmra.mxu0 %v971
        %v1064 = vpop.f32.mrf.mxu0
        %v1065 = vadd.f32 %v724, %v1064
        %v1066 = vpop.f32.mrf.mxu0
        %v1067 = vadd.f32 %v728, %v1066
        %v1068 = vpop.f32.mrf.mxu0
        %v1069 = vadd.f32 %v724, %v1068
        %v1070 = vpop.f32.mrf.mxu0
        %v1071 = vadd.f32 %v728, %v1070
        %1072 = vmatprep.mubr.bf16.mxu0 0
        %1073 = vmatmul.mubr.bf16.gmra.mxu0 %v974
        %v1074 = vpop.f32.mrf.mxu0
        %v1075 = vadd.f32 %v724, %v1074
        %v1076 = vpop.f32.mrf.mxu0
        %v1077 = vadd.f32 %v728, %v1076
        %v1078 = vpop.f32.mrf.mxu0
        %v1079 = vadd.f32 %v724, %v1078
        %v1080 = vpop.f32.mrf.mxu0
        %v1081 = vadd.f32 %v728, %v1080
        %1082 = vmatprep.mubr.bf16.mxu0 0
        %1083 = vmatmul.mubr.bf16.gmra.mxu0 %v977
        %v1084 = vpop.f32.mrf.mxu0
        %v1085 = vadd.f32 %v724, %v1084
        %v1086 = vpop.f32.mrf.mxu0
        %v1087 = vadd.f32 %v728, %v1086
        %v1088 = vpop.f32.mrf.mxu0
        %v1089 = vadd.f32 %v724, %v1088
        %v1090 = vpop.f32.mrf.mxu0
        %v1091 = vadd.f32 %v728, %v1090
        %1092 = vmatprep.mubr.bf16.mxu0 0
        %1093 = vmatmul.mubr.bf16.gmra.mxu0 %v980
        %v1094 = vpop.f32.mrf.mxu0
        %v1095 = vadd.f32 %v724, %v1094
        %v1096 = vpop.f32.mrf.mxu0
        %v1097 = vadd.f32 %v728, %v1096
        %v1098 = vpop.f32.mrf.mxu0
        %v1099 = vadd.f32 %v724, %v1098
        %v1100 = vpop.f32.mrf.mxu0
        %v1101 = vadd.f32 %v728, %v1100
        %1102 = vmatprep.mubr.bf16.mxu0 0
        %1103 = vmatmul.mubr.bf16.gmra.mxu0 %v983
        %v1104 = vpop.f32.mrf.mxu0
        %v1105 = vadd.f32 %v724, %v1104
        %v1106 = vpop.f32.mrf.mxu0
        %v1107 = vadd.f32 %v728, %v1106
        %v1108 = vpop.f32.mrf.mxu0
        %v1109 = vadd.f32 %v724, %v1108
        %v1110 = vpop.f32.mrf.mxu0
        %v1111 = vadd.f32 %v728, %v1110
        %1112 = vmatprep.mubr.bf16.mxu0 0
        %1113 = vmatmul.mubr.bf16.gmra.mxu0 %v986
        %v1114 = vpop.f32.mrf.mxu0
        %v1115 = vadd.f32 %v724, %v1114
        %v1116 = vpop.f32.mrf.mxu0
        %v1117 = vadd.f32 %v728, %v1116
        %v1118 = vpop.f32.mrf.mxu0
        %v1119 = vadd.f32 %v724, %v1118
        %v1120 = vpop.f32.mrf.mxu0
        %v1121 = vadd.f32 %v728, %v1120
        %1122 = vmatprep.mubr.bf16.mxu0 0
        %1123 = vmatmul.mubr.bf16.gmra.mxu0 %v989
        %v1124 = vpop.f32.mrf.mxu0
        %v1125 = vadd.f32 %v724, %v1124
        %v1126 = vpop.f32.mrf.mxu0
        %v1127 = vadd.f32 %v728, %v1126
        %v1128 = vpop.f32.mrf.mxu0
        %v1129 = vadd.f32 %v724, %v1128
        %v1130 = vpop.f32.mrf.mxu0
        %v1131 = vadd.f32 %v728, %v1130
        %1132 = vmatprep.mubr.bf16.mxu0 0
        %1133 = vmatmul.mubr.bf16.gmra.mxu0 %v992
        %v1134 = vpop.f32.mrf.mxu0
        %v1135 = vadd.f32 %v724, %v1134
        %v1136 = vpop.f32.mrf.mxu0
        %v1137 = vadd.f32 %v728, %v1136
        %v1138 = vpop.f32.mrf.mxu0
        %v1139 = vadd.f32 %v724, %v1138
        %v1140 = vpop.f32.mrf.mxu0
        %v1141 = vadd.f32 %v728, %v1140
        %1142 = vmatprep.mubr.bf16.mxu0 0
        %1143 = vmatmul.mubr.bf16.gmra.mxu0 %v995
        %v1144 = vpop.f32.mrf.mxu0
        %v1145 = vadd.f32 %v724, %v1144
        %v1146 = vpop.f32.mrf.mxu0
        %v1147 = vadd.f32 %v728, %v1146
        %v1148 = vpop.f32.mrf.mxu0
        %v1149 = vadd.f32 %v724, %v1148
        %v1150 = vpop.f32.mrf.mxu0
        %v1151 = vadd.f32 %v728, %v1150
        %1152 = vmatprep.mubr.bf16.mxu0 0
        %1153 = vmatmul.mubr.bf16.gmra.mxu0 %v998
        %v1154 = vpop.f32.mrf.mxu0
        %v1155 = vadd.f32 %v724, %v1154
        %v1156 = vpop.f32.mrf.mxu0
        %v1157 = vadd.f32 %v728, %v1156
        %v1158 = vpop.f32.mrf.mxu0
        %v1159 = vadd.f32 %v724, %v1158
        %v1160 = vpop.f32.mrf.mxu0
        %v1161 = vadd.f32 %v728, %v1160
        %1162 = vdwg.mxu0
        %1163 = vmatprep.subr.bf16.mxu0 0
        %1164 = vmatpush1.bf16.msra.mxu0 0
        %1165 = vmatprep.subr.bf16.mxu0 0
        %1166 = vmatpush1.bf16.msra.mxu0 0
        %1167 = vmatprep.subr.bf16.mxu0 0
        %1168 = vmatpush1.bf16.msra.mxu0 0
        %1169 = vmatprep.subr.bf16.mxu0 0
        %1170 = vmatpush1.bf16.msra.mxu0 0
        %1171 = vmatprep.subr.bf16.mxu0 0
        %1172 = vmatpush1.bf16.msra.mxu0 0
        %1173 = vmatprep.subr.bf16.mxu0 0
        %1174 = vmatpush1.bf16.msra.mxu0 0
        %1175 = vmatprep.subr.bf16.mxu0 %v916
        %1176 = vmatpush1.bf16.msra.mxu0 %v915
        %1177 = vmatprep.subr.bf16.mxu0 %v900
        %1178 = vmatpush1.bf16.msra.mxu0 %v899
        %1179 = vmatprep.subr.bf16.mxu0 0
        %1180 = vmatpush2.bf16.msra.mxu0 0
        %1181 = vmatprep.subr.bf16.mxu0 0
        %1182 = vmatpush2.bf16.msra.mxu0 0
        %1183 = vmatprep.subr.bf16.mxu0 0
        %1184 = vmatpush2.bf16.msra.mxu0 0
        %1185 = vmatprep.subr.bf16.mxu0 0
        %1186 = vmatpush2.bf16.msra.mxu0 0
        %1187 = vmatprep.subr.bf16.mxu0 0
        %1188 = vmatpush2.bf16.msra.mxu0 0
        %1189 = vmatprep.subr.bf16.mxu0 0
        %1190 = vmatpush2.bf16.msra.mxu0 0
        %1191 = vmatprep.subr.bf16.mxu0 0
        %1192 = vmatpush2.bf16.msra.mxu0 0
        %1193 = vmatprep.subr.bf16.mxu0 0
        %1194 = vmatpush2.bf16.msra.mxu0 0
        %1195 = vmatprep.mubr.bf16.mxu0 0
        %1196 = vmatmul.mubr.bf16.gmra.mxu0 %v962
        %v1197 = vpop.f32.mrf.mxu0
        %v1198 = vadd.f32 %v732, %v1197
        %v1199 = vpop.f32.mrf.mxu0
        %v1200 = vadd.f32 %v736, %v1199
        %v1201 = vpop.f32.mrf.mxu0
        %v1202 = vadd.f32 %v732, %v1201
        %v1203 = vpop.f32.mrf.mxu0
        %v1204 = vadd.f32 %v736, %v1203
        %1205 = vmatprep.mubr.bf16.mxu0 0
        %1206 = vmatmul.mubr.bf16.gmra.mxu0 %v965
        %v1207 = vpop.f32.mrf.mxu0
        %v1208 = vadd.f32 %v732, %v1207
        %v1209 = vpop.f32.mrf.mxu0
        %v1210 = vadd.f32 %v736, %v1209
        %v1211 = vpop.f32.mrf.mxu0
        %v1212 = vadd.f32 %v732, %v1211
        %v1213 = vpop.f32.mrf.mxu0
        %v1214 = vadd.f32 %v736, %v1213
        %1215 = vmatprep.mubr.bf16.mxu0 0
        %1216 = vmatmul.mubr.bf16.gmra.mxu0 %v968
        %v1217 = vpop.f32.mrf.mxu0
        %v1218 = vadd.f32 %v732, %v1217
        %v1219 = vpop.f32.mrf.mxu0
        %v1220 = vadd.f32 %v736, %v1219
        %v1221 = vpop.f32.mrf.mxu0
        %v1222 = vadd.f32 %v732, %v1221
        %v1223 = vpop.f32.mrf.mxu0
        %v1224 = vadd.f32 %v736, %v1223
        %1225 = vmatprep.mubr.bf16.mxu0 0
        %1226 = vmatmul.mubr.bf16.gmra.mxu0 %v971
        %v1227 = vpop.f32.mrf.mxu0
        %v1228 = vadd.f32 %v732, %v1227
        %v1229 = vpop.f32.mrf.mxu0
        %v1230 = vadd.f32 %v736, %v1229
        %v1231 = vpop.f32.mrf.mxu0
        %v1232 = vadd.f32 %v732, %v1231
        %v1233 = vpop.f32.mrf.mxu0
        %v1234 = vadd.f32 %v736, %v1233
        %1235 = vmatprep.mubr.bf16.mxu0 0
        %1236 = vmatmul.mubr.bf16.gmra.mxu0 %v974
        %v1237 = vpop.f32.mrf.mxu0
        %v1238 = vadd.f32 %v732, %v1237
        %v1239 = vpop.f32.mrf.mxu0
        %v1240 = vadd.f32 %v736, %v1239
        %v1241 = vpop.f32.mrf.mxu0
        %v1242 = vadd.f32 %v732, %v1241
        %v1243 = vpop.f32.mrf.mxu0
        %v1244 = vadd.f32 %v736, %v1243
        %1245 = vmatprep.mubr.bf16.mxu0 0
        %1246 = vmatmul.mubr.bf16.gmra.mxu0 %v977
        %v1247 = vpop.f32.mrf.mxu0
        %v1248 = vadd.f32 %v732, %v1247
        %v1249 = vpop.f32.mrf.mxu0
        %v1250 = vadd.f32 %v736, %v1249
        %v1251 = vpop.f32.mrf.mxu0
        %v1252 = vadd.f32 %v732, %v1251
        %v1253 = vpop.f32.mrf.mxu0
        %v1254 = vadd.f32 %v736, %v1253
        %1255 = vmatprep.mubr.bf16.mxu0 0
        %1256 = vmatmul.mubr.bf16.gmra.mxu0 %v980
        %v1257 = vpop.f32.mrf.mxu0
        %v1258 = vadd.f32 %v732, %v1257
        %v1259 = vpop.f32.mrf.mxu0
        %v1260 = vadd.f32 %v736, %v1259
        %v1261 = vpop.f32.mrf.mxu0
        %v1262 = vadd.f32 %v732, %v1261
        %v1263 = vpop.f32.mrf.mxu0
        %v1264 = vadd.f32 %v736, %v1263
        %1265 = vmatprep.mubr.bf16.mxu0 0
        %1266 = vmatmul.mubr.bf16.gmra.mxu0 %v983
        %v1267 = vpop.f32.mrf.mxu0
        %v1268 = vadd.f32 %v732, %v1267
        %v1269 = vpop.f32.mrf.mxu0
        %v1270 = vadd.f32 %v736, %v1269
        %v1271 = vpop.f32.mrf.mxu0
        %v1272 = vadd.f32 %v732, %v1271
        %v1273 = vpop.f32.mrf.mxu0
        %v1274 = vadd.f32 %v736, %v1273
        %1275 = vmatprep.mubr.bf16.mxu0 0
        %1276 = vmatmul.mubr.bf16.gmra.mxu0 %v986
        %v1277 = vpop.f32.mrf.mxu0
        %v1278 = vadd.f32 %v732, %v1277
        %v1279 = vpop.f32.mrf.mxu0
        %v1280 = vadd.f32 %v736, %v1279
        %v1281 = vpop.f32.mrf.mxu0
        %v1282 = vadd.f32 %v732, %v1281
        %v1283 = vpop.f32.mrf.mxu0
        %v1284 = vadd.f32 %v736, %v1283
        %1285 = vmatprep.mubr.bf16.mxu0 0
        %1286 = vmatmul.mubr.bf16.gmra.mxu0 %v989
        %v1287 = vpop.f32.mrf.mxu0
        %v1288 = vadd.f32 %v732, %v1287
        %v1289 = vpop.f32.mrf.mxu0
        %v1290 = vadd.f32 %v736, %v1289
        %v1291 = vpop.f32.mrf.mxu0
        %v1292 = vadd.f32 %v732, %v1291
        %v1293 = vpop.f32.mrf.mxu0
        %v1294 = vadd.f32 %v736, %v1293
        %1295 = vmatprep.mubr.bf16.mxu0 0
        %1296 = vmatmul.mubr.bf16.gmra.mxu0 %v992
        %v1297 = vpop.f32.mrf.mxu0
        %v1298 = vadd.f32 %v732, %v1297
        %v1299 = vpop.f32.mrf.mxu0
        %v1300 = vadd.f32 %v736, %v1299
        %v1301 = vpop.f32.mrf.mxu0
        %v1302 = vadd.f32 %v732, %v1301
        %v1303 = vpop.f32.mrf.mxu0
        %v1304 = vadd.f32 %v736, %v1303
        %1305 = vmatprep.mubr.bf16.mxu0 0
        %1306 = vmatmul.mubr.bf16.gmra.mxu0 %v995
        %v1307 = vpop.f32.mrf.mxu0
        %v1308 = vadd.f32 %v732, %v1307
        %v1309 = vpop.f32.mrf.mxu0
        %v1310 = vadd.f32 %v736, %v1309
        %v1311 = vpop.f32.mrf.mxu0
        %v1312 = vadd.f32 %v732, %v1311
        %v1313 = vpop.f32.mrf.mxu0
        %v1314 = vadd.f32 %v736, %v1313
        %1315 = vmatprep.mubr.bf16.mxu0 0
        %1316 = vmatmul.mubr.bf16.gmra.mxu0 %v998
        %v1317 = vpop.f32.mrf.mxu0
        %v1318 = vadd.f32 %v732, %v1317
        %v1319 = vpop.f32.mrf.mxu0
        %v1320 = vadd.f32 %v736, %v1319
        %v1321 = vpop.f32.mrf.mxu0
        %v1322 = vadd.f32 %v732, %v1321
        %v1323 = vpop.f32.mrf.mxu0
        %v1324 = vadd.f32 %v736, %v1323
        %1325 = vdwg.mxu0
        %1326 = vmatprep.subr.bf16.mxu0 0
        %1327 = vmatpush1.bf16.msra.mxu0 0
        %1328 = vmatprep.subr.bf16.mxu0 0
        %1329 = vmatpush1.bf16.msra.mxu0 0
        %1330 = vmatprep.subr.bf16.mxu0 0
        %1331 = vmatpush1.bf16.msra.mxu0 0
        %1332 = vmatprep.subr.bf16.mxu0 0
        %1333 = vmatpush1.bf16.msra.mxu0 0
        %1334 = vmatprep.subr.bf16.mxu0 0
        %1335 = vmatpush1.bf16.msra.mxu0 0
        %1336 = vmatprep.subr.bf16.mxu0 0
        %1337 = vmatpush1.bf16.msra.mxu0 0
        %1338 = vmatprep.subr.bf16.mxu0 %v918
        %1339 = vmatpush1.bf16.msra.mxu0 %v917
        %1340 = vmatprep.subr.bf16.mxu0 %v902
        %1341 = vmatpush1.bf16.msra.mxu0 %v901
        %1342 = vmatprep.subr.bf16.mxu0 0
        %1343 = vmatpush2.bf16.msra.mxu0 0
        %1344 = vmatprep.subr.bf16.mxu0 0
        %1345 = vmatpush2.bf16.msra.mxu0 0
        %1346 = vmatprep.subr.bf16.mxu0 0
        %1347 = vmatpush2.bf16.msra.mxu0 0
        %1348 = vmatprep.subr.bf16.mxu0 0
        %1349 = vmatpush2.bf16.msra.mxu0 0
        %1350 = vmatprep.subr.bf16.mxu0 0
        %1351 = vmatpush2.bf16.msra.mxu0 0
        %1352 = vmatprep.subr.bf16.mxu0 0
        %1353 = vmatpush2.bf16.msra.mxu0 0
        %1354 = vmatprep.subr.bf16.mxu0 0
        %1355 = vmatpush2.bf16.msra.mxu0 0
        %1356 = vmatprep.subr.bf16.mxu0 0
        %1357 = vmatpush2.bf16.msra.mxu0 0
        %1358 = vmatprep.mubr.bf16.mxu0 0
        %1359 = vmatmul.mubr.bf16.gmra.mxu0 %v962
        %v1360 = vpop.f32.mrf.mxu0
        %v1361 = vadd.f32 %v740, %v1360
        %v1362 = vpop.f32.mrf.mxu0
        %v1363 = vadd.f32 %v744, %v1362
        %v1364 = vpop.f32.mrf.mxu0
        %v1365 = vadd.f32 %v740, %v1364
        %v1366 = vpop.f32.mrf.mxu0
        %v1367 = vadd.f32 %v744, %v1366
        %1368 = vmatprep.mubr.bf16.mxu0 0
        %1369 = vmatmul.mubr.bf16.gmra.mxu0 %v965
        %v1370 = vpop.f32.mrf.mxu0
        %v1371 = vadd.f32 %v740, %v1370
        %v1372 = vpop.f32.mrf.mxu0
        %v1373 = vadd.f32 %v744, %v1372
        %v1374 = vpop.f32.mrf.mxu0
        %v1375 = vadd.f32 %v740, %v1374
        %v1376 = vpop.f32.mrf.mxu0
        %v1377 = vadd.f32 %v744, %v1376
        %1378 = vmatprep.mubr.bf16.mxu0 0
        %1379 = vmatmul.mubr.bf16.gmra.mxu0 %v968
        %v1380 = vpop.f32.mrf.mxu0
        %v1381 = vadd.f32 %v740, %v1380
        %v1382 = vpop.f32.mrf.mxu0
        %v1383 = vadd.f32 %v744, %v1382
        %v1384 = vpop.f32.mrf.mxu0
        %v1385 = vadd.f32 %v740, %v1384
        %v1386 = vpop.f32.mrf.mxu0
        %v1387 = vadd.f32 %v744, %v1386
        %1388 = vmatprep.mubr.bf16.mxu0 0
        %1389 = vmatmul.mubr.bf16.gmra.mxu0 %v971
        %v1390 = vpop.f32.mrf.mxu0
        %v1391 = vadd.f32 %v740, %v1390
        %v1392 = vpop.f32.mrf.mxu0
        %v1393 = vadd.f32 %v744, %v1392
        %v1394 = vpop.f32.mrf.mxu0
        %v1395 = vadd.f32 %v740, %v1394
        %v1396 = vpop.f32.mrf.mxu0
        %v1397 = vadd.f32 %v744, %v1396
        %1398 = vmatprep.mubr.bf16.mxu0 0
        %1399 = vmatmul.mubr.bf16.gmra.mxu0 %v974
        %v1400 = vpop.f32.mrf.mxu0
        %v1401 = vadd.f32 %v740, %v1400
        %v1402 = vpop.f32.mrf.mxu0
        %v1403 = vadd.f32 %v744, %v1402
        %v1404 = vpop.f32.mrf.mxu0
        %v1405 = vadd.f32 %v740, %v1404
        %v1406 = vpop.f32.mrf.mxu0
        %v1407 = vadd.f32 %v744, %v1406
        %1408 = vmatprep.mubr.bf16.mxu0 0
        %1409 = vmatmul.mubr.bf16.gmra.mxu0 %v977
        %v1410 = vpop.f32.mrf.mxu0
        %v1411 = vadd.f32 %v740, %v1410
        %v1412 = vpop.f32.mrf.mxu0
        %v1413 = vadd.f32 %v744, %v1412
        %v1414 = vpop.f32.mrf.mxu0
        %v1415 = vadd.f32 %v740, %v1414
        %v1416 = vpop.f32.mrf.mxu0
        %v1417 = vadd.f32 %v744, %v1416
        %1418 = vmatprep.mubr.bf16.mxu0 0
        %1419 = vmatmul.mubr.bf16.gmra.mxu0 %v980
        %v1420 = vpop.f32.mrf.mxu0
        %v1421 = vadd.f32 %v740, %v1420
        %v1422 = vpop.f32.mrf.mxu0
        %v1423 = vadd.f32 %v744, %v1422
        %v1424 = vpop.f32.mrf.mxu0
        %v1425 = vadd.f32 %v740, %v1424
        %v1426 = vpop.f32.mrf.mxu0
        %v1427 = vadd.f32 %v744, %v1426
        %1428 = vmatprep.mubr.bf16.mxu0 0
        %1429 = vmatmul.mubr.bf16.gmra.mxu0 %v983
        %v1430 = vpop.f32.mrf.mxu0
        %v1431 = vadd.f32 %v740, %v1430
        %v1432 = vpop.f32.mrf.mxu0
        %v1433 = vadd.f32 %v744, %v1432
        %v1434 = vpop.f32.mrf.mxu0
        %v1435 = vadd.f32 %v740, %v1434
        %v1436 = vpop.f32.mrf.mxu0
        %v1437 = vadd.f32 %v744, %v1436
        %1438 = vmatprep.mubr.bf16.mxu0 0
        %1439 = vmatmul.mubr.bf16.gmra.mxu0 %v986
        %v1440 = vpop.f32.mrf.mxu0
        %v1441 = vadd.f32 %v740, %v1440
        %v1442 = vpop.f32.mrf.mxu0
        %v1443 = vadd.f32 %v744, %v1442
        %v1444 = vpop.f32.mrf.mxu0
        %v1445 = vadd.f32 %v740, %v1444
        %v1446 = vpop.f32.mrf.mxu0
        %v1447 = vadd.f32 %v744, %v1446
        %1448 = vmatprep.mubr.bf16.mxu0 0
        %1449 = vmatmul.mubr.bf16.gmra.mxu0 %v989
        %v1450 = vpop.f32.mrf.mxu0
        %v1451 = vadd.f32 %v740, %v1450
        %v1452 = vpop.f32.mrf.mxu0
        %v1453 = vadd.f32 %v744, %v1452
        %v1454 = vpop.f32.mrf.mxu0
        %v1455 = vadd.f32 %v740, %v1454
        %v1456 = vpop.f32.mrf.mxu0
        %v1457 = vadd.f32 %v744, %v1456
        %1458 = vmatprep.mubr.bf16.mxu0 0
        %1459 = vmatmul.mubr.bf16.gmra.mxu0 %v992
        %v1460 = vpop.f32.mrf.mxu0
        %v1461 = vadd.f32 %v740, %v1460
        %v1462 = vpop.f32.mrf.mxu0
        %v1463 = vadd.f32 %v744, %v1462
        %v1464 = vpop.f32.mrf.mxu0
        %v1465 = vadd.f32 %v740, %v1464
        %v1466 = vpop.f32.mrf.mxu0
        %v1467 = vadd.f32 %v744, %v1466
        %1468 = vmatprep.mubr.bf16.mxu0 0
        %1469 = vmatmul.mubr.bf16.gmra.mxu0 %v995
        %v1470 = vpop.f32.mrf.mxu0
        %v1471 = vadd.f32 %v740, %v1470
        %v1472 = vpop.f32.mrf.mxu0
        %v1473 = vadd.f32 %v744, %v1472
        %v1474 = vpop.f32.mrf.mxu0
        %v1475 = vadd.f32 %v740, %v1474
        %v1476 = vpop.f32.mrf.mxu0
        %v1477 = vadd.f32 %v744, %v1476
        %1478 = vmatprep.mubr.bf16.mxu0 0
        %1479 = vmatmul.mubr.bf16.gmra.mxu0 %v998
        %v1480 = vpop.f32.mrf.mxu0
        %v1481 = vadd.f32 %v740, %v1480
        %v1482 = vpop.f32.mrf.mxu0
        %v1483 = vadd.f32 %v744, %v1482
        %v1484 = vpop.f32.mrf.mxu0
        %v1485 = vadd.f32 %v740, %v1484
        %v1486 = vpop.f32.mrf.mxu0
        %v1487 = vadd.f32 %v744, %v1486
        %1488 = vdwg.mxu0
        %1489 = vmatprep.subr.bf16.mxu0 0
        %1490 = vmatpush1.bf16.msra.mxu0 0
        %1491 = vmatprep.subr.bf16.mxu0 0
        %1492 = vmatpush1.bf16.msra.mxu0 0
        %1493 = vmatprep.subr.bf16.mxu0 0
        %1494 = vmatpush1.bf16.msra.mxu0 0
        %1495 = vmatprep.subr.bf16.mxu0 0
        %1496 = vmatpush1.bf16.msra.mxu0 0
        %1497 = vmatprep.subr.bf16.mxu0 0
        %1498 = vmatpush1.bf16.msra.mxu0 0
        %1499 = vmatprep.subr.bf16.mxu0 0
        %1500 = vmatpush1.bf16.msra.mxu0 0
        %1501 = vmatprep.subr.bf16.mxu0 %v920
        %1502 = vmatpush1.bf16.msra.mxu0 %v919
        %1503 = vmatprep.subr.bf16.mxu0 %v904
        %1504 = vmatpush1.bf16.msra.mxu0 %v903
        %1505 = vmatprep.subr.bf16.mxu0 0
        %1506 = vmatpush2.bf16.msra.mxu0 0
        %1507 = vmatprep.subr.bf16.mxu0 0
        %1508 = vmatpush2.bf16.msra.mxu0 0
        %1509 = vmatprep.subr.bf16.mxu0 0
        %1510 = vmatpush2.bf16.msra.mxu0 0
        %1511 = vmatprep.subr.bf16.mxu0 0
        %1512 = vmatpush2.bf16.msra.mxu0 0
        %1513 = vmatprep.subr.bf16.mxu0 0
        %1514 = vmatpush2.bf16.msra.mxu0 0
        %1515 = vmatprep.subr.bf16.mxu0 0
        %1516 = vmatpush2.bf16.msra.mxu0 0
        %1517 = vmatprep.subr.bf16.mxu0 0
        %1518 = vmatpush2.bf16.msra.mxu0 0
        %1519 = vmatprep.subr.bf16.mxu0 0
        %1520 = vmatpush2.bf16.msra.mxu0 0
        %1521 = vmatprep.mubr.bf16.mxu0 0
        %1522 = vmatmul.mubr.bf16.gmra.mxu0 %v962
        %v1523 = vpop.f32.mrf.mxu0
        %v1524 = vadd.f32 %v748, %v1523
        %v1525 = vpop.f32.mrf.mxu0
        %v1526 = vadd.f32 %v752, %v1525
        %v1527 = vpop.f32.mrf.mxu0
        %v1528 = vadd.f32 %v748, %v1527
        %v1529 = vpop.f32.mrf.mxu0
        %v1530 = vadd.f32 %v752, %v1529
        %1531 = vmatprep.mubr.bf16.mxu0 0
        %1532 = vmatmul.mubr.bf16.gmra.mxu0 %v965
        %v1533 = vpop.f32.mrf.mxu0
        %v1534 = vadd.f32 %v748, %v1533
        %v1535 = vpop.f32.mrf.mxu0
        %v1536 = vadd.f32 %v752, %v1535
        %v1537 = vpop.f32.mrf.mxu0
        %v1538 = vadd.f32 %v748, %v1537
        %v1539 = vpop.f32.mrf.mxu0
        %v1540 = vadd.f32 %v752, %v1539
        %1541 = vmatprep.mubr.bf16.mxu0 0
        %1542 = vmatmul.mubr.bf16.gmra.mxu0 %v968
        %v1543 = vpop.f32.mrf.mxu0
        %v1544 = vadd.f32 %v748, %v1543
        %v1545 = vpop.f32.mrf.mxu0
        %v1546 = vadd.f32 %v752, %v1545
        %v1547 = vpop.f32.mrf.mxu0
        %v1548 = vadd.f32 %v748, %v1547
        %v1549 = vpop.f32.mrf.mxu0
        %v1550 = vadd.f32 %v752, %v1549
        %1551 = vmatprep.mubr.bf16.mxu0 0
        %1552 = vmatmul.mubr.bf16.gmra.mxu0 %v971
        %v1553 = vpop.f32.mrf.mxu0
        %v1554 = vadd.f32 %v748, %v1553
        %v1555 = vpop.f32.mrf.mxu0
        %v1556 = vadd.f32 %v752, %v1555
        %v1557 = vpop.f32.mrf.mxu0
        %v1558 = vadd.f32 %v748, %v1557
        %v1559 = vpop.f32.mrf.mxu0
        %v1560 = vadd.f32 %v752, %v1559
        %1561 = vmatprep.mubr.bf16.mxu0 0
        %1562 = vmatmul.mubr.bf16.gmra.mxu0 %v974
        %v1563 = vpop.f32.mrf.mxu0
        %v1564 = vadd.f32 %v748, %v1563
        %v1565 = vpop.f32.mrf.mxu0
        %v1566 = vadd.f32 %v752, %v1565
        %v1567 = vpop.f32.mrf.mxu0
        %v1568 = vadd.f32 %v748, %v1567
        %v1569 = vpop.f32.mrf.mxu0
        %v1570 = vadd.f32 %v752, %v1569
        %1571 = vmatprep.mubr.bf16.mxu0 0
        %1572 = vmatmul.mubr.bf16.gmra.mxu0 %v977
        %v1573 = vpop.f32.mrf.mxu0
        %v1574 = vadd.f32 %v748, %v1573
        %v1575 = vpop.f32.mrf.mxu0
        %v1576 = vadd.f32 %v752, %v1575
        %v1577 = vpop.f32.mrf.mxu0
        %v1578 = vadd.f32 %v748, %v1577
        %v1579 = vpop.f32.mrf.mxu0
        %v1580 = vadd.f32 %v752, %v1579
        %1581 = vmatprep.mubr.bf16.mxu0 0
        %1582 = vmatmul.mubr.bf16.gmra.mxu0 %v980
        %v1583 = vpop.f32.mrf.mxu0
        %v1584 = vadd.f32 %v748, %v1583
        %v1585 = vpop.f32.mrf.mxu0
        %v1586 = vadd.f32 %v752, %v1585
        %v1587 = vpop.f32.mrf.mxu0
        %v1588 = vadd.f32 %v748, %v1587
        %v1589 = vpop.f32.mrf.mxu0
        %v1590 = vadd.f32 %v752, %v1589
        %1591 = vmatprep.mubr.bf16.mxu0 0
        %1592 = vmatmul.mubr.bf16.gmra.mxu0 %v983
        %v1593 = vpop.f32.mrf.mxu0
        %v1594 = vadd.f32 %v748, %v1593
        %v1595 = vpop.f32.mrf.mxu0
        %v1596 = vadd.f32 %v752, %v1595
        %v1597 = vpop.f32.mrf.mxu0
        %v1598 = vadd.f32 %v748, %v1597
        %v1599 = vpop.f32.mrf.mxu0
        %v1600 = vadd.f32 %v752, %v1599
        %1601 = vmatprep.mubr.bf16.mxu0 0
        %1602 = vmatmul.mubr.bf16.gmra.mxu0 %v986
        %v1603 = vpop.f32.mrf.mxu0
        %v1604 = vadd.f32 %v748, %v1603
        %v1605 = vpop.f32.mrf.mxu0
        %v1606 = vadd.f32 %v752, %v1605
        %v1607 = vpop.f32.mrf.mxu0
        %v1608 = vadd.f32 %v748, %v1607
        %v1609 = vpop.f32.mrf.mxu0
        %v1610 = vadd.f32 %v752, %v1609
        %1611 = vmatprep.mubr.bf16.mxu0 0
        %1612 = vmatmul.mubr.bf16.gmra.mxu0 %v989
        %v1613 = vpop.f32.mrf.mxu0
        %v1614 = vadd.f32 %v748, %v1613
        %v1615 = vpop.f32.mrf.mxu0
        %v1616 = vadd.f32 %v752, %v1615
        %v1617 = vpop.f32.mrf.mxu0
        %v1618 = vadd.f32 %v748, %v1617
        %v1619 = vpop.f32.mrf.mxu0
        %v1620 = vadd.f32 %v752, %v1619
        %1621 = vmatprep.mubr.bf16.mxu0 0
        %1622 = vmatmul.mubr.bf16.gmra.mxu0 %v992
        %v1623 = vpop.f32.mrf.mxu0
        %v1624 = vadd.f32 %v748, %v1623
        %v1625 = vpop.f32.mrf.mxu0
        %v1626 = vadd.f32 %v752, %v1625
        %v1627 = vpop.f32.mrf.mxu0
        %v1628 = vadd.f32 %v748, %v1627
        %v1629 = vpop.f32.mrf.mxu0
        %v1630 = vadd.f32 %v752, %v1629
        %1631 = vmatprep.mubr.bf16.mxu0 0
        %1632 = vmatmul.mubr.bf16.gmra.mxu0 %v995
        %v1633 = vpop.f32.mrf.mxu0
        %v1634 = vadd.f32 %v748, %v1633
        %v1635 = vpop.f32.mrf.mxu0
        %v1636 = vadd.f32 %v752, %v1635
        %v1637 = vpop.f32.mrf.mxu0
        %v1638 = vadd.f32 %v748, %v1637
        %v1639 = vpop.f32.mrf.mxu0
        %v1640 = vadd.f32 %v752, %v1639
        %1641 = vmatprep.mubr.bf16.mxu0 0
        %1642 = vmatmul.mubr.bf16.gmra.mxu0 %v998
        %v1643 = vpop.f32.mrf.mxu0
        %v1644 = vadd.f32 %v748, %v1643
        %v1645 = vpop.f32.mrf.mxu0
        %v1646 = vadd.f32 %v752, %v1645
        %v1647 = vpop.f32.mrf.mxu0
        %v1648 = vadd.f32 %v748, %v1647
        %v1649 = vpop.f32.mrf.mxu0
        %v1650 = vadd.f32 %v752, %v1649
        %1651 = vdwg.mxu0
        %1652 = vmatprep.subr.bf16.mxu0 0
        %1653 = vmatpush1.bf16.msra.mxu0 0
        %1654 = vmatprep.subr.bf16.mxu0 0
        %1655 = vmatpush1.bf16.msra.mxu0 0
        %1656 = vmatprep.subr.bf16.mxu0 0
        %1657 = vmatpush1.bf16.msra.mxu0 0
        %1658 = vmatprep.subr.bf16.mxu0 0
        %1659 = vmatpush1.bf16.msra.mxu0 0
        %1660 = vmatprep.subr.bf16.mxu0 0
        %1661 = vmatpush1.bf16.msra.mxu0 0
        %1662 = vmatprep.subr.bf16.mxu0 0
        %1663 = vmatpush1.bf16.msra.mxu0 0
        %1664 = vmatprep.subr.bf16.mxu0 %v922
        %1665 = vmatpush1.bf16.msra.mxu0 %v921
        %1666 = vmatprep.subr.bf16.mxu0 %v906
        %1667 = vmatpush1.bf16.msra.mxu0 %v905
        %1668 = vmatprep.subr.bf16.mxu0 0
        %1669 = vmatpush2.bf16.msra.mxu0 0
        %1670 = vmatprep.subr.bf16.mxu0 0
        %1671 = vmatpush2.bf16.msra.mxu0 0
        %1672 = vmatprep.subr.bf16.mxu0 0
        %1673 = vmatpush2.bf16.msra.mxu0 0
        %1674 = vmatprep.subr.bf16.mxu0 0
        %1675 = vmatpush2.bf16.msra.mxu0 0
        %1676 = vmatprep.subr.bf16.mxu0 0
        %1677 = vmatpush2.bf16.msra.mxu0 0
        %1678 = vmatprep.subr.bf16.mxu0 0
        %1679 = vmatpush2.bf16.msra.mxu0 0
        %1680 = vmatprep.subr.bf16.mxu0 0
        %1681 = vmatpush2.bf16.msra.mxu0 0
        %1682 = vmatprep.subr.bf16.mxu0 0
        %1683 = vmatpush2.bf16.msra.mxu0 0
        %1684 = vmatprep.mubr.bf16.mxu0 0
        %1685 = vmatmul.mubr.bf16.gmra.mxu0 %v962
        %v1686 = vpop.f32.mrf.mxu0
        %v1687 = vadd.f32 %v756, %v1686
        %v1688 = vpop.f32.mrf.mxu0
        %v1689 = vadd.f32 %v760, %v1688
        %v1690 = vpop.f32.mrf.mxu0
        %v1691 = vadd.f32 %v756, %v1690
        %v1692 = vpop.f32.mrf.mxu0
        %v1693 = vadd.f32 %v760, %v1692
        %1694 = vmatprep.mubr.bf16.mxu0 0
        %1695 = vmatmul.mubr.bf16.gmra.mxu0 %v965
        %v1696 = vpop.f32.mrf.mxu0
        %v1697 = vadd.f32 %v756, %v1696
        %v1698 = vpop.f32.mrf.mxu0
        %v1699 = vadd.f32 %v760, %v1698
        %v1700 = vpop.f32.mrf.mxu0
        %v1701 = vadd.f32 %v756, %v1700
        %v1702 = vpop.f32.mrf.mxu0
        %v1703 = vadd.f32 %v760, %v1702
        %1704 = vmatprep.mubr.bf16.mxu0 0
        %1705 = vmatmul.mubr.bf16.gmra.mxu0 %v968
        %v1706 = vpop.f32.mrf.mxu0
        %v1707 = vadd.f32 %v756, %v1706
        %v1708 = vpop.f32.mrf.mxu0
        %v1709 = vadd.f32 %v760, %v1708
        %v1710 = vpop.f32.mrf.mxu0
        %v1711 = vadd.f32 %v756, %v1710
        %v1712 = vpop.f32.mrf.mxu0
        %v1713 = vadd.f32 %v760, %v1712
        %1714 = vmatprep.mubr.bf16.mxu0 0
        %1715 = vmatmul.mubr.bf16.gmra.mxu0 %v971
        %v1716 = vpop.f32.mrf.mxu0
        %v1717 = vadd.f32 %v756, %v1716
        %v1718 = vpop.f32.mrf.mxu0
        %v1719 = vadd.f32 %v760, %v1718
        %v1720 = vpop.f32.mrf.mxu0
        %v1721 = vadd.f32 %v756, %v1720
        %v1722 = vpop.f32.mrf.mxu0
        %v1723 = vadd.f32 %v760, %v1722
        %1724 = vmatprep.mubr.bf16.mxu0 0
        %1725 = vmatmul.mubr.bf16.gmra.mxu0 %v974
        %v1726 = vpop.f32.mrf.mxu0
        %v1727 = vadd.f32 %v756, %v1726
        %v1728 = vpop.f32.mrf.mxu0
        %v1729 = vadd.f32 %v760, %v1728
        %v1730 = vpop.f32.mrf.mxu0
        %v1731 = vadd.f32 %v756, %v1730
        %v1732 = vpop.f32.mrf.mxu0
        %v1733 = vadd.f32 %v760, %v1732
        %1734 = vmatprep.mubr.bf16.mxu0 0
        %1735 = vmatmul.mubr.bf16.gmra.mxu0 %v977
        %v1736 = vpop.f32.mrf.mxu0
        %v1737 = vadd.f32 %v756, %v1736
        %v1738 = vpop.f32.mrf.mxu0
        %v1739 = vadd.f32 %v760, %v1738
        %v1740 = vpop.f32.mrf.mxu0
        %v1741 = vadd.f32 %v756, %v1740
        %v1742 = vpop.f32.mrf.mxu0
        %v1743 = vadd.f32 %v760, %v1742
        %1744 = vmatprep.mubr.bf16.mxu0 0
        %1745 = vmatmul.mubr.bf16.gmra.mxu0 %v980
        %v1746 = vpop.f32.mrf.mxu0
        %v1747 = vadd.f32 %v756, %v1746
        %v1748 = vpop.f32.mrf.mxu0
        %v1749 = vadd.f32 %v760, %v1748
        %v1750 = vpop.f32.mrf.mxu0
        %v1751 = vadd.f32 %v756, %v1750
        %v1752 = vpop.f32.mrf.mxu0
        %v1753 = vadd.f32 %v760, %v1752
        %1754 = vmatprep.mubr.bf16.mxu0 0
        %1755 = vmatmul.mubr.bf16.gmra.mxu0 %v983
        %v1756 = vpop.f32.mrf.mxu0
        %v1757 = vadd.f32 %v756, %v1756
        %v1758 = vpop.f32.mrf.mxu0
        %v1759 = vadd.f32 %v760, %v1758
        %v1760 = vpop.f32.mrf.mxu0
        %v1761 = vadd.f32 %v756, %v1760
        %v1762 = vpop.f32.mrf.mxu0
        %v1763 = vadd.f32 %v760, %v1762
        %1764 = vmatprep.mubr.bf16.mxu0 0
        %1765 = vmatmul.mubr.bf16.gmra.mxu0 %v986
        %v1766 = vpop.f32.mrf.mxu0
        %v1767 = vadd.f32 %v756, %v1766
        %v1768 = vpop.f32.mrf.mxu0
        %v1769 = vadd.f32 %v760, %v1768
        %v1770 = vpop.f32.mrf.mxu0
        %v1771 = vadd.f32 %v756, %v1770
        %v1772 = vpop.f32.mrf.mxu0
        %v1773 = vadd.f32 %v760, %v1772
        %1774 = vmatprep.mubr.bf16.mxu0 0
        %1775 = vmatmul.mubr.bf16.gmra.mxu0 %v989
        %v1776 = vpop.f32.mrf.mxu0
        %v1777 = vadd.f32 %v756, %v1776
        %v1778 = vpop.f32.mrf.mxu0
        %v1779 = vadd.f32 %v760, %v1778
        %v1780 = vpop.f32.mrf.mxu0
        %v1781 = vadd.f32 %v756, %v1780
        %v1782 = vpop.f32.mrf.mxu0
        %v1783 = vadd.f32 %v760, %v1782
        %1784 = vmatprep.mubr.bf16.mxu0 0
        %1785 = vmatmul.mubr.bf16.gmra.mxu0 %v992
        %v1786 = vpop.f32.mrf.mxu0
        %v1787 = vadd.f32 %v756, %v1786
        %v1788 = vpop.f32.mrf.mxu0
        %v1789 = vadd.f32 %v760, %v1788
        %v1790 = vpop.f32.mrf.mxu0
        %v1791 = vadd.f32 %v756, %v1790
        %v1792 = vpop.f32.mrf.mxu0
        %v1793 = vadd.f32 %v760, %v1792
        %1794 = vmatprep.mubr.bf16.mxu0 0
        %1795 = vmatmul.mubr.bf16.gmra.mxu0 %v995
        %v1796 = vpop.f32.mrf.mxu0
        %v1797 = vadd.f32 %v756, %v1796
        %v1798 = vpop.f32.mrf.mxu0
        %v1799 = vadd.f32 %v760, %v1798
        %v1800 = vpop.f32.mrf.mxu0
        %v1801 = vadd.f32 %v756, %v1800
        %v1802 = vpop.f32.mrf.mxu0
        %v1803 = vadd.f32 %v760, %v1802
        %1804 = vmatprep.mubr.bf16.mxu0 0
        %1805 = vmatmul.mubr.bf16.gmra.mxu0 %v998
        %v1806 = vpop.f32.mrf.mxu0
        %v1807 = vadd.f32 %v756, %v1806
        %v1808 = vpop.f32.mrf.mxu0
        %v1809 = vadd.f32 %v760, %v1808
        %v1810 = vpop.f32.mrf.mxu0
        %v1811 = vadd.f32 %v756, %v1810
        %v1812 = vpop.f32.mrf.mxu0
        %v1813 = vadd.f32 %v760, %v1812
        %1814 = vdwg.mxu0
        %1815 = vmatprep.subr.bf16.mxu0 0
        %1816 = vmatpush1.bf16.msra.mxu0 0
        %1817 = vmatprep.subr.bf16.mxu0 0
        %1818 = vmatpush1.bf16.msra.mxu0 0
        %1819 = vmatprep.subr.bf16.mxu0 0
        %1820 = vmatpush1.bf16.msra.mxu0 0
        %1821 = vmatprep.subr.bf16.mxu0 0
        %1822 = vmatpush1.bf16.msra.mxu0 0
        %1823 = vmatprep.subr.bf16.mxu0 0
        %1824 = vmatpush1.bf16.msra.mxu0 0
        %1825 = vmatprep.subr.bf16.mxu0 0
        %1826 = vmatpush1.bf16.msra.mxu0 0
        %1827 = vmatprep.subr.bf16.mxu0 %v924
        %1828 = vmatpush1.bf16.msra.mxu0 %v923
        %1829 = vmatprep.subr.bf16.mxu0 %v908
        %1830 = vmatpush1.bf16.msra.mxu0 %v907
        %1831 = vmatprep.subr.bf16.mxu0 0
        %1832 = vmatpush2.bf16.msra.mxu0 0
        %1833 = vmatprep.subr.bf16.mxu0 0
        %1834 = vmatpush2.bf16.msra.mxu0 0
        %1835 = vmatprep.subr.bf16.mxu0 0
        %1836 = vmatpush2.bf16.msra.mxu0 0
        %1837 = vmatprep.subr.bf16.mxu0 0
        %1838 = vmatpush2.bf16.msra.mxu0 0
        %1839 = vmatprep.subr.bf16.mxu0 0
        %1840 = vmatpush2.bf16.msra.mxu0 0
        %1841 = vmatprep.subr.bf16.mxu0 0
        %1842 = vmatpush2.bf16.msra.mxu0 0
        %1843 = vmatprep.subr.bf16.mxu0 0
        %1844 = vmatpush2.bf16.msra.mxu0 0
        %1845 = vmatprep.subr.bf16.mxu0 0
        %1846 = vmatpush2.bf16.msra.mxu0 0
        %1847 = vmatprep.mubr.bf16.mxu0 0
        %1848 = vmatmul.mubr.bf16.gmra.mxu0 %v962
        %v1849 = vpop.f32.mrf.mxu0
        %v1850 = vadd.f32 %v764, %v1849
        %v1851 = vpop.f32.mrf.mxu0
        %v1852 = vadd.f32 %v768, %v1851
        %v1853 = vpop.f32.mrf.mxu0
        %v1854 = vadd.f32 %v764, %v1853
        %v1855 = vpop.f32.mrf.mxu0
        %v1856 = vadd.f32 %v768, %v1855
        %1857 = vmatprep.mubr.bf16.mxu0 0
        %1858 = vmatmul.mubr.bf16.gmra.mxu0 %v965
        %v1859 = vpop.f32.mrf.mxu0
        %v1860 = vadd.f32 %v764, %v1859
        %v1861 = vpop.f32.mrf.mxu0
        %v1862 = vadd.f32 %v768, %v1861
        %v1863 = vpop.f32.mrf.mxu0
        %v1864 = vadd.f32 %v764, %v1863
        %v1865 = vpop.f32.mrf.mxu0
        %v1866 = vadd.f32 %v768, %v1865
        %1867 = vmatprep.mubr.bf16.mxu0 0
        %1868 = vmatmul.mubr.bf16.gmra.mxu0 %v968
        %v1869 = vpop.f32.mrf.mxu0
        %v1870 = vadd.f32 %v764, %v1869
        %v1871 = vpop.f32.mrf.mxu0
        %v1872 = vadd.f32 %v768, %v1871
        %v1873 = vpop.f32.mrf.mxu0
        %v1874 = vadd.f32 %v764, %v1873
        %v1875 = vpop.f32.mrf.mxu0
        %v1876 = vadd.f32 %v768, %v1875
        %1877 = vmatprep.mubr.bf16.mxu0 0
        %1878 = vmatmul.mubr.bf16.gmra.mxu0 %v971
        %v1879 = vpop.f32.mrf.mxu0
        %v1880 = vadd.f32 %v764, %v1879
        %v1881 = vpop.f32.mrf.mxu0
        %v1882 = vadd.f32 %v768, %v1881
        %v1883 = vpop.f32.mrf.mxu0
        %v1884 = vadd.f32 %v764, %v1883
        %v1885 = vpop.f32.mrf.mxu0
        %v1886 = vadd.f32 %v768, %v1885
        %1887 = vmatprep.mubr.bf16.mxu0 0
        %1888 = vmatmul.mubr.bf16.gmra.mxu0 %v974
        %v1889 = vpop.f32.mrf.mxu0
        %v1890 = vadd.f32 %v764, %v1889
        %v1891 = vpop.f32.mrf.mxu0
        %v1892 = vadd.f32 %v768, %v1891
        %v1893 = vpop.f32.mrf.mxu0
        %v1894 = vadd.f32 %v764, %v1893
        %v1895 = vpop.f32.mrf.mxu0
        %v1896 = vadd.f32 %v768, %v1895
        %1897 = vmatprep.mubr.bf16.mxu0 0
        %1898 = vmatmul.mubr.bf16.gmra.mxu0 %v977
        %v1899 = vpop.f32.mrf.mxu0
        %v1900 = vadd.f32 %v764, %v1899
        %v1901 = vpop.f32.mrf.mxu0
        %v1902 = vadd.f32 %v768, %v1901
        %v1903 = vpop.f32.mrf.mxu0
        %v1904 = vadd.f32 %v764, %v1903
        %v1905 = vpop.f32.mrf.mxu0
        %v1906 = vadd.f32 %v768, %v1905
        %1907 = vmatprep.mubr.bf16.mxu0 0
        %1908 = vmatmul.mubr.bf16.gmra.mxu0 %v980
        %v1909 = vpop.f32.mrf.mxu0
        %v1910 = vadd.f32 %v764, %v1909
        %v1911 = vpop.f32.mrf.mxu0
        %v1912 = vadd.f32 %v768, %v1911
        %v1913 = vpop.f32.mrf.mxu0
        %v1914 = vadd.f32 %v764, %v1913
        %v1915 = vpop.f32.mrf.mxu0
        %v1916 = vadd.f32 %v768, %v1915
        %1917 = vmatprep.mubr.bf16.mxu0 0
        %1918 = vmatmul.mubr.bf16.gmra.mxu0 %v983
        %v1919 = vpop.f32.mrf.mxu0
        %v1920 = vadd.f32 %v764, %v1919
        %v1921 = vpop.f32.mrf.mxu0
        %v1922 = vadd.f32 %v768, %v1921
        %v1923 = vpop.f32.mrf.mxu0
        %v1924 = vadd.f32 %v764, %v1923
        %v1925 = vpop.f32.mrf.mxu0
        %v1926 = vadd.f32 %v768, %v1925
        %1927 = vmatprep.mubr.bf16.mxu0 0
        %1928 = vmatmul.mubr.bf16.gmra.mxu0 %v986
        %v1929 = vpop.f32.mrf.mxu0
        %v1930 = vadd.f32 %v764, %v1929
        %v1931 = vpop.f32.mrf.mxu0
        %v1932 = vadd.f32 %v768, %v1931
        %v1933 = vpop.f32.mrf.mxu0
        %v1934 = vadd.f32 %v764, %v1933
        %v1935 = vpop.f32.mrf.mxu0
        %v1936 = vadd.f32 %v768, %v1935
        %1937 = vmatprep.mubr.bf16.mxu0 0
        %1938 = vmatmul.mubr.bf16.gmra.mxu0 %v989
        %v1939 = vpop.f32.mrf.mxu0
        %v1940 = vadd.f32 %v764, %v1939
        %v1941 = vpop.f32.mrf.mxu0
        %v1942 = vadd.f32 %v768, %v1941
        %v1943 = vpop.f32.mrf.mxu0
        %v1944 = vadd.f32 %v764, %v1943
        %v1945 = vpop.f32.mrf.mxu0
        %v1946 = vadd.f32 %v768, %v1945
        %1947 = vmatprep.mubr.bf16.mxu0 0
        %1948 = vmatmul.mubr.bf16.gmra.mxu0 %v992
        %v1949 = vpop.f32.mrf.mxu0
        %v1950 = vadd.f32 %v764, %v1949
        %v1951 = vpop.f32.mrf.mxu0
        %v1952 = vadd.f32 %v768, %v1951
        %v1953 = vpop.f32.mrf.mxu0
        %v1954 = vadd.f32 %v764, %v1953
        %v1955 = vpop.f32.mrf.mxu0
        %v1956 = vadd.f32 %v768, %v1955
        %1957 = vmatprep.mubr.bf16.mxu0 0
        %1958 = vmatmul.mubr.bf16.gmra.mxu0 %v995
        %v1959 = vpop.f32.mrf.mxu0
        %v1960 = vadd.f32 %v764, %v1959
        %v1961 = vpop.f32.mrf.mxu0
        %v1962 = vadd.f32 %v768, %v1961
        %v1963 = vpop.f32.mrf.mxu0
        %v1964 = vadd.f32 %v764, %v1963
        %v1965 = vpop.f32.mrf.mxu0
        %v1966 = vadd.f32 %v768, %v1965
        %1967 = vmatprep.mubr.bf16.mxu0 0
        %1968 = vmatmul.mubr.bf16.gmra.mxu0 %v998
        %v1969 = vpop.f32.mrf.mxu0
        %v1970 = vadd.f32 %v764, %v1969
        %v1971 = vpop.f32.mrf.mxu0
        %v1972 = vadd.f32 %v768, %v1971
        %v1973 = vpop.f32.mrf.mxu0
        %v1974 = vadd.f32 %v764, %v1973
        %v1975 = vpop.f32.mrf.mxu0
        %v1976 = vadd.f32 %v768, %v1975
        %1977 = vdwg.mxu0
        %1978 = vmatprep.subr.bf16.mxu0 0
        %1979 = vmatpush1.bf16.msra.mxu0 0
        %1980 = vmatprep.subr.bf16.mxu0 0
        %1981 = vmatpush1.bf16.msra.mxu0 0
        %1982 = vmatprep.subr.bf16.mxu0 0
        %1983 = vmatpush1.bf16.msra.mxu0 0
        %1984 = vmatprep.subr.bf16.mxu0 0
        %1985 = vmatpush1.bf16.msra.mxu0 0
        %1986 = vmatprep.subr.bf16.mxu0 0
        %1987 = vmatpush1.bf16.msra.mxu0 0
        %1988 = vmatprep.subr.bf16.mxu0 0
        %1989 = vmatpush1.bf16.msra.mxu0 0
        %1990 = vmatprep.subr.bf16.mxu0 %v926
        %1991 = vmatpush1.bf16.msra.mxu0 %v925
        %1992 = vmatprep.subr.bf16.mxu0 %v910
        %1993 = vmatpush1.bf16.msra.mxu0 %v909
        %1994 = vmatprep.subr.bf16.mxu0 0
        %1995 = vmatpush2.bf16.msra.mxu0 0
        %1996 = vmatprep.subr.bf16.mxu0 0
        %1997 = vmatpush2.bf16.msra.mxu0 0
        %1998 = vmatprep.subr.bf16.mxu0 0
        %1999 = vmatpush2.bf16.msra.mxu0 0
        %2000 = vmatprep.subr.bf16.mxu0 0
        %2001 = vmatpush2.bf16.msra.mxu0 0
        %2002 = vmatprep.subr.bf16.mxu0 0
        %2003 = vmatpush2.bf16.msra.mxu0 0
        %2004 = vmatprep.subr.bf16.mxu0 0
        %2005 = vmatpush2.bf16.msra.mxu0 0
        %2006 = vmatprep.subr.bf16.mxu0 0
        %2007 = vmatpush2.bf16.msra.mxu0 0
        %2008 = vmatprep.subr.bf16.mxu0 0
        %2009 = vmatpush2.bf16.msra.mxu0 0
        %2010 = vmatprep.mubr.bf16.mxu0 0
        %2011 = vmatmul.mubr.bf16.gmra.mxu0 %v962
        %v2012 = vpop.f32.mrf.mxu0
        %v2013 = vadd.f32 %v772, %v2012
        %v2014 = vpop.f32.mrf.mxu0
        %v2015 = vadd.f32 %v776, %v2014
        %v2016 = vpop.f32.mrf.mxu0
        %v2017 = vadd.f32 %v772, %v2016
        %v2018 = vpop.f32.mrf.mxu0
        %v2019 = vadd.f32 %v776, %v2018
        %2020 = vmatprep.mubr.bf16.mxu0 0
        %2021 = vmatmul.mubr.bf16.gmra.mxu0 %v965
        %v2022 = vpop.f32.mrf.mxu0
        %v2023 = vadd.f32 %v772, %v2022
        %v2024 = vpop.f32.mrf.mxu0
        %v2025 = vadd.f32 %v776, %v2024
        %v2026 = vpop.f32.mrf.mxu0
        %v2027 = vadd.f32 %v772, %v2026
        %v2028 = vpop.f32.mrf.mxu0
        %v2029 = vadd.f32 %v776, %v2028
        %2030 = vmatprep.mubr.bf16.mxu0 0
        %2031 = vmatmul.mubr.bf16.gmra.mxu0 %v968
        %v2032 = vpop.f32.mrf.mxu0
        %v2033 = vadd.f32 %v772, %v2032
        %v2034 = vpop.f32.mrf.mxu0
        %v2035 = vadd.f32 %v776, %v2034
        %v2036 = vpop.f32.mrf.mxu0
        %v2037 = vadd.f32 %v772, %v2036
        %v2038 = vpop.f32.mrf.mxu0
        %v2039 = vadd.f32 %v776, %v2038
        %2040 = vmatprep.mubr.bf16.mxu0 0
        %2041 = vmatmul.mubr.bf16.gmra.mxu0 %v971
        %v2042 = vpop.f32.mrf.mxu0
        %v2043 = vadd.f32 %v772, %v2042
        %v2044 = vpop.f32.mrf.mxu0
        %v2045 = vadd.f32 %v776, %v2044
        %v2046 = vpop.f32.mrf.mxu0
        %v2047 = vadd.f32 %v772, %v2046
        %v2048 = vpop.f32.mrf.mxu0
        %v2049 = vadd.f32 %v776, %v2048
        %2050 = vmatprep.mubr.bf16.mxu0 0
        %2051 = vmatmul.mubr.bf16.gmra.mxu0 %v974
        %v2052 = vpop.f32.mrf.mxu0
        %v2053 = vadd.f32 %v772, %v2052
        %v2054 = vpop.f32.mrf.mxu0
        %v2055 = vadd.f32 %v776, %v2054
        %v2056 = vpop.f32.mrf.mxu0
        %v2057 = vadd.f32 %v772, %v2056
        %v2058 = vpop.f32.mrf.mxu0
        %v2059 = vadd.f32 %v776, %v2058
        %2060 = vmatprep.mubr.bf16.mxu0 0
        %2061 = vmatmul.mubr.bf16.gmra.mxu0 %v977
        %v2062 = vpop.f32.mrf.mxu0
        %v2063 = vadd.f32 %v772, %v2062
        %v2064 = vpop.f32.mrf.mxu0
        %v2065 = vadd.f32 %v776, %v2064
        %v2066 = vpop.f32.mrf.mxu0
        %v2067 = vadd.f32 %v772, %v2066
        %v2068 = vpop.f32.mrf.mxu0
        %v2069 = vadd.f32 %v776, %v2068
        %2070 = vmatprep.mubr.bf16.mxu0 0
        %2071 = vmatmul.mubr.bf16.gmra.mxu0 %v980
        %v2072 = vpop.f32.mrf.mxu0
        %v2073 = vadd.f32 %v772, %v2072
        %v2074 = vpop.f32.mrf.mxu0
        %v2075 = vadd.f32 %v776, %v2074
        %v2076 = vpop.f32.mrf.mxu0
        %v2077 = vadd.f32 %v772, %v2076
        %v2078 = vpop.f32.mrf.mxu0
        %v2079 = vadd.f32 %v776, %v2078
        %2080 = vmatprep.mubr.bf16.mxu0 0
        %2081 = vmatmul.mubr.bf16.gmra.mxu0 %v983
        %v2082 = vpop.f32.mrf.mxu0
        %v2083 = vadd.f32 %v772, %v2082
        %v2084 = vpop.f32.mrf.mxu0
        %v2085 = vadd.f32 %v776, %v2084
        %v2086 = vpop.f32.mrf.mxu0
        %v2087 = vadd.f32 %v772, %v2086
        %v2088 = vpop.f32.mrf.mxu0
        %v2089 = vadd.f32 %v776, %v2088
        %2090 = vmatprep.mubr.bf16.mxu0 0
        %2091 = vmatmul.mubr.bf16.gmra.mxu0 %v986
        %v2092 = vpop.f32.mrf.mxu0
        %v2093 = vadd.f32 %v772, %v2092
        %v2094 = vpop.f32.mrf.mxu0
        %v2095 = vadd.f32 %v776, %v2094
        %v2096 = vpop.f32.mrf.mxu0
        %v2097 = vadd.f32 %v772, %v2096
        %v2098 = vpop.f32.mrf.mxu0
        %v2099 = vadd.f32 %v776, %v2098
        %2100 = vmatprep.mubr.bf16.mxu0 0
        %2101 = vmatmul.mubr.bf16.gmra.mxu0 %v989
        %v2102 = vpop.f32.mrf.mxu0
        %v2103 = vadd.f32 %v772, %v2102
        %v2104 = vpop.f32.mrf.mxu0
        %v2105 = vadd.f32 %v776, %v2104
        %v2106 = vpop.f32.mrf.mxu0
        %v2107 = vadd.f32 %v772, %v2106
        %v2108 = vpop.f32.mrf.mxu0
        %v2109 = vadd.f32 %v776, %v2108
        %2110 = vmatprep.mubr.bf16.mxu0 0
        %2111 = vmatmul.mubr.bf16.gmra.mxu0 %v992
        %v2112 = vpop.f32.mrf.mxu0
        %v2113 = vadd.f32 %v772, %v2112
        %v2114 = vpop.f32.mrf.mxu0
        %v2115 = vadd.f32 %v776, %v2114
        %v2116 = vpop.f32.mrf.mxu0
        %v2117 = vadd.f32 %v772, %v2116
        %v2118 = vpop.f32.mrf.mxu0
        %v2119 = vadd.f32 %v776, %v2118
        %2120 = vmatprep.mubr.bf16.mxu0 0
        %2121 = vmatmul.mubr.bf16.gmra.mxu0 %v995
        %v2122 = vpop.f32.mrf.mxu0
        %v2123 = vadd.f32 %v772, %v2122
        %v2124 = vpop.f32.mrf.mxu0
        %v2125 = vadd.f32 %v776, %v2124
        %v2126 = vpop.f32.mrf.mxu0
        %v2127 = vadd.f32 %v772, %v2126
        %v2128 = vpop.f32.mrf.mxu0
        %v2129 = vadd.f32 %v776, %v2128
        %2130 = vmatprep.mubr.bf16.mxu0 0
        %2131 = vmatmul.mubr.bf16.gmra.mxu0 %v998
        %v2132 = vpop.f32.mrf.mxu0
        %v2133 = vadd.f32 %v772, %v2132
        %v2134 = vpop.f32.mrf.mxu0
        %v2135 = vadd.f32 %v776, %v2134
        %v2136 = vpop.f32.mrf.mxu0
        %v2137 = vadd.f32 %v772, %v2136
        %v2138 = vpop.f32.mrf.mxu0
        %v2139 = vadd.f32 %v776, %v2138
        %2140 = vdwg.mxu0
        %2141 = vmatprep.subr.bf16.mxu0 0
        %2142 = vmatpush1.bf16.msra.mxu0 0
        %2143 = vmatprep.subr.bf16.mxu0 0
        %2144 = vmatpush1.bf16.msra.mxu0 0
        %2145 = vmatprep.subr.bf16.mxu0 0
        %2146 = vmatpush1.bf16.msra.mxu0 0
        %2147 = vmatprep.subr.bf16.mxu0 0
        %2148 = vmatpush1.bf16.msra.mxu0 0
        %2149 = vmatprep.subr.bf16.mxu0 0
        %2150 = vmatpush1.bf16.msra.mxu0 0
        %2151 = vmatprep.subr.bf16.mxu0 0
        %2152 = vmatpush1.bf16.msra.mxu0 0
        %2153 = vmatprep.subr.bf16.mxu0 %v928
        %2154 = vmatpush1.bf16.msra.mxu0 %v927
        %2155 = vmatprep.subr.bf16.mxu0 %v912
        %2156 = vmatpush1.bf16.msra.mxu0 %v911
        %2157 = vmatprep.subr.bf16.mxu0 0
        %2158 = vmatpush2.bf16.msra.mxu0 0
        %2159 = vmatprep.subr.bf16.mxu0 0
        %2160 = vmatpush2.bf16.msra.mxu0 0
        %2161 = vmatprep.subr.bf16.mxu0 0
        %2162 = vmatpush2.bf16.msra.mxu0 0
        %2163 = vmatprep.subr.bf16.mxu0 0
        %2164 = vmatpush2.bf16.msra.mxu0 0
        %2165 = vmatprep.subr.bf16.mxu0 0
        %2166 = vmatpush2.bf16.msra.mxu0 0
        %2167 = vmatprep.subr.bf16.mxu0 0
        %2168 = vmatpush2.bf16.msra.mxu0 0
        %2169 = vmatprep.subr.bf16.mxu0 0
        %2170 = vmatpush2.bf16.msra.mxu0 0
        %2171 = vmatprep.subr.bf16.mxu0 0
        %2172 = vmatpush2.bf16.msra.mxu0 0
        %2173 = vmatprep.mubr.bf16.mxu0 0
        %2174 = vmatmul.mubr.bf16.gmra.mxu0 %v962
        %v2175 = vpop.f32.mrf.mxu0
        %v2176 = vadd.f32 %v780, %v2175
        %v2177 = vpop.f32.mrf.mxu0
        %v2178 = vadd.f32 %v784, %v2177
        %v2179 = vpop.f32.mrf.mxu0
        %v2180 = vadd.f32 %v780, %v2179
        %v2181 = vpop.f32.mrf.mxu0
        %v2182 = vadd.f32 %v784, %v2181
        %2183 = vmatprep.mubr.bf16.mxu0 0
        %2184 = vmatmul.mubr.bf16.gmra.mxu0 %v965
        %v2185 = vpop.f32.mrf.mxu0
        %v2186 = vadd.f32 %v780, %v2185
        %v2187 = vpop.f32.mrf.mxu0
        %v2188 = vadd.f32 %v784, %v2187
        %v2189 = vpop.f32.mrf.mxu0
        %v2190 = vadd.f32 %v780, %v2189
        %v2191 = vpop.f32.mrf.mxu0
        %v2192 = vadd.f32 %v784, %v2191
        %2193 = vmatprep.mubr.bf16.mxu0 0
        %2194 = vmatmul.mubr.bf16.gmra.mxu0 %v968
        %v2195 = vpop.f32.mrf.mxu0
        %v2196 = vadd.f32 %v780, %v2195
        %v2197 = vpop.f32.mrf.mxu0
        %v2198 = vadd.f32 %v784, %v2197
        %v2199 = vpop.f32.mrf.mxu0
        %v2200 = vadd.f32 %v780, %v2199
        %v2201 = vpop.f32.mrf.mxu0
        %v2202 = vadd.f32 %v784, %v2201
        %2203 = vmatprep.mubr.bf16.mxu0 0
        %2204 = vmatmul.mubr.bf16.gmra.mxu0 %v971
        %v2205 = vpop.f32.mrf.mxu0
        %v2206 = vadd.f32 %v780, %v2205
        %v2207 = vpop.f32.mrf.mxu0
        %v2208 = vadd.f32 %v784, %v2207
        %v2209 = vpop.f32.mrf.mxu0
        %v2210 = vadd.f32 %v780, %v2209
        %v2211 = vpop.f32.mrf.mxu0
        %v2212 = vadd.f32 %v784, %v2211
        %2213 = vmatprep.mubr.bf16.mxu0 0
        %2214 = vmatmul.mubr.bf16.gmra.mxu0 %v974
        %v2215 = vpop.f32.mrf.mxu0
        %v2216 = vadd.f32 %v780, %v2215
        %v2217 = vpop.f32.mrf.mxu0
        %v2218 = vadd.f32 %v784, %v2217
        %v2219 = vpop.f32.mrf.mxu0
        %v2220 = vadd.f32 %v780, %v2219
        %v2221 = vpop.f32.mrf.mxu0
        %v2222 = vadd.f32 %v784, %v2221
        %2223 = vmatprep.mubr.bf16.mxu0 0
        %2224 = vmatmul.mubr.bf16.gmra.mxu0 %v977
        %v2225 = vpop.f32.mrf.mxu0
        %v2226 = vadd.f32 %v780, %v2225
        %v2227 = vpop.f32.mrf.mxu0
        %v2228 = vadd.f32 %v784, %v2227
        %v2229 = vpop.f32.mrf.mxu0
        %v2230 = vadd.f32 %v780, %v2229
        %v2231 = vpop.f32.mrf.mxu0
        %v2232 = vadd.f32 %v784, %v2231
        %2233 = vmatprep.mubr.bf16.mxu0 0
        %2234 = vmatmul.mubr.bf16.gmra.mxu0 %v980
        %v2235 = vpop.f32.mrf.mxu0
        %v2236 = vadd.f32 %v780, %v2235
        %v2237 = vpop.f32.mrf.mxu0
        %v2238 = vadd.f32 %v784, %v2237
        %v2239 = vpop.f32.mrf.mxu0
        %v2240 = vadd.f32 %v780, %v2239
        %v2241 = vpop.f32.mrf.mxu0
        %v2242 = vadd.f32 %v784, %v2241
        %2243 = vmatprep.mubr.bf16.mxu0 0
        %2244 = vmatmul.mubr.bf16.gmra.mxu0 %v983
        %v2245 = vpop.f32.mrf.mxu0
        %v2246 = vadd.f32 %v780, %v2245
        %v2247 = vpop.f32.mrf.mxu0
        %v2248 = vadd.f32 %v784, %v2247
        %v2249 = vpop.f32.mrf.mxu0
        %v2250 = vadd.f32 %v780, %v2249
        %v2251 = vpop.f32.mrf.mxu0
        %v2252 = vadd.f32 %v784, %v2251
        %2253 = vmatprep.mubr.bf16.mxu0 0
        %2254 = vmatmul.mubr.bf16.gmra.mxu0 %v986
        %v2255 = vpop.f32.mrf.mxu0
        %v2256 = vadd.f32 %v780, %v2255
        %v2257 = vpop.f32.mrf.mxu0
        %v2258 = vadd.f32 %v784, %v2257
        %v2259 = vpop.f32.mrf.mxu0
        %v2260 = vadd.f32 %v780, %v2259
        %v2261 = vpop.f32.mrf.mxu0
        %v2262 = vadd.f32 %v784, %v2261
        %2263 = vmatprep.mubr.bf16.mxu0 0
        %2264 = vmatmul.mubr.bf16.gmra.mxu0 %v989
        %v2265 = vpop.f32.mrf.mxu0
        %v2266 = vadd.f32 %v780, %v2265
        %v2267 = vpop.f32.mrf.mxu0
        %v2268 = vadd.f32 %v784, %v2267
        %v2269 = vpop.f32.mrf.mxu0
        %v2270 = vadd.f32 %v780, %v2269
        %v2271 = vpop.f32.mrf.mxu0
        %v2272 = vadd.f32 %v784, %v2271
        %2273 = vmatprep.mubr.bf16.mxu0 0
        %2274 = vmatmul.mubr.bf16.gmra.mxu0 %v992
        %v2275 = vpop.f32.mrf.mxu0
        %v2276 = vadd.f32 %v780, %v2275
        %v2277 = vpop.f32.mrf.mxu0
        %v2278 = vadd.f32 %v784, %v2277
        %v2279 = vpop.f32.mrf.mxu0
        %v2280 = vadd.f32 %v780, %v2279
        %v2281 = vpop.f32.mrf.mxu0
        %v2282 = vadd.f32 %v784, %v2281
        %2283 = vmatprep.mubr.bf16.mxu0 0
        %2284 = vmatmul.mubr.bf16.gmra.mxu0 %v995
        %v2285 = vpop.f32.mrf.mxu0
        %v2286 = vadd.f32 %v780, %v2285
        %v2287 = vpop.f32.mrf.mxu0
        %v2288 = vadd.f32 %v784, %v2287
        %v2289 = vpop.f32.mrf.mxu0
        %v2290 = vadd.f32 %v780, %v2289
        %v2291 = vpop.f32.mrf.mxu0
        %v2292 = vadd.f32 %v784, %v2291
        %2293 = vmatprep.mubr.bf16.mxu0 0
        %2294 = vmatmul.mubr.bf16.gmra.mxu0 %v998
        %v2295 = vpop.f32.mrf.mxu0
        %v2296 = vadd.f32 %v780, %v2295
        %v2297 = vpop.f32.mrf.mxu0
        %v2298 = vadd.f32 %v784, %v2297
        %v2299 = vpop.f32.mrf.mxu0
        %v2300 = vadd.f32 %v780, %v2299
        %v2301 = vpop.f32.mrf.mxu0
        %v2302 = vadd.f32 %v784, %v2301
        %2303 = vdwg.mxu0
        %v2304 = vmax.f32 %v1035, 0.0
        %v2305 = vmax.f32 %v1037, 0.0
        %v2306 = vmax.f32 %v1198, 0.0
        %v2307 = vmax.f32 %v1200, 0.0
        %v2308 = vmax.f32 %v1361, 0.0
        %v2309 = vmax.f32 %v1363, 0.0
        %v2310 = vmax.f32 %v1524, 0.0
        %v2311 = vmax.f32 %v1526, 0.0
        %v2312 = vmax.f32 %v1687, 0.0
        %v2313 = vmax.f32 %v1689, 0.0
        %v2314 = vmax.f32 %v1850, 0.0
        %v2315 = vmax.f32 %v1852, 0.0
        %v2316 = vmax.f32 %v2013, 0.0
        %v2317 = vmax.f32 %v2015, 0.0
        %v2318 = vmax.f32 %v2176, 0.0
        %v2319 = vmax.f32 %v2178, 0.0
        %v2320 = vmax.f32 %v1039, 0.0
        %v2321 = vmax.f32 %v1041, 0.0
        %v2322 = vmax.f32 %v1202, 0.0
        %v2323 = vmax.f32 %v1204, 0.0
        %v2324 = vmax.f32 %v1365, 0.0
        %v2325 = vmax.f32 %v1367, 0.0
        %v2326 = vmax.f32 %v1528, 0.0
        %v2327 = vmax.f32 %v1530, 0.0
        %v2328 = vmax.f32 %v1691, 0.0
        %v2329 = vmax.f32 %v1693, 0.0
        %v2330 = vmax.f32 %v1854, 0.0
        %v2331 = vmax.f32 %v1856, 0.0
        %v2332 = vmax.f32 %v2017, 0.0
        %v2333 = vmax.f32 %v2019, 0.0
        %v2334 = vmax.f32 %v2180, 0.0
        %v2335 = vmax.f32 %v2182, 0.0
        %v2336 = vmax.f32 %v1045, 0.0
        %v2337 = vmax.f32 %v1047, 0.0
        %v2338 = vmax.f32 %v1208, 0.0
        %v2339 = vmax.f32 %v1210, 0.0
        %v2340 = vmax.f32 %v1371, 0.0
        %v2341 = vmax.f32 %v1373, 0.0
        %v2342 = vmax.f32 %v1534, 0.0
        %v2343 = vmax.f32 %v1536, 0.0
        %v2344 = vmax.f32 %v1697, 0.0
        %v2345 = vmax.f32 %v1699, 0.0
        %v2346 = vmax.f32 %v1860, 0.0
        %v2347 = vmax.f32 %v1862, 0.0
        %v2348 = vmax.f32 %v2023, 0.0
        %v2349 = vmax.f32 %v2025, 0.0
        %v2350 = vmax.f32 %v2186, 0.0
        %v2351 = vmax.f32 %v2188, 0.0
        %v2352 = vmax.f32 %v1049, 0.0
        %v2353 = vmax.f32 %v1051, 0.0
        %v2354 = vmax.f32 %v1212, 0.0
        %v2355 = vmax.f32 %v1214, 0.0
        %v2356 = vmax.f32 %v1375, 0.0
        %v2357 = vmax.f32 %v1377, 0.0
        %v2358 = vmax.f32 %v1538, 0.0
        %v2359 = vmax.f32 %v1540, 0.0
        %v2360 = vmax.f32 %v1701, 0.0
        %v2361 = vmax.f32 %v1703, 0.0
        %v2362 = vmax.f32 %v1864, 0.0
        %v2363 = vmax.f32 %v1866, 0.0
        %v2364 = vmax.f32 %v2027, 0.0
        %v2365 = vmax.f32 %v2029, 0.0
        %v2366 = vmax.f32 %v2190, 0.0
        %v2367 = vmax.f32 %v2192, 0.0
        %v2368 = vmax.f32 %v1055, 0.0
        %v2369 = vmax.f32 %v1057, 0.0
        %v2370 = vmax.f32 %v1218, 0.0
        %v2371 = vmax.f32 %v1220, 0.0
        %v2372 = vmax.f32 %v1381, 0.0
        %v2373 = vmax.f32 %v1383, 0.0
        %v2374 = vmax.f32 %v1544, 0.0
        %v2375 = vmax.f32 %v1546, 0.0
        %v2376 = vmax.f32 %v1707, 0.0
        %v2377 = vmax.f32 %v1709, 0.0
        %v2378 = vmax.f32 %v1870, 0.0
        %v2379 = vmax.f32 %v1872, 0.0
        %v2380 = vmax.f32 %v2033, 0.0
        %v2381 = vmax.f32 %v2035, 0.0
        %v2382 = vmax.f32 %v2196, 0.0
        %v2383 = vmax.f32 %v2198, 0.0
        %v2384 = vmax.f32 %v1059, 0.0
        %v2385 = vmax.f32 %v1061, 0.0
        %v2386 = vmax.f32 %v1222, 0.0
        %v2387 = vmax.f32 %v1224, 0.0
        %v2388 = vmax.f32 %v1385, 0.0
        %v2389 = vmax.f32 %v1387, 0.0
        %v2390 = vmax.f32 %v1548, 0.0
        %v2391 = vmax.f32 %v1550, 0.0
        %v2392 = vmax.f32 %v1711, 0.0
        %v2393 = vmax.f32 %v1713, 0.0
        %v2394 = vmax.f32 %v1874, 0.0
        %v2395 = vmax.f32 %v1876, 0.0
        %v2396 = vmax.f32 %v2037, 0.0
        %v2397 = vmax.f32 %v2039, 0.0
        %v2398 = vmax.f32 %v2200, 0.0
        %v2399 = vmax.f32 %v2202, 0.0
        %v2400 = vmax.f32 %v1065, 0.0
        %v2401 = vmax.f32 %v1067, 0.0
        %v2402 = vmax.f32 %v1228, 0.0
        %v2403 = vmax.f32 %v1230, 0.0
        %v2404 = vmax.f32 %v1391, 0.0
        %v2405 = vmax.f32 %v1393, 0.0
        %v2406 = vmax.f32 %v1554, 0.0
        %v2407 = vmax.f32 %v1556, 0.0
        %v2408 = vmax.f32 %v1717, 0.0
        %v2409 = vmax.f32 %v1719, 0.0
        %v2410 = vmax.f32 %v1880, 0.0
        %v2411 = vmax.f32 %v1882, 0.0
        %v2412 = vmax.f32 %v2043, 0.0
        %v2413 = vmax.f32 %v2045, 0.0
        %v2414 = vmax.f32 %v2206, 0.0
        %v2415 = vmax.f32 %v2208, 0.0
        %v2416 = vmax.f32 %v1069, 0.0
        %v2417 = vmax.f32 %v1071, 0.0
        %v2418 = vmax.f32 %v1232, 0.0
        %v2419 = vmax.f32 %v1234, 0.0
        %v2420 = vmax.f32 %v1395, 0.0
        %v2421 = vmax.f32 %v1397, 0.0
        %v2422 = vmax.f32 %v1558, 0.0
        %v2423 = vmax.f32 %v1560, 0.0
        %v2424 = vmax.f32 %v1721, 0.0
        %v2425 = vmax.f32 %v1723, 0.0
        %v2426 = vmax.f32 %v1884, 0.0
        %v2427 = vmax.f32 %v1886, 0.0
        %v2428 = vmax.f32 %v2047, 0.0
        %v2429 = vmax.f32 %v2049, 0.0
        %v2430 = vmax.f32 %v2210, 0.0
        %v2431 = vmax.f32 %v2212, 0.0
        %v2432 = vmax.f32 %v1075, 0.0
        %v2433 = vmax.f32 %v1077, 0.0
        %v2434 = vmax.f32 %v1238, 0.0
        %v2435 = vmax.f32 %v1240, 0.0
        %v2436 = vmax.f32 %v1401, 0.0
        %v2437 = vmax.f32 %v1403, 0.0
        %v2438 = vmax.f32 %v1564, 0.0
        %v2439 = vmax.f32 %v1566, 0.0
        %v2440 = vmax.f32 %v1727, 0.0
        %v2441 = vmax.f32 %v1729, 0.0
        %v2442 = vmax.f32 %v1890, 0.0
        %v2443 = vmax.f32 %v1892, 0.0
        %v2444 = vmax.f32 %v2053, 0.0
        %v2445 = vmax.f32 %v2055, 0.0
        %v2446 = vmax.f32 %v2216, 0.0
        %v2447 = vmax.f32 %v2218, 0.0
        %v2448 = vmax.f32 %v1079, 0.0
        %v2449 = vmax.f32 %v1081, 0.0
        %v2450 = vmax.f32 %v1242, 0.0
        %v2451 = vmax.f32 %v1244, 0.0
        %v2452 = vmax.f32 %v1405, 0.0
        %v2453 = vmax.f32 %v1407, 0.0
        %v2454 = vmax.f32 %v1568, 0.0
        %v2455 = vmax.f32 %v1570, 0.0
        %v2456 = vmax.f32 %v1731, 0.0
        %v2457 = vmax.f32 %v1733, 0.0
        %v2458 = vmax.f32 %v1894, 0.0
        %v2459 = vmax.f32 %v1896, 0.0
        %v2460 = vmax.f32 %v2057, 0.0
        %v2461 = vmax.f32 %v2059, 0.0
        %v2462 = vmax.f32 %v2220, 0.0
        %v2463 = vmax.f32 %v2222, 0.0
        %v2464 = vmax.f32 %v1085, 0.0
        %v2465 = vmax.f32 %v1087, 0.0
        %v2466 = vmax.f32 %v1248, 0.0
        %v2467 = vmax.f32 %v1250, 0.0
        %v2468 = vmax.f32 %v1411, 0.0
        %v2469 = vmax.f32 %v1413, 0.0
        %v2470 = vmax.f32 %v1574, 0.0
        %v2471 = vmax.f32 %v1576, 0.0
        %v2472 = vmax.f32 %v1737, 0.0
        %v2473 = vmax.f32 %v1739, 0.0
        %v2474 = vmax.f32 %v1900, 0.0
        %v2475 = vmax.f32 %v1902, 0.0
        %v2476 = vmax.f32 %v2063, 0.0
        %v2477 = vmax.f32 %v2065, 0.0
        %v2478 = vmax.f32 %v2226, 0.0
        %v2479 = vmax.f32 %v2228, 0.0
        %v2480 = vmax.f32 %v1089, 0.0
        %v2481 = vmax.f32 %v1091, 0.0
        %v2482 = vmax.f32 %v1252, 0.0
        %v2483 = vmax.f32 %v1254, 0.0
        %v2484 = vmax.f32 %v1415, 0.0
        %v2485 = vmax.f32 %v1417, 0.0
        %v2486 = vmax.f32 %v1578, 0.0
        %v2487 = vmax.f32 %v1580, 0.0
        %v2488 = vmax.f32 %v1741, 0.0
        %v2489 = vmax.f32 %v1743, 0.0
        %v2490 = vmax.f32 %v1904, 0.0
        %v2491 = vmax.f32 %v1906, 0.0
        %v2492 = vmax.f32 %v2067, 0.0
        %v2493 = vmax.f32 %v2069, 0.0
        %v2494 = vmax.f32 %v2230, 0.0
        %v2495 = vmax.f32 %v2232, 0.0
        %v2496 = vmax.f32 %v1095, 0.0
        %v2497 = vmax.f32 %v1097, 0.0
        %v2498 = vmax.f32 %v1258, 0.0
        %v2499 = vmax.f32 %v1260, 0.0
        %v2500 = vmax.f32 %v1421, 0.0
        %v2501 = vmax.f32 %v1423, 0.0
        %v2502 = vmax.f32 %v1584, 0.0
        %v2503 = vmax.f32 %v1586, 0.0
        %v2504 = vmax.f32 %v1747, 0.0
        %v2505 = vmax.f32 %v1749, 0.0
        %v2506 = vmax.f32 %v1910, 0.0
        %v2507 = vmax.f32 %v1912, 0.0
        %v2508 = vmax.f32 %v2073, 0.0
        %v2509 = vmax.f32 %v2075, 0.0
        %v2510 = vmax.f32 %v2236, 0.0
        %v2511 = vmax.f32 %v2238, 0.0
        %v2512 = vmax.f32 %v1099, 0.0
        %v2513 = vmax.f32 %v1101, 0.0
        %v2514 = vmax.f32 %v1262, 0.0
        %v2515 = vmax.f32 %v1264, 0.0
        %v2516 = vmax.f32 %v1425, 0.0
        %v2517 = vmax.f32 %v1427, 0.0
        %v2518 = vmax.f32 %v1588, 0.0
        %v2519 = vmax.f32 %v1590, 0.0
        %v2520 = vmax.f32 %v1751, 0.0
        %v2521 = vmax.f32 %v1753, 0.0
        %v2522 = vmax.f32 %v1914, 0.0
        %v2523 = vmax.f32 %v1916, 0.0
        %v2524 = vmax.f32 %v2077, 0.0
        %v2525 = vmax.f32 %v2079, 0.0
        %v2526 = vmax.f32 %v2240, 0.0
        %v2527 = vmax.f32 %v2242, 0.0
        %v2528 = vmax.f32 %v1105, 0.0
        %v2529 = vmax.f32 %v1107, 0.0
        %v2530 = vmax.f32 %v1268, 0.0
        %v2531 = vmax.f32 %v1270, 0.0
        %v2532 = vmax.f32 %v1431, 0.0
        %v2533 = vmax.f32 %v1433, 0.0
        %v2534 = vmax.f32 %v1594, 0.0
        %v2535 = vmax.f32 %v1596, 0.0
        %v2536 = vmax.f32 %v1757, 0.0
        %v2537 = vmax.f32 %v1759, 0.0
        %v2538 = vmax.f32 %v1920, 0.0
        %v2539 = vmax.f32 %v1922, 0.0
        %v2540 = vmax.f32 %v2083, 0.0
        %v2541 = vmax.f32 %v2085, 0.0
        %v2542 = vmax.f32 %v2246, 0.0
        %v2543 = vmax.f32 %v2248, 0.0
        %v2544 = vmax.f32 %v1109, 0.0
        %v2545 = vmax.f32 %v1111, 0.0
        %v2546 = vmax.f32 %v1272, 0.0
        %v2547 = vmax.f32 %v1274, 0.0
        %v2548 = vmax.f32 %v1435, 0.0
        %v2549 = vmax.f32 %v1437, 0.0
        %v2550 = vmax.f32 %v1598, 0.0
        %v2551 = vmax.f32 %v1600, 0.0
        %v2552 = vmax.f32 %v1761, 0.0
        %v2553 = vmax.f32 %v1763, 0.0
        %v2554 = vmax.f32 %v1924, 0.0
        %v2555 = vmax.f32 %v1926, 0.0
        %v2556 = vmax.f32 %v2087, 0.0
        %v2557 = vmax.f32 %v2089, 0.0
        %v2558 = vmax.f32 %v2250, 0.0
        %v2559 = vmax.f32 %v2252, 0.0
        %v2560 = vmax.f32 %v1115, 0.0
        %v2561 = vmax.f32 %v1117, 0.0
        %v2562 = vmax.f32 %v1278, 0.0
        %v2563 = vmax.f32 %v1280, 0.0
        %v2564 = vmax.f32 %v1441, 0.0
        %v2565 = vmax.f32 %v1443, 0.0
        %v2566 = vmax.f32 %v1604, 0.0
        %v2567 = vmax.f32 %v1606, 0.0
        %v2568 = vmax.f32 %v1767, 0.0
        %v2569 = vmax.f32 %v1769, 0.0
        %v2570 = vmax.f32 %v1930, 0.0
        %v2571 = vmax.f32 %v1932, 0.0
        %v2572 = vmax.f32 %v2093, 0.0
        %v2573 = vmax.f32 %v2095, 0.0
        %v2574 = vmax.f32 %v2256, 0.0
        %v2575 = vmax.f32 %v2258, 0.0
        %v2576 = vmax.f32 %v1119, 0.0
        %v2577 = vmax.f32 %v1121, 0.0
        %v2578 = vmax.f32 %v1282, 0.0
        %v2579 = vmax.f32 %v1284, 0.0
        %v2580 = vmax.f32 %v1445, 0.0
        %v2581 = vmax.f32 %v1447, 0.0
        %v2582 = vmax.f32 %v1608, 0.0
        %v2583 = vmax.f32 %v1610, 0.0
        %v2584 = vmax.f32 %v1771, 0.0
        %v2585 = vmax.f32 %v1773, 0.0
        %v2586 = vmax.f32 %v1934, 0.0
        %v2587 = vmax.f32 %v1936, 0.0
        %v2588 = vmax.f32 %v2097, 0.0
        %v2589 = vmax.f32 %v2099, 0.0
        %v2590 = vmax.f32 %v2260, 0.0
        %v2591 = vmax.f32 %v2262, 0.0
        %v2592 = vmax.f32 %v1125, 0.0
        %v2593 = vmax.f32 %v1127, 0.0
        %v2594 = vmax.f32 %v1288, 0.0
        %v2595 = vmax.f32 %v1290, 0.0
        %v2596 = vmax.f32 %v1451, 0.0
        %v2597 = vmax.f32 %v1453, 0.0
        %v2598 = vmax.f32 %v1614, 0.0
        %v2599 = vmax.f32 %v1616, 0.0
        %v2600 = vmax.f32 %v1777, 0.0
        %v2601 = vmax.f32 %v1779, 0.0
        %v2602 = vmax.f32 %v1940, 0.0
        %v2603 = vmax.f32 %v1942, 0.0
        %v2604 = vmax.f32 %v2103, 0.0
        %v2605 = vmax.f32 %v2105, 0.0
        %v2606 = vmax.f32 %v2266, 0.0
        %v2607 = vmax.f32 %v2268, 0.0
        %v2608 = vmax.f32 %v1129, 0.0
        %v2609 = vmax.f32 %v1131, 0.0
        %v2610 = vmax.f32 %v1292, 0.0
        %v2611 = vmax.f32 %v1294, 0.0
        %v2612 = vmax.f32 %v1455, 0.0
        %v2613 = vmax.f32 %v1457, 0.0
        %v2614 = vmax.f32 %v1618, 0.0
        %v2615 = vmax.f32 %v1620, 0.0
        %v2616 = vmax.f32 %v1781, 0.0
        %v2617 = vmax.f32 %v1783, 0.0
        %v2618 = vmax.f32 %v1944, 0.0
        %v2619 = vmax.f32 %v1946, 0.0
        %v2620 = vmax.f32 %v2107, 0.0
        %v2621 = vmax.f32 %v2109, 0.0
        %v2622 = vmax.f32 %v2270, 0.0
        %v2623 = vmax.f32 %v2272, 0.0
        %v2624 = vmax.f32 %v1135, 0.0
        %v2625 = vmax.f32 %v1137, 0.0
        %v2626 = vmax.f32 %v1298, 0.0
        %v2627 = vmax.f32 %v1300, 0.0
        %v2628 = vmax.f32 %v1461, 0.0
        %v2629 = vmax.f32 %v1463, 0.0
        %v2630 = vmax.f32 %v1624, 0.0
        %v2631 = vmax.f32 %v1626, 0.0
        %v2632 = vmax.f32 %v1787, 0.0
        %v2633 = vmax.f32 %v1789, 0.0
        %v2634 = vmax.f32 %v1950, 0.0
        %v2635 = vmax.f32 %v1952, 0.0
        %v2636 = vmax.f32 %v2113, 0.0
        %v2637 = vmax.f32 %v2115, 0.0
        %v2638 = vmax.f32 %v2276, 0.0
        %v2639 = vmax.f32 %v2278, 0.0
        %v2640 = vmax.f32 %v1139, 0.0
        %v2641 = vmax.f32 %v1141, 0.0
        %v2642 = vmax.f32 %v1302, 0.0
        %v2643 = vmax.f32 %v1304, 0.0
        %v2644 = vmax.f32 %v1465, 0.0
        %v2645 = vmax.f32 %v1467, 0.0
        %v2646 = vmax.f32 %v1628, 0.0
        %v2647 = vmax.f32 %v1630, 0.0
        %v2648 = vmax.f32 %v1791, 0.0
        %v2649 = vmax.f32 %v1793, 0.0
        %v2650 = vmax.f32 %v1954, 0.0
        %v2651 = vmax.f32 %v1956, 0.0
        %v2652 = vmax.f32 %v2117, 0.0
        %v2653 = vmax.f32 %v2119, 0.0
        %v2654 = vmax.f32 %v2280, 0.0
        %v2655 = vmax.f32 %v2282, 0.0
        %v2656 = vmax.f32 %v1145, 0.0
        %v2657 = vmax.f32 %v1147, 0.0
        %v2658 = vmax.f32 %v1308, 0.0
        %v2659 = vmax.f32 %v1310, 0.0
        %v2660 = vmax.f32 %v1471, 0.0
        %v2661 = vmax.f32 %v1473, 0.0
        %v2662 = vmax.f32 %v1634, 0.0
        %v2663 = vmax.f32 %v1636, 0.0
        %v2664 = vmax.f32 %v1797, 0.0
        %v2665 = vmax.f32 %v1799, 0.0
        %v2666 = vmax.f32 %v1960, 0.0
        %v2667 = vmax.f32 %v1962, 0.0
        %v2668 = vmax.f32 %v2123, 0.0
        %v2669 = vmax.f32 %v2125, 0.0
        %v2670 = vmax.f32 %v2286, 0.0
        %v2671 = vmax.f32 %v2288, 0.0
        %v2672 = vmax.f32 %v1149, 0.0
        %v2673 = vmax.f32 %v1151, 0.0
        %v2674 = vmax.f32 %v1312, 0.0
        %v2675 = vmax.f32 %v1314, 0.0
        %v2676 = vmax.f32 %v1475, 0.0
        %v2677 = vmax.f32 %v1477, 0.0
        %v2678 = vmax.f32 %v1638, 0.0
        %v2679 = vmax.f32 %v1640, 0.0
        %v2680 = vmax.f32 %v1801, 0.0
        %v2681 = vmax.f32 %v1803, 0.0
        %v2682 = vmax.f32 %v1964, 0.0
        %v2683 = vmax.f32 %v1966, 0.0
        %v2684 = vmax.f32 %v2127, 0.0
        %v2685 = vmax.f32 %v2129, 0.0
        %v2686 = vmax.f32 %v2290, 0.0
        %v2687 = vmax.f32 %v2292, 0.0
        %v2688 = vmax.f32 %v1155, 0.0
        %v2689 = vmax.f32 %v1157, 0.0
        %v2690 = vmax.f32 %v1318, 0.0
        %v2691 = vmax.f32 %v1320, 0.0
        %v2692 = vmax.f32 %v1481, 0.0
        %v2693 = vmax.f32 %v1483, 0.0
        %v2694 = vmax.f32 %v1644, 0.0
        %v2695 = vmax.f32 %v1646, 0.0
        %v2696 = vmax.f32 %v1807, 0.0
        %v2697 = vmax.f32 %v1809, 0.0
        %v2698 = vmax.f32 %v1970, 0.0
        %v2699 = vmax.f32 %v1972, 0.0
        %v2700 = vmax.f32 %v2133, 0.0
        %v2701 = vmax.f32 %v2135, 0.0
        %v2702 = vmax.f32 %v2296, 0.0
        %v2703 = vmax.f32 %v2298, 0.0
        %v2704 = vmax.f32 %v1159, 0.0
        %v2705 = vmax.f32 %v1161, 0.0
        %v2706 = vmax.f32 %v1322, 0.0
        %v2707 = vmax.f32 %v1324, 0.0
        %v2708 = vmax.f32 %v1485, 0.0
        %v2709 = vmax.f32 %v1487, 0.0
        %v2710 = vmax.f32 %v1648, 0.0
        %v2711 = vmax.f32 %v1650, 0.0
        %v2712 = vmax.f32 %v1811, 0.0
        %v2713 = vmax.f32 %v1813, 0.0
        %v2714 = vmax.f32 %v1974, 0.0
        %v2715 = vmax.f32 %v1976, 0.0
        %v2716 = vmax.f32 %v2137, 0.0
        %v2717 = vmax.f32 %v2139, 0.0
        %v2718 = vmax.f32 %v2300, 0.0
        %v2719 = vmax.f32 %v2302, 0.0
        %vm2720 = vcmask 654336
        %v2722 = vsel %vm2720, %v669, 0
        %2724 = vmatprep.subr.mxu0 %v2545
        %2725 = vmatpush1.msra.mxu0 %v2544
        %2726 = vmatprep.subr.mxu0 %v2529
        %2727 = vmatpush1.msra.mxu0 %v2528
        %2728 = vmatprep.subr.mxu0 %v2513
        %2729 = vmatpush1.msra.mxu0 %v2512
        %2730 = vmatprep.subr.mxu0 %v2497
        %2731 = vmatpush1.msra.mxu0 %v2496
        %2732 = vmatprep.subr.mxu0 %v2481
        %2733 = vmatpush1.msra.mxu0 %v2480
        %2734 = vmatprep.subr.mxu0 %v2465
        %2735 = vmatpush1.msra.mxu0 %v2464
        %2736 = vmatprep.subr.mxu0 %v2449
        %2737 = vmatpush1.msra.mxu0 %v2448
        %2738 = vmatprep.subr.mxu0 %v2433
        %2739 = vmatpush1.msra.mxu0 %v2432
        %2740 = vmatprep.subr.mxu0 %v2417
        %2741 = vmatpush1.msra.mxu0 %v2416
        %2742 = vmatprep.subr.mxu0 %v2401
        %2743 = vmatpush1.msra.mxu0 %v2400
        %2744 = vmatprep.subr.mxu0 %v2385
        %2745 = vmatpush1.msra.mxu0 %v2384
        %2746 = vmatprep.subr.mxu0 %v2369
        %2747 = vmatpush1.msra.mxu0 %v2368
        %2748 = vmatprep.subr.mxu0 %v2353
        %2749 = vmatpush1.msra.mxu0 %v2352
        %2750 = vmatprep.subr.mxu0 %v2337
        %2751 = vmatpush1.msra.mxu0 %v2336
        %2752 = vmatprep.subr.mxu0 %v2321
        %2753 = vmatpush1.msra.mxu0 %v2320
        %2754 = vmatprep.subr.mxu0 %v2305
        %2755 = vmatpush1.msra.mxu0 %v2304
        %2756 = vmatprep.subr.mxu0 0.0
        %2757 = vmatpush2.msra.mxu0 0.0
        %2758 = vmatprep.subr.mxu0 0.0
        %2759 = vmatpush2.msra.mxu0 0.0
        %2760 = vmatprep.subr.mxu0 0.0
        %2761 = vmatpush2.msra.mxu0 0.0
        %2762 = vmatprep.subr.mxu0 0.0
        %2763 = vmatpush2.msra.mxu0 0.0
        %2764 = vmatprep.subr.mxu0 0.0
        %2765 = vmatpush2.msra.mxu0 0.0
        %2766 = vmatprep.subr.mxu0 0.0
        %2767 = vmatpush2.msra.mxu0 0.0
        %2768 = vmatprep.subr.mxu0 %v2705
        %2769 = vmatpush2.msra.mxu0 %v2704
        %2770 = vmatprep.subr.mxu0 %v2689
        %2771 = vmatpush2.msra.mxu0 %v2688
        %2772 = vmatprep.subr.mxu0 %v2673
        %2773 = vmatpush2.msra.mxu0 %v2672
        %2774 = vmatprep.subr.mxu0 %v2657
        %2775 = vmatpush2.msra.mxu0 %v2656
        %2776 = vmatprep.subr.mxu0 %v2641
        %2777 = vmatpush2.msra.mxu0 %v2640
        %2778 = vmatprep.subr.mxu0 %v2625
        %2779 = vmatpush2.msra.mxu0 %v2624
        %2780 = vmatprep.subr.mxu0 %v2609
        %2781 = vmatpush2.msra.mxu0 %v2608
        %2782 = vmatprep.subr.mxu0 %v2593
        %2783 = vmatpush2.msra.mxu0 %v2592
        %2784 = vmatprep.subr.mxu0 %v2577
        %2785 = vmatpush2.msra.mxu0 %v2576
        %2786 = vmatprep.subr.mxu0 %v2561
        %2787 = vmatpush2.msra.mxu0 %v2560
        %2788 = vmatprep.mubr.f32.mxu0 %v2722
        %2789 = vmatmul.mubr.f32.gmra.mxu0 %v668
        %v2790 = vpop.f32.mrf.mxu0
        %v2791 = vadd.f32 0.0, %v2790
        %v2792 = vpop.f32.mrf.mxu0
        %v2793 = vadd.f32 0.0, %v2792
        %2794 = vdwg.mxu0
        %2795 = vmatprep.subr.mxu0 %v2547
        %2796 = vmatpush1.msra.mxu0 %v2546
        %2797 = vmatprep.subr.mxu0 %v2531
        %2798 = vmatpush1.msra.mxu0 %v2530
        %2799 = vmatprep.subr.mxu0 %v2515
        %2800 = vmatpush1.msra.mxu0 %v2514
        %2801 = vmatprep.subr.mxu0 %v2499
        %2802 = vmatpush1.msra.mxu0 %v2498
        %2803 = vmatprep.subr.mxu0 %v2483
        %2804 = vmatpush1.msra.mxu0 %v2482
        %2805 = vmatprep.subr.mxu0 %v2467
        %2806 = vmatpush1.msra.mxu0 %v2466
        %2807 = vmatprep.subr.mxu0 %v2451
        %2808 = vmatpush1.msra.mxu0 %v2450
        %2809 = vmatprep.subr.mxu0 %v2435
        %2810 = vmatpush1.msra.mxu0 %v2434
        %2811 = vmatprep.subr.mxu0 %v2419
        %2812 = vmatpush1.msra.mxu0 %v2418
        %2813 = vmatprep.subr.mxu0 %v2403
        %2814 = vmatpush1.msra.mxu0 %v2402
        %2815 = vmatprep.subr.mxu0 %v2387
        %2816 = vmatpush1.msra.mxu0 %v2386
        %2817 = vmatprep.subr.mxu0 %v2371
        %2818 = vmatpush1.msra.mxu0 %v2370
        %2819 = vmatprep.subr.mxu0 %v2355
        %2820 = vmatpush1.msra.mxu0 %v2354
        %2821 = vmatprep.subr.mxu0 %v2339
        %2822 = vmatpush1.msra.mxu0 %v2338
        %2823 = vmatprep.subr.mxu0 %v2323
        %2824 = vmatpush1.msra.mxu0 %v2322
        %2825 = vmatprep.subr.mxu0 %v2307
        %2826 = vmatpush1.msra.mxu0 %v2306
        %2827 = vmatprep.subr.mxu0 0.0
        %2828 = vmatpush2.msra.mxu0 0.0
        %2829 = vmatprep.subr.mxu0 0.0
        %2830 = vmatpush2.msra.mxu0 0.0
        %2831 = vmatprep.subr.mxu0 0.0
        %2832 = vmatpush2.msra.mxu0 0.0
        %2833 = vmatprep.subr.mxu0 0.0
        %2834 = vmatpush2.msra.mxu0 0.0
        %2835 = vmatprep.subr.mxu0 0.0
        %2836 = vmatpush2.msra.mxu0 0.0
        %2837 = vmatprep.subr.mxu0 0.0
        %2838 = vmatpush2.msra.mxu0 0.0
        %2839 = vmatprep.subr.mxu0 %v2707
        %2840 = vmatpush2.msra.mxu0 %v2706
        %2841 = vmatprep.subr.mxu0 %v2691
        %2842 = vmatpush2.msra.mxu0 %v2690
        %2843 = vmatprep.subr.mxu0 %v2675
        %2844 = vmatpush2.msra.mxu0 %v2674
        %2845 = vmatprep.subr.mxu0 %v2659
        %2846 = vmatpush2.msra.mxu0 %v2658
        %2847 = vmatprep.subr.mxu0 %v2643
        %2848 = vmatpush2.msra.mxu0 %v2642
        %2849 = vmatprep.subr.mxu0 %v2627
        %2850 = vmatpush2.msra.mxu0 %v2626
        %2851 = vmatprep.subr.mxu0 %v2611
        %2852 = vmatpush2.msra.mxu0 %v2610
        %2853 = vmatprep.subr.mxu0 %v2595
        %2854 = vmatpush2.msra.mxu0 %v2594
        %2855 = vmatprep.subr.mxu0 %v2579
        %2856 = vmatpush2.msra.mxu0 %v2578
        %2857 = vmatprep.subr.mxu0 %v2563
        %2858 = vmatpush2.msra.mxu0 %v2562
        %2859 = vmatprep.mubr.f32.mxu0 %v2722
        %2860 = vmatmul.mubr.f32.gmra.mxu0 %v668
        %v2861 = vpop.f32.mrf.mxu0
        %v2862 = vadd.f32 0.0, %v2861
        %v2863 = vpop.f32.mrf.mxu0
        %v2864 = vadd.f32 0.0, %v2863
        %2865 = vdwg.mxu0
        %2866 = vmatprep.subr.mxu0 %v2549
        %2867 = vmatpush1.msra.mxu0 %v2548
        %2868 = vmatprep.subr.mxu0 %v2533
        %2869 = vmatpush1.msra.mxu0 %v2532
        %2870 = vmatprep.subr.mxu0 %v2517
        %2871 = vmatpush1.msra.mxu0 %v2516
        %2872 = vmatprep.subr.mxu0 %v2501
        %2873 = vmatpush1.msra.mxu0 %v2500
        %2874 = vmatprep.subr.mxu0 %v2485
        %2875 = vmatpush1.msra.mxu0 %v2484
        %2876 = vmatprep.subr.mxu0 %v2469
        %2877 = vmatpush1.msra.mxu0 %v2468
        %2878 = vmatprep.subr.mxu0 %v2453
        %2879 = vmatpush1.msra.mxu0 %v2452
        %2880 = vmatprep.subr.mxu0 %v2437
        %2881 = vmatpush1.msra.mxu0 %v2436
        %2882 = vmatprep.subr.mxu0 %v2421
        %2883 = vmatpush1.msra.mxu0 %v2420
        %2884 = vmatprep.subr.mxu0 %v2405
        %2885 = vmatpush1.msra.mxu0 %v2404
        %2886 = vmatprep.subr.mxu0 %v2389
        %2887 = vmatpush1.msra.mxu0 %v2388
        %2888 = vmatprep.subr.mxu0 %v2373
        %2889 = vmatpush1.msra.mxu0 %v2372
        %2890 = vmatprep.subr.mxu0 %v2357
        %2891 = vmatpush1.msra.mxu0 %v2356
        %2892 = vmatprep.subr.mxu0 %v2341
        %2893 = vmatpush1.msra.mxu0 %v2340
        %2894 = vmatprep.subr.mxu0 %v2325
        %2895 = vmatpush1.msra.mxu0 %v2324
        %2896 = vmatprep.subr.mxu0 %v2309
        %2897 = vmatpush1.msra.mxu0 %v2308
        %2898 = vmatprep.subr.mxu0 0.0
        %2899 = vmatpush2.msra.mxu0 0.0
        %2900 = vmatprep.subr.mxu0 0.0
        %2901 = vmatpush2.msra.mxu0 0.0
        %2902 = vmatprep.subr.mxu0 0.0
        %2903 = vmatpush2.msra.mxu0 0.0
        %2904 = vmatprep.subr.mxu0 0.0
        %2905 = vmatpush2.msra.mxu0 0.0
        %2906 = vmatprep.subr.mxu0 0.0
        %2907 = vmatpush2.msra.mxu0 0.0
        %2908 = vmatprep.subr.mxu0 0.0
        %2909 = vmatpush2.msra.mxu0 0.0
        %2910 = vmatprep.subr.mxu0 %v2709
        %2911 = vmatpush2.msra.mxu0 %v2708
        %2912 = vmatprep.subr.mxu0 %v2693
        %2913 = vmatpush2.msra.mxu0 %v2692
        %2914 = vmatprep.subr.mxu0 %v2677
        %2915 = vmatpush2.msra.mxu0 %v2676
        %2916 = vmatprep.subr.mxu0 %v2661
        %2917 = vmatpush2.msra.mxu0 %v2660
        %2918 = vmatprep.subr.mxu0 %v2645
        %2919 = vmatpush2.msra.mxu0 %v2644
        %2920 = vmatprep.subr.mxu0 %v2629
        %2921 = vmatpush2.msra.mxu0 %v2628
        %2922 = vmatprep.subr.mxu0 %v2613
        %2923 = vmatpush2.msra.mxu0 %v2612
        %2924 = vmatprep.subr.mxu0 %v2597
        %2925 = vmatpush2.msra.mxu0 %v2596
        %2926 = vmatprep.subr.mxu0 %v2581
        %2927 = vmatpush2.msra.mxu0 %v2580
        %2928 = vmatprep.subr.mxu0 %v2565
        %2929 = vmatpush2.msra.mxu0 %v2564
        %2930 = vmatprep.mubr.f32.mxu0 %v2722
        %2931 = vmatmul.mubr.f32.gmra.mxu0 %v668
        %v2932 = vpop.f32.mrf.mxu0
        %v2933 = vadd.f32 0.0, %v2932
        %v2934 = vpop.f32.mrf.mxu0
        %v2935 = vadd.f32 0.0, %v2934
        %2936 = vdwg.mxu0
        %2937 = vmatprep.subr.mxu0 %v2551
        %2938 = vmatpush1.msra.mxu0 %v2550
        %2939 = vmatprep.subr.mxu0 %v2535
        %2940 = vmatpush1.msra.mxu0 %v2534
        %2941 = vmatprep.subr.mxu0 %v2519
        %2942 = vmatpush1.msra.mxu0 %v2518
        %2943 = vmatprep.subr.mxu0 %v2503
        %2944 = vmatpush1.msra.mxu0 %v2502
        %2945 = vmatprep.subr.mxu0 %v2487
        %2946 = vmatpush1.msra.mxu0 %v2486
        %2947 = vmatprep.subr.mxu0 %v2471
        %2948 = vmatpush1.msra.mxu0 %v2470
        %2949 = vmatprep.subr.mxu0 %v2455
        %2950 = vmatpush1.msra.mxu0 %v2454
        %2951 = vmatprep.subr.mxu0 %v2439
        %2952 = vmatpush1.msra.mxu0 %v2438
        %2953 = vmatprep.subr.mxu0 %v2423
        %2954 = vmatpush1.msra.mxu0 %v2422
        %2955 = vmatprep.subr.mxu0 %v2407
        %2956 = vmatpush1.msra.mxu0 %v2406
        %2957 = vmatprep.subr.mxu0 %v2391
        %2958 = vmatpush1.msra.mxu0 %v2390
        %2959 = vmatprep.subr.mxu0 %v2375
        %2960 = vmatpush1.msra.mxu0 %v2374
        %2961 = vmatprep.subr.mxu0 %v2359
        %2962 = vmatpush1.msra.mxu0 %v2358
        %2963 = vmatprep.subr.mxu0 %v2343
        %2964 = vmatpush1.msra.mxu0 %v2342
        %2965 = vmatprep.subr.mxu0 %v2327
        %2966 = vmatpush1.msra.mxu0 %v2326
        %2967 = vmatprep.subr.mxu0 %v2311
        %2968 = vmatpush1.msra.mxu0 %v2310
        %2969 = vmatprep.subr.mxu0 0.0
        %2970 = vmatpush2.msra.mxu0 0.0
        %2971 = vmatprep.subr.mxu0 0.0
        %2972 = vmatpush2.msra.mxu0 0.0
        %2973 = vmatprep.subr.mxu0 0.0
        %2974 = vmatpush2.msra.mxu0 0.0
        %2975 = vmatprep.subr.mxu0 0.0
        %2976 = vmatpush2.msra.mxu0 0.0
        %2977 = vmatprep.subr.mxu0 0.0
        %2978 = vmatpush2.msra.mxu0 0.0
        %2979 = vmatprep.subr.mxu0 0.0
        %2980 = vmatpush2.msra.mxu0 0.0
        %2981 = vmatprep.subr.mxu0 %v2711
        %2982 = vmatpush2.msra.mxu0 %v2710
        %2983 = vmatprep.subr.mxu0 %v2695
        %2984 = vmatpush2.msra.mxu0 %v2694
        %2985 = vmatprep.subr.mxu0 %v2679
        %2986 = vmatpush2.msra.mxu0 %v2678
        %2987 = vmatprep.subr.mxu0 %v2663
        %2988 = vmatpush2.msra.mxu0 %v2662
        %2989 = vmatprep.subr.mxu0 %v2647
        %2990 = vmatpush2.msra.mxu0 %v2646
        %2991 = vmatprep.subr.mxu0 %v2631
        %2992 = vmatpush2.msra.mxu0 %v2630
        %2993 = vmatprep.subr.mxu0 %v2615
        %2994 = vmatpush2.msra.mxu0 %v2614
        %2995 = vmatprep.subr.mxu0 %v2599
        %2996 = vmatpush2.msra.mxu0 %v2598
        %2997 = vmatprep.subr.mxu0 %v2583
        %2998 = vmatpush2.msra.mxu0 %v2582
        %2999 = vmatprep.subr.mxu0 %v2567
        %3000 = vmatpush2.msra.mxu0 %v2566
        %3001 = vmatprep.mubr.f32.mxu0 %v2722
        %3002 = vmatmul.mubr.f32.gmra.mxu0 %v668
        %v3003 = vpop.f32.mrf.mxu0
        %v3004 = vadd.f32 0.0, %v3003
        %v3005 = vpop.f32.mrf.mxu0
        %v3006 = vadd.f32 0.0, %v3005
        %3007 = vdwg.mxu0
        %3008 = vmatprep.subr.mxu0 %v2553
        %3009 = vmatpush1.msra.mxu0 %v2552
        %3010 = vmatprep.subr.mxu0 %v2537
        %3011 = vmatpush1.msra.mxu0 %v2536
        %3012 = vmatprep.subr.mxu0 %v2521
        %3013 = vmatpush1.msra.mxu0 %v2520
        %3014 = vmatprep.subr.mxu0 %v2505
        %3015 = vmatpush1.msra.mxu0 %v2504
        %3016 = vmatprep.subr.mxu0 %v2489
        %3017 = vmatpush1.msra.mxu0 %v2488
        %3018 = vmatprep.subr.mxu0 %v2473
        %3019 = vmatpush1.msra.mxu0 %v2472
        %3020 = vmatprep.subr.mxu0 %v2457
        %3021 = vmatpush1.msra.mxu0 %v2456
        %3022 = vmatprep.subr.mxu0 %v2441
        %3023 = vmatpush1.msra.mxu0 %v2440
        %3024 = vmatprep.subr.mxu0 %v2425
        %3025 = vmatpush1.msra.mxu0 %v2424
        %3026 = vmatprep.subr.mxu0 %v2409
        %3027 = vmatpush1.msra.mxu0 %v2408
        %3028 = vmatprep.subr.mxu0 %v2393
        %3029 = vmatpush1.msra.mxu0 %v2392
        %3030 = vmatprep.subr.mxu0 %v2377
        %3031 = vmatpush1.msra.mxu0 %v2376
        %3032 = vmatprep.subr.mxu0 %v2361
        %3033 = vmatpush1.msra.mxu0 %v2360
        %3034 = vmatprep.subr.mxu0 %v2345
        %3035 = vmatpush1.msra.mxu0 %v2344
        %3036 = vmatprep.subr.mxu0 %v2329
        %3037 = vmatpush1.msra.mxu0 %v2328
        %3038 = vmatprep.subr.mxu0 %v2313
        %3039 = vmatpush1.msra.mxu0 %v2312
        %3040 = vmatprep.subr.mxu0 0.0
        %3041 = vmatpush2.msra.mxu0 0.0
        %3042 = vmatprep.subr.mxu0 0.0
        %3043 = vmatpush2.msra.mxu0 0.0
        %3044 = vmatprep.subr.mxu0 0.0
        %3045 = vmatpush2.msra.mxu0 0.0
        %3046 = vmatprep.subr.mxu0 0.0
        %3047 = vmatpush2.msra.mxu0 0.0
        %3048 = vmatprep.subr.mxu0 0.0
        %3049 = vmatpush2.msra.mxu0 0.0
        %3050 = vmatprep.subr.mxu0 0.0
        %3051 = vmatpush2.msra.mxu0 0.0
        %3052 = vmatprep.subr.mxu0 %v2713
        %3053 = vmatpush2.msra.mxu0 %v2712
        %3054 = vmatprep.subr.mxu0 %v2697
        %3055 = vmatpush2.msra.mxu0 %v2696
        %3056 = vmatprep.subr.mxu0 %v2681
        %3057 = vmatpush2.msra.mxu0 %v2680
        %3058 = vmatprep.subr.mxu0 %v2665
        %3059 = vmatpush2.msra.mxu0 %v2664
        %3060 = vmatprep.subr.mxu0 %v2649
        %3061 = vmatpush2.msra.mxu0 %v2648
        %3062 = vmatprep.subr.mxu0 %v2633
        %3063 = vmatpush2.msra.mxu0 %v2632
        %3064 = vmatprep.subr.mxu0 %v2617
        %3065 = vmatpush2.msra.mxu0 %v2616
        %3066 = vmatprep.subr.mxu0 %v2601
        %3067 = vmatpush2.msra.mxu0 %v2600
        %3068 = vmatprep.subr.mxu0 %v2585
        %3069 = vmatpush2.msra.mxu0 %v2584
        %3070 = vmatprep.subr.mxu0 %v2569
        %3071 = vmatpush2.msra.mxu0 %v2568
        %3072 = vmatprep.mubr.f32.mxu0 %v2722
        %3073 = vmatmul.mubr.f32.gmra.mxu0 %v668
        %v3074 = vpop.f32.mrf.mxu0
        %v3075 = vadd.f32 0.0, %v3074
        %v3076 = vpop.f32.mrf.mxu0
        %v3077 = vadd.f32 0.0, %v3076
        %3078 = vdwg.mxu0
        %3079 = vmatprep.subr.mxu0 %v2555
        %3080 = vmatpush1.msra.mxu0 %v2554
        %3081 = vmatprep.subr.mxu0 %v2539
        %3082 = vmatpush1.msra.mxu0 %v2538
        %3083 = vmatprep.subr.mxu0 %v2523
        %3084 = vmatpush1.msra.mxu0 %v2522
        %3085 = vmatprep.subr.mxu0 %v2507
        %3086 = vmatpush1.msra.mxu0 %v2506
        %3087 = vmatprep.subr.mxu0 %v2491
        %3088 = vmatpush1.msra.mxu0 %v2490
        %3089 = vmatprep.subr.mxu0 %v2475
        %3090 = vmatpush1.msra.mxu0 %v2474
        %3091 = vmatprep.subr.mxu0 %v2459
        %3092 = vmatpush1.msra.mxu0 %v2458
        %3093 = vmatprep.subr.mxu0 %v2443
        %3094 = vmatpush1.msra.mxu0 %v2442
        %3095 = vmatprep.subr.mxu0 %v2427
        %3096 = vmatpush1.msra.mxu0 %v2426
        %3097 = vmatprep.subr.mxu0 %v2411
        %3098 = vmatpush1.msra.mxu0 %v2410
        %3099 = vmatprep.subr.mxu0 %v2395
        %3100 = vmatpush1.msra.mxu0 %v2394
        %3101 = vmatprep.subr.mxu0 %v2379
        %3102 = vmatpush1.msra.mxu0 %v2378
        %3103 = vmatprep.subr.mxu0 %v2363
        %3104 = vmatpush1.msra.mxu0 %v2362
        %3105 = vmatprep.subr.mxu0 %v2347
        %3106 = vmatpush1.msra.mxu0 %v2346
        %3107 = vmatprep.subr.mxu0 %v2331
        %3108 = vmatpush1.msra.mxu0 %v2330
        %3109 = vmatprep.subr.mxu0 %v2315
        %3110 = vmatpush1.msra.mxu0 %v2314
        %3111 = vmatprep.subr.mxu0 0.0
        %3112 = vmatpush2.msra.mxu0 0.0
        %3113 = vmatprep.subr.mxu0 0.0
        %3114 = vmatpush2.msra.mxu0 0.0
        %3115 = vmatprep.subr.mxu0 0.0
        %3116 = vmatpush2.msra.mxu0 0.0
        %3117 = vmatprep.subr.mxu0 0.0
        %3118 = vmatpush2.msra.mxu0 0.0
        %3119 = vmatprep.subr.mxu0 0.0
        %3120 = vmatpush2.msra.mxu0 0.0
        %3121 = vmatprep.subr.mxu0 0.0
        %3122 = vmatpush2.msra.mxu0 0.0
        %3123 = vmatprep.subr.mxu0 %v2715
        %3124 = vmatpush2.msra.mxu0 %v2714
        %3125 = vmatprep.subr.mxu0 %v2699
        %3126 = vmatpush2.msra.mxu0 %v2698
        %3127 = vmatprep.subr.mxu0 %v2683
        %3128 = vmatpush2.msra.mxu0 %v2682
        %3129 = vmatprep.subr.mxu0 %v2667
        %3130 = vmatpush2.msra.mxu0 %v2666
        %3131 = vmatprep.subr.mxu0 %v2651
        %3132 = vmatpush2.msra.mxu0 %v2650
        %3133 = vmatprep.subr.mxu0 %v2635
        %3134 = vmatpush2.msra.mxu0 %v2634
        %3135 = vmatprep.subr.mxu0 %v2619
        %3136 = vmatpush2.msra.mxu0 %v2618
        %3137 = vmatprep.subr.mxu0 %v2603
        %3138 = vmatpush2.msra.mxu0 %v2602
        %3139 = vmatprep.subr.mxu0 %v2587
        %3140 = vmatpush2.msra.mxu0 %v2586
        %3141 = vmatprep.subr.mxu0 %v2571
        %3142 = vmatpush2.msra.mxu0 %v2570
        %3143 = vmatprep.mubr.f32.mxu0 %v2722
        %3144 = vmatmul.mubr.f32.gmra.mxu0 %v668
        %v3145 = vpop.f32.mrf.mxu0
        %v3146 = vadd.f32 0.0, %v3145
        %v3147 = vpop.f32.mrf.mxu0
        %v3148 = vadd.f32 0.0, %v3147
        %3149 = vdwg.mxu0
        %3150 = vmatprep.subr.mxu0 %v2557
        %3151 = vmatpush1.msra.mxu0 %v2556
        %3152 = vmatprep.subr.mxu0 %v2541
        %3153 = vmatpush1.msra.mxu0 %v2540
        %3154 = vmatprep.subr.mxu0 %v2525
        %3155 = vmatpush1.msra.mxu0 %v2524
        %3156 = vmatprep.subr.mxu0 %v2509
        %3157 = vmatpush1.msra.mxu0 %v2508
        %3158 = vmatprep.subr.mxu0 %v2493
        %3159 = vmatpush1.msra.mxu0 %v2492
        %3160 = vmatprep.subr.mxu0 %v2477
        %3161 = vmatpush1.msra.mxu0 %v2476
        %3162 = vmatprep.subr.mxu0 %v2461
        %3163 = vmatpush1.msra.mxu0 %v2460
        %3164 = vmatprep.subr.mxu0 %v2445
        %3165 = vmatpush1.msra.mxu0 %v2444
        %3166 = vmatprep.subr.mxu0 %v2429
        %3167 = vmatpush1.msra.mxu0 %v2428
        %3168 = vmatprep.subr.mxu0 %v2413
        %3169 = vmatpush1.msra.mxu0 %v2412
        %3170 = vmatprep.subr.mxu0 %v2397
        %3171 = vmatpush1.msra.mxu0 %v2396
        %3172 = vmatprep.subr.mxu0 %v2381
        %3173 = vmatpush1.msra.mxu0 %v2380
        %3174 = vmatprep.subr.mxu0 %v2365
        %3175 = vmatpush1.msra.mxu0 %v2364
        %3176 = vmatprep.subr.mxu0 %v2349
        %3177 = vmatpush1.msra.mxu0 %v2348
        %3178 = vmatprep.subr.mxu0 %v2333
        %3179 = vmatpush1.msra.mxu0 %v2332
        %3180 = vmatprep.subr.mxu0 %v2317
        %3181 = vmatpush1.msra.mxu0 %v2316
        %3182 = vmatprep.subr.mxu0 0.0
        %3183 = vmatpush2.msra.mxu0 0.0
        %3184 = vmatprep.subr.mxu0 0.0
        %3185 = vmatpush2.msra.mxu0 0.0
        %3186 = vmatprep.subr.mxu0 0.0
        %3187 = vmatpush2.msra.mxu0 0.0
        %3188 = vmatprep.subr.mxu0 0.0
        %3189 = vmatpush2.msra.mxu0 0.0
        %3190 = vmatprep.subr.mxu0 0.0
        %3191 = vmatpush2.msra.mxu0 0.0
        %3192 = vmatprep.subr.mxu0 0.0
        %3193 = vmatpush2.msra.mxu0 0.0
        %3194 = vmatprep.subr.mxu0 %v2717
        %3195 = vmatpush2.msra.mxu0 %v2716
        %3196 = vmatprep.subr.mxu0 %v2701
        %3197 = vmatpush2.msra.mxu0 %v2700
        %3198 = vmatprep.subr.mxu0 %v2685
        %3199 = vmatpush2.msra.mxu0 %v2684
        %3200 = vmatprep.subr.mxu0 %v2669
        %3201 = vmatpush2.msra.mxu0 %v2668
        %3202 = vmatprep.subr.mxu0 %v2653
        %3203 = vmatpush2.msra.mxu0 %v2652
        %3204 = vmatprep.subr.mxu0 %v2637
        %3205 = vmatpush2.msra.mxu0 %v2636
        %3206 = vmatprep.subr.mxu0 %v2621
        %3207 = vmatpush2.msra.mxu0 %v2620
        %3208 = vmatprep.subr.mxu0 %v2605
        %3209 = vmatpush2.msra.mxu0 %v2604
        %3210 = vmatprep.subr.mxu0 %v2589
        %3211 = vmatpush2.msra.mxu0 %v2588
        %3212 = vmatprep.subr.mxu0 %v2573
        %3213 = vmatpush2.msra.mxu0 %v2572
        %3214 = vmatprep.mubr.f32.mxu0 %v2722
        %3215 = vmatmul.mubr.f32.gmra.mxu0 %v668
        %v3216 = vpop.f32.mrf.mxu0
        %v3217 = vadd.f32 0.0, %v3216
        %v3218 = vpop.f32.mrf.mxu0
        %v3219 = vadd.f32 0.0, %v3218
        %3220 = vdwg.mxu0
        %3221 = vmatprep.subr.mxu0 %v2559
        %3222 = vmatpush1.msra.mxu0 %v2558
        %3223 = vmatprep.subr.mxu0 %v2543
        %3224 = vmatpush1.msra.mxu0 %v2542
        %3225 = vmatprep.subr.mxu0 %v2527
        %3226 = vmatpush1.msra.mxu0 %v2526
        %3227 = vmatprep.subr.mxu0 %v2511
        %3228 = vmatpush1.msra.mxu0 %v2510
        %3229 = vmatprep.subr.mxu0 %v2495
        %3230 = vmatpush1.msra.mxu0 %v2494
        %3231 = vmatprep.subr.mxu0 %v2479
        %3232 = vmatpush1.msra.mxu0 %v2478
        %3233 = vmatprep.subr.mxu0 %v2463
        %3234 = vmatpush1.msra.mxu0 %v2462
        %3235 = vmatprep.subr.mxu0 %v2447
        %3236 = vmatpush1.msra.mxu0 %v2446
        %3237 = vmatprep.subr.mxu0 %v2431
        %3238 = vmatpush1.msra.mxu0 %v2430
        %3239 = vmatprep.subr.mxu0 %v2415
        %3240 = vmatpush1.msra.mxu0 %v2414
        %3241 = vmatprep.subr.mxu0 %v2399
        %3242 = vmatpush1.msra.mxu0 %v2398
        %3243 = vmatprep.subr.mxu0 %v2383
        %3244 = vmatpush1.msra.mxu0 %v2382
        %3245 = vmatprep.subr.mxu0 %v2367
        %3246 = vmatpush1.msra.mxu0 %v2366
        %3247 = vmatprep.subr.mxu0 %v2351
        %3248 = vmatpush1.msra.mxu0 %v2350
        %3249 = vmatprep.subr.mxu0 %v2335
        %3250 = vmatpush1.msra.mxu0 %v2334
        %3251 = vmatprep.subr.mxu0 %v2319
        %3252 = vmatpush1.msra.mxu0 %v2318
        %3253 = vmatprep.subr.mxu0 0.0
        %3254 = vmatpush2.msra.mxu0 0.0
        %3255 = vmatprep.subr.mxu0 0.0
        %3256 = vmatpush2.msra.mxu0 0.0
        %3257 = vmatprep.subr.mxu0 0.0
        %3258 = vmatpush2.msra.mxu0 0.0
        %3259 = vmatprep.subr.mxu0 0.0
        %3260 = vmatpush2.msra.mxu0 0.0
        %3261 = vmatprep.subr.mxu0 0.0
        %3262 = vmatpush2.msra.mxu0 0.0
        %3263 = vmatprep.subr.mxu0 0.0
        %3264 = vmatpush2.msra.mxu0 0.0
        %3265 = vmatprep.subr.mxu0 %v2719
        %3266 = vmatpush2.msra.mxu0 %v2718
        %3267 = vmatprep.subr.mxu0 %v2703
        %3268 = vmatpush2.msra.mxu0 %v2702
        %3269 = vmatprep.subr.mxu0 %v2687
        %3270 = vmatpush2.msra.mxu0 %v2686
        %3271 = vmatprep.subr.mxu0 %v2671
        %3272 = vmatpush2.msra.mxu0 %v2670
        %3273 = vmatprep.subr.mxu0 %v2655
        %3274 = vmatpush2.msra.mxu0 %v2654
        %3275 = vmatprep.subr.mxu0 %v2639
        %3276 = vmatpush2.msra.mxu0 %v2638
        %3277 = vmatprep.subr.mxu0 %v2623
        %3278 = vmatpush2.msra.mxu0 %v2622
        %3279 = vmatprep.subr.mxu0 %v2607
        %3280 = vmatpush2.msra.mxu0 %v2606
        %3281 = vmatprep.subr.mxu0 %v2591
        %3282 = vmatpush2.msra.mxu0 %v2590
        %3283 = vmatprep.subr.mxu0 %v2575
        %3284 = vmatpush2.msra.mxu0 %v2574
        %3285 = vmatprep.mubr.f32.mxu0 %v2722
        %3286 = vmatmul.mubr.f32.gmra.mxu0 %v668
        %v3287 = vpop.f32.mrf.mxu0
        %v3288 = vadd.f32 0.0, %v3287
        %v3289 = vpop.f32.mrf.mxu0
        %v3290 = vadd.f32 0.0, %v3289
        %3291 = vdwg.mxu0
        %v3308 = vcombine.low %v2791, %v2793
        %v3309 = vcombine.low %v2862, %v2864
        %v3310 = vcombine.low %v2933, %v2935
        %v3311 = vcombine.low %v3004, %v3006
        %v3313 = vunpack.c.l.s4 1966171168
        %v3314 = vunpack.c.0.s8 %v3313
        %v3315 = vlaneseq
        %v3316 = vshrl.u32 %v3315, 7
        %v3317 = vsub.s32 %v3314, %v3316
        %v3318 = vrot.slane %v3308, %v3317
        %v3320 = vunpack.c.l.s4 1966171168
        %v3321 = vunpack.c.0.s8 %v3320
        %v3322 = vlaneseq
        %v3323 = vshrl.u32 %v3322, 7
        %v3324 = vsub.s32 %v3321, %v3323
        %v3325 = vrot.slane %v3309, %v3324
        %v3327 = vunpack.c.l.s4 1966171168
        %v3328 = vunpack.c.0.s8 %v3327
        %v3329 = vlaneseq
        %v3330 = vshrl.u32 %v3329, 7
        %v3331 = vsub.s32 %v3328, %v3330
        %v3332 = vrot.slane %v3310, %v3331
        %v3334 = vunpack.c.l.s4 1966171168
        %v3335 = vunpack.c.0.s8 %v3334
        %v3336 = vlaneseq
        %v3337 = vshrl.u32 %v3336, 7
        %v3338 = vsub.s32 %v3335, %v3337
        %v3339 = vrot.slane %v3311, %v3338
        %v3340 = vcombine.low %v3318, %v3325
        %v3341 = vcombine.low %v3332, %v3339
        %v3343 = vunpack.c.l.s4 1966171168
        %v3344 = vunpack.c.0.s8 %v3343
        %v3345 = vlaneseq
        %v3346 = vshrl.u32 %v3345, 7
        %v3347 = vsub.s32 %v3344, %v3346
        %v3348 = vrot.slane %v3340, %v3347
        %v3350 = vunpack.c.l.s4 1966171168
        %v3351 = vunpack.c.0.s8 %v3350
        %v3352 = vlaneseq
        %v3353 = vshrl.u32 %v3352, 7
        %v3354 = vsub.s32 %v3351, %v3353
        %v3355 = vrot.slane %v3341, %v3354
        %v3356 = vcombine.low %v3348, %v3355
        %v3357 = vcombine.low %v3075, %v3077
        %v3358 = vcombine.low %v3146, %v3148
        %v3359 = vcombine.low %v3217, %v3219
        %v3360 = vcombine.low %v3288, %v3290
        %v3362 = vunpack.c.l.s4 1966171168
        %v3363 = vunpack.c.0.s8 %v3362
        %v3364 = vlaneseq
        %v3365 = vshrl.u32 %v3364, 7
        %v3366 = vsub.s32 %v3363, %v3365
        %v3367 = vrot.slane %v3357, %v3366
        %v3369 = vunpack.c.l.s4 1966171168
        %v3370 = vunpack.c.0.s8 %v3369
        %v3371 = vlaneseq
        %v3372 = vshrl.u32 %v3371, 7
        %v3373 = vsub.s32 %v3370, %v3372
        %v3374 = vrot.slane %v3358, %v3373
        %v3376 = vunpack.c.l.s4 1966171168
        %v3377 = vunpack.c.0.s8 %v3376
        %v3378 = vlaneseq
        %v3379 = vshrl.u32 %v3378, 7
        %v3380 = vsub.s32 %v3377, %v3379
        %v3381 = vrot.slane %v3359, %v3380
        %v3383 = vunpack.c.l.s4 1966171168
        %v3384 = vunpack.c.0.s8 %v3383
        %v3385 = vlaneseq
        %v3386 = vshrl.u32 %v3385, 7
        %v3387 = vsub.s32 %v3384, %v3386
        %v3388 = vrot.slane %v3360, %v3387
        %v3389 = vcombine.low %v3367, %v3374
        %v3390 = vcombine.low %v3381, %v3388
        %v3392 = vunpack.c.l.s4 1966171168
        %v3393 = vunpack.c.0.s8 %v3392
        %v3394 = vlaneseq
        %v3395 = vshrl.u32 %v3394, 7
        %v3396 = vsub.s32 %v3393, %v3395
        %v3397 = vrot.slane %v3389, %v3396
        %v3399 = vunpack.c.l.s4 1966171168
        %v3400 = vunpack.c.0.s8 %v3399
        %v3401 = vlaneseq
        %v3402 = vshrl.u32 %v3401, 7
        %v3403 = vsub.s32 %v3400, %v3402
        %v3404 = vrot.slane %v3390, %v3403
        %v3405 = vcombine.low %v3397, %v3404
        %v3408 = vadd.f32 %v670, %v3356
        %v3409 = vadd.f32 %v671, %v3405
        %3410 = vst [vmem:[#allocation2] sm:$0xff] %v3408
        %3411 = vst [vmem:[#allocation2 + $0x8] sm:$0xff] %v3409
        // Predicated region
        $region61: #{tpu_custom_call.1} parent=47 // pred_check
          %p3412 = pneg %p334
        $region62: #{tpu_custom_call.1} parent=47 // pred_check_branch
          %3414 = sbr.rel (%p3412) target = $region64
        $region63: #{tpu_custom_call.1} parent=47 // pred_region
          %v3415 = vld [vmem:[#allocation2] sm:$0xff]
          %v3416 = vld [vmem:[#allocation2 + $0x8] sm:$0xff]
          %v3417 = vmul.f32 %v3415, 0.0051020407
          %v3418 = vmul.f32 %v3416, 0.0051020407
          %v3421 = vlaneseq
          %v3422 = vshrl.u32 %v3421, 7
          %v3423 = vsub.s32 0, %v3422
          %v3424 = vrot.slane %v3417, %v3423
          %v3425 = vlaneseq
          %v3426 = vshrl.u32 %v3425, 7
          %v3427 = vsub.s32 1, %v3426
          %v3428 = vrot.slane %v3417, %v3427
          %v3429 = vlaneseq
          %v3430 = vshrl.u32 %v3429, 7
          %v3431 = vsub.s32 2, %v3430
          %v3432 = vrot.slane %v3417, %v3431
          %v3433 = vlaneseq
          %v3434 = vshrl.u32 %v3433, 7
          %v3435 = vsub.s32 3, %v3434
          %v3436 = vrot.slane %v3417, %v3435
          %v3437 = vlaneseq
          %v3438 = vshrl.u32 %v3437, 7
          %v3439 = vsub.s32 4, %v3438
          %v3440 = vrot.slane %v3417, %v3439
          %v3441 = vlaneseq
          %v3442 = vshrl.u32 %v3441, 7
          %v3443 = vsub.s32 5, %v3442
          %v3444 = vrot.slane %v3417, %v3443
          %v3445 = vlaneseq
          %v3446 = vshrl.u32 %v3445, 7
          %v3447 = vsub.s32 6, %v3446
          %v3448 = vrot.slane %v3417, %v3447
          %v3449 = vlaneseq
          %v3450 = vshrl.u32 %v3449, 7
          %v3451 = vsub.s32 7, %v3450
          %v3452 = vrot.slane %v3417, %v3451
          %v3453 = vlaneseq
          %v3454 = vshrl.u32 %v3453, 7
          %v3455 = vsub.s32 0, %v3454
          %v3456 = vrot.slane %v3418, %v3455
          %v3457 = vlaneseq
          %v3458 = vshrl.u32 %v3457, 7
          %v3459 = vsub.s32 1, %v3458
          %v3460 = vrot.slane %v3418, %v3459
          %v3461 = vlaneseq
          %v3462 = vshrl.u32 %v3461, 7
          %v3463 = vsub.s32 2, %v3462
          %v3464 = vrot.slane %v3418, %v3463
          %v3465 = vlaneseq
          %v3466 = vshrl.u32 %v3465, 7
          %v3467 = vsub.s32 3, %v3466
          %v3468 = vrot.slane %v3418, %v3467
          %v3469 = vlaneseq
          %v3470 = vshrl.u32 %v3469, 7
          %v3471 = vsub.s32 4, %v3470
          %v3472 = vrot.slane %v3418, %v3471
          %v3473 = vlaneseq
          %v3474 = vshrl.u32 %v3473, 7
          %v3475 = vsub.s32 5, %v3474
          %v3476 = vrot.slane %v3418, %v3475
          %v3477 = vlaneseq
          %v3478 = vshrl.u32 %v3477, 7
          %v3479 = vsub.s32 6, %v3478
          %v3480 = vrot.slane %v3418, %v3479
          %v3481 = vlaneseq
          %v3482 = vshrl.u32 %v3481, 7
          %v3483 = vsub.s32 7, %v3482
          %v3484 = vrot.slane %v3418, %v3483
          %v3501 = vpack.c.bf16 %v3424, %v3424
          %v3502 = vpack.c.bf16 %v3428, %v3428
          %v3503 = vpack.c.bf16 %v3432, %v3432
          %v3504 = vpack.c.bf16 %v3436, %v3436
          %v3505 = vpack.c.bf16 %v3440, %v3440
          %v3506 = vpack.c.bf16 %v3444, %v3444
          %v3507 = vpack.c.bf16 %v3448, %v3448
          %v3508 = vpack.c.bf16 %v3452, %v3452
          %v3509 = vpack.c.bf16 %v3456, %v3456
          %v3510 = vpack.c.bf16 %v3460, %v3460
          %v3511 = vpack.c.bf16 %v3464, %v3464
          %v3512 = vpack.c.bf16 %v3468, %v3468
          %v3513 = vpack.c.bf16 %v3472, %v3472
          %v3514 = vpack.c.bf16 %v3476, %v3476
          %v3515 = vpack.c.bf16 %v3480, %v3480
          %v3516 = vpack.c.bf16 %v3484, %v3484
          %v3517 = vld [vmem:[#allocation6] sm:$0xff]
          %v3518 = vld [vmem:[#allocation6 + $0x8] sm:$0xff]
          %v3519 = vld [vmem:[#allocation6 + $0x10] sm:$0xff]
          %v3520 = vld [vmem:[#allocation6 + $0x18] sm:$0xff]
          %v3521 = vld [vmem:[#allocation6 + $0x20] sm:$0xff]
          %v3522 = vld [vmem:[#allocation6 + $0x28] sm:$0xff]
          %v3523 = vld [vmem:[#allocation6 + $0x30] sm:$0xff]
          %v3524 = vld [vmem:[#allocation6 + $0x38] sm:$0xff]
          %v3525 = vld [vmem:[#allocation6 + $0x40] sm:$0xff]
          %v3526 = vld [vmem:[#allocation6 + $0x48] sm:$0xff]
          %v3527 = vld [vmem:[#allocation6 + $0x50] sm:$0xff]
          %v3528 = vld [vmem:[#allocation6 + $0x58] sm:$0xff]
          %v3529 = vld [vmem:[#allocation6 + $0x60] sm:$0xff]
          %v3530 = vld [vmem:[#allocation6 + $0x68] sm:$0xff]
          %v3531 = vld [vmem:[#allocation6 + $0x70] sm:$0xff]
          %v3532 = vld [vmem:[#allocation6 + $0x78] sm:$0xff]
          %v3533 = vld [vmem:[#allocation6 + $0x80] sm:$0xff]
          %v3534 = vld [vmem:[#allocation6 + $0x88] sm:$0xff]
          %v3535 = vld [vmem:[#allocation6 + $0x90] sm:$0xff]
          %v3536 = vld [vmem:[#allocation6 + $0x98] sm:$0xff]
          %v3537 = vld [vmem:[#allocation6 + $0xa0] sm:$0xff]
          %v3538 = vld [vmem:[#allocation6 + $0xa8] sm:$0xff]
          %v3539 = vld [vmem:[#allocation6 + $0xb0] sm:$0xff]
          %v3540 = vld [vmem:[#allocation6 + $0xb8] sm:$0xff]
          %v3541 = vld [vmem:[#allocation6 + $0xc0] sm:$0xff]
          %v3542 = vld [vmem:[#allocation6 + $0xc8] sm:$0xff]
          %v3543 = vld [vmem:[#allocation6 + $0xd0] sm:$0xff]
          %v3544 = vld [vmem:[#allocation6 + $0xd8] sm:$0xff]
          %v3545 = vld [vmem:[#allocation6 + $0xe0] sm:$0xff]
          %v3546 = vld [vmem:[#allocation6 + $0xe8] sm:$0xff]
          %v3547 = vld [vmem:[#allocation6 + $0xf0] sm:$0xff]
          %v3548 = vld [vmem:[#allocation6 + $0xf8] sm:$0xff]
          %v3549 = vld [vmem:[#allocation6 + $0x100] sm:$0xff]
          %v3550 = vld [vmem:[#allocation6 + $0x108] sm:$0xff]
          %v3551 = vld [vmem:[#allocation6 + $0x110] sm:$0xff]
          %v3552 = vld [vmem:[#allocation6 + $0x118] sm:$0xff]
          %v3553 = vld [vmem:[#allocation6 + $0x120] sm:$0xff]
          %v3554 = vld [vmem:[#allocation6 + $0x128] sm:$0xff]
          %v3555 = vld [vmem:[#allocation6 + $0x130] sm:$0xff]
          %v3556 = vld [vmem:[#allocation6 + $0x138] sm:$0xff]
          %v3557 = vld [vmem:[#allocation6 + $0x140] sm:$0xff]
          %v3558 = vld [vmem:[#allocation6 + $0x148] sm:$0xff]
          %v3559 = vld [vmem:[#allocation6 + $0x150] sm:$0xff]
          %v3560 = vld [vmem:[#allocation6 + $0x158] sm:$0xff]
          %v3561 = vld [vmem:[#allocation6 + $0x160] sm:$0xff]
          %v3562 = vld [vmem:[#allocation6 + $0x168] sm:$0xff]
          %v3563 = vld [vmem:[#allocation6 + $0x170] sm:$0xff]
          %v3564 = vld [vmem:[#allocation6 + $0x178] sm:$0xff]
          %v3565 = vld [vmem:[#allocation6 + $0x180] sm:$0xff]
          %v3566 = vld [vmem:[#allocation6 + $0x188] sm:$0xff]
          %v3567 = vld [vmem:[#allocation6 + $0x190] sm:$0xff]
          %v3568 = vld [vmem:[#allocation6 + $0x198] sm:$0xff]
          %v3569 = vld [vmem:[#allocation6 + $0x1a0] sm:$0xff]
          %v3570 = vld [vmem:[#allocation6 + $0x1a8] sm:$0xff]
          %v3571 = vld [vmem:[#allocation6 + $0x1b0] sm:$0xff]
          %v3572 = vld [vmem:[#allocation6 + $0x1b8] sm:$0xff]
          %v3573 = vld [vmem:[#allocation6 + $0x1c0] sm:$0xff]
          %v3574 = vld [vmem:[#allocation6 + $0x1c8] sm:$0xff]
          %v3575 = vld [vmem:[#allocation6 + $0x1d0] sm:$0xff]
          %v3576 = vld [vmem:[#allocation6 + $0x1d8] sm:$0xff]
          %v3577 = vld [vmem:[#allocation6 + $0x1e0] sm:$0xff]
          %v3578 = vld [vmem:[#allocation6 + $0x1e8] sm:$0xff]
          %v3579 = vld [vmem:[#allocation6 + $0x1f0] sm:$0xff]
          %v3580 = vld [vmem:[#allocation6 + $0x1f8] sm:$0xff]
          %v3581 = vld [vmem:[#allocation6 + $0x200] sm:$0xff]
          %v3582 = vld [vmem:[#allocation6 + $0x208] sm:$0xff]
          %v3583 = vld [vmem:[#allocation6 + $0x210] sm:$0xff]
          %v3584 = vld [vmem:[#allocation6 + $0x218] sm:$0xff]
          %v3585 = vld [vmem:[#allocation6 + $0x220] sm:$0xff]
          %v3586 = vld [vmem:[#allocation6 + $0x228] sm:$0xff]
          %v3587 = vld [vmem:[#allocation6 + $0x230] sm:$0xff]
          %v3588 = vld [vmem:[#allocation6 + $0x238] sm:$0xff]
          %v3589 = vld [vmem:[#allocation6 + $0x240] sm:$0xff]
          %v3590 = vld [vmem:[#allocation6 + $0x248] sm:$0xff]
          %v3591 = vld [vmem:[#allocation6 + $0x250] sm:$0xff]
          %v3592 = vld [vmem:[#allocation6 + $0x258] sm:$0xff]
          %v3593 = vld [vmem:[#allocation6 + $0x260] sm:$0xff]
          %v3594 = vld [vmem:[#allocation6 + $0x268] sm:$0xff]
          %v3595 = vld [vmem:[#allocation6 + $0x270] sm:$0xff]
          %v3596 = vld [vmem:[#allocation6 + $0x278] sm:$0xff]
          %v3597 = vld [vmem:[#allocation6 + $0x280] sm:$0xff]
          %v3598 = vld [vmem:[#allocation6 + $0x288] sm:$0xff]
          %v3599 = vld [vmem:[#allocation6 + $0x290] sm:$0xff]
          %v3600 = vld [vmem:[#allocation6 + $0x298] sm:$0xff]
          %v3601 = vld [vmem:[#allocation6 + $0x2a0] sm:$0xff]
          %v3602 = vld [vmem:[#allocation6 + $0x2a8] sm:$0xff]
          %v3603 = vld [vmem:[#allocation6 + $0x2b0] sm:$0xff]
          %v3604 = vld [vmem:[#allocation6 + $0x2b8] sm:$0xff]
          %v3605 = vld [vmem:[#allocation6 + $0x2c0] sm:$0xff]
          %v3606 = vld [vmem:[#allocation6 + $0x2c8] sm:$0xff]
          %v3607 = vld [vmem:[#allocation6 + $0x2d0] sm:$0xff]
          %v3608 = vld [vmem:[#allocation6 + $0x2d8] sm:$0xff]
          %v3609 = vld [vmem:[#allocation6 + $0x2e0] sm:$0xff]
          %v3610 = vld [vmem:[#allocation6 + $0x2e8] sm:$0xff]
          %v3611 = vld [vmem:[#allocation6 + $0x2f0] sm:$0xff]
          %v3612 = vld [vmem:[#allocation6 + $0x2f8] sm:$0xff]
          %v3613 = vld [vmem:[#allocation6 + $0x300] sm:$0xff]
          %v3614 = vld [vmem:[#allocation6 + $0x308] sm:$0xff]
          %v3615 = vld [vmem:[#allocation6 + $0x310] sm:$0xff]
          %v3616 = vld [vmem:[#allocation6 + $0x318] sm:$0xff]
          %v3617 = vld [vmem:[#allocation6 + $0x320] sm:$0xff]
          %v3618 = vld [vmem:[#allocation6 + $0x328] sm:$0xff]
          %v3619 = vld [vmem:[#allocation6 + $0x330] sm:$0xff]
          %v3620 = vld [vmem:[#allocation6 + $0x338] sm:$0xff]
          %v3621 = vld [vmem:[#allocation6 + $0x340] sm:$0xff]
          %v3622 = vld [vmem:[#allocation6 + $0x348] sm:$0xff]
          %v3623 = vld [vmem:[#allocation6 + $0x350] sm:$0xff]
          %v3624 = vld [vmem:[#allocation6 + $0x358] sm:$0xff]
          %v3625 = vld [vmem:[#allocation6 + $0x360] sm:$0xff]
          %v3626 = vld [vmem:[#allocation6 + $0x368] sm:$0xff]
          %v3627 = vld [vmem:[#allocation6 + $0x370] sm:$0xff]
          %v3628 = vld [vmem:[#allocation6 + $0x378] sm:$0xff]
          %v3629 = vld [vmem:[#allocation6 + $0x380] sm:$0xff]
          %v3630 = vld [vmem:[#allocation6 + $0x388] sm:$0xff]
          %v3631 = vld [vmem:[#allocation6 + $0x390] sm:$0xff]
          %v3632 = vld [vmem:[#allocation6 + $0x398] sm:$0xff]
          %v3633 = vld [vmem:[#allocation6 + $0x3a0] sm:$0xff]
          %v3634 = vld [vmem:[#allocation6 + $0x3a8] sm:$0xff]
          %v3635 = vld [vmem:[#allocation6 + $0x3b0] sm:$0xff]
          %v3636 = vld [vmem:[#allocation6 + $0x3b8] sm:$0xff]
          %v3637 = vld [vmem:[#allocation6 + $0x3c0] sm:$0xff]
          %v3638 = vld [vmem:[#allocation6 + $0x3c8] sm:$0xff]
          %v3639 = vld [vmem:[#allocation6 + $0x3d0] sm:$0xff]
          %v3640 = vld [vmem:[#allocation6 + $0x3d8] sm:$0xff]
          %v3641 = vld [vmem:[#allocation6 + $0x3e0] sm:$0xff]
          %v3642 = vld [vmem:[#allocation6 + $0x3e8] sm:$0xff]
          %v3643 = vld [vmem:[#allocation6 + $0x3f0] sm:$0xff]
          %v3644 = vld [vmem:[#allocation6 + $0x3f8] sm:$0xff]
          %v3645 = vld [vmem:[#allocation6 + $0x400] sm:$0xff]
          %v3646 = vld [vmem:[#allocation6 + $0x408] sm:$0xff]
          %v3647 = vld [vmem:[#allocation6 + $0x410] sm:$0xff]
          %v3648 = vld [vmem:[#allocation6 + $0x418] sm:$0xff]
          %v3649 = vld [vmem:[#allocation6 + $0x420] sm:$0xff]
          %v3650 = vld [vmem:[#allocation6 + $0x428] sm:$0xff]
          %v3651 = vld [vmem:[#allocation6 + $0x430] sm:$0xff]
          %v3652 = vld [vmem:[#allocation6 + $0x438] sm:$0xff]
          %v3653 = vld [vmem:[#allocation6 + $0x440] sm:$0xff]
          %v3654 = vld [vmem:[#allocation6 + $0x448] sm:$0xff]
          %v3655 = vld [vmem:[#allocation6 + $0x450] sm:$0xff]
          %v3656 = vld [vmem:[#allocation6 + $0x458] sm:$0xff]
          %v3657 = vld [vmem:[#allocation6 + $0x460] sm:$0xff]
          %v3658 = vld [vmem:[#allocation6 + $0x468] sm:$0xff]
          %v3659 = vld [vmem:[#allocation6 + $0x470] sm:$0xff]
          %v3660 = vld [vmem:[#allocation6 + $0x478] sm:$0xff]
          %v3661 = vld [vmem:[#allocation6 + $0x480] sm:$0xff]
          %v3662 = vld [vmem:[#allocation6 + $0x488] sm:$0xff]
          %v3663 = vld [vmem:[#allocation6 + $0x490] sm:$0xff]
          %v3664 = vld [vmem:[#allocation6 + $0x498] sm:$0xff]
          %v3665 = vld [vmem:[#allocation6 + $0x4a0] sm:$0xff]
          %v3666 = vld [vmem:[#allocation6 + $0x4a8] sm:$0xff]
          %v3667 = vld [vmem:[#allocation6 + $0x4b0] sm:$0xff]
          %v3668 = vld [vmem:[#allocation6 + $0x4b8] sm:$0xff]
          %v3669 = vld [vmem:[#allocation6 + $0x4c0] sm:$0xff]
          %v3670 = vld [vmem:[#allocation6 + $0x4c8] sm:$0xff]
          %v3671 = vld [vmem:[#allocation6 + $0x4d0] sm:$0xff]
          %v3672 = vld [vmem:[#allocation6 + $0x4d8] sm:$0xff]
          %v3673 = vld [vmem:[#allocation6 + $0x4e0] sm:$0xff]
          %v3674 = vld [vmem:[#allocation6 + $0x4e8] sm:$0xff]
          %v3675 = vld [vmem:[#allocation6 + $0x4f0] sm:$0xff]
          %v3676 = vld [vmem:[#allocation6 + $0x4f8] sm:$0xff]
          %v3677 = vld [vmem:[#allocation6 + $0x500] sm:$0xff]
          %v3678 = vld [vmem:[#allocation6 + $0x508] sm:$0xff]
          %v3679 = vld [vmem:[#allocation6 + $0x510] sm:$0xff]
          %v3680 = vld [vmem:[#allocation6 + $0x518] sm:$0xff]
          %v3681 = vld [vmem:[#allocation6 + $0x520] sm:$0xff]
          %v3682 = vld [vmem:[#allocation6 + $0x528] sm:$0xff]
          %v3683 = vld [vmem:[#allocation6 + $0x530] sm:$0xff]
          %v3684 = vld [vmem:[#allocation6 + $0x538] sm:$0xff]
          %v3685 = vld [vmem:[#allocation6 + $0x540] sm:$0xff]
          %v3686 = vld [vmem:[#allocation6 + $0x548] sm:$0xff]
          %v3687 = vld [vmem:[#allocation6 + $0x550] sm:$0xff]
          %v3688 = vld [vmem:[#allocation6 + $0x558] sm:$0xff]
          %v3689 = vld [vmem:[#allocation6 + $0x560] sm:$0xff]
          %v3690 = vld [vmem:[#allocation6 + $0x568] sm:$0xff]
          %v3691 = vld [vmem:[#allocation6 + $0x570] sm:$0xff]
          %v3692 = vld [vmem:[#allocation6 + $0x578] sm:$0xff]
          %v3693 = vld [vmem:[#allocation6 + $0x580] sm:$0xff]
          %v3694 = vld [vmem:[#allocation6 + $0x588] sm:$0xff]
          %v3695 = vld [vmem:[#allocation6 + $0x590] sm:$0xff]
          %v3696 = vld [vmem:[#allocation6 + $0x598] sm:$0xff]
          %v3697 = vld [vmem:[#allocation6 + $0x5a0] sm:$0xff]
          %v3698 = vld [vmem:[#allocation6 + $0x5a8] sm:$0xff]
          %v3699 = vld [vmem:[#allocation6 + $0x5b0] sm:$0xff]
          %v3700 = vld [vmem:[#allocation6 + $0x5b8] sm:$0xff]
          %v3701 = vld [vmem:[#allocation6 + $0x5c0] sm:$0xff]
          %v3702 = vld [vmem:[#allocation6 + $0x5c8] sm:$0xff]
          %v3703 = vld [vmem:[#allocation6 + $0x5d0] sm:$0xff]
          %v3704 = vld [vmem:[#allocation6 + $0x5d8] sm:$0xff]
          %v3705 = vld [vmem:[#allocation6 + $0x5e0] sm:$0xff]
          %v3706 = vld [vmem:[#allocation6 + $0x5e8] sm:$0xff]
          %v3707 = vld [vmem:[#allocation6 + $0x5f0] sm:$0xff]
          %v3708 = vld [vmem:[#allocation6 + $0x5f8] sm:$0xff]
          %v3709 = vld [vmem:[#allocation6 + $0x600] sm:$0xff]
          %v3710 = vld [vmem:[#allocation6 + $0x608] sm:$0xff]
          %v3711 = vld [vmem:[#allocation6 + $0x610] sm:$0xff]
          %v3712 = vld [vmem:[#allocation6 + $0x618] sm:$0xff]
          %v3713 = vld [vmem:[#allocation6 + $0x620] sm:$0xff]
          %v3714 = vld [vmem:[#allocation6 + $0x628] sm:$0xff]
          %v3715 = vld [vmem:[#allocation6 + $0x630] sm:$0xff]
          %v3716 = vld [vmem:[#allocation6 + $0x638] sm:$0xff]
          %v3717 = vld [vmem:[#allocation6 + $0x640] sm:$0xff]
          %v3718 = vld [vmem:[#allocation6 + $0x648] sm:$0xff]
          %v3719 = vld [vmem:[#allocation6 + $0x650] sm:$0xff]
          %v3720 = vld [vmem:[#allocation6 + $0x658] sm:$0xff]
          %v3721 = vld [vmem:[#allocation6 + $0x660] sm:$0xff]
          %v3722 = vld [vmem:[#allocation6 + $0x668] sm:$0xff]
          %v3723 = vld [vmem:[#allocation6 + $0x670] sm:$0xff]
          %v3724 = vld [vmem:[#allocation6 + $0x678] sm:$0xff]
          %v3725 = vld [vmem:[#allocation6 + $0x680] sm:$0xff]
          %v3726 = vld [vmem:[#allocation6 + $0x688] sm:$0xff]
          %v3727 = vld [vmem:[#allocation6 + $0x690] sm:$0xff]
          %v3728 = vld [vmem:[#allocation6 + $0x698] sm:$0xff]
          %v3729 = vld [vmem:[#allocation6 + $0x6a0] sm:$0xff]
          %v3730 = vld [vmem:[#allocation6 + $0x6a8] sm:$0xff]
          %v3731 = vld [vmem:[#allocation6 + $0x6b0] sm:$0xff]
          %v3732 = vld [vmem:[#allocation6 + $0x6b8] sm:$0xff]
          %v3733 = vld [vmem:[#allocation6 + $0x6c0] sm:$0xff]
          %v3734 = vld [vmem:[#allocation6 + $0x6c8] sm:$0xff]
          %v3735 = vld [vmem:[#allocation6 + $0x6d0] sm:$0xff]
          %v3736 = vld [vmem:[#allocation6 + $0x6d8] sm:$0xff]
          %v3737 = vld [vmem:[#allocation6 + $0x6e0] sm:$0xff]
          %v3738 = vld [vmem:[#allocation6 + $0x6e8] sm:$0xff]
          %v3739 = vld [vmem:[#allocation6 + $0x6f0] sm:$0xff]
          %v3740 = vld [vmem:[#allocation6 + $0x6f8] sm:$0xff]
          %v3741 = vld [vmem:[#allocation6 + $0x700] sm:$0xff]
          %v3742 = vld [vmem:[#allocation6 + $0x708] sm:$0xff]
          %v3743 = vld [vmem:[#allocation6 + $0x710] sm:$0xff]
          %v3744 = vld [vmem:[#allocation6 + $0x718] sm:$0xff]
          %v3745 = vld [vmem:[#allocation6 + $0x720] sm:$0xff]
          %v3746 = vld [vmem:[#allocation6 + $0x728] sm:$0xff]
          %v3747 = vld [vmem:[#allocation6 + $0x730] sm:$0xff]
          %v3748 = vld [vmem:[#allocation6 + $0x738] sm:$0xff]
          %v3749 = vld [vmem:[#allocation6 + $0x740] sm:$0xff]
          %v3750 = vld [vmem:[#allocation6 + $0x748] sm:$0xff]
          %v3751 = vld [vmem:[#allocation6 + $0x750] sm:$0xff]
          %v3752 = vld [vmem:[#allocation6 + $0x758] sm:$0xff]
          %v3753 = vld [vmem:[#allocation6 + $0x760] sm:$0xff]
          %v3754 = vld [vmem:[#allocation6 + $0x768] sm:$0xff]
          %v3755 = vld [vmem:[#allocation6 + $0x770] sm:$0xff]
          %v3756 = vld [vmem:[#allocation6 + $0x778] sm:$0xff]
          %v3757 = vld [vmem:[#allocation6 + $0x780] sm:$0xff]
          %v3758 = vld [vmem:[#allocation6 + $0x788] sm:$0xff]
          %v3759 = vld [vmem:[#allocation6 + $0x790] sm:$0xff]
          %v3760 = vld [vmem:[#allocation6 + $0x798] sm:$0xff]
          %v3761 = vld [vmem:[#allocation6 + $0x7a0] sm:$0xff]
          %v3762 = vld [vmem:[#allocation6 + $0x7a8] sm:$0xff]
          %v3763 = vld [vmem:[#allocation6 + $0x7b0] sm:$0xff]
          %v3764 = vld [vmem:[#allocation6 + $0x7b8] sm:$0xff]
          %v3765 = vld [vmem:[#allocation6 + $0x7c0] sm:$0xff]
          %v3766 = vld [vmem:[#allocation6 + $0x7c8] sm:$0xff]
          %v3767 = vld [vmem:[#allocation6 + $0x7d0] sm:$0xff]
          %v3768 = vld [vmem:[#allocation6 + $0x7d8] sm:$0xff]
          %v3769 = vld [vmem:[#allocation6 + $0x7e0] sm:$0xff]
          %v3770 = vld [vmem:[#allocation6 + $0x7e8] sm:$0xff]
          %v3771 = vld [vmem:[#allocation6 + $0x7f0] sm:$0xff]
          %v3772 = vld [vmem:[#allocation6 + $0x7f8] sm:$0xff]
          %v3773 = vld [vmem:[%s6] sm:$0x3]
          %v4030 = vunpack.c.l.b16 %v3517
          %v4031 = vunpack.c.h.b16 %v3517
          %v4032 = vunpack.c.l.b16 %v3518
          %v4033 = vunpack.c.h.b16 %v3518
          %v4034 = vunpack.c.l.b16 %v3519
          %v4035 = vunpack.c.h.b16 %v3519
          %v4036 = vunpack.c.l.b16 %v3520
          %v4037 = vunpack.c.h.b16 %v3520
          %v4038 = vunpack.c.l.b16 %v3521
          %v4039 = vunpack.c.h.b16 %v3521
          %v4040 = vunpack.c.l.b16 %v3522
          %v4041 = vunpack.c.h.b16 %v3522
          %v4042 = vunpack.c.l.b16 %v3523
          %v4043 = vunpack.c.h.b16 %v3523
          %v4044 = vunpack.c.l.b16 %v3524
          %v4045 = vunpack.c.h.b16 %v3524
          %v4046 = vunpack.c.l.b16 %v3525
          %v4047 = vunpack.c.h.b16 %v3525
          %v4048 = vunpack.c.l.b16 %v3526
          %v4049 = vunpack.c.h.b16 %v3526
          %v4050 = vunpack.c.l.b16 %v3527
          %v4051 = vunpack.c.h.b16 %v3527
          %v4052 = vunpack.c.l.b16 %v3528
          %v4053 = vunpack.c.h.b16 %v3528
          %v4054 = vunpack.c.l.b16 %v3529
          %v4055 = vunpack.c.h.b16 %v3529
          %v4056 = vunpack.c.l.b16 %v3530
          %v4057 = vunpack.c.h.b16 %v3530
          %v4058 = vunpack.c.l.b16 %v3531
          %v4059 = vunpack.c.h.b16 %v3531
          %v4060 = vunpack.c.l.b16 %v3532
          %v4061 = vunpack.c.h.b16 %v3532
          %v4062 = vunpack.c.l.b16 %v3533
          %v4063 = vunpack.c.h.b16 %v3533
          %v4064 = vunpack.c.l.b16 %v3534
          %v4065 = vunpack.c.h.b16 %v3534
          %v4066 = vunpack.c.l.b16 %v3535
          %v4067 = vunpack.c.h.b16 %v3535
          %v4068 = vunpack.c.l.b16 %v3536
          %v4069 = vunpack.c.h.b16 %v3536
          %v4070 = vunpack.c.l.b16 %v3537
          %v4071 = vunpack.c.h.b16 %v3537
          %v4072 = vunpack.c.l.b16 %v3538
          %v4073 = vunpack.c.h.b16 %v3538
          %v4074 = vunpack.c.l.b16 %v3539
          %v4075 = vunpack.c.h.b16 %v3539
          %v4076 = vunpack.c.l.b16 %v3540
          %v4077 = vunpack.c.h.b16 %v3540
          %v4078 = vunpack.c.l.b16 %v3541
          %v4079 = vunpack.c.h.b16 %v3541
          %v4080 = vunpack.c.l.b16 %v3542
          %v4081 = vunpack.c.h.b16 %v3542
          %v4082 = vunpack.c.l.b16 %v3543
          %v4083 = vunpack.c.h.b16 %v3543
          %v4084 = vunpack.c.l.b16 %v3544
          %v4085 = vunpack.c.h.b16 %v3544
          %v4086 = vunpack.c.l.b16 %v3545
          %v4087 = vunpack.c.h.b16 %v3545
          %v4088 = vunpack.c.l.b16 %v3546
          %v4089 = vunpack.c.h.b16 %v3546
          %v4090 = vunpack.c.l.b16 %v3547
          %v4091 = vunpack.c.h.b16 %v3547
          %v4092 = vunpack.c.l.b16 %v3548
          %v4093 = vunpack.c.h.b16 %v3548
          %v4094 = vunpack.c.l.b16 %v3549
          %v4095 = vunpack.c.h.b16 %v3549
          %v4096 = vunpack.c.l.b16 %v3550
          %v4097 = vunpack.c.h.b16 %v3550
          %v4098 = vunpack.c.l.b16 %v3551
          %v4099 = vunpack.c.h.b16 %v3551
          %v4100 = vunpack.c.l.b16 %v3552
          %v4101 = vunpack.c.h.b16 %v3552
          %v4102 = vunpack.c.l.b16 %v3553
          %v4103 = vunpack.c.h.b16 %v3553
          %v4104 = vunpack.c.l.b16 %v3554
          %v4105 = vunpack.c.h.b16 %v3554
          %v4106 = vunpack.c.l.b16 %v3555
          %v4107 = vunpack.c.h.b16 %v3555
          %v4108 = vunpack.c.l.b16 %v3556
          %v4109 = vunpack.c.h.b16 %v3556
          %v4110 = vunpack.c.l.b16 %v3557
          %v4111 = vunpack.c.h.b16 %v3557
          %v4112 = vunpack.c.l.b16 %v3558
          %v4113 = vunpack.c.h.b16 %v3558
          %v4114 = vunpack.c.l.b16 %v3559
          %v4115 = vunpack.c.h.b16 %v3559
          %v4116 = vunpack.c.l.b16 %v3560
          %v4117 = vunpack.c.h.b16 %v3560
          %v4118 = vunpack.c.l.b16 %v3561
          %v4119 = vunpack.c.h.b16 %v3561
          %v4120 = vunpack.c.l.b16 %v3562
          %v4121 = vunpack.c.h.b16 %v3562
          %v4122 = vunpack.c.l.b16 %v3563
          %v4123 = vunpack.c.h.b16 %v3563
          %v4124 = vunpack.c.l.b16 %v3564
          %v4125 = vunpack.c.h.b16 %v3564
          %v4126 = vunpack.c.l.b16 %v3565
          %v4127 = vunpack.c.h.b16 %v3565
          %v4128 = vunpack.c.l.b16 %v3566
          %v4129 = vunpack.c.h.b16 %v3566
          %v4130 = vunpack.c.l.b16 %v3567
          %v4131 = vunpack.c.h.b16 %v3567
          %v4132 = vunpack.c.l.b16 %v3568
          %v4133 = vunpack.c.h.b16 %v3568
          %v4134 = vunpack.c.l.b16 %v3569
          %v4135 = vunpack.c.h.b16 %v3569
          %v4136 = vunpack.c.l.b16 %v3570
          %v4137 = vunpack.c.h.b16 %v3570
          %v4138 = vunpack.c.l.b16 %v3571
          %v4139 = vunpack.c.h.b16 %v3571
          %v4140 = vunpack.c.l.b16 %v3572
          %v4141 = vunpack.c.h.b16 %v3572
          %v4142 = vunpack.c.l.b16 %v3573
          %v4143 = vunpack.c.h.b16 %v3573
          %v4144 = vunpack.c.l.b16 %v3574
          %v4145 = vunpack.c.h.b16 %v3574
          %v4146 = vunpack.c.l.b16 %v3575
          %v4147 = vunpack.c.h.b16 %v3575
          %v4148 = vunpack.c.l.b16 %v3576
          %v4149 = vunpack.c.h.b16 %v3576
          %v4150 = vunpack.c.l.b16 %v3577
          %v4151 = vunpack.c.h.b16 %v3577
          %v4152 = vunpack.c.l.b16 %v3578
          %v4153 = vunpack.c.h.b16 %v3578
          %v4154 = vunpack.c.l.b16 %v3579
          %v4155 = vunpack.c.h.b16 %v3579
          %v4156 = vunpack.c.l.b16 %v3580
          %v4157 = vunpack.c.h.b16 %v3580
          %v4158 = vunpack.c.l.b16 %v3581
          %v4159 = vunpack.c.h.b16 %v3581
          %v4160 = vunpack.c.l.b16 %v3582
          %v4161 = vunpack.c.h.b16 %v3582
          %v4162 = vunpack.c.l.b16 %v3583
          %v4163 = vunpack.c.h.b16 %v3583
          %v4164 = vunpack.c.l.b16 %v3584
          %v4165 = vunpack.c.h.b16 %v3584
          %v4166 = vunpack.c.l.b16 %v3585
          %v4167 = vunpack.c.h.b16 %v3585
          %v4168 = vunpack.c.l.b16 %v3586
          %v4169 = vunpack.c.h.b16 %v3586
          %v4170 = vunpack.c.l.b16 %v3587
          %v4171 = vunpack.c.h.b16 %v3587
          %v4172 = vunpack.c.l.b16 %v3588
          %v4173 = vunpack.c.h.b16 %v3588
          %v4174 = vunpack.c.l.b16 %v3589
          %v4175 = vunpack.c.h.b16 %v3589
          %v4176 = vunpack.c.l.b16 %v3590
          %v4177 = vunpack.c.h.b16 %v3590
          %v4178 = vunpack.c.l.b16 %v3591
          %v4179 = vunpack.c.h.b16 %v3591
          %v4180 = vunpack.c.l.b16 %v3592
          %v4181 = vunpack.c.h.b16 %v3592
          %v4182 = vunpack.c.l.b16 %v3593
          %v4183 = vunpack.c.h.b16 %v3593
          %v4184 = vunpack.c.l.b16 %v3594
          %v4185 = vunpack.c.h.b16 %v3594
          %v4186 = vunpack.c.l.b16 %v3595
          %v4187 = vunpack.c.h.b16 %v3595
          %v4188 = vunpack.c.l.b16 %v3596
          %v4189 = vunpack.c.h.b16 %v3596
          %v4190 = vunpack.c.l.b16 %v3597
          %v4191 = vunpack.c.h.b16 %v3597
          %v4192 = vunpack.c.l.b16 %v3598
          %v4193 = vunpack.c.h.b16 %v3598
          %v4194 = vunpack.c.l.b16 %v3599
          %v4195 = vunpack.c.h.b16 %v3599
          %v4196 = vunpack.c.l.b16 %v3600
          %v4197 = vunpack.c.h.b16 %v3600
          %v4198 = vunpack.c.l.b16 %v3601
          %v4199 = vunpack.c.h.b16 %v3601
          %v4200 = vunpack.c.l.b16 %v3602
          %v4201 = vunpack.c.h.b16 %v3602
          %v4202 = vunpack.c.l.b16 %v3603
          %v4203 = vunpack.c.h.b16 %v3603
          %v4204 = vunpack.c.l.b16 %v3604
          %v4205 = vunpack.c.h.b16 %v3604
          %v4206 = vunpack.c.l.b16 %v3605
          %v4207 = vunpack.c.h.b16 %v3605
          %v4208 = vunpack.c.l.b16 %v3606
          %v4209 = vunpack.c.h.b16 %v3606
          %v4210 = vunpack.c.l.b16 %v3607
          %v4211 = vunpack.c.h.b16 %v3607
          %v4212 = vunpack.c.l.b16 %v3608
          %v4213 = vunpack.c.h.b16 %v3608
          %v4214 = vunpack.c.l.b16 %v3609
          %v4215 = vunpack.c.h.b16 %v3609
          %v4216 = vunpack.c.l.b16 %v3610
          %v4217 = vunpack.c.h.b16 %v3610
          %v4218 = vunpack.c.l.b16 %v3611
          %v4219 = vunpack.c.h.b16 %v3611
          %v4220 = vunpack.c.l.b16 %v3612
          %v4221 = vunpack.c.h.b16 %v3612
          %v4222 = vunpack.c.l.b16 %v3613
          %v4223 = vunpack.c.h.b16 %v3613
          %v4224 = vunpack.c.l.b16 %v3614
          %v4225 = vunpack.c.h.b16 %v3614
          %v4226 = vunpack.c.l.b16 %v3615
          %v4227 = vunpack.c.h.b16 %v3615
          %v4228 = vunpack.c.l.b16 %v3616
          %v4229 = vunpack.c.h.b16 %v3616
          %v4230 = vunpack.c.l.b16 %v3617
          %v4231 = vunpack.c.h.b16 %v3617
          %v4232 = vunpack.c.l.b16 %v3618
          %v4233 = vunpack.c.h.b16 %v3618
          %v4234 = vunpack.c.l.b16 %v3619
          %v4235 = vunpack.c.h.b16 %v3619
          %v4236 = vunpack.c.l.b16 %v3620
          %v4237 = vunpack.c.h.b16 %v3620
          %v4238 = vunpack.c.l.b16 %v3621
          %v4239 = vunpack.c.h.b16 %v3621
          %v4240 = vunpack.c.l.b16 %v3622
          %v4241 = vunpack.c.h.b16 %v3622
          %v4242 = vunpack.c.l.b16 %v3623
          %v4243 = vunpack.c.h.b16 %v3623
          %v4244 = vunpack.c.l.b16 %v3624
          %v4245 = vunpack.c.h.b16 %v3624
          %v4246 = vunpack.c.l.b16 %v3625
          %v4247 = vunpack.c.h.b16 %v3625
          %v4248 = vunpack.c.l.b16 %v3626
          %v4249 = vunpack.c.h.b16 %v3626
          %v4250 = vunpack.c.l.b16 %v3627
          %v4251 = vunpack.c.h.b16 %v3627
          %v4252 = vunpack.c.l.b16 %v3628
          %v4253 = vunpack.c.h.b16 %v3628
          %v4254 = vunpack.c.l.b16 %v3629
          %v4255 = vunpack.c.h.b16 %v3629
          %v4256 = vunpack.c.l.b16 %v3630
          %v4257 = vunpack.c.h.b16 %v3630
          %v4258 = vunpack.c.l.b16 %v3631
          %v4259 = vunpack.c.h.b16 %v3631
          %v4260 = vunpack.c.l.b16 %v3632
          %v4261 = vunpack.c.h.b16 %v3632
          %v4262 = vunpack.c.l.b16 %v3633
          %v4263 = vunpack.c.h.b16 %v3633
          %v4264 = vunpack.c.l.b16 %v3634
          %v4265 = vunpack.c.h.b16 %v3634
          %v4266 = vunpack.c.l.b16 %v3635
          %v4267 = vunpack.c.h.b16 %v3635
          %v4268 = vunpack.c.l.b16 %v3636
          %v4269 = vunpack.c.h.b16 %v3636
          %v4270 = vunpack.c.l.b16 %v3637
          %v4271 = vunpack.c.h.b16 %v3637
          %v4272 = vunpack.c.l.b16 %v3638
          %v4273 = vunpack.c.h.b16 %v3638
          %v4274 = vunpack.c.l.b16 %v3639
          %v4275 = vunpack.c.h.b16 %v3639
          %v4276 = vunpack.c.l.b16 %v3640
          %v4277 = vunpack.c.h.b16 %v3640
          %v4278 = vunpack.c.l.b16 %v3641
          %v4279 = vunpack.c.h.b16 %v3641
          %v4280 = vunpack.c.l.b16 %v3642
          %v4281 = vunpack.c.h.b16 %v3642
          %v4282 = vunpack.c.l.b16 %v3643
          %v4283 = vunpack.c.h.b16 %v3643
          %v4284 = vunpack.c.l.b16 %v3644
          %v4285 = vunpack.c.h.b16 %v3644
          %v4286 = vunpack.c.l.b16 %v3645
          %v4287 = vunpack.c.h.b16 %v3645
          %v4288 = vunpack.c.l.b16 %v3646
          %v4289 = vunpack.c.h.b16 %v3646
          %v4290 = vunpack.c.l.b16 %v3647
          %v4291 = vunpack.c.h.b16 %v3647
          %v4292 = vunpack.c.l.b16 %v3648
          %v4293 = vunpack.c.h.b16 %v3648
          %v4294 = vunpack.c.l.b16 %v3649
          %v4295 = vunpack.c.h.b16 %v3649
          %v4296 = vunpack.c.l.b16 %v3650
          %v4297 = vunpack.c.h.b16 %v3650
          %v4298 = vunpack.c.l.b16 %v3651
          %v4299 = vunpack.c.h.b16 %v3651
          %v4300 = vunpack.c.l.b16 %v3652
          %v4301 = vunpack.c.h.b16 %v3652
          %v4302 = vunpack.c.l.b16 %v3653
          %v4303 = vunpack.c.h.b16 %v3653
          %v4304 = vunpack.c.l.b16 %v3654
          %v4305 = vunpack.c.h.b16 %v3654
          %v4306 = vunpack.c.l.b16 %v3655
          %v4307 = vunpack.c.h.b16 %v3655
          %v4308 = vunpack.c.l.b16 %v3656
          %v4309 = vunpack.c.h.b16 %v3656
          %v4310 = vunpack.c.l.b16 %v3657
          %v4311 = vunpack.c.h.b16 %v3657
          %v4312 = vunpack.c.l.b16 %v3658
          %v4313 = vunpack.c.h.b16 %v3658
          %v4314 = vunpack.c.l.b16 %v3659
          %v4315 = vunpack.c.h.b16 %v3659
          %v4316 = vunpack.c.l.b16 %v3660
          %v4317 = vunpack.c.h.b16 %v3660
          %v4318 = vunpack.c.l.b16 %v3661
          %v4319 = vunpack.c.h.b16 %v3661
          %v4320 = vunpack.c.l.b16 %v3662
          %v4321 = vunpack.c.h.b16 %v3662
          %v4322 = vunpack.c.l.b16 %v3663
          %v4323 = vunpack.c.h.b16 %v3663
          %v4324 = vunpack.c.l.b16 %v3664
          %v4325 = vunpack.c.h.b16 %v3664
          %v4326 = vunpack.c.l.b16 %v3665
          %v4327 = vunpack.c.h.b16 %v3665
          %v4328 = vunpack.c.l.b16 %v3666
          %v4329 = vunpack.c.h.b16 %v3666
          %v4330 = vunpack.c.l.b16 %v3667
          %v4331 = vunpack.c.h.b16 %v3667
          %v4332 = vunpack.c.l.b16 %v3668
          %v4333 = vunpack.c.h.b16 %v3668
          %v4334 = vunpack.c.l.b16 %v3669
          %v4335 = vunpack.c.h.b16 %v3669
          %v4336 = vunpack.c.l.b16 %v3670
          %v4337 = vunpack.c.h.b16 %v3670
          %v4338 = vunpack.c.l.b16 %v3671
          %v4339 = vunpack.c.h.b16 %v3671
          %v4340 = vunpack.c.l.b16 %v3672
          %v4341 = vunpack.c.h.b16 %v3672
          %v4342 = vunpack.c.l.b16 %v3673
          %v4343 = vunpack.c.h.b16 %v3673
          %v4344 = vunpack.c.l.b16 %v3674
          %v4345 = vunpack.c.h.b16 %v3674
          %v4346 = vunpack.c.l.b16 %v3675
          %v4347 = vunpack.c.h.b16 %v3675
          %v4348 = vunpack.c.l.b16 %v3676
          %v4349 = vunpack.c.h.b16 %v3676
          %v4350 = vunpack.c.l.b16 %v3677
          %v4351 = vunpack.c.h.b16 %v3677
          %v4352 = vunpack.c.l.b16 %v3678
          %v4353 = vunpack.c.h.b16 %v3678
          %v4354 = vunpack.c.l.b16 %v3679
          %v4355 = vunpack.c.h.b16 %v3679
          %v4356 = vunpack.c.l.b16 %v3680
          %v4357 = vunpack.c.h.b16 %v3680
          %v4358 = vunpack.c.l.b16 %v3681
          %v4359 = vunpack.c.h.b16 %v3681
          %v4360 = vunpack.c.l.b16 %v3682
          %v4361 = vunpack.c.h.b16 %v3682
          %v4362 = vunpack.c.l.b16 %v3683
          %v4363 = vunpack.c.h.b16 %v3683
          %v4364 = vunpack.c.l.b16 %v3684
          %v4365 = vunpack.c.h.b16 %v3684
          %v4366 = vunpack.c.l.b16 %v3685
          %v4367 = vunpack.c.h.b16 %v3685
          %v4368 = vunpack.c.l.b16 %v3686
          %v4369 = vunpack.c.h.b16 %v3686
          %v4370 = vunpack.c.l.b16 %v3687
          %v4371 = vunpack.c.h.b16 %v3687
          %v4372 = vunpack.c.l.b16 %v3688
          %v4373 = vunpack.c.h.b16 %v3688
          %v4374 = vunpack.c.l.b16 %v3689
          %v4375 = vunpack.c.h.b16 %v3689
          %v4376 = vunpack.c.l.b16 %v3690
          %v4377 = vunpack.c.h.b16 %v3690
          %v4378 = vunpack.c.l.b16 %v3691
          %v4379 = vunpack.c.h.b16 %v3691
          %v4380 = vunpack.c.l.b16 %v3692
          %v4381 = vunpack.c.h.b16 %v3692
          %v4382 = vunpack.c.l.b16 %v3693
          %v4383 = vunpack.c.h.b16 %v3693
          %v4384 = vunpack.c.l.b16 %v3694
          %v4385 = vunpack.c.h.b16 %v3694
          %v4386 = vunpack.c.l.b16 %v3695
          %v4387 = vunpack.c.h.b16 %v3695
          %v4388 = vunpack.c.l.b16 %v3696
          %v4389 = vunpack.c.h.b16 %v3696
          %v4390 = vunpack.c.l.b16 %v3697
          %v4391 = vunpack.c.h.b16 %v3697
          %v4392 = vunpack.c.l.b16 %v3698
          %v4393 = vunpack.c.h.b16 %v3698
          %v4394 = vunpack.c.l.b16 %v3699
          %v4395 = vunpack.c.h.b16 %v3699
          %v4396 = vunpack.c.l.b16 %v3700
          %v4397 = vunpack.c.h.b16 %v3700
          %v4398 = vunpack.c.l.b16 %v3701
          %v4399 = vunpack.c.h.b16 %v3701
          %v4400 = vunpack.c.l.b16 %v3702
          %v4401 = vunpack.c.h.b16 %v3702
          %v4402 = vunpack.c.l.b16 %v3703
          %v4403 = vunpack.c.h.b16 %v3703
          %v4404 = vunpack.c.l.b16 %v3704
          %v4405 = vunpack.c.h.b16 %v3704
          %v4406 = vunpack.c.l.b16 %v3705
          %v4407 = vunpack.c.h.b16 %v3705
          %v4408 = vunpack.c.l.b16 %v3706
          %v4409 = vunpack.c.h.b16 %v3706
          %v4410 = vunpack.c.l.b16 %v3707
          %v4411 = vunpack.c.h.b16 %v3707
          %v4412 = vunpack.c.l.b16 %v3708
          %v4413 = vunpack.c.h.b16 %v3708
          %v4414 = vunpack.c.l.b16 %v3709
          %v4415 = vunpack.c.h.b16 %v3709
          %v4416 = vunpack.c.l.b16 %v3710
          %v4417 = vunpack.c.h.b16 %v3710
          %v4418 = vunpack.c.l.b16 %v3711
          %v4419 = vunpack.c.h.b16 %v3711
          %v4420 = vunpack.c.l.b16 %v3712
          %v4421 = vunpack.c.h.b16 %v3712
          %v4422 = vunpack.c.l.b16 %v3713
          %v4423 = vunpack.c.h.b16 %v3713
          %v4424 = vunpack.c.l.b16 %v3714
          %v4425 = vunpack.c.h.b16 %v3714
          %v4426 = vunpack.c.l.b16 %v3715
          %v4427 = vunpack.c.h.b16 %v3715
          %v4428 = vunpack.c.l.b16 %v3716
          %v4429 = vunpack.c.h.b16 %v3716
          %v4430 = vunpack.c.l.b16 %v3717
          %v4431 = vunpack.c.h.b16 %v3717
          %v4432 = vunpack.c.l.b16 %v3718
          %v4433 = vunpack.c.h.b16 %v3718
          %v4434 = vunpack.c.l.b16 %v3719
          %v4435 = vunpack.c.h.b16 %v3719
          %v4436 = vunpack.c.l.b16 %v3720
          %v4437 = vunpack.c.h.b16 %v3720
          %v4438 = vunpack.c.l.b16 %v3721
          %v4439 = vunpack.c.h.b16 %v3721
          %v4440 = vunpack.c.l.b16 %v3722
          %v4441 = vunpack.c.h.b16 %v3722
          %v4442 = vunpack.c.l.b16 %v3723
          %v4443 = vunpack.c.h.b16 %v3723
          %v4444 = vunpack.c.l.b16 %v3724
          %v4445 = vunpack.c.h.b16 %v3724
          %v4446 = vunpack.c.l.b16 %v3725
          %v4447 = vunpack.c.h.b16 %v3725
          %v4448 = vunpack.c.l.b16 %v3726
          %v4449 = vunpack.c.h.b16 %v3726
          %v4450 = vunpack.c.l.b16 %v3727
          %v4451 = vunpack.c.h.b16 %v3727
          %v4452 = vunpack.c.l.b16 %v3728
          %v4453 = vunpack.c.h.b16 %v3728
          %v4454 = vunpack.c.l.b16 %v3729
          %v4455 = vunpack.c.h.b16 %v3729
          %v4456 = vunpack.c.l.b16 %v3730
          %v4457 = vunpack.c.h.b16 %v3730
          %v4458 = vunpack.c.l.b16 %v3731
          %v4459 = vunpack.c.h.b16 %v3731
          %v4460 = vunpack.c.l.b16 %v3732
          %v4461 = vunpack.c.h.b16 %v3732
          %v4462 = vunpack.c.l.b16 %v3733
          %v4463 = vunpack.c.h.b16 %v3733
          %v4464 = vunpack.c.l.b16 %v3734
          %v4465 = vunpack.c.h.b16 %v3734
          %v4466 = vunpack.c.l.b16 %v3735
          %v4467 = vunpack.c.h.b16 %v3735
          %v4468 = vunpack.c.l.b16 %v3736
          %v4469 = vunpack.c.h.b16 %v3736
          %v4470 = vunpack.c.l.b16 %v3737
          %v4471 = vunpack.c.h.b16 %v3737
          %v4472 = vunpack.c.l.b16 %v3738
          %v4473 = vunpack.c.h.b16 %v3738
          %v4474 = vunpack.c.l.b16 %v3739
          %v4475 = vunpack.c.h.b16 %v3739
          %v4476 = vunpack.c.l.b16 %v3740
          %v4477 = vunpack.c.h.b16 %v3740
          %v4478 = vunpack.c.l.b16 %v3741
          %v4479 = vunpack.c.h.b16 %v3741
          %v4480 = vunpack.c.l.b16 %v3742
          %v4481 = vunpack.c.h.b16 %v3742
          %v4482 = vunpack.c.l.b16 %v3743
          %v4483 = vunpack.c.h.b16 %v3743
          %v4484 = vunpack.c.l.b16 %v3744
          %v4485 = vunpack.c.h.b16 %v3744
          %v4486 = vunpack.c.l.b16 %v3745
          %v4487 = vunpack.c.h.b16 %v3745
          %v4488 = vunpack.c.l.b16 %v3746
          %v4489 = vunpack.c.h.b16 %v3746
          %v4490 = vunpack.c.l.b16 %v3747
          %v4491 = vunpack.c.h.b16 %v3747
          %v4492 = vunpack.c.l.b16 %v3748
          %v4493 = vunpack.c.h.b16 %v3748
          %v4494 = vunpack.c.l.b16 %v3749
          %v4495 = vunpack.c.h.b16 %v3749
          %v4496 = vunpack.c.l.b16 %v3750
          %v4497 = vunpack.c.h.b16 %v3750
          %v4498 = vunpack.c.l.b16 %v3751
          %v4499 = vunpack.c.h.b16 %v3751
          %v4500 = vunpack.c.l.b16 %v3752
          %v4501 = vunpack.c.h.b16 %v3752
          %v4502 = vunpack.c.l.b16 %v3753
          %v4503 = vunpack.c.h.b16 %v3753
          %v4504 = vunpack.c.l.b16 %v3754
          %v4505 = vunpack.c.h.b16 %v3754
          %v4506 = vunpack.c.l.b16 %v3755
          %v4507 = vunpack.c.h.b16 %v3755
          %v4508 = vunpack.c.l.b16 %v3756
          %v4509 = vunpack.c.h.b16 %v3756
          %v4510 = vunpack.c.l.b16 %v3757
          %v4511 = vunpack.c.h.b16 %v3757
          %v4512 = vunpack.c.l.b16 %v3758
          %v4513 = vunpack.c.h.b16 %v3758
          %v4514 = vunpack.c.l.b16 %v3759
          %v4515 = vunpack.c.h.b16 %v3759
          %v4516 = vunpack.c.l.b16 %v3760
          %v4517 = vunpack.c.h.b16 %v3760
          %v4518 = vunpack.c.l.b16 %v3761
          %v4519 = vunpack.c.h.b16 %v3761
          %v4520 = vunpack.c.l.b16 %v3762
          %v4521 = vunpack.c.h.b16 %v3762
          %v4522 = vunpack.c.l.b16 %v3763
          %v4523 = vunpack.c.h.b16 %v3763
          %v4524 = vunpack.c.l.b16 %v3764
          %v4525 = vunpack.c.h.b16 %v3764
          %v4526 = vunpack.c.l.b16 %v3765
          %v4527 = vunpack.c.h.b16 %v3765
          %v4528 = vunpack.c.l.b16 %v3766
          %v4529 = vunpack.c.h.b16 %v3766
          %v4530 = vunpack.c.l.b16 %v3767
          %v4531 = vunpack.c.h.b16 %v3767
          %v4532 = vunpack.c.l.b16 %v3768
          %v4533 = vunpack.c.h.b16 %v3768
          %v4534 = vunpack.c.l.b16 %v3769
          %v4535 = vunpack.c.h.b16 %v3769
          %v4536 = vunpack.c.l.b16 %v3770
          %v4537 = vunpack.c.h.b16 %v3770
          %v4538 = vunpack.c.l.b16 %v3771
          %v4539 = vunpack.c.h.b16 %v3771
          %v4540 = vunpack.c.l.b16 %v3772
          %v4541 = vunpack.c.h.b16 %v3772
          %v4542 = vpack.c.b16 %v4032, %v4030
          %v4543 = vpack.c.b16 %v4033, %v4031
          %v4544 = vpack.c.b16 %v4036, %v4034
          %v4545 = vpack.c.b16 %v4037, %v4035
          %v4546 = vpack.c.b16 %v4040, %v4038
          %v4547 = vpack.c.b16 %v4041, %v4039
          %v4548 = vpack.c.b16 %v4044, %v4042
          %v4549 = vpack.c.b16 %v4045, %v4043
          %v4550 = vpack.c.b16 %v4048, %v4046
          %v4551 = vpack.c.b16 %v4049, %v4047
          %v4552 = vpack.c.b16 %v4052, %v4050
          %v4553 = vpack.c.b16 %v4053, %v4051
          %v4554 = vpack.c.b16 %v4056, %v4054
          %v4555 = vpack.c.b16 %v4057, %v4055
          %v4556 = vpack.c.b16 %v4060, %v4058
          %v4557 = vpack.c.b16 %v4061, %v4059
          %v4558 = vpack.c.b16 %v4064, %v4062
          %v4559 = vpack.c.b16 %v4065, %v4063
          %v4560 = vpack.c.b16 %v4068, %v4066
          %v4561 = vpack.c.b16 %v4069, %v4067
          %v4562 = vpack.c.b16 %v4072, %v4070
          %v4563 = vpack.c.b16 %v4073, %v4071
          %v4564 = vpack.c.b16 %v4076, %v4074
          %v4565 = vpack.c.b16 %v4077, %v4075
          %v4566 = vpack.c.b16 %v4080, %v4078
          %v4567 = vpack.c.b16 %v4081, %v4079
          %v4568 = vpack.c.b16 %v4084, %v4082
          %v4569 = vpack.c.b16 %v4085, %v4083
          %v4570 = vpack.c.b16 %v4088, %v4086
          %v4571 = vpack.c.b16 %v4089, %v4087
          %v4572 = vpack.c.b16 %v4092, %v4090
          %v4573 = vpack.c.b16 %v4093, %v4091
          %v4574 = vpack.c.b16 %v4096, %v4094
          %v4575 = vpack.c.b16 %v4097, %v4095
          %v4576 = vpack.c.b16 %v4100, %v4098
          %v4577 = vpack.c.b16 %v4101, %v4099
          %v4578 = vpack.c.b16 %v4104, %v4102
          %v4579 = vpack.c.b16 %v4105, %v4103
          %v4580 = vpack.c.b16 %v4108, %v4106
          %v4581 = vpack.c.b16 %v4109, %v4107
          %v4582 = vpack.c.b16 %v4112, %v4110
          %v4583 = vpack.c.b16 %v4113, %v4111
          %v4584 = vpack.c.b16 %v4116, %v4114
          %v4585 = vpack.c.b16 %v4117, %v4115
          %v4586 = vpack.c.b16 %v4120, %v4118
          %v4587 = vpack.c.b16 %v4121, %v4119
          %v4588 = vpack.c.b16 %v4124, %v4122
          %v4589 = vpack.c.b16 %v4125, %v4123
          %v4590 = vpack.c.b16 %v4128, %v4126
          %v4591 = vpack.c.b16 %v4129, %v4127
          %v4592 = vpack.c.b16 %v4132, %v4130
          %v4593 = vpack.c.b16 %v4133, %v4131
          %v4594 = vpack.c.b16 %v4136, %v4134
          %v4595 = vpack.c.b16 %v4137, %v4135
          %v4596 = vpack.c.b16 %v4140, %v4138
          %v4597 = vpack.c.b16 %v4141, %v4139
          %v4598 = vpack.c.b16 %v4144, %v4142
          %v4599 = vpack.c.b16 %v4145, %v4143
          %v4600 = vpack.c.b16 %v4148, %v4146
          %v4601 = vpack.c.b16 %v4149, %v4147
          %v4602 = vpack.c.b16 %v4152, %v4150
          %v4603 = vpack.c.b16 %v4153, %v4151
          %v4604 = vpack.c.b16 %v4156, %v4154
          %v4605 = vpack.c.b16 %v4157, %v4155
          %v4606 = vpack.c.b16 %v4160, %v4158
          %v4607 = vpack.c.b16 %v4161, %v4159
          %v4608 = vpack.c.b16 %v4164, %v4162
          %v4609 = vpack.c.b16 %v4165, %v4163
          %v4610 = vpack.c.b16 %v4168, %v4166
          %v4611 = vpack.c.b16 %v4169, %v4167
          %v4612 = vpack.c.b16 %v4172, %v4170
          %v4613 = vpack.c.b16 %v4173, %v4171
          %v4614 = vpack.c.b16 %v4176, %v4174
          %v4615 = vpack.c.b16 %v4177, %v4175
          %v4616 = vpack.c.b16 %v4180, %v4178
          %v4617 = vpack.c.b16 %v4181, %v4179
          %v4618 = vpack.c.b16 %v4184, %v4182
          %v4619 = vpack.c.b16 %v4185, %v4183
          %v4620 = vpack.c.b16 %v4188, %v4186
          %v4621 = vpack.c.b16 %v4189, %v4187
          %v4622 = vpack.c.b16 %v4192, %v4190
          %v4623 = vpack.c.b16 %v4193, %v4191
          %v4624 = vpack.c.b16 %v4196, %v4194
          %v4625 = vpack.c.b16 %v4197, %v4195
          %v4626 = vpack.c.b16 %v4200, %v4198
          %v4627 = vpack.c.b16 %v4201, %v4199
          %v4628 = vpack.c.b16 %v4204, %v4202
          %v4629 = vpack.c.b16 %v4205, %v4203
          %v4630 = vpack.c.b16 %v4208, %v4206
          %v4631 = vpack.c.b16 %v4209, %v4207
          %v4632 = vpack.c.b16 %v4212, %v4210
          %v4633 = vpack.c.b16 %v4213, %v4211
          %v4634 = vpack.c.b16 %v4216, %v4214
          %v4635 = vpack.c.b16 %v4217, %v4215
          %v4636 = vpack.c.b16 %v4220, %v4218
          %v4637 = vpack.c.b16 %v4221, %v4219
          %v4638 = vpack.c.b16 %v4224, %v4222
          %v4639 = vpack.c.b16 %v4225, %v4223
          %v4640 = vpack.c.b16 %v4228, %v4226
          %v4641 = vpack.c.b16 %v4229, %v4227
          %v4642 = vpack.c.b16 %v4232, %v4230
          %v4643 = vpack.c.b16 %v4233, %v4231
          %v4644 = vpack.c.b16 %v4236, %v4234
          %v4645 = vpack.c.b16 %v4237, %v4235
          %v4646 = vpack.c.b16 %v4240, %v4238
          %v4647 = vpack.c.b16 %v4241, %v4239
          %v4648 = vpack.c.b16 %v4244, %v4242
          %v4649 = vpack.c.b16 %v4245, %v4243
          %v4650 = vpack.c.b16 %v4248, %v4246
          %v4651 = vpack.c.b16 %v4249, %v4247
          %v4652 = vpack.c.b16 %v4252, %v4250
          %v4653 = vpack.c.b16 %v4253, %v4251
          %v4654 = vpack.c.b16 %v4256, %v4254
          %v4655 = vpack.c.b16 %v4257, %v4255
          %v4656 = vpack.c.b16 %v4260, %v4258
          %v4657 = vpack.c.b16 %v4261, %v4259
          %v4658 = vpack.c.b16 %v4264, %v4262
          %v4659 = vpack.c.b16 %v4265, %v4263
          %v4660 = vpack.c.b16 %v4268, %v4266
          %v4661 = vpack.c.b16 %v4269, %v4267
          %v4662 = vpack.c.b16 %v4272, %v4270
          %v4663 = vpack.c.b16 %v4273, %v4271
          %v4664 = vpack.c.b16 %v4276, %v4274
          %v4665 = vpack.c.b16 %v4277, %v4275
          %v4666 = vpack.c.b16 %v4280, %v4278
          %v4667 = vpack.c.b16 %v4281, %v4279
          %v4668 = vpack.c.b16 %v4284, %v4282
          %v4669 = vpack.c.b16 %v4285, %v4283
          %v4670 = vpack.c.b16 %v4288, %v4286
          %v4671 = vpack.c.b16 %v4289, %v4287
          %v4672 = vpack.c.b16 %v4292, %v4290
          %v4673 = vpack.c.b16 %v4293, %v4291
          %v4674 = vpack.c.b16 %v4296, %v4294
          %v4675 = vpack.c.b16 %v4297, %v4295
          %v4676 = vpack.c.b16 %v4300, %v4298
          %v4677 = vpack.c.b16 %v4301, %v4299
          %v4678 = vpack.c.b16 %v4304, %v4302
          %v4679 = vpack.c.b16 %v4305, %v4303
          %v4680 = vpack.c.b16 %v4308, %v4306
          %v4681 = vpack.c.b16 %v4309, %v4307
          %v4682 = vpack.c.b16 %v4312, %v4310
          %v4683 = vpack.c.b16 %v4313, %v4311
          %v4684 = vpack.c.b16 %v4316, %v4314
          %v4685 = vpack.c.b16 %v4317, %v4315
          %v4686 = vpack.c.b16 %v4320, %v4318
          %v4687 = vpack.c.b16 %v4321, %v4319
          %v4688 = vpack.c.b16 %v4324, %v4322
          %v4689 = vpack.c.b16 %v4325, %v4323
          %v4690 = vpack.c.b16 %v4328, %v4326
          %v4691 = vpack.c.b16 %v4329, %v4327
          %v4692 = vpack.c.b16 %v4332, %v4330
          %v4693 = vpack.c.b16 %v4333, %v4331
          %v4694 = vpack.c.b16 %v4336, %v4334
          %v4695 = vpack.c.b16 %v4337, %v4335
          %v4696 = vpack.c.b16 %v4340, %v4338
          %v4697 = vpack.c.b16 %v4341, %v4339
          %v4698 = vpack.c.b16 %v4344, %v4342
          %v4699 = vpack.c.b16 %v4345, %v4343
          %v4700 = vpack.c.b16 %v4348, %v4346
          %v4701 = vpack.c.b16 %v4349, %v4347
          %v4702 = vpack.c.b16 %v4352, %v4350
          %v4703 = vpack.c.b16 %v4353, %v4351
          %v4704 = vpack.c.b16 %v4356, %v4354
          %v4705 = vpack.c.b16 %v4357, %v4355
          %v4706 = vpack.c.b16 %v4360, %v4358
          %v4707 = vpack.c.b16 %v4361, %v4359
          %v4708 = vpack.c.b16 %v4364, %v4362
          %v4709 = vpack.c.b16 %v4365, %v4363
          %v4710 = vpack.c.b16 %v4368, %v4366
          %v4711 = vpack.c.b16 %v4369, %v4367
          %v4712 = vpack.c.b16 %v4372, %v4370
          %v4713 = vpack.c.b16 %v4373, %v4371
          %v4714 = vpack.c.b16 %v4376, %v4374
          %v4715 = vpack.c.b16 %v4377, %v4375
          %v4716 = vpack.c.b16 %v4380, %v4378
          %v4717 = vpack.c.b16 %v4381, %v4379
          %v4718 = vpack.c.b16 %v4384, %v4382
          %v4719 = vpack.c.b16 %v4385, %v4383
          %v4720 = vpack.c.b16 %v4388, %v4386
          %v4721 = vpack.c.b16 %v4389, %v4387
          %v4722 = vpack.c.b16 %v4392, %v4390
          %v4723 = vpack.c.b16 %v4393, %v4391
          %v4724 = vpack.c.b16 %v4396, %v4394
          %v4725 = vpack.c.b16 %v4397, %v4395
          %v4726 = vpack.c.b16 %v4400, %v4398
          %v4727 = vpack.c.b16 %v4401, %v4399
          %v4728 = vpack.c.b16 %v4404, %v4402
          %v4729 = vpack.c.b16 %v4405, %v4403
          %v4730 = vpack.c.b16 %v4408, %v4406
          %v4731 = vpack.c.b16 %v4409, %v4407
          %v4732 = vpack.c.b16 %v4412, %v4410
          %v4733 = vpack.c.b16 %v4413, %v4411
          %v4734 = vpack.c.b16 %v4416, %v4414
          %v4735 = vpack.c.b16 %v4417, %v4415
          %v4736 = vpack.c.b16 %v4420, %v4418
          %v4737 = vpack.c.b16 %v4421, %v4419
          %v4738 = vpack.c.b16 %v4424, %v4422
          %v4739 = vpack.c.b16 %v4425, %v4423
          %v4740 = vpack.c.b16 %v4428, %v4426
          %v4741 = vpack.c.b16 %v4429, %v4427
          %v4742 = vpack.c.b16 %v4432, %v4430
          %v4743 = vpack.c.b16 %v4433, %v4431
          %v4744 = vpack.c.b16 %v4436, %v4434
          %v4745 = vpack.c.b16 %v4437, %v4435
          %v4746 = vpack.c.b16 %v4440, %v4438
          %v4747 = vpack.c.b16 %v4441, %v4439
          %v4748 = vpack.c.b16 %v4444, %v4442
          %v4749 = vpack.c.b16 %v4445, %v4443
          %v4750 = vpack.c.b16 %v4448, %v4446
          %v4751 = vpack.c.b16 %v4449, %v4447
          %v4752 = vpack.c.b16 %v4452, %v4450
          %v4753 = vpack.c.b16 %v4453, %v4451
          %v4754 = vpack.c.b16 %v4456, %v4454
          %v4755 = vpack.c.b16 %v4457, %v4455
          %v4756 = vpack.c.b16 %v4460, %v4458
          %v4757 = vpack.c.b16 %v4461, %v4459
          %v4758 = vpack.c.b16 %v4464, %v4462
          %v4759 = vpack.c.b16 %v4465, %v4463
          %v4760 = vpack.c.b16 %v4468, %v4466
          %v4761 = vpack.c.b16 %v4469, %v4467
          %v4762 = vpack.c.b16 %v4472, %v4470
          %v4763 = vpack.c.b16 %v4473, %v4471
          %v4764 = vpack.c.b16 %v4476, %v4474
          %v4765 = vpack.c.b16 %v4477, %v4475
          %v4766 = vpack.c.b16 %v4480, %v4478
          %v4767 = vpack.c.b16 %v4481, %v4479
          %v4768 = vpack.c.b16 %v4484, %v4482
          %v4769 = vpack.c.b16 %v4485, %v4483
          %v4770 = vpack.c.b16 %v4488, %v4486
          %v4771 = vpack.c.b16 %v4489, %v4487
          %v4772 = vpack.c.b16 %v4492, %v4490
          %v4773 = vpack.c.b16 %v4493, %v4491
          %v4774 = vpack.c.b16 %v4496, %v4494
          %v4775 = vpack.c.b16 %v4497, %v4495
          %v4776 = vpack.c.b16 %v4500, %v4498
          %v4777 = vpack.c.b16 %v4501, %v4499
          %v4778 = vpack.c.b16 %v4504, %v4502
          %v4779 = vpack.c.b16 %v4505, %v4503
          %v4780 = vpack.c.b16 %v4508, %v4506
          %v4781 = vpack.c.b16 %v4509, %v4507
          %v4782 = vpack.c.b16 %v4512, %v4510
          %v4783 = vpack.c.b16 %v4513, %v4511
          %v4784 = vpack.c.b16 %v4516, %v4514
          %v4785 = vpack.c.b16 %v4517, %v4515
          %v4786 = vpack.c.b16 %v4520, %v4518
          %v4787 = vpack.c.b16 %v4521, %v4519
          %v4788 = vpack.c.b16 %v4524, %v4522
          %v4789 = vpack.c.b16 %v4525, %v4523
          %v4790 = vpack.c.b16 %v4528, %v4526
          %v4791 = vpack.c.b16 %v4529, %v4527
          %v4792 = vpack.c.b16 %v4532, %v4530
          %v4793 = vpack.c.b16 %v4533, %v4531
          %v4794 = vpack.c.b16 %v4536, %v4534
          %v4795 = vpack.c.b16 %v4537, %v4535
          %v4796 = vpack.c.b16 %v4540, %v4538
          %v4797 = vpack.c.b16 %v4541, %v4539
          %v5055 = vlaneseq
          %v5056 = vshrl.u32 %v5055, 7
          %v5057 = vsub.s32 0, %v5056
          %v5058 = vrot.slane %v3773, %v5057
          %v5059 = vlaneseq
          %v5060 = vshrl.u32 %v5059, 7
          %v5061 = vsub.s32 1, %v5060
          %v5062 = vrot.slane %v3773, %v5061
          %5065 = vmatprep.subr.bf16.mxu0 %v4557
          %5066 = vmatpush1.bf16.msra.mxu0 %v4556
          %5067 = vmatprep.subr.bf16.mxu0 %v4555
          %5068 = vmatpush1.bf16.msra.mxu0 %v4554
          %5069 = vmatprep.subr.bf16.mxu0 %v4553
          %5070 = vmatpush1.bf16.msra.mxu0 %v4552
          %5071 = vmatprep.subr.bf16.mxu0 %v4551
          %5072 = vmatpush1.bf16.msra.mxu0 %v4550
          %5073 = vmatprep.subr.bf16.mxu0 %v4549
          %5074 = vmatpush1.bf16.msra.mxu0 %v4548
          %5075 = vmatprep.subr.bf16.mxu0 %v4547
          %5076 = vmatpush1.bf16.msra.mxu0 %v4546
          %5077 = vmatprep.subr.bf16.mxu0 %v4545
          %5078 = vmatpush1.bf16.msra.mxu0 %v4544
          %5079 = vmatprep.subr.bf16.mxu0 %v4543
          %5080 = vmatpush1.bf16.msra.mxu0 %v4542
          %5081 = vmatprep.subr.bf16.mxu0 %v4573
          %5082 = vmatpush2.bf16.msra.mxu0 %v4572
          %5083 = vmatprep.subr.bf16.mxu0 %v4571
          %5084 = vmatpush2.bf16.msra.mxu0 %v4570
          %5085 = vmatprep.subr.bf16.mxu0 %v4569
          %5086 = vmatpush2.bf16.msra.mxu0 %v4568
          %5087 = vmatprep.subr.bf16.mxu0 %v4567
          %5088 = vmatpush2.bf16.msra.mxu0 %v4566
          %5089 = vmatprep.subr.bf16.mxu0 %v4565
          %5090 = vmatpush2.bf16.msra.mxu0 %v4564
          %5091 = vmatprep.subr.bf16.mxu0 %v4563
          %5092 = vmatpush2.bf16.msra.mxu0 %v4562
          %5093 = vmatprep.subr.bf16.mxu0 %v4561
          %5094 = vmatpush2.bf16.msra.mxu0 %v4560
          %5095 = vmatprep.subr.bf16.mxu0 %v4559
          %5096 = vmatpush2.bf16.msra.mxu0 %v4558
          %5097 = vmatprep.mubr.bf16.mxu0 %v3502
          %5098 = vmatmul.mubr.bf16.gmra.mxu0 %v3501
          %v5099 = vpop.f32.mrf.mxu0
          %v5100 = vadd.f32 %v5058, %v5099
          %v5101 = vpop.f32.mrf.mxu0
          %v5102 = vadd.f32 %v5062, %v5101
          %v5103 = vpop.f32.mrf.mxu0
          %v5104 = vpop.f32.mrf.mxu0
          %5105 = vdwg.mxu0
          %5106 = vmatprep.subr.bf16.mxu0 %v4589
          %5107 = vmatpush1.bf16.msra.mxu0 %v4588
          %5108 = vmatprep.subr.bf16.mxu0 %v4587
          %5109 = vmatpush1.bf16.msra.mxu0 %v4586
          %5110 = vmatprep.subr.bf16.mxu0 %v4585
          %5111 = vmatpush1.bf16.msra.mxu0 %v4584
          %5112 = vmatprep.subr.bf16.mxu0 %v4583
          %5113 = vmatpush1.bf16.msra.mxu0 %v4582
          %5114 = vmatprep.subr.bf16.mxu0 %v4581
          %5115 = vmatpush1.bf16.msra.mxu0 %v4580
          %5116 = vmatprep.subr.bf16.mxu0 %v4579
          %5117 = vmatpush1.bf16.msra.mxu0 %v4578
          %5118 = vmatprep.subr.bf16.mxu0 %v4577
          %5119 = vmatpush1.bf16.msra.mxu0 %v4576
          %5120 = vmatprep.subr.bf16.mxu0 %v4575
          %5121 = vmatpush1.bf16.msra.mxu0 %v4574
          %5122 = vmatprep.subr.bf16.mxu0 %v4605
          %5123 = vmatpush2.bf16.msra.mxu0 %v4604
          %5124 = vmatprep.subr.bf16.mxu0 %v4603
          %5125 = vmatpush2.bf16.msra.mxu0 %v4602
          %5126 = vmatprep.subr.bf16.mxu0 %v4601
          %5127 = vmatpush2.bf16.msra.mxu0 %v4600
          %5128 = vmatprep.subr.bf16.mxu0 %v4599
          %5129 = vmatpush2.bf16.msra.mxu0 %v4598
          %5130 = vmatprep.subr.bf16.mxu0 %v4597
          %5131 = vmatpush2.bf16.msra.mxu0 %v4596
          %5132 = vmatprep.subr.bf16.mxu0 %v4595
          %5133 = vmatpush2.bf16.msra.mxu0 %v4594
          %5134 = vmatprep.subr.bf16.mxu0 %v4593
          %5135 = vmatpush2.bf16.msra.mxu0 %v4592
          %5136 = vmatprep.subr.bf16.mxu0 %v4591
          %5137 = vmatpush2.bf16.msra.mxu0 %v4590
          %5138 = vmatprep.mubr.bf16.mxu0 %v3504
          %5139 = vmatmul.mubr.bf16.gmra.mxu0 %v3503
          %v5140 = vpop.f32.mrf.mxu0
          %v5141 = vadd.f32 %v5100, %v5140
          %v5142 = vpop.f32.mrf.mxu0
          %v5143 = vadd.f32 %v5102, %v5142
          %v5144 = vpop.f32.mrf.mxu0
          %v5145 = vpop.f32.mrf.mxu0
          %5146 = vdwg.mxu0
          %5147 = vmatprep.subr.bf16.mxu0 %v4621
          %5148 = vmatpush1.bf16.msra.mxu0 %v4620
          %5149 = vmatprep.subr.bf16.mxu0 %v4619
          %5150 = vmatpush1.bf16.msra.mxu0 %v4618
          %5151 = vmatprep.subr.bf16.mxu0 %v4617
          %5152 = vmatpush1.bf16.msra.mxu0 %v4616
          %5153 = vmatprep.subr.bf16.mxu0 %v4615
          %5154 = vmatpush1.bf16.msra.mxu0 %v4614
          %5155 = vmatprep.subr.bf16.mxu0 %v4613
          %5156 = vmatpush1.bf16.msra.mxu0 %v4612
          %5157 = vmatprep.subr.bf16.mxu0 %v4611
          %5158 = vmatpush1.bf16.msra.mxu0 %v4610
          %5159 = vmatprep.subr.bf16.mxu0 %v4609
          %5160 = vmatpush1.bf16.msra.mxu0 %v4608
          %5161 = vmatprep.subr.bf16.mxu0 %v4607
          %5162 = vmatpush1.bf16.msra.mxu0 %v4606
          %5163 = vmatprep.subr.bf16.mxu0 %v4637
          %5164 = vmatpush2.bf16.msra.mxu0 %v4636
          %5165 = vmatprep.subr.bf16.mxu0 %v4635
          %5166 = vmatpush2.bf16.msra.mxu0 %v4634
          %5167 = vmatprep.subr.bf16.mxu0 %v4633
          %5168 = vmatpush2.bf16.msra.mxu0 %v4632
          %5169 = vmatprep.subr.bf16.mxu0 %v4631
          %5170 = vmatpush2.bf16.msra.mxu0 %v4630
          %5171 = vmatprep.subr.bf16.mxu0 %v4629
          %5172 = vmatpush2.bf16.msra.mxu0 %v4628
          %5173 = vmatprep.subr.bf16.mxu0 %v4627
          %5174 = vmatpush2.bf16.msra.mxu0 %v4626
          %5175 = vmatprep.subr.bf16.mxu0 %v4625
          %5176 = vmatpush2.bf16.msra.mxu0 %v4624
          %5177 = vmatprep.subr.bf16.mxu0 %v4623
          %5178 = vmatpush2.bf16.msra.mxu0 %v4622
          %5179 = vmatprep.mubr.bf16.mxu0 %v3506
          %5180 = vmatmul.mubr.bf16.gmra.mxu0 %v3505
          %v5181 = vpop.f32.mrf.mxu0
          %v5182 = vadd.f32 %v5141, %v5181
          %v5183 = vpop.f32.mrf.mxu0
          %v5184 = vadd.f32 %v5143, %v5183
          %v5185 = vpop.f32.mrf.mxu0
          %v5186 = vpop.f32.mrf.mxu0
          %5187 = vdwg.mxu0
          %5188 = vmatprep.subr.bf16.mxu0 %v4653
          %5189 = vmatpush1.bf16.msra.mxu0 %v4652
          %5190 = vmatprep.subr.bf16.mxu0 %v4651
          %5191 = vmatpush1.bf16.msra.mxu0 %v4650
          %5192 = vmatprep.subr.bf16.mxu0 %v4649
          %5193 = vmatpush1.bf16.msra.mxu0 %v4648
          %5194 = vmatprep.subr.bf16.mxu0 %v4647
          %5195 = vmatpush1.bf16.msra.mxu0 %v4646
          %5196 = vmatprep.subr.bf16.mxu0 %v4645
          %5197 = vmatpush1.bf16.msra.mxu0 %v4644
          %5198 = vmatprep.subr.bf16.mxu0 %v4643
          %5199 = vmatpush1.bf16.msra.mxu0 %v4642
          %5200 = vmatprep.subr.bf16.mxu0 %v4641
          %5201 = vmatpush1.bf16.msra.mxu0 %v4640
          %5202 = vmatprep.subr.bf16.mxu0 %v4639
          %5203 = vmatpush1.bf16.msra.mxu0 %v4638
          %5204 = vmatprep.subr.bf16.mxu0 %v4669
          %5205 = vmatpush2.bf16.msra.mxu0 %v4668
          %5206 = vmatprep.subr.bf16.mxu0 %v4667
          %5207 = vmatpush2.bf16.msra.mxu0 %v4666
          %5208 = vmatprep.subr.bf16.mxu0 %v4665
          %5209 = vmatpush2.bf16.msra.mxu0 %v4664
          %5210 = vmatprep.subr.bf16.mxu0 %v4663
          %5211 = vmatpush2.bf16.msra.mxu0 %v4662
          %5212 = vmatprep.subr.bf16.mxu0 %v4661
          %5213 = vmatpush2.bf16.msra.mxu0 %v4660
          %5214 = vmatprep.subr.bf16.mxu0 %v4659
          %5215 = vmatpush2.bf16.msra.mxu0 %v4658
          %5216 = vmatprep.subr.bf16.mxu0 %v4657
          %5217 = vmatpush2.bf16.msra.mxu0 %v4656
          %5218 = vmatprep.subr.bf16.mxu0 %v4655
          %5219 = vmatpush2.bf16.msra.mxu0 %v4654
          %5220 = vmatprep.mubr.bf16.mxu0 %v3508
          %5221 = vmatmul.mubr.bf16.gmra.mxu0 %v3507
          %v5222 = vpop.f32.mrf.mxu0
          %v5223 = vadd.f32 %v5182, %v5222
          %v5224 = vpop.f32.mrf.mxu0
          %v5225 = vadd.f32 %v5184, %v5224
          %v5226 = vpop.f32.mrf.mxu0
          %v5227 = vpop.f32.mrf.mxu0
          %5228 = vdwg.mxu0
          %5229 = vmatprep.subr.bf16.mxu0 %v4685
          %5230 = vmatpush1.bf16.msra.mxu0 %v4684
          %5231 = vmatprep.subr.bf16.mxu0 %v4683
          %5232 = vmatpush1.bf16.msra.mxu0 %v4682
          %5233 = vmatprep.subr.bf16.mxu0 %v4681
          %5234 = vmatpush1.bf16.msra.mxu0 %v4680
          %5235 = vmatprep.subr.bf16.mxu0 %v4679
          %5236 = vmatpush1.bf16.msra.mxu0 %v4678
          %5237 = vmatprep.subr.bf16.mxu0 %v4677
          %5238 = vmatpush1.bf16.msra.mxu0 %v4676
          %5239 = vmatprep.subr.bf16.mxu0 %v4675
          %5240 = vmatpush1.bf16.msra.mxu0 %v4674
          %5241 = vmatprep.subr.bf16.mxu0 %v4673
          %5242 = vmatpush1.bf16.msra.mxu0 %v4672
          %5243 = vmatprep.subr.bf16.mxu0 %v4671
          %5244 = vmatpush1.bf16.msra.mxu0 %v4670
          %5245 = vmatprep.subr.bf16.mxu0 %v4701
          %5246 = vmatpush2.bf16.msra.mxu0 %v4700
          %5247 = vmatprep.subr.bf16.mxu0 %v4699
          %5248 = vmatpush2.bf16.msra.mxu0 %v4698
          %5249 = vmatprep.subr.bf16.mxu0 %v4697
          %5250 = vmatpush2.bf16.msra.mxu0 %v4696
          %5251 = vmatprep.subr.bf16.mxu0 %v4695
          %5252 = vmatpush2.bf16.msra.mxu0 %v4694
          %5253 = vmatprep.subr.bf16.mxu0 %v4693
          %5254 = vmatpush2.bf16.msra.mxu0 %v4692
          %5255 = vmatprep.subr.bf16.mxu0 %v4691
          %5256 = vmatpush2.bf16.msra.mxu0 %v4690
          %5257 = vmatprep.subr.bf16.mxu0 %v4689
          %5258 = vmatpush2.bf16.msra.mxu0 %v4688
          %5259 = vmatprep.subr.bf16.mxu0 %v4687
          %5260 = vmatpush2.bf16.msra.mxu0 %v4686
          %5261 = vmatprep.mubr.bf16.mxu0 %v3510
          %5262 = vmatmul.mubr.bf16.gmra.mxu0 %v3509
          %v5263 = vpop.f32.mrf.mxu0
          %v5264 = vadd.f32 %v5223, %v5263
          %v5265 = vpop.f32.mrf.mxu0
          %v5266 = vadd.f32 %v5225, %v5265
          %v5267 = vpop.f32.mrf.mxu0
          %v5268 = vpop.f32.mrf.mxu0
          %5269 = vdwg.mxu0
          %5270 = vmatprep.subr.bf16.mxu0 %v4717
          %5271 = vmatpush1.bf16.msra.mxu0 %v4716
          %5272 = vmatprep.subr.bf16.mxu0 %v4715
          %5273 = vmatpush1.bf16.msra.mxu0 %v4714
          %5274 = vmatprep.subr.bf16.mxu0 %v4713
          %5275 = vmatpush1.bf16.msra.mxu0 %v4712
          %5276 = vmatprep.subr.bf16.mxu0 %v4711
          %5277 = vmatpush1.bf16.msra.mxu0 %v4710
          %5278 = vmatprep.subr.bf16.mxu0 %v4709
          %5279 = vmatpush1.bf16.msra.mxu0 %v4708
          %5280 = vmatprep.subr.bf16.mxu0 %v4707
          %5281 = vmatpush1.bf16.msra.mxu0 %v4706
          %5282 = vmatprep.subr.bf16.mxu0 %v4705
          %5283 = vmatpush1.bf16.msra.mxu0 %v4704
          %5284 = vmatprep.subr.bf16.mxu0 %v4703
          %5285 = vmatpush1.bf16.msra.mxu0 %v4702
          %5286 = vmatprep.subr.bf16.mxu0 %v4733
          %5287 = vmatpush2.bf16.msra.mxu0 %v4732
          %5288 = vmatprep.subr.bf16.mxu0 %v4731
          %5289 = vmatpush2.bf16.msra.mxu0 %v4730
          %5290 = vmatprep.subr.bf16.mxu0 %v4729
          %5291 = vmatpush2.bf16.msra.mxu0 %v4728
          %5292 = vmatprep.subr.bf16.mxu0 %v4727
          %5293 = vmatpush2.bf16.msra.mxu0 %v4726
          %5294 = vmatprep.subr.bf16.mxu0 %v4725
          %5295 = vmatpush2.bf16.msra.mxu0 %v4724
          %5296 = vmatprep.subr.bf16.mxu0 %v4723
          %5297 = vmatpush2.bf16.msra.mxu0 %v4722
          %5298 = vmatprep.subr.bf16.mxu0 %v4721
          %5299 = vmatpush2.bf16.msra.mxu0 %v4720
          %5300 = vmatprep.subr.bf16.mxu0 %v4719
          %5301 = vmatpush2.bf16.msra.mxu0 %v4718
          %5302 = vmatprep.mubr.bf16.mxu0 %v3512
          %5303 = vmatmul.mubr.bf16.gmra.mxu0 %v3511
          %v5304 = vpop.f32.mrf.mxu0
          %v5305 = vadd.f32 %v5264, %v5304
          %v5306 = vpop.f32.mrf.mxu0
          %v5307 = vadd.f32 %v5266, %v5306
          %v5308 = vpop.f32.mrf.mxu0
          %v5309 = vpop.f32.mrf.mxu0
          %5310 = vdwg.mxu0
          %5311 = vmatprep.subr.bf16.mxu0 %v4749
          %5312 = vmatpush1.bf16.msra.mxu0 %v4748
          %5313 = vmatprep.subr.bf16.mxu0 %v4747
          %5314 = vmatpush1.bf16.msra.mxu0 %v4746
          %5315 = vmatprep.subr.bf16.mxu0 %v4745
          %5316 = vmatpush1.bf16.msra.mxu0 %v4744
          %5317 = vmatprep.subr.bf16.mxu0 %v4743
          %5318 = vmatpush1.bf16.msra.mxu0 %v4742
          %5319 = vmatprep.subr.bf16.mxu0 %v4741
          %5320 = vmatpush1.bf16.msra.mxu0 %v4740
          %5321 = vmatprep.subr.bf16.mxu0 %v4739
          %5322 = vmatpush1.bf16.msra.mxu0 %v4738
          %5323 = vmatprep.subr.bf16.mxu0 %v4737
          %5324 = vmatpush1.bf16.msra.mxu0 %v4736
          %5325 = vmatprep.subr.bf16.mxu0 %v4735
          %5326 = vmatpush1.bf16.msra.mxu0 %v4734
          %5327 = vmatprep.subr.bf16.mxu0 %v4765
          %5328 = vmatpush2.bf16.msra.mxu0 %v4764
          %5329 = vmatprep.subr.bf16.mxu0 %v4763
          %5330 = vmatpush2.bf16.msra.mxu0 %v4762
          %5331 = vmatprep.subr.bf16.mxu0 %v4761
          %5332 = vmatpush2.bf16.msra.mxu0 %v4760
          %5333 = vmatprep.subr.bf16.mxu0 %v4759
          %5334 = vmatpush2.bf16.msra.mxu0 %v4758
          %5335 = vmatprep.subr.bf16.mxu0 %v4757
          %5336 = vmatpush2.bf16.msra.mxu0 %v4756
          %5337 = vmatprep.subr.bf16.mxu0 %v4755
          %5338 = vmatpush2.bf16.msra.mxu0 %v4754
          %5339 = vmatprep.subr.bf16.mxu0 %v4753
          %5340 = vmatpush2.bf16.msra.mxu0 %v4752
          %5341 = vmatprep.subr.bf16.mxu0 %v4751
          %5342 = vmatpush2.bf16.msra.mxu0 %v4750
          %5343 = vmatprep.mubr.bf16.mxu0 %v3514
          %5344 = vmatmul.mubr.bf16.gmra.mxu0 %v3513
          %v5345 = vpop.f32.mrf.mxu0
          %v5346 = vadd.f32 %v5305, %v5345
          %v5347 = vpop.f32.mrf.mxu0
          %v5348 = vadd.f32 %v5307, %v5347
          %v5349 = vpop.f32.mrf.mxu0
          %v5350 = vpop.f32.mrf.mxu0
          %5351 = vdwg.mxu0
          %5352 = vmatprep.subr.bf16.mxu0 %v4781
          %5353 = vmatpush1.bf16.msra.mxu0 %v4780
          %5354 = vmatprep.subr.bf16.mxu0 %v4779
          %5355 = vmatpush1.bf16.msra.mxu0 %v4778
          %5356 = vmatprep.subr.bf16.mxu0 %v4777
          %5357 = vmatpush1.bf16.msra.mxu0 %v4776
          %5358 = vmatprep.subr.bf16.mxu0 %v4775
          %5359 = vmatpush1.bf16.msra.mxu0 %v4774
          %5360 = vmatprep.subr.bf16.mxu0 %v4773
          %5361 = vmatpush1.bf16.msra.mxu0 %v4772
          %5362 = vmatprep.subr.bf16.mxu0 %v4771
          %5363 = vmatpush1.bf16.msra.mxu0 %v4770
          %5364 = vmatprep.subr.bf16.mxu0 %v4769
          %5365 = vmatpush1.bf16.msra.mxu0 %v4768
          %5366 = vmatprep.subr.bf16.mxu0 %v4767
          %5367 = vmatpush1.bf16.msra.mxu0 %v4766
          %5368 = vmatprep.subr.bf16.mxu0 %v4797
          %5369 = vmatpush2.bf16.msra.mxu0 %v4796
          %5370 = vmatprep.subr.bf16.mxu0 %v4795
          %5371 = vmatpush2.bf16.msra.mxu0 %v4794
          %5372 = vmatprep.subr.bf16.mxu0 %v4793
          %5373 = vmatpush2.bf16.msra.mxu0 %v4792
          %5374 = vmatprep.subr.bf16.mxu0 %v4791
          %5375 = vmatpush2.bf16.msra.mxu0 %v4790
          %5376 = vmatprep.subr.bf16.mxu0 %v4789
          %5377 = vmatpush2.bf16.msra.mxu0 %v4788
          %5378 = vmatprep.subr.bf16.mxu0 %v4787
          %5379 = vmatpush2.bf16.msra.mxu0 %v4786
          %5380 = vmatprep.subr.bf16.mxu0 %v4785
          %5381 = vmatpush2.bf16.msra.mxu0 %v4784
          %5382 = vmatprep.subr.bf16.mxu0 %v4783
          %5383 = vmatpush2.bf16.msra.mxu0 %v4782
          %5384 = vmatprep.mubr.bf16.mxu0 %v3516
          %5385 = vmatmul.mubr.bf16.gmra.mxu0 %v3515
          %v5386 = vpop.f32.mrf.mxu0
          %v5387 = vadd.f32 %v5346, %v5386
          %v5388 = vpop.f32.mrf.mxu0
          %v5389 = vadd.f32 %v5348, %v5388
          %v5390 = vpop.f32.mrf.mxu0
          %v5391 = vpop.f32.mrf.mxu0
          %5392 = vdwg.mxu0
          %v5395 = vcombine.low %v5387, %v5389
          %v5397 = vunpack.c.l.s4 1966171168
          %v5398 = vunpack.c.0.s8 %v5397
          %v5399 = vlaneseq
          %v5400 = vshrl.u32 %v5399, 7
          %v5401 = vsub.s32 %v5398, %v5400
          %v5402 = vrot.slane %v5395, %v5401
          %v5404 = vunpack.c.l.s4 1966171168
          %v5405 = vunpack.c.0.s8 %v5404
          %v5406 = vlaneseq
          %v5407 = vshrl.u32 %v5406, 7
          %v5408 = vsub.s32 %v5405, %v5407
          %v5409 = vrot.slane %v5402, %v5408
          %v5411 = vlaneseq
          %vm5412 = vcmp.ge.s32.totalorder %v5411, 0
          %vm5413 = vcmp.lt.s32.totalorder %v5411, 256
          %vm5414 = vmand %vm5412, %vm5413
          %5415 = vst.msk [vmem:[%s322] sm:$0x3] %vm5414, %v5409
        $region64: #{tpu_custom_call.1} parent=47 // pred_fallthru
          _
        %s5416 = sand.u32 %s197, 1
        %s5417 = scalar_lea.sflag [#allocation5], %s5416
        %s5418 = sand.u32 %s197, 1
        %s5419 = smul.addr %s5418, 2
        %s5420 = scalar_lea.vmem [#allocation8], %s5419
        // Predicated region
        $region65: #{tpu_custom_call.1} parent=47 // pred_check
          %p5421 = pneg %p207
        $region66: #{tpu_custom_call.1} parent=47 // pred_check_branch
          %5423 = sbr.rel (%p5421) target = $region68
        $region67: #{tpu_custom_call.1} parent=47 // pred_region
          %s5425 = ssub.s32 32, 32
          %5426 = vsyncadd %s5417, %s5425
          %s5427 = smul.addr %s27, 2
          %s5428 = smul.addr %s5427, 16
          %s5429 = scalar_lea.hbm %s7, %s5428
          %s5431 = sshll.u32 %s5420, 4
          %s5432 = int_to_ptr.vmem [resolvable:$true] %s5431
          %5434 = dma.vmem_to_hbm [thread:$0]  %s5432, 32, %s5429, %s5417
        $region68: #{tpu_custom_call.1} parent=47 // pred_fallthru
          _
      $region48: #{tpu_custom_call.1} parent=5 // pred_fallthru
        _
      %p5435 = scmp.le.s32.totalorder 2, %s18
      // Predicated region
      $region69: #{tpu_custom_call.1} parent=5 // pred_check
        %p5436 = pneg %p5435
      $region70: #{tpu_custom_call.1} parent=5 // pred_check_branch
        %5438 = sbr.rel (%p5436) target = $region72
      $region71: #{tpu_custom_call.1} parent=5 // pred_region
        %s5439 = ssub.s32 %s18, 2
        // Predicated region
        $region73: #{tpu_custom_call.1} parent=71 // pred_check
          %p5440 = pneg %p213
        $region74: #{tpu_custom_call.1} parent=71 // pred_check_branch
          %5442 = sbr.rel (%p5440) target = $region76
        $region75: #{tpu_custom_call.1} parent=71 // pred_region
          %s5443 = sand.u32 %s198, 1
          %s5444 = scalar_lea.sflag [#allocation5], %s5443
          %s5445 = sand.u32 %s198, 1
          %s5446 = smul.addr %s5445, 2
          %s5447 = scalar_lea.vmem [#allocation8], %s5446
          %5448 = dma.done %s5444, 32
        $region76: #{tpu_custom_call.1} parent=71 // pred_fallthru
          _
      $region72: #{tpu_custom_call.1} parent=5 // pred_fallthru
        _
    $region6: #{tpu_custom_call.1} parent=1 // loop_footer
      %s22 = sadd.s32 1, %s18
    $region7: #{tpu_custom_call.1} parent=1 // loop_footer_branch
      %17 = sbr.rel target = $region3
    $region8: #{tpu_custom_call.1} parent=1 // loop_exit
      _
    %5449 = vsyncpa [#allocation4], 1
    %s5450 = scalar_lea.sflag [#allocation4], 1
    %5451 = vsyncpa %s5450, 1
    %5452 = vsyncpa [#allocation7], 1
    %5453 = vsyncpa [#allocation5], 1
    %s5454 = scalar_lea.sflag [#allocation5], 1
    %5455 = vsyncpa %s5454, 1

</llo_original>
